<compile_context>
chip_gen: v7x
topology: tpu7x:2x2x1
jax: 0.10.0
libtpu: 0.0.40
codegen_flags: <defaults>
</compile_context>

<pallas_src>
import functools

import jax
import jax.numpy as jnp
from jax import lax
from jax.experimental import pallas as pl
from jax.experimental.pallas import tpu as pltpu


def _lstsq_normal_kernel(xyz_ref, out_ref, shifted_ref, *, tile_rows, W, size,
                         gamma, eps):
    """Per-(image, row-tile) least-squares surface-normal kernel.

    xyz_ref     : (1, 1, 3, tile_rows+size-1, W+size-1) replicate-padded points (VMEM)
    out_ref     : (1, 3, tile_rows, W) output normals (VMEM)
    shifted_ref : (3, tile_rows+size-1, W) scratch holding the lane-shifted slabs
    """
    half = size // 2
    TR = tile_rows

    # Patch-center z and its exact reciprocal, hoisted out of the 81-offset loop.
    # Exact divide (not approx) so the z-gate boundary and the zc==0 -> NaN ->
    # "keep" behavior match the torch reference.
    zc = xyz_ref[0, 0, 2, half:half + TR, half:half + W]          # (TR, W)
    inv_zc = 1.0 / zc

    zero = jnp.zeros((TR, W), jnp.float32)
    acc = (zero,) * 9   # axx, ayy, azz, axy, axz, ayz, bx, by, bz

    def dy_body(dy, carry):
        axx, ayy, azz, axy, axz, ayz, bx, by, bz = carry
        px = shifted_ref[0, pl.ds(dy, TR), :]
        py = shifted_ref[1, pl.ds(dy, TR), :]
        pz = shifted_ref[2, pl.ds(dy, TR), :]
        # Relative z-difference w.r.t. the patch center. NaN (pz==0 and zc==0)
        # compares False, so the point is KEPT, matching torch.
        diff = (pz - zc) * inv_zc
        drop = jnp.abs(diff) > gamma
        px = jnp.where(drop, 0.0, px)
        py = jnp.where(drop, 0.0, py)
        pz = jnp.where(drop, 0.0, pz)
        return (axx + px * px, ayy + py * py, azz + pz * pz,
                axy + px * py, axz + px * pz, ayz + py * pz,
                bx + px, by + py, bz + pz)

    # Outer static loop over lane offsets: each lane shift is done ONCE per
    # (dx, channel) directly from the Ref; the hot dy loop below touches only
    # sublane-offset windows of the VMEM scratch.
    for dx in range(size):
        for c in range(3):
            shifted_ref[c, :, :] = xyz_ref[0, 0, c, :, dx:dx + W]
        acc = lax.fori_loop(0, size, dy_body, acc, unroll=True)

    axx, ayy, azz, axy, axz, ayz, bx, by, bz = acc

    # det(A); torch replaces A with I where det < eps (intentionally NOT
    # abs(det) — keep it to match the reference module).
    det = (axx * (ayy * azz - ayz * ayz)
           - axy * (axy * azz - ayz * axz)
           + axz * (axy * ayz - ayy * axz))
    degen = det < eps
    axx = jnp.where(degen, 1.0, axx)
    ayy = jnp.where(degen, 1.0, ayy)
    azz = jnp.where(degen, 1.0, azz)
    axy = jnp.where(degen, 0.0, axy)
    axz = jnp.where(degen, 0.0, axz)
    ayz = jnp.where(degen, 0.0, ayz)
    det = jnp.where(degen, 1.0, det)

    # Closed-form inverse of the symmetric 3x3 matrix via adjugate / det.
    inv_det = 1.0 / det
    i00 = (ayy * azz - ayz * ayz) * inv_det
    i01 = (axz * ayz - axy * azz) * inv_det
    i02 = (axy * ayz - axz * ayy) * inv_det
    i11 = (axx * azz - axz * axz) * inv_det
    i12 = (axy * axz - axx * ayz) * inv_det
    i22 = (axx * ayy - axy * axy) * inv_det

    # n = A^{-1} (A^T @ ones)
    nx = i00 * bx + i01 * by + i02 * bz
    ny = i01 * bx + i11 * by + i12 * bz
    nz = i02 * bx + i12 * by + i22 * bz

    # Normalize with one EUP rsqrt + 3 multiplies (instead of sqrt + 3 divides).
    # NaN handling (0 * inf = NaN etc.) still caught by the isnan masks below.
    inv_nrm = lax.rsqrt(nx * nx + ny * ny + nz * nz)
    nx = nx * inv_nrm
    ny = ny * inv_nrm
    nz = nz * inv_nrm
    nx = jnp.where(jnp.isnan(nx), 0.0, nx)
    ny = jnp.where(jnp.isnan(ny), 0.0, ny)
    nz = jnp.where(jnp.isnan(nz), 0.0, nz)

    out_ref[0, 0] = -nx
    out_ref[0, 1] = -ny
    out_ref[0, 2] = -nz


def _pick_tile_rows(S, W):
    """Row-tile height: whole image if small, else bound the VMEM working set."""
    if S * W <= 128 * 128:
        return S
    target = max(8, (32 * 1024) // W)
    for t in (128, 64, 32, 16, 8):
        if t <= target and S % t == 0:
            return t
    return S   # no clean divisor -> process the full image per grid step


def least_square_normal_regress(xyz, *, size=9, gamma=0.15, eps=1e-5):
    """xyz: (B, 3, S, S) point cloud -> (B, 3, S, S) surface normals."""
    B, C, S, W = xyz.shape
    assert C == 3 and S == W, "module assumes square images and 3-channel xyz"
    half = size // 2

    tile_rows = _pick_tile_rows(S, W)
    num_tiles = S // tile_rows
    tr_h = tile_rows + 2 * half          # rows per tile incl. vertical halo
    Wp = W + 2 * half                    # padded width

    # Replicate padding (matches F.pad mode='replicate').
    xyz_pad = jnp.pad(xyz, ((0, 0), (0, 0), (half, half), (half, half)), mode="edge")

    # Overlapping row tiles so the BlockSpec pipeline supplies the vertical halo
    # (duplicates size-1 rows per tile; cheap HBM-side glue, keeps auto double
    # buffering).
    if num_tiles == 1:
        xyz_tiles = xyz_pad[:, None]                                   # (B, 1, 3, S+2h, Wp)
    else:
        row_idx = (jnp.arange(num_tiles)[:, None] * tile_rows
                   + jnp.arange(tr_h)[None, :])                        # (T, tr_h)
        xyz_tiles = xyz_pad[:, :, row_idx, :]                          # (B, 3, T, tr_h, Wp)
        xyz_tiles = jnp.transpose(xyz_tiles, (0, 2, 1, 3, 4))          # (B, T, 3, tr_h, Wp)

    kernel = functools.partial(_lstsq_normal_kernel, tile_rows=tile_rows, W=W,
                               size=size, gamma=gamma, eps=eps)

    # TODO(synk): the horizontal halo is still wrapper-padded (input lane dim is
    # W + size - 1); handling it in-kernel with pltpu.roll + edge fix would keep
    # the input lane-dense for large W.
    # TODO(synk): for S < 128 the 128-lane vreg is underfilled; repacking rows /
    # several images into the lane dim would recover VPU throughput for tiny images.
    return pl.pallas_call(
        kernel,
        out_shape=jax.ShapeDtypeStruct((B, 3, S, W), jnp.float32),
        grid_spec=pltpu.PrefetchScalarGridSpec(
            num_scalar_prefetch=0,
            grid=(B, num_tiles),
            in_specs=[pl.BlockSpec((1, 1, 3, tr_h, Wp),
                                   lambda b, t: (b, t, 0, 0, 0))],
            out_specs=pl.BlockSpec((1, 3, tile_rows, W),
                                   lambda b, t: (b, 0, t, 0)),
            scratch_shapes=[pltpu.VMEM((3, tr_h, W), jnp.float32)],
        ),
        compiler_params=pltpu.CompilerParams(
            dimension_semantics=("parallel", "parallel"),
            vmem_limit_bytes=32 * 1024 * 1024,
        ),
    )(xyz_tiles)


def reproject_depth(depth, field_of_view, max_depth=1.0):
    """depth: (B, 1, H, W) -> point cloud (B, 3, H, W). Matches torch semantics (H == W)."""
    B, _, H, W = depth.shape
    cx = (H - 1) / 2.0
    cy = (W - 1) / 2.0
    f = 1.0 / (2.0 * jnp.tan(field_of_view.astype(jnp.float32) / 2.0))  # (B,)
    fx = H * f
    fy = W * f
    # np.meshgrid(arange(H), arange(W)) with 'xy' indexing: c[i,j]=j, r[i,j]=i.
    c = jnp.broadcast_to(jnp.arange(H, dtype=jnp.float32)[None, :], (W, H))
    r = jnp.broadcast_to(jnp.arange(W, dtype=jnp.float32)[:, None], (W, H))
    z = depth[:, 0].astype(jnp.float32) * max_depth                     # (B, H, W)
    x = z * ((c - cx)[None] / fx[:, None, None])
    y = z * ((r - cy)[None] / fy[:, None, None])
    return jnp.stack([x, y, z], axis=1)                                 # (B, 3, H, W)


class LeastSquareModule:
    """JAX/Pallas re-implementation of the PyTorch LeastSquareModule (no learned params)."""

    def __init__(self, gamma=0.15, beta=9):
        self.patch_size = beta
        self.z_depth_thresh = gamma
        # TODO(synk): torch caches the meshgrid (cached_cr); here it is recomputed
        # in cheap JAX glue every call, which is semantically identical.

    def forward(self, x_depth, field_of_view_rads):
        xyz = reproject_depth(x_depth, field_of_view_rads, max_depth=1.0)
        return least_square_normal_regress(
            xyz, size=self.patch_size, gamma=self.z_depth_thresh)

    __call__ = forward


if __name__ == "__main__":
    key = jax.random.PRNGKey(0)
    k_depth, _ = jax.random.split(key)

    B, S = 2, 16
    x_depth = jax.random.uniform(k_depth, (B, 1, S, S), dtype=jnp.float32,
                                 minval=0.2, maxval=1.0)
    field_of_view_rads = jnp.full((B,), jnp.pi / 3.0, dtype=jnp.float32)

    module = LeastSquareModule(gamma=0.15, beta=9)
    out = module(x_depth, field_of_view_rads)
    out = jax.block_until_ready(out)

    assert out.shape == (B, 3, S, S), out.shape
    assert out.dtype == jnp.float32
    assert bool(jnp.all(jnp.isfinite(out)))
    print("KERNEL_OK")
</pallas_src>

<mosaic_0001>
module attributes {stable_mosaic.version = 11 : i64} {
  func.func @_lstsq_normal_kernel(%arg0: i32, %arg1: i32, %arg2: memref<1x1x3x24x24xf32, #tpu.memory_space<vmem>>, %arg3: memref<1x3x16x16xf32, #tpu.memory_space<vmem>>, %arg4: memref<3x24x16xf32, #tpu.memory_space<vmem>>) attributes {dimension_semantics = [#tpu.dimension_semantics<parallel>, #tpu.dimension_semantics<parallel>], iteration_bounds = array<i64: 2, 1>, scalar_prefetch = 0 : i64, scratch_operands = 1 : i64, tpu.core_type = #tpu.core_type<tc>, window_params = [{transform_indices = @transform_0, window_bounds = array<i64: 1, 1, 3, 24, 24>}, {transform_indices = @transform_1, window_bounds = array<i64: 1, 3, 16, 16>}]} {
    %c0 = arith.constant 0 : index
    %c0_0 = arith.constant 0 : index
    %c2 = arith.constant 2 : index
    %c4 = arith.constant 4 : index
    %c4_1 = arith.constant 4 : index
    %0 = vector.load %arg2[%c0, %c0_0, %c2, %c4, %c4_1] : memref<1x1x3x24x24xf32, #tpu.memory_space<vmem>>, vector<1x1x1x16x16xf32>
    %1 = vector.shape_cast %0 : vector<1x1x1x16x16xf32> to vector<16x16xf32>
    %cst = arith.constant 1.000000e+00 : f32
    %2 = vector.broadcast %cst : f32 to vector<16x16xf32>
    %3 = arith.divf %2, %1 : vector<16x16xf32>
    %cst_2 = arith.constant 0.000000e+00 : f32
    %4 = vector.broadcast %cst_2 : f32 to vector<16x16xf32>
    %c0_3 = arith.constant 0 : index
    %c0_4 = arith.constant 0 : index
    %c0_5 = arith.constant 0 : index
    %c0_6 = arith.constant 0 : index
    %c0_7 = arith.constant 0 : index
    %5 = vector.load %arg2[%c0_3, %c0_4, %c0_5, %c0_6, %c0_7] : memref<1x1x3x24x24xf32, #tpu.memory_space<vmem>>, vector<1x1x1x24x16xf32>
    %6 = vector.shape_cast %5 : vector<1x1x1x24x16xf32> to vector<24x16xf32>
    %c0_8 = arith.constant 0 : index
    %c0_9 = arith.constant 0 : index
    %c0_10 = arith.constant 0 : index
    %7 = vector.load %arg4[%c0_8, %c0_9, %c0_10] : memref<3x24x16xf32, #tpu.memory_space<vmem>>, vector<1x24x16xf32>
    %8 = vector.shape_cast %7 : vector<1x24x16xf32> to vector<24x16xf32>
    %9 = vector.shape_cast %6 : vector<24x16xf32> to vector<1x24x16xf32>
    tpu.vector_store %arg4[%c0_8, %c0_9, %c0_10], %9 {strides = array<i32>} : memref<3x24x16xf32, #tpu.memory_space<vmem>>, vector<1x24x16xf32>,
    %c0_11 = arith.constant 0 : index
    %c0_12 = arith.constant 0 : index
    %c1 = arith.constant 1 : index
    %c0_13 = arith.constant 0 : index
    %c0_14 = arith.constant 0 : index
    %10 = vector.load %arg2[%c0_11, %c0_12, %c1, %c0_13, %c0_14] : memref<1x1x3x24x24xf32, #tpu.memory_space<vmem>>, vector<1x1x1x24x16xf32>
    %11 = vector.shape_cast %10 : vector<1x1x1x24x16xf32> to vector<24x16xf32>
    %c1_15 = arith.constant 1 : index
    %c0_16 = arith.constant 0 : index
    %c0_17 = arith.constant 0 : index
    %12 = vector.load %arg4[%c1_15, %c0_16, %c0_17] : memref<3x24x16xf32, #tpu.memory_space<vmem>>, vector<1x24x16xf32>
    %13 = vector.shape_cast %12 : vector<1x24x16xf32> to vector<24x16xf32>
    %14 = vector.shape_cast %11 : vector<24x16xf32> to vector<1x24x16xf32>
    tpu.vector_store %arg4[%c1_15, %c0_16, %c0_17], %14 {strides = array<i32>} : memref<3x24x16xf32, #tpu.memory_space<vmem>>, vector<1x24x16xf32>,
    %c0_18 = arith.constant 0 : index
    %c0_19 = arith.constant 0 : index
    %c2_20 = arith.constant 2 : index
    %c0_21 = arith.constant 0 : index
    %c0_22 = arith.constant 0 : index
    %15 = vector.load %arg2[%c0_18, %c0_19, %c2_20, %c0_21, %c0_22] : memref<1x1x3x24x24xf32, #tpu.memory_space<vmem>>, vector<1x1x1x24x16xf32>
    %16 = vector.shape_cast %15 : vector<1x1x1x24x16xf32> to vector<24x16xf32>
    %c2_23 = arith.constant 2 : index
    %c0_24 = arith.constant 0 : index
    %c0_25 = arith.constant 0 : index
    %17 = vector.load %arg4[%c2_23, %c0_24, %c0_25] : memref<3x24x16xf32, #tpu.memory_space<vmem>>, vector<1x24x16xf32>
    %18 = vector.shape_cast %17 : vector<1x24x16xf32> to vector<24x16xf32>
    %19 = vector.shape_cast %16 : vector<24x16xf32> to vector<1x24x16xf32>
    tpu.vector_store %arg4[%c2_23, %c0_24, %c0_25], %19 {strides = array<i32>} : memref<3x24x16xf32, #tpu.memory_space<vmem>>, vector<1x24x16xf32>,
    %c0_i32 = arith.constant 0 : i32
    %c0_26 = arith.constant 0 : index
    %20 = arith.index_cast %c0_i32 : i32 to index
    %c0_27 = arith.constant 0 : index
    %21 = vector.load %arg4[%c0_26, %20, %c0_27] : memref<3x24x16xf32, #tpu.memory_space<vmem>>, vector<1x16x16xf32>
    %22 = vector.shape_cast %21 : vector<1x16x16xf32> to vector<16x16xf32>
    %c1_28 = arith.constant 1 : index
    %23 = arith.index_cast %c0_i32 : i32 to index
    %c0_29 = arith.constant 0 : index
    %24 = vector.load %arg4[%c1_28, %23, %c0_29] : memref<3x24x16xf32, #tpu.memory_space<vmem>>, vector<1x16x16xf32>
    %25 = vector.shape_cast %24 : vector<1x16x16xf32> to vector<16x16xf32>
    %c2_30 = arith.constant 2 : index
    %26 = arith.index_cast %c0_i32 : i32 to index
    %c0_31 = arith.constant 0 : index
    %27 = vector.load %arg4[%c2_30, %26, %c0_31] : memref<3x24x16xf32, #tpu.memory_space<vmem>>, vector<1x16x16xf32>
    %28 = vector.shape_cast %27 : vector<1x16x16xf32> to vector<16x16xf32>
    %29 = arith.subf %28, %1 : vector<16x16xf32>
    %30 = arith.mulf %29, %3 : vector<16x16xf32>
    %31 = math.absf %30 : vector<16x16xf32>
    %cst_32 = arith.constant 1.500000e-01 : f32
    %32 = vector.broadcast %cst_32 : f32 to vector<16x16xf32>
    %33 = arith.cmpf ogt, %31, %32 : vector<16x16xf32>
    %cst_33 = arith.constant 0.000000e+00 : f32
    %34 = vector.broadcast %cst_33 : f32 to vector<16x16xf32>
    %35 = arith.select %33, %34, %22 : vector<16x16xi1>, vector<16x16xf32>
    %cst_34 = arith.constant 0.000000e+00 : f32
    %36 = vector.broadcast %cst_34 : f32 to vector<16x16xf32>
    %37 = arith.select %33, %36, %25 : vector<16x16xi1>, vector<16x16xf32>
    %cst_35 = arith.constant 0.000000e+00 : f32
    %38 = vector.broadcast %cst_35 : f32 to vector<16x16xf32>
    %39 = arith.select %33, %38, %28 : vector<16x16xi1>, vector<16x16xf32>
    %40 = arith.mulf %35, %35 : vector<16x16xf32>
    %41 = arith.addf %4, %40 : vector<16x16xf32>
    %42 = arith.mulf %37, %37 : vector<16x16xf32>
    %43 = arith.addf %4, %42 : vector<16x16xf32>
    %44 = arith.mulf %39, %39 : vector<16x16xf32>
    %45 = arith.addf %4, %44 : vector<16x16xf32>
    %46 = arith.mulf %35, %37 : vector<16x16xf32>
    %47 = arith.addf %4, %46 : vector<16x16xf32>
    %48 = arith.mulf %35, %39 : vector<16x16xf32>
    %49 = arith.addf %4, %48 : vector<16x16xf32>
    %50 = arith.mulf %37, %39 : vector<16x16xf32>
    %51 = arith.addf %4, %50 : vector<16x16xf32>
    %52 = arith.addf %4, %35 : vector<16x16xf32>
    %53 = arith.addf %4, %37 : vector<16x16xf32>
    %54 = arith.addf %4, %39 : vector<16x16xf32>
    %c1_i32 = arith.constant 1 : i32
    %c0_36 = arith.constant 0 : index
    %55 = arith.index_cast %c1_i32 : i32 to index
    %c0_37 = arith.constant 0 : index
    %56 = vector.load %arg4[%c0_36, %55, %c0_37] : memref<3x24x16xf32, #tpu.memory_space<vmem>>, vector<1x16x16xf32>
    %57 = vector.shape_cast %56 : vector<1x16x16xf32> to vector<16x16xf32>
    %c1_38 = arith.constant 1 : index
    %58 = arith.index_cast %c1_i32 : i32 to index
    %c0_39 = arith.constant 0 : index
    %59 = vector.load %arg4[%c1_38, %58, %c0_39] : memref<3x24x16xf32, #tpu.memory_space<vmem>>, vector<1x16x16xf32>
    %60 = vector.shape_cast %59 : vector<1x16x16xf32> to vector<16x16xf32>
    %c2_40 = arith.constant 2 : index
    %61 = arith.index_cast %c1_i32 : i32 to index
    %c0_41 = arith.constant 0 : index
    %62 = vector.load %arg4[%c2_40, %61, %c0_41] : memref<3x24x16xf32, #tpu.memory_space<vmem>>, vector<1x16x16xf32>
    %63 = vector.shape_cast %62 : vector<1x16x16xf32> to vector<16x16xf32>
    %64 = arith.subf %63, %1 : vector<16x16xf32>
    %65 = arith.mulf %64, %3 : vector<16x16xf32>
    %66 = math.absf %65 : vector<16x16xf32>
    %cst_42 = arith.constant 1.500000e-01 : f32
    %67 = vector.broadcast %cst_42 : f32 to vector<16x16xf32>
    %68 = arith.cmpf ogt, %66, %67 : vector<16x16xf32>
    %cst_43 = arith.constant 0.000000e+00 : f32
    %69 = vector.broadcast %cst_43 : f32 to vector<16x16xf32>
    %70 = arith.select %68, %69, %57 : vector<16x16xi1>, vector<16x16xf32>
    %cst_44 = arith.constant 0.000000e+00 : f32
    %71 = vector.broadcast %cst_44 : f32 to vector<16x16xf32>
    %72 = arith.select %68, %71, %60 : vector<16x16xi1>, vector<16x16xf32>
    %cst_45 = arith.constant 0.000000e+00 : f32
    %73 = vector.broadcast %cst_45 : f32 to vector<16x16xf32>
    %74 = arith.select %68, %73, %63 : vector<16x16xi1>, vector<16x16xf32>
    %75 = arith.mulf %70, %70 : vector<16x16xf32>
    %76 = arith.addf %41, %75 : vector<16x16xf32>
    %77 = arith.mulf %72, %72 : vector<16x16xf32>
    %78 = arith.addf %43, %77 : vector<16x16xf32>
    %79 = arith.mulf %74, %74 : vector<16x16xf32>
    %80 = arith.addf %45, %79 : vector<16x16xf32>
    %81 = arith.mulf %70, %72 : vector<16x16xf32>
    %82 = arith.addf %47, %81 : vector<16x16xf32>
    %83 = arith.mulf %70, %74 : vector<16x16xf32>
    %84 = arith.addf %49, %83 : vector<16x16xf32>
    %85 = arith.mulf %72, %74 : vector<16x16xf32>
    %86 = arith.addf %51, %85 : vector<16x16xf32>
    %87 = arith.addf %52, %70 : vector<16x16xf32>
    %88 = arith.addf %53, %72 : vector<16x16xf32>
    %89 = arith.addf %54, %74 : vector<16x16xf32>
    %c2_i32 = arith.constant 2 : i32
    %c0_46 = arith.constant 0 : index
    %90 = arith.index_cast %c2_i32 : i32 to index
    %c0_47 = arith.constant 0 : index
    %91 = vector.load %arg4[%c0_46, %90, %c0_47] : memref<3x24x16xf32, #tpu.memory_space<vmem>>, vector<1x16x16xf32>
    %92 = vector.shape_cast %91 : vector<1x16x16xf32> to vector<16x16xf32>
    %c1_48 = arith.constant 1 : index
    %93 = arith.index_cast %c2_i32 : i32 to index
    %c0_49 = arith.constant 0 : index
    %94 = vector.load %arg4[%c1_48, %93, %c0_49] : memref<3x24x16xf32, #tpu.memory_space<vmem>>, vector<1x16x16xf32>
    %95 = vector.shape_cast %94 : vector<1x16x16xf32> to vector<16x16xf32>
    %c2_50 = arith.constant 2 : index
    %96 = arith.index_cast %c2_i32 : i32 to index
    %c0_51 = arith.constant 0 : index
    %97 = vector.load %arg4[%c2_50, %96, %c0_51] : memref<3x24x16xf32, #tpu.memory_space<vmem>>, vector<1x16x16xf32>
    %98 = vector.shape_cast %97 : vector<1x16x16xf32> to vector<16x16xf32>
    %99 = arith.subf %98, %1 : vector<16x16xf32>
    %100 = arith.mulf %99, %3 : vector<16x16xf32>
    %101 = math.absf %100 : vector<16x16xf32>
    %cst_52 = arith.constant 1.500000e-01 : f32
    %102 = vector.broadcast %cst_52 : f32 to vector<16x16xf32>
    %103 = arith.cmpf ogt, %101, %102 : vector<16x16xf32>
    %cst_53 = arith.constant 0.000000e+00 : f32
    %104 = vector.broadcast %cst_53 : f32 to vector<16x16xf32>
    %105 = arith.select %103, %104, %92 : vector<16x16xi1>, vector<16x16xf32>
    %cst_54 = arith.constant 0.000000e+00 : f32
    %106 = vector.broadcast %cst_54 : f32 to vector<16x16xf32>
    %107 = arith.select %103, %106, %95 : vector<16x16xi1>, vector<16x16xf32>
    %cst_55 = arith.constant 0.000000e+00 : f32
    %108 = vector.broadcast %cst_55 : f32 to vector<16x16xf32>
    %109 = arith.select %103, %108, %98 : vector<16x16xi1>, vector<16x16xf32>
    %110 = arith.mulf %105, %105 : vector<16x16xf32>
    %111 = arith.addf %76, %110 : vector<16x16xf32>
    %112 = arith.mulf %107, %107 : vector<16x16xf32>
    %113 = arith.addf %78, %112 : vector<16x16xf32>
    %114 = arith.mulf %109, %109 : vector<16x16xf32>
    %115 = arith.addf %80, %114 : vector<16x16xf32>
    %116 = arith.mulf %105, %107 : vector<16x16xf32>
    %117 = arith.addf %82, %116 : vector<16x16xf32>
    %118 = arith.mulf %105, %109 : vector<16x16xf32>
    %119 = arith.addf %84, %118 : vector<16x16xf32>
    %120 = arith.mulf %107, %109 : vector<16x16xf32>
    %121 = arith.addf %86, %120 : vector<16x16xf32>
    %122 = arith.addf %87, %105 : vector<16x16xf32>
    %123 = arith.addf %88, %107 : vector<16x16xf32>
    %124 = arith.addf %89, %109 : vector<16x16xf32>
    %c3_i32 = arith.constant 3 : i32
    %c0_56 = arith.constant 0 : index
    %125 = arith.index_cast %c3_i32 : i32 to index
    %c0_57 = arith.constant 0 : index
    %126 = vector.load %arg4[%c0_56, %125, %c0_57] : memref<3x24x16xf32, #tpu.memory_space<vmem>>, vector<1x16x16xf32>
    %127 = vector.shape_cast %126 : vector<1x16x16xf32> to vector<16x16xf32>
    %c1_58 = arith.constant 1 : index
    %128 = arith.index_cast %c3_i32 : i32 to index
    %c0_59 = arith.constant 0 : index
    %129 = vector.load %arg4[%c1_58, %128, %c0_59] : memref<3x24x16xf32, #tpu.memory_space<vmem>>, vector<1x16x16xf32>
    %130 = vector.shape_cast %129 : vector<1x16x16xf32> to vector<16x16xf32>
    %c2_60 = arith.constant 2 : index
    %131 = arith.index_cast %c3_i32 : i32 to index
    %c0_61 = arith.constant 0 : index
    %132 = vector.load %arg4[%c2_60, %131, %c0_61] : memref<3x24x16xf32, #tpu.memory_space<vmem>>, vector<1x16x16xf32>
    %133 = vector.shape_cast %132 : vector<1x16x16xf32> to vector<16x16xf32>
    %134 = arith.subf %133, %1 : vector<16x16xf32>
    %135 = arith.mulf %134, %3 : vector<16x16xf32>
    %136 = math.absf %135 : vector<16x16xf32>
    %cst_62 = arith.constant 1.500000e-01 : f32
    %137 = vector.broadcast %cst_62 : f32 to vector<16x16xf32>
    %138 = arith.cmpf ogt, %136, %137 : vector<16x16xf32>
    %cst_63 = arith.constant 0.000000e+00 : f32
    %139 = vector.broadcast %cst_63 : f32 to vector<16x16xf32>
    %140 = arith.select %138, %139, %127 : vector<16x16xi1>, vector<16x16xf32>
    %cst_64 = arith.constant 0.000000e+00 : f32
    %141 = vector.broadcast %cst_64 : f32 to vector<16x16xf32>
    %142 = arith.select %138, %141, %130 : vector<16x16xi1>, vector<16x16xf32>
    %cst_65 = arith.constant 0.000000e+00 : f32
    %143 = vector.broadcast %cst_65 : f32 to vector<16x16xf32>
    %144 = arith.select %138, %143, %133 : vector<16x16xi1>, vector<16x16xf32>
    %145 = arith.mulf %140, %140 : vector<16x16xf32>
    %146 = arith.addf %111, %145 : vector<16x16xf32>
    %147 = arith.mulf %142, %142 : vector<16x16xf32>
    %148 = arith.addf %113, %147 : vector<16x16xf32>
    %149 = arith.mulf %144, %144 : vector<16x16xf32>
    %150 = arith.addf %115, %149 : vector<16x16xf32>
    %151 = arith.mulf %140, %142 : vector<16x16xf32>
    %152 = arith.addf %117, %151 : vector<16x16xf32>
    %153 = arith.mulf %140, %144 : vector<16x16xf32>
    %154 = arith.addf %119, %153 : vector<16x16xf32>
    %155 = arith.mulf %142, %144 : vector<16x16xf32>
    %156 = arith.addf %121, %155 : vector<16x16xf32>
    %157 = arith.addf %122, %140 : vector<16x16xf32>
    %158 = arith.addf %123, %142 : vector<16x16xf32>
    %159 = arith.addf %124, %144 : vector<16x16xf32>
    %c4_i32 = arith.constant 4 : i32
    %c0_66 = arith.constant 0 : index
    %160 = arith.index_cast %c4_i32 : i32 to index
    %c0_67 = arith.constant 0 : index
    %161 = vector.load %arg4[%c0_66, %160, %c0_67] : memref<3x24x16xf32, #tpu.memory_space<vmem>>, vector<1x16x16xf32>
    %162 = vector.shape_cast %161 : vector<1x16x16xf32> to vector<16x16xf32>
    %c1_68 = arith.constant 1 : index
    %163 = arith.index_cast %c4_i32 : i32 to index
    %c0_69 = arith.constant 0 : index
    %164 = vector.load %arg4[%c1_68, %163, %c0_69] : memref<3x24x16xf32, #tpu.memory_space<vmem>>, vector<1x16x16xf32>
    %165 = vector.shape_cast %164 : vector<1x16x16xf32> to vector<16x16xf32>
    %c2_70 = arith.constant 2 : index
    %166 = arith.index_cast %c4_i32 : i32 to index
    %c0_71 = arith.constant 0 : index
    %167 = vector.load %arg4[%c2_70, %166, %c0_71] : memref<3x24x16xf32, #tpu.memory_space<vmem>>, vector<1x16x16xf32>
    %168 = vector.shape_cast %167 : vector<1x16x16xf32> to vector<16x16xf32>
    %169 = arith.subf %168, %1 : vector<16x16xf32>
    %170 = arith.mulf %169, %3 : vector<16x16xf32>
    %171 = math.absf %170 : vector<16x16xf32>
    %cst_72 = arith.constant 1.500000e-01 : f32
    %172 = vector.broadcast %cst_72 : f32 to vector<16x16xf32>
    %173 = arith.cmpf ogt, %171, %172 : vector<16x16xf32>
    %cst_73 = arith.constant 0.000000e+00 : f32
    %174 = vector.broadcast %cst_73 : f32 to vector<16x16xf32>
    %175 = arith.select %173, %174, %162 : vector<16x16xi1>, vector<16x16xf32>
    %cst_74 = arith.constant 0.000000e+00 : f32
    %176 = vector.broadcast %cst_74 : f32 to vector<16x16xf32>
    %177 = arith.select %173, %176, %165 : vector<16x16xi1>, vector<16x16xf32>
    %cst_75 = arith.constant 0.000000e+00 : f32
    %178 = vector.broadcast %cst_75 : f32 to vector<16x16xf32>
    %179 = arith.select %173, %178, %168 : vector<16x16xi1>, vector<16x16xf32>
    %180 = arith.mulf %175, %175 : vector<16x16xf32>
    %181 = arith.addf %146, %180 : vector<16x16xf32>
    %182 = arith.mulf %177, %177 : vector<16x16xf32>
    %183 = arith.addf %148, %182 : vector<16x16xf32>
    %184 = arith.mulf %179, %179 : vector<16x16xf32>
    %185 = arith.addf %150, %184 : vector<16x16xf32>
    %186 = arith.mulf %175, %177 : vector<16x16xf32>
    %187 = arith.addf %152, %186 : vector<16x16xf32>
    %188 = arith.mulf %175, %179 : vector<16x16xf32>
    %189 = arith.addf %154, %188 : vector<16x16xf32>
    %190 = arith.mulf %177, %179 : vector<16x16xf32>
    %191 = arith.addf %156, %190 : vector<16x16xf32>
    %192 = arith.addf %157, %175 : vector<16x16xf32>
    %193 = arith.addf %158, %177 : vector<16x16xf32>
    %194 = arith.addf %159, %179 : vector<16x16xf32>
    %c5_i32 = arith.constant 5 : i32
    %c0_76 = arith.constant 0 : index
    %195 = arith.index_cast %c5_i32 : i32 to index
    %c0_77 = arith.constant 0 : index
    %196 = vector.load %arg4[%c0_76, %195, %c0_77] : memref<3x24x16xf32, #tpu.memory_space<vmem>>, vector<1x16x16xf32>
    %197 = vector.shape_cast %196 : vector<1x16x16xf32> to vector<16x16xf32>
    %c1_78 = arith.constant 1 : index
    %198 = arith.index_cast %c5_i32 : i32 to index
    %c0_79 = arith.constant 0 : index
    %199 = vector.load %arg4[%c1_78, %198, %c0_79] : memref<3x24x16xf32, #tpu.memory_space<vmem>>, vector<1x16x16xf32>
    %200 = vector.shape_cast %199 : vector<1x16x16xf32> to vector<16x16xf32>
    %c2_80 = arith.constant 2 : index
    %201 = arith.index_cast %c5_i32 : i32 to index
    %c0_81 = arith.constant 0 : index
    %202 = vector.load %arg4[%c2_80, %201, %c0_81] : memref<3x24x16xf32, #tpu.memory_space<vmem>>, vector<1x16x16xf32>
    %203 = vector.shape_cast %202 : vector<1x16x16xf32> to vector<16x16xf32>
    %204 = arith.subf %203, %1 : vector<16x16xf32>
    %205 = arith.mulf %204, %3 : vector<16x16xf32>
    %206 = math.absf %205 : vector<16x16xf32>
    %cst_82 = arith.constant 1.500000e-01 : f32
    %207 = vector.broadcast %cst_82 : f32 to vector<16x16xf32>
    %208 = arith.cmpf ogt, %206, %207 : vector<16x16xf32>
    %cst_83 = arith.constant 0.000000e+00 : f32
    %209 = vector.broadcast %cst_83 : f32 to vector<16x16xf32>
    %210 = arith.select %208, %209, %197 : vector<16x16xi1>, vector<16x16xf32>
    %cst_84 = arith.constant 0.000000e+00 : f32
    %211 = vector.broadcast %cst_84 : f32 to vector<16x16xf32>
    %212 = arith.select %208, %211, %200 : vector<16x16xi1>, vector<16x16xf32>
    %cst_85 = arith.constant 0.000000e+00 : f32
    %213 = vector.broadcast %cst_85 : f32 to vector<16x16xf32>
    %214 = arith.select %208, %213, %203 : vector<16x16xi1>, vector<16x16xf32>
    %215 = arith.mulf %210, %210 : vector<16x16xf32>
    %216 = arith.addf %181, %215 : vector<16x16xf32>
    %217 = arith.mulf %212, %212 : vector<16x16xf32>
    %218 = arith.addf %183, %217 : vector<16x16xf32>
    %219 = arith.mulf %214, %214 : vector<16x16xf32>
    %220 = arith.addf %185, %219 : vector<16x16xf32>
    %221 = arith.mulf %210, %212 : vector<16x16xf32>
    %222 = arith.addf %187, %221 : vector<16x16xf32>
    %223 = arith.mulf %210, %214 : vector<16x16xf32>
    %224 = arith.addf %189, %223 : vector<16x16xf32>
    %225 = arith.mulf %212, %214 : vector<16x16xf32>
    %226 = arith.addf %191, %225 : vector<16x16xf32>
    %227 = arith.addf %192, %210 : vector<16x16xf32>
    %228 = arith.addf %193, %212 : vector<16x16xf32>
    %229 = arith.addf %194, %214 : vector<16x16xf32>
    %c6_i32 = arith.constant 6 : i32
    %c0_86 = arith.constant 0 : index
    %230 = arith.index_cast %c6_i32 : i32 to index
    %c0_87 = arith.constant 0 : index
    %231 = vector.load %arg4[%c0_86, %230, %c0_87] : memref<3x24x16xf32, #tpu.memory_space<vmem>>, vector<1x16x16xf32>
    %232 = vector.shape_cast %231 : vector<1x16x16xf32> to vector<16x16xf32>
    %c1_88 = arith.constant 1 : index
    %233 = arith.index_cast %c6_i32 : i32 to index
    %c0_89 = arith.constant 0 : index
    %234 = vector.load %arg4[%c1_88, %233, %c0_89] : memref<3x24x16xf32, #tpu.memory_space<vmem>>, vector<1x16x16xf32>
    %235 = vector.shape_cast %234 : vector<1x16x16xf32> to vector<16x16xf32>
    %c2_90 = arith.constant 2 : index
    %236 = arith.index_cast %c6_i32 : i32 to index
    %c0_91 = arith.constant 0 : index
    %237 = vector.load %arg4[%c2_90, %236, %c0_91] : memref<3x24x16xf32, #tpu.memory_space<vmem>>, vector<1x16x16xf32>
    %238 = vector.shape_cast %237 : vector<1x16x16xf32> to vector<16x16xf32>
    %239 = arith.subf %238, %1 : vector<16x16xf32>
    %240 = arith.mulf %239, %3 : vector<16x16xf32>
    %241 = math.absf %240 : vector<16x16xf32>
    %cst_92 = arith.constant 1.500000e-01 : f32
    %242 = vector.broadcast %cst_92 : f32 to vector<16x16xf32>
    %243 = arith.cmpf ogt, %241, %242 : vector<16x16xf32>
    %cst_93 = arith.constant 0.000000e+00 : f32
    %244 = vector.broadcast %cst_93 : f32 to vector<16x16xf32>
    %245 = arith.select %243, %244, %232 : vector<16x16xi1>, vector<16x16xf32>
    %cst_94 = arith.constant 0.000000e+00 : f32
    %246 = vector.broadcast %cst_94 : f32 to vector<16x16xf32>
    %247 = arith.select %243, %246, %235 : vector<16x16xi1>, vector<16x16xf32>
    %cst_95 = arith.constant 0.000000e+00 : f32
    %248 = vector.broadcast %cst_95 : f32 to vector<16x16xf32>
    %249 = arith.select %243, %248, %238 : vector<16x16xi1>, vector<16x16xf32>
    %250 = arith.mulf %245, %245 : vector<16x16xf32>
    %251 = arith.addf %216, %250 : vector<16x16xf32>
    %252 = arith.mulf %247, %247 : vector<16x16xf32>
    %253 = arith.addf %218, %252 : vector<16x16xf32>
    %254 = arith.mulf %249, %249 : vector<16x16xf32>
    %255 = arith.addf %220, %254 : vector<16x16xf32>
    %256 = arith.mulf %245, %247 : vector<16x16xf32>
    %257 = arith.addf %222, %256 : vector<16x16xf32>
    %258 = arith.mulf %245, %249 : vector<16x16xf32>
    %259 = arith.addf %224, %258 : vector<16x16xf32>
    %260 = arith.mulf %247, %249 : vector<16x16xf32>
    %261 = arith.addf %226, %260 : vector<16x16xf32>
    %262 = arith.addf %227, %245 : vector<16x16xf32>
    %263 = arith.addf %228, %247 : vector<16x16xf32>
    %264 = arith.addf %229, %249 : vector<16x16xf32>
    %c7_i32 = arith.constant 7 : i32
    %c0_96 = arith.constant 0 : index
    %265 = arith.index_cast %c7_i32 : i32 to index
    %c0_97 = arith.constant 0 : index
    %266 = vector.load %arg4[%c0_96, %265, %c0_97] : memref<3x24x16xf32, #tpu.memory_space<vmem>>, vector<1x16x16xf32>
    %267 = vector.shape_cast %266 : vector<1x16x16xf32> to vector<16x16xf32>
    %c1_98 = arith.constant 1 : index
    %268 = arith.index_cast %c7_i32 : i32 to index
    %c0_99 = arith.constant 0 : index
    %269 = vector.load %arg4[%c1_98, %268, %c0_99] : memref<3x24x16xf32, #tpu.memory_space<vmem>>, vector<1x16x16xf32>
    %270 = vector.shape_cast %269 : vector<1x16x16xf32> to vector<16x16xf32>
    %c2_100 = arith.constant 2 : index
    %271 = arith.index_cast %c7_i32 : i32 to index
    %c0_101 = arith.constant 0 : index
    %272 = vector.load %arg4[%c2_100, %271, %c0_101] : memref<3x24x16xf32, #tpu.memory_space<vmem>>, vector<1x16x16xf32>
    %273 = vector.shape_cast %272 : vector<1x16x16xf32> to vector<16x16xf32>
    %274 = arith.subf %273, %1 : vector<16x16xf32>
    %275 = arith.mulf %274, %3 : vector<16x16xf32>
    %276 = math.absf %275 : vector<16x16xf32>
    %cst_102 = arith.constant 1.500000e-01 : f32
    %277 = vector.broadcast %cst_102 : f32 to vector<16x16xf32>
    %278 = arith.cmpf ogt, %276, %277 : vector<16x16xf32>
    %cst_103 = arith.constant 0.000000e+00 : f32
    %279 = vector.broadcast %cst_103 : f32 to vector<16x16xf32>
    %280 = arith.select %278, %279, %267 : vector<16x16xi1>, vector<16x16xf32>
    %cst_104 = arith.constant 0.000000e+00 : f32
    %281 = vector.broadcast %cst_104 : f32 to vector<16x16xf32>
    %282 = arith.select %278, %281, %270 : vector<16x16xi1>, vector<16x16xf32>
    %cst_105 = arith.constant 0.000000e+00 : f32
    %283 = vector.broadcast %cst_105 : f32 to vector<16x16xf32>
    %284 = arith.select %278, %283, %273 : vector<16x16xi1>, vector<16x16xf32>
    %285 = arith.mulf %280, %280 : vector<16x16xf32>
    %286 = arith.addf %251, %285 : vector<16x16xf32>
    %287 = arith.mulf %282, %282 : vector<16x16xf32>
    %288 = arith.addf %253, %287 : vector<16x16xf32>
    %289 = arith.mulf %284, %284 : vector<16x16xf32>
    %290 = arith.addf %255, %289 : vector<16x16xf32>
    %291 = arith.mulf %280, %282 : vector<16x16xf32>
    %292 = arith.addf %257, %291 : vector<16x16xf32>
    %293 = arith.mulf %280, %284 : vector<16x16xf32>
    %294 = arith.addf %259, %293 : vector<16x16xf32>
    %295 = arith.mulf %282, %284 : vector<16x16xf32>
    %296 = arith.addf %261, %295 : vector<16x16xf32>
    %297 = arith.addf %262, %280 : vector<16x16xf32>
    %298 = arith.addf %263, %282 : vector<16x16xf32>
    %299 = arith.addf %264, %284 : vector<16x16xf32>
    %c8_i32 = arith.constant 8 : i32
    %c0_106 = arith.constant 0 : index
    %300 = arith.index_cast %c8_i32 : i32 to index
    %c0_107 = arith.constant 0 : index
    %301 = vector.load %arg4[%c0_106, %300, %c0_107] : memref<3x24x16xf32, #tpu.memory_space<vmem>>, vector<1x16x16xf32>
    %302 = vector.shape_cast %301 : vector<1x16x16xf32> to vector<16x16xf32>
    %c1_108 = arith.constant 1 : index
    %303 = arith.index_cast %c8_i32 : i32 to index
    %c0_109 = arith.constant 0 : index
    %304 = vector.load %arg4[%c1_108, %303, %c0_109] : memref<3x24x16xf32, #tpu.memory_space<vmem>>, vector<1x16x16xf32>
    %305 = vector.shape_cast %304 : vector<1x16x16xf32> to vector<16x16xf32>
    %c2_110 = arith.constant 2 : index
    %306 = arith.index_cast %c8_i32 : i32 to index
    %c0_111 = arith.constant 0 : index
    %307 = vector.load %arg4[%c2_110, %306, %c0_111] : memref<3x24x16xf32, #tpu.memory_space<vmem>>, vector<1x16x16xf32>
    %308 = vector.shape_cast %307 : vector<1x16x16xf32> to vector<16x16xf32>
    %309 = arith.subf %308, %1 : vector<16x16xf32>
    %310 = arith.mulf %309, %3 : vector<16x16xf32>
    %311 = math.absf %310 : vector<16x16xf32>
    %cst_112 = arith.constant 1.500000e-01 : f32
    %312 = vector.broadcast %cst_112 : f32 to vector<16x16xf32>
    %313 = arith.cmpf ogt, %311, %312 : vector<16x16xf32>
    %cst_113 = arith.constant 0.000000e+00 : f32
    %314 = vector.broadcast %cst_113 : f32 to vector<16x16xf32>
    %315 = arith.select %313, %314, %302 : vector<16x16xi1>, vector<16x16xf32>
    %cst_114 = arith.constant 0.000000e+00 : f32
    %316 = vector.broadcast %cst_114 : f32 to vector<16x16xf32>
    %317 = arith.select %313, %316, %305 : vector<16x16xi1>, vector<16x16xf32>
    %cst_115 = arith.constant 0.000000e+00 : f32
    %318 = vector.broadcast %cst_115 : f32 to vector<16x16xf32>
    %319 = arith.select %313, %318, %308 : vector<16x16xi1>, vector<16x16xf32>
    %320 = arith.mulf %315, %315 : vector<16x16xf32>
    %321 = arith.addf %286, %320 : vector<16x16xf32>
    %322 = arith.mulf %317, %317 : vector<16x16xf32>
    %323 = arith.addf %288, %322 : vector<16x16xf32>
    %324 = arith.mulf %319, %319 : vector<16x16xf32>
    %325 = arith.addf %290, %324 : vector<16x16xf32>
    %326 = arith.mulf %315, %317 : vector<16x16xf32>
    %327 = arith.addf %292, %326 : vector<16x16xf32>
    %328 = arith.mulf %315, %319 : vector<16x16xf32>
    %329 = arith.addf %294, %328 : vector<16x16xf32>
    %330 = arith.mulf %317, %319 : vector<16x16xf32>
    %331 = arith.addf %296, %330 : vector<16x16xf32>
    %332 = arith.addf %297, %315 : vector<16x16xf32>
    %333 = arith.addf %298, %317 : vector<16x16xf32>
    %334 = arith.addf %299, %319 : vector<16x16xf32>
    %c9_i32 = arith.constant 9 : i32
    %c0_116 = arith.constant 0 : index
    %c0_117 = arith.constant 0 : index
    %c0_118 = arith.constant 0 : index
    %c0_119 = arith.constant 0 : index
    %c1_120 = arith.constant 1 : index
    %335 = vector.load %arg2[%c0_116, %c0_117, %c0_118, %c0_119, %c1_120] : memref<1x1x3x24x24xf32, #tpu.memory_space<vmem>>, vector<1x1x1x24x16xf32>
    %336 = vector.shape_cast %335 : vector<1x1x1x24x16xf32> to vector<24x16xf32>
    %c0_121 = arith.constant 0 : index
    %c0_122 = arith.constant 0 : index
    %c0_123 = arith.constant 0 : index
    %337 = vector.load %arg4[%c0_121, %c0_122, %c0_123] : memref<3x24x16xf32, #tpu.memory_space<vmem>>, vector<1x24x16xf32>
    %338 = vector.shape_cast %337 : vector<1x24x16xf32> to vector<24x16xf32>
    %339 = vector.shape_cast %336 : vector<24x16xf32> to vector<1x24x16xf32>
    tpu.vector_store %arg4[%c0_121, %c0_122, %c0_123], %339 {strides = array<i32>} : memref<3x24x16xf32, #tpu.memory_space<vmem>>, vector<1x24x16xf32>,
    %c0_124 = arith.constant 0 : index
    %c0_125 = arith.constant 0 : index
    %c1_126 = arith.constant 1 : index
    %c0_127 = arith.constant 0 : index
    %c1_128 = arith.constant 1 : index
    %340 = vector.load %arg2[%c0_124, %c0_125, %c1_126, %c0_127, %c1_128] : memref<1x1x3x24x24xf32, #tpu.memory_space<vmem>>, vector<1x1x1x24x16xf32>
    %341 = vector.shape_cast %340 : vector<1x1x1x24x16xf32> to vector<24x16xf32>
    %c1_129 = arith.constant 1 : index
    %c0_130 = arith.constant 0 : index
    %c0_131 = arith.constant 0 : index
    %342 = vector.load %arg4[%c1_129, %c0_130, %c0_131] : memref<3x24x16xf32, #tpu.memory_space<vmem>>, vector<1x24x16xf32>
    %343 = vector.shape_cast %342 : vector<1x24x16xf32> to vector<24x16xf32>
    %344 = vector.shape_cast %341 : vector<24x16xf32> to vector<1x24x16xf32>
    tpu.vector_store %arg4[%c1_129, %c0_130, %c0_131], %344 {strides = array<i32>} : memref<3x24x16xf32, #tpu.memory_space<vmem>>, vector<1x24x16xf32>,
    %c0_132 = arith.constant 0 : index
    %c0_133 = arith.constant 0 : index
    %c2_134 = arith.constant 2 : index
    %c0_135 = arith.constant 0 : index
    %c1_136 = arith.constant 1 : index
    %345 = vector.load %arg2[%c0_132, %c0_133, %c2_134, %c0_135, %c1_136] : memref<1x1x3x24x24xf32, #tpu.memory_space<vmem>>, vector<1x1x1x24x16xf32>
    %346 = vector.shape_cast %345 : vector<1x1x1x24x16xf32> to vector<24x16xf32>
    %c2_137 = arith.constant 2 : index
    %c0_138 = arith.constant 0 : index
    %c0_139 = arith.constant 0 : index
    %347 = vector.load %arg4[%c2_137, %c0_138, %c0_139] : memref<3x24x16xf32, #tpu.memory_space<vmem>>, vector<1x24x16xf32>
    %348 = vector.shape_cast %347 : vector<1x24x16xf32> to vector<24x16xf32>
    %349 = vector.shape_cast %346 : vector<24x16xf32> to vector<1x24x16xf32>
    tpu.vector_store %arg4[%c2_137, %c0_138, %c0_139], %349 {strides = array<i32>} : memref<3x24x16xf32, #tpu.memory_space<vmem>>, vector<1x24x16xf32>,
    %c0_i32_140 = arith.constant 0 : i32
    %c0_141 = arith.constant 0 : index
    %350 = arith.index_cast %c0_i32_140 : i32 to index
    %c0_142 = arith.constant 0 : index
    %351 = vector.load %arg4[%c0_141, %350, %c0_142] : memref<3x24x16xf32, #tpu.memory_space<vmem>>, vector<1x16x16xf32>
    %352 = vector.shape_cast %351 : vector<1x16x16xf32> to vector<16x16xf32>
    %c1_143 = arith.constant 1 : index
    %353 = arith.index_cast %c0_i32_140 : i32 to index
    %c0_144 = arith.constant 0 : index
    %354 = vector.load %arg4[%c1_143, %353, %c0_144] : memref<3x24x16xf32, #tpu.memory_space<vmem>>, vector<1x16x16xf32>
    %355 = vector.shape_cast %354 : vector<1x16x16xf32> to vector<16x16xf32>
    %c2_145 = arith.constant 2 : index
    %356 = arith.index_cast %c0_i32_140 : i32 to index
    %c0_146 = arith.constant 0 : index
    %357 = vector.load %arg4[%c2_145, %356, %c0_146] : memref<3x24x16xf32, #tpu.memory_space<vmem>>, vector<1x16x16xf32>
    %358 = vector.shape_cast %357 : vector<1x16x16xf32> to vector<16x16xf32>
    %359 = arith.subf %358, %1 : vector<16x16xf32>
    %360 = arith.mulf %359, %3 : vector<16x16xf32>
    %361 = math.absf %360 : vector<16x16xf32>
    %cst_147 = arith.constant 1.500000e-01 : f32
    %362 = vector.broadcast %cst_147 : f32 to vector<16x16xf32>
    %363 = arith.cmpf ogt, %361, %362 : vector<16x16xf32>
    %cst_148 = arith.constant 0.000000e+00 : f32
    %364 = vector.broadcast %cst_148 : f32 to vector<16x16xf32>
    %365 = arith.select %363, %364, %352 : vector<16x16xi1>, vector<16x16xf32>
    %cst_149 = arith.constant 0.000000e+00 : f32
    %366 = vector.broadcast %cst_149 : f32 to vector<16x16xf32>
    %367 = arith.select %363, %366, %355 : vector<16x16xi1>, vector<16x16xf32>
    %cst_150 = arith.constant 0.000000e+00 : f32
    %368 = vector.broadcast %cst_150 : f32 to vector<16x16xf32>
    %369 = arith.select %363, %368, %358 : vector<16x16xi1>, vector<16x16xf32>
    %370 = arith.mulf %365, %365 : vector<16x16xf32>
    %371 = arith.addf %321, %370 : vector<16x16xf32>
    %372 = arith.mulf %367, %367 : vector<16x16xf32>
    %373 = arith.addf %323, %372 : vector<16x16xf32>
    %374 = arith.mulf %369, %369 : vector<16x16xf32>
    %375 = arith.addf %325, %374 : vector<16x16xf32>
    %376 = arith.mulf %365, %367 : vector<16x16xf32>
    %377 = arith.addf %327, %376 : vector<16x16xf32>
    %378 = arith.mulf %365, %369 : vector<16x16xf32>
    %379 = arith.addf %329, %378 : vector<16x16xf32>
    %380 = arith.mulf %367, %369 : vector<16x16xf32>
    %381 = arith.addf %331, %380 : vector<16x16xf32>
    %382 = arith.addf %332, %365 : vector<16x16xf32>
    %383 = arith.addf %333, %367 : vector<16x16xf32>
    %384 = arith.addf %334, %369 : vector<16x16xf32>
    %c1_i32_151 = arith.constant 1 : i32
    %c0_152 = arith.constant 0 : index
    %385 = arith.index_cast %c1_i32_151 : i32 to index
    %c0_153 = arith.constant 0 : index
    %386 = vector.load %arg4[%c0_152, %385, %c0_153] : memref<3x24x16xf32, #tpu.memory_space<vmem>>, vector<1x16x16xf32>
    %387 = vector.shape_cast %386 : vector<1x16x16xf32> to vector<16x16xf32>
    %c1_154 = arith.constant 1 : index
    %388 = arith.index_cast %c1_i32_151 : i32 to index
    %c0_155 = arith.constant 0 : index
    %389 = vector.load %arg4[%c1_154, %388, %c0_155] : memref<3x24x16xf32, #tpu.memory_space<vmem>>, vector<1x16x16xf32>
    %390 = vector.shape_cast %389 : vector<1x16x16xf32> to vector<16x16xf32>
    %c2_156 = arith.constant 2 : index
    %391 = arith.index_cast %c1_i32_151 : i32 to index
    %c0_157 = arith.constant 0 : index
    %392 = vector.load %arg4[%c2_156, %391, %c0_157] : memref<3x24x16xf32, #tpu.memory_space<vmem>>, vector<1x16x16xf32>
    %393 = vector.shape_cast %392 : vector<1x16x16xf32> to vector<16x16xf32>
    %394 = arith.subf %393, %1 : vector<16x16xf32>
    %395 = arith.mulf %394, %3 : vector<16x16xf32>
    %396 = math.absf %395 : vector<16x16xf32>
    %cst_158 = arith.constant 1.500000e-01 : f32
    %397 = vector.broadcast %cst_158 : f32 to vector<16x16xf32>
    %398 = arith.cmpf ogt, %396, %397 : vector<16x16xf32>
    %cst_159 = arith.constant 0.000000e+00 : f32
    %399 = vector.broadcast %cst_159 : f32 to vector<16x16xf32>
    %400 = arith.select %398, %399, %387 : vector<16x16xi1>, vector<16x16xf32>
    %cst_160 = arith.constant 0.000000e+00 : f32
    %401 = vector.broadcast %cst_160 : f32 to vector<16x16xf32>
    %402 = arith.select %398, %401, %390 : vector<16x16xi1>, vector<16x16xf32>
    %cst_161 = arith.constant 0.000000e+00 : f32
    %403 = vector.broadcast %cst_161 : f32 to vector<16x16xf32>
    %404 = arith.select %398, %403, %393 : vector<16x16xi1>, vector<16x16xf32>
    %405 = arith.mulf %400, %400 : vector<16x16xf32>
    %406 = arith.addf %371, %405 : vector<16x16xf32>
    %407 = arith.mulf %402, %402 : vector<16x16xf32>
    %408 = arith.addf %373, %407 : vector<16x16xf32>
    %409 = arith.mulf %404, %404 : vector<16x16xf32>
    %410 = arith.addf %375, %409 : vector<16x16xf32>
    %411 = arith.mulf %400, %402 : vector<16x16xf32>
    %412 = arith.addf %377, %411 : vector<16x16xf32>
    %413 = arith.mulf %400, %404 : vector<16x16xf32>
    %414 = arith.addf %379, %413 : vector<16x16xf32>
    %415 = arith.mulf %402, %404 : vector<16x16xf32>
    %416 = arith.addf %381, %415 : vector<16x16xf32>
    %417 = arith.addf %382, %400 : vector<16x16xf32>
    %418 = arith.addf %383, %402 : vector<16x16xf32>
    %419 = arith.addf %384, %404 : vector<16x16xf32>
    %c2_i32_162 = arith.constant 2 : i32
    %c0_163 = arith.constant 0 : index
    %420 = arith.index_cast %c2_i32_162 : i32 to index
    %c0_164 = arith.constant 0 : index
    %421 = vector.load %arg4[%c0_163, %420, %c0_164] : memref<3x24x16xf32, #tpu.memory_space<vmem>>, vector<1x16x16xf32>
    %422 = vector.shape_cast %421 : vector<1x16x16xf32> to vector<16x16xf32>
    %c1_165 = arith.constant 1 : index
    %423 = arith.index_cast %c2_i32_162 : i32 to index
    %c0_166 = arith.constant 0 : index
    %424 = vector.load %arg4[%c1_165, %423, %c0_166] : memref<3x24x16xf32, #tpu.memory_space<vmem>>, vector<1x16x16xf32>
    %425 = vector.shape_cast %424 : vector<1x16x16xf32> to vector<16x16xf32>
    %c2_167 = arith.constant 2 : index
    %426 = arith.index_cast %c2_i32_162 : i32 to index
    %c0_168 = arith.constant 0 : index
    %427 = vector.load %arg4[%c2_167, %426, %c0_168] : memref<3x24x16xf32, #tpu.memory_space<vmem>>, vector<1x16x16xf32>
    %428 = vector.shape_cast %427 : vector<1x16x16xf32> to vector<16x16xf32>
    %429 = arith.subf %428, %1 : vector<16x16xf32>
    %430 = arith.mulf %429, %3 : vector<16x16xf32>
    %431 = math.absf %430 : vector<16x16xf32>
    %cst_169 = arith.constant 1.500000e-01 : f32
    %432 = vector.broadcast %cst_169 : f32 to vector<16x16xf32>
    %433 = arith.cmpf ogt, %431, %432 : vector<16x16xf32>
    %cst_170 = arith.constant 0.000000e+00 : f32
    %434 = vector.broadcast %cst_170 : f32 to vector<16x16xf32>
    %435 = arith.select %433, %434, %422 : vector<16x16xi1>, vector<16x16xf32>
    %cst_171 = arith.constant 0.000000e+00 : f32
    %436 = vector.broadcast %cst_171 : f32 to vector<16x16xf32>
    %437 = arith.select %433, %436, %425 : vector<16x16xi1>, vector<16x16xf32>
    %cst_172 = arith.constant 0.000000e+00 : f32
    %438 = vector.broadcast %cst_172 : f32 to vector<16x16xf32>
    %439 = arith.select %433, %438, %428 : vector<16x16xi1>, vector<16x16xf32>
    %440 = arith.mulf %435, %435 : vector<16x16xf32>
    %441 = arith.addf %406, %440 : vector<16x16xf32>
    %442 = arith.mulf %437, %437 : vector<16x16xf32>
    %443 = arith.addf %408, %442 : vector<16x16xf32>
    %444 = arith.mulf %439, %439 : vector<16x16xf32>
    %445 = arith.addf %410, %444 : vector<16x16xf32>
    %446 = arith.mulf %435, %437 : vector<16x16xf32>
    %447 = arith.addf %412, %446 : vector<16x16xf32>
    %448 = arith.mulf %435, %439 : vector<16x16xf32>
    %449 = arith.addf %414, %448 : vector<16x16xf32>
    %450 = arith.mulf %437, %439 : vector<16x16xf32>
    %451 = arith.addf %416, %450 : vector<16x16xf32>
    %452 = arith.addf %417, %435 : vector<16x16xf32>
    %453 = arith.addf %418, %437 : vector<16x16xf32>
    %454 = arith.addf %419, %439 : vector<16x16xf32>
    %c3_i32_173 = arith.constant 3 : i32
    %c0_174 = arith.constant 0 : index
    %455 = arith.index_cast %c3_i32_173 : i32 to index
    %c0_175 = arith.constant 0 : index
    %456 = vector.load %arg4[%c0_174, %455, %c0_175] : memref<3x24x16xf32, #tpu.memory_space<vmem>>, vector<1x16x16xf32>
    %457 = vector.shape_cast %456 : vector<1x16x16xf32> to vector<16x16xf32>
    %c1_176 = arith.constant 1 : index
    %458 = arith.index_cast %c3_i32_173 : i32 to index
    %c0_177 = arith.constant 0 : index
    %459 = vector.load %arg4[%c1_176, %458, %c0_177] : memref<3x24x16xf32, #tpu.memory_space<vmem>>, vector<1x16x16xf32>
    %460 = vector.shape_cast %459 : vector<1x16x16xf32> to vector<16x16xf32>
    %c2_178 = arith.constant 2 : index
    %461 = arith.index_cast %c3_i32_173 : i32 to index
    %c0_179 = arith.constant 0 : index
    %462 = vector.load %arg4[%c2_178, %461, %c0_179] : memref<3x24x16xf32, #tpu.memory_space<vmem>>, vector<1x16x16xf32>
    %463 = vector.shape_cast %462 : vector<1x16x16xf32> to vector<16x16xf32>
    %464 = arith.subf %463, %1 : vector<16x16xf32>
    %465 = arith.mulf %464, %3 : vector<16x16xf32>
    %466 = math.absf %465 : vector<16x16xf32>
    %cst_180 = arith.constant 1.500000e-01 : f32
    %467 = vector.broadcast %cst_180 : f32 to vector<16x16xf32>
    %468 = arith.cmpf ogt, %466, %467 : vector<16x16xf32>
    %cst_181 = arith.constant 0.000000e+00 : f32
    %469 = vector.broadcast %cst_181 : f32 to vector<16x16xf32>
    %470 = arith.select %468, %469, %457 : vector<16x16xi1>, vector<16x16xf32>
    %cst_182 = arith.constant 0.000000e+00 : f32
    %471 = vector.broadcast %cst_182 : f32 to vector<16x16xf32>
    %472 = arith.select %468, %471, %460 : vector<16x16xi1>, vector<16x16xf32>
    %cst_183 = arith.constant 0.000000e+00 : f32
    %473 = vector.broadcast %cst_183 : f32 to vector<16x16xf32>
    %474 = arith.select %468, %473, %463 : vector<16x16xi1>, vector<16x16xf32>
    %475 = arith.mulf %470, %470 : vector<16x16xf32>
    %476 = arith.addf %441, %475 : vector<16x16xf32>
    %477 = arith.mulf %472, %472 : vector<16x16xf32>
    %478 = arith.addf %443, %477 : vector<16x16xf32>
    %479 = arith.mulf %474, %474 : vector<16x16xf32>
    %480 = arith.addf %445, %479 : vector<16x16xf32>
    %481 = arith.mulf %470, %472 : vector<16x16xf32>
    %482 = arith.addf %447, %481 : vector<16x16xf32>
    %483 = arith.mulf %470, %474 : vector<16x16xf32>
    %484 = arith.addf %449, %483 : vector<16x16xf32>
    %485 = arith.mulf %472, %474 : vector<16x16xf32>
    %486 = arith.addf %451, %485 : vector<16x16xf32>
    %487 = arith.addf %452, %470 : vector<16x16xf32>
    %488 = arith.addf %453, %472 : vector<16x16xf32>
    %489 = arith.addf %454, %474 : vector<16x16xf32>
    %c4_i32_184 = arith.constant 4 : i32
    %c0_185 = arith.constant 0 : index
    %490 = arith.index_cast %c4_i32_184 : i32 to index
    %c0_186 = arith.constant 0 : index
    %491 = vector.load %arg4[%c0_185, %490, %c0_186] : memref<3x24x16xf32, #tpu.memory_space<vmem>>, vector<1x16x16xf32>
    %492 = vector.shape_cast %491 : vector<1x16x16xf32> to vector<16x16xf32>
    %c1_187 = arith.constant 1 : index
    %493 = arith.index_cast %c4_i32_184 : i32 to index
    %c0_188 = arith.constant 0 : index
    %494 = vector.load %arg4[%c1_187, %493, %c0_188] : memref<3x24x16xf32, #tpu.memory_space<vmem>>, vector<1x16x16xf32>
    %495 = vector.shape_cast %494 : vector<1x16x16xf32> to vector<16x16xf32>
    %c2_189 = arith.constant 2 : index
    %496 = arith.index_cast %c4_i32_184 : i32 to index
    %c0_190 = arith.constant 0 : index
    %497 = vector.load %arg4[%c2_189, %496, %c0_190] : memref<3x24x16xf32, #tpu.memory_space<vmem>>, vector<1x16x16xf32>
    %498 = vector.shape_cast %497 : vector<1x16x16xf32> to vector<16x16xf32>
    %499 = arith.subf %498, %1 : vector<16x16xf32>
    %500 = arith.mulf %499, %3 : vector<16x16xf32>
    %501 = math.absf %500 : vector<16x16xf32>
    %cst_191 = arith.constant 1.500000e-01 : f32
    %502 = vector.broadcast %cst_191 : f32 to vector<16x16xf32>
    %503 = arith.cmpf ogt, %501, %502 : vector<16x16xf32>
    %cst_192 = arith.constant 0.000000e+00 : f32
    %504 = vector.broadcast %cst_192 : f32 to vector<16x16xf32>
    %505 = arith.select %503, %504, %492 : vector<16x16xi1>, vector<16x16xf32>
    %cst_193 = arith.constant 0.000000e+00 : f32
    %506 = vector.broadcast %cst_193 : f32 to vector<16x16xf32>
    %507 = arith.select %503, %506, %495 : vector<16x16xi1>, vector<16x16xf32>
    %cst_194 = arith.constant 0.000000e+00 : f32
    %508 = vector.broadcast %cst_194 : f32 to vector<16x16xf32>
    %509 = arith.select %503, %508, %498 : vector<16x16xi1>, vector<16x16xf32>
    %510 = arith.mulf %505, %505 : vector<16x16xf32>
    %511 = arith.addf %476, %510 : vector<16x16xf32>
    %512 = arith.mulf %507, %507 : vector<16x16xf32>
    %513 = arith.addf %478, %512 : vector<16x16xf32>
    %514 = arith.mulf %509, %509 : vector<16x16xf32>
    %515 = arith.addf %480, %514 : vector<16x16xf32>
    %516 = arith.mulf %505, %507 : vector<16x16xf32>
    %517 = arith.addf %482, %516 : vector<16x16xf32>
    %518 = arith.mulf %505, %509 : vector<16x16xf32>
    %519 = arith.addf %484, %518 : vector<16x16xf32>
    %520 = arith.mulf %507, %509 : vector<16x16xf32>
    %521 = arith.addf %486, %520 : vector<16x16xf32>
    %522 = arith.addf %487, %505 : vector<16x16xf32>
    %523 = arith.addf %488, %507 : vector<16x16xf32>
    %524 = arith.addf %489, %509 : vector<16x16xf32>
    %c5_i32_195 = arith.constant 5 : i32
    %c0_196 = arith.constant 0 : index
    %525 = arith.index_cast %c5_i32_195 : i32 to index
    %c0_197 = arith.constant 0 : index
    %526 = vector.load %arg4[%c0_196, %525, %c0_197] : memref<3x24x16xf32, #tpu.memory_space<vmem>>, vector<1x16x16xf32>
    %527 = vector.shape_cast %526 : vector<1x16x16xf32> to vector<16x16xf32>
    %c1_198 = arith.constant 1 : index
    %528 = arith.index_cast %c5_i32_195 : i32 to index
    %c0_199 = arith.constant 0 : index
    %529 = vector.load %arg4[%c1_198, %528, %c0_199] : memref<3x24x16xf32, #tpu.memory_space<vmem>>, vector<1x16x16xf32>
    %530 = vector.shape_cast %529 : vector<1x16x16xf32> to vector<16x16xf32>
    %c2_200 = arith.constant 2 : index
    %531 = arith.index_cast %c5_i32_195 : i32 to index
    %c0_201 = arith.constant 0 : index
    %532 = vector.load %arg4[%c2_200, %531, %c0_201] : memref<3x24x16xf32, #tpu.memory_space<vmem>>, vector<1x16x16xf32>
    %533 = vector.shape_cast %532 : vector<1x16x16xf32> to vector<16x16xf32>
    %534 = arith.subf %533, %1 : vector<16x16xf32>
    %535 = arith.mulf %534, %3 : vector<16x16xf32>
    %536 = math.absf %535 : vector<16x16xf32>
    %cst_202 = arith.constant 1.500000e-01 : f32
    %537 = vector.broadcast %cst_202 : f32 to vector<16x16xf32>
    %538 = arith.cmpf ogt, %536, %537 : vector<16x16xf32>
    %cst_203 = arith.constant 0.000000e+00 : f32
    %539 = vector.broadcast %cst_203 : f32 to vector<16x16xf32>
    %540 = arith.select %538, %539, %527 : vector<16x16xi1>, vector<16x16xf32>
    %cst_204 = arith.constant 0.000000e+00 : f32
    %541 = vector.broadcast %cst_204 : f32 to vector<16x16xf32>
    %542 = arith.select %538, %541, %530 : vector<16x16xi1>, vector<16x16xf32>
    %cst_205 = arith.constant 0.000000e+00 : f32
    %543 = vector.broadcast %cst_205 : f32 to vector<16x16xf32>
    %544 = arith.select %538, %543, %533 : vector<16x16xi1>, vector<16x16xf32>
    %545 = arith.mulf %540, %540 : vector<16x16xf32>
    %546 = arith.addf %511, %545 : vector<16x16xf32>
    %547 = arith.mulf %542, %542 : vector<16x16xf32>
    %548 = arith.addf %513, %547 : vector<16x16xf32>
    %549 = arith.mulf %544, %544 : vector<16x16xf32>
    %550 = arith.addf %515, %549 : vector<16x16xf32>
    %551 = arith.mulf %540, %542 : vector<16x16xf32>
    %552 = arith.addf %517, %551 : vector<16x16xf32>
    %553 = arith.mulf %540, %544 : vector<16x16xf32>
    %554 = arith.addf %519, %553 : vector<16x16xf32>
    %555 = arith.mulf %542, %544 : vector<16x16xf32>
    %556 = arith.addf %521, %555 : vector<16x16xf32>
    %557 = arith.addf %522, %540 : vector<16x16xf32>
    %558 = arith.addf %523, %542 : vector<16x16xf32>
    %559 = arith.addf %524, %544 : vector<16x16xf32>
    %c6_i32_206 = arith.constant 6 : i32
    %c0_207 = arith.constant 0 : index
    %560 = arith.index_cast %c6_i32_206 : i32 to index
    %c0_208 = arith.constant 0 : index
    %561 = vector.load %arg4[%c0_207, %560, %c0_208] : memref<3x24x16xf32, #tpu.memory_space<vmem>>, vector<1x16x16xf32>
    %562 = vector.shape_cast %561 : vector<1x16x16xf32> to vector<16x16xf32>
    %c1_209 = arith.constant 1 : index
    %563 = arith.index_cast %c6_i32_206 : i32 to index
    %c0_210 = arith.constant 0 : index
    %564 = vector.load %arg4[%c1_209, %563, %c0_210] : memref<3x24x16xf32, #tpu.memory_space<vmem>>, vector<1x16x16xf32>
    %565 = vector.shape_cast %564 : vector<1x16x16xf32> to vector<16x16xf32>
    %c2_211 = arith.constant 2 : index
    %566 = arith.index_cast %c6_i32_206 : i32 to index
    %c0_212 = arith.constant 0 : index
    %567 = vector.load %arg4[%c2_211, %566, %c0_212] : memref<3x24x16xf32, #tpu.memory_space<vmem>>, vector<1x16x16xf32>
    %568 = vector.shape_cast %567 : vector<1x16x16xf32> to vector<16x16xf32>
    %569 = arith.subf %568, %1 : vector<16x16xf32>
    %570 = arith.mulf %569, %3 : vector<16x16xf32>
    %571 = math.absf %570 : vector<16x16xf32>
    %cst_213 = arith.constant 1.500000e-01 : f32
    %572 = vector.broadcast %cst_213 : f32 to vector<16x16xf32>
    %573 = arith.cmpf ogt, %571, %572 : vector<16x16xf32>
    %cst_214 = arith.constant 0.000000e+00 : f32
    %574 = vector.broadcast %cst_214 : f32 to vector<16x16xf32>
    %575 = arith.select %573, %574, %562 : vector<16x16xi1>, vector<16x16xf32>
    %cst_215 = arith.constant 0.000000e+00 : f32
    %576 = vector.broadcast %cst_215 : f32 to vector<16x16xf32>
    %577 = arith.select %573, %576, %565 : vector<16x16xi1>, vector<16x16xf32>
    %cst_216 = arith.constant 0.000000e+00 : f32
    %578 = vector.broadcast %cst_216 : f32 to vector<16x16xf32>
    %579 = arith.select %573, %578, %568 : vector<16x16xi1>, vector<16x16xf32>
    %580 = arith.mulf %575, %575 : vector<16x16xf32>
    %581 = arith.addf %546, %580 : vector<16x16xf32>
    %582 = arith.mulf %577, %577 : vector<16x16xf32>
    %583 = arith.addf %548, %582 : vector<16x16xf32>
    %584 = arith.mulf %579, %579 : vector<16x16xf32>
    %585 = arith.addf %550, %584 : vector<16x16xf32>
    %586 = arith.mulf %575, %577 : vector<16x16xf32>
    %587 = arith.addf %552, %586 : vector<16x16xf32>
    %588 = arith.mulf %575, %579 : vector<16x16xf32>
    %589 = arith.addf %554, %588 : vector<16x16xf32>
    %590 = arith.mulf %577, %579 : vector<16x16xf32>
    %591 = arith.addf %556, %590 : vector<16x16xf32>
    %592 = arith.addf %557, %575 : vector<16x16xf32>
    %593 = arith.addf %558, %577 : vector<16x16xf32>
    %594 = arith.addf %559, %579 : vector<16x16xf32>
    %c7_i32_217 = arith.constant 7 : i32
    %c0_218 = arith.constant 0 : index
    %595 = arith.index_cast %c7_i32_217 : i32 to index
    %c0_219 = arith.constant 0 : index
    %596 = vector.load %arg4[%c0_218, %595, %c0_219] : memref<3x24x16xf32, #tpu.memory_space<vmem>>, vector<1x16x16xf32>
    %597 = vector.shape_cast %596 : vector<1x16x16xf32> to vector<16x16xf32>
    %c1_220 = arith.constant 1 : index
    %598 = arith.index_cast %c7_i32_217 : i32 to index
    %c0_221 = arith.constant 0 : index
    %599 = vector.load %arg4[%c1_220, %598, %c0_221] : memref<3x24x16xf32, #tpu.memory_space<vmem>>, vector<1x16x16xf32>
    %600 = vector.shape_cast %599 : vector<1x16x16xf32> to vector<16x16xf32>
    %c2_222 = arith.constant 2 : index
    %601 = arith.index_cast %c7_i32_217 : i32 to index
    %c0_223 = arith.constant 0 : index
    %602 = vector.load %arg4[%c2_222, %601, %c0_223] : memref<3x24x16xf32, #tpu.memory_space<vmem>>, vector<1x16x16xf32>
    %603 = vector.shape_cast %602 : vector<1x16x16xf32> to vector<16x16xf32>
    %604 = arith.subf %603, %1 : vector<16x16xf32>
    %605 = arith.mulf %604, %3 : vector<16x16xf32>
    %606 = math.absf %605 : vector<16x16xf32>
    %cst_224 = arith.constant 1.500000e-01 : f32
    %607 = vector.broadcast %cst_224 : f32 to vector<16x16xf32>
    %608 = arith.cmpf ogt, %606, %607 : vector<16x16xf32>
    %cst_225 = arith.constant 0.000000e+00 : f32
    %609 = vector.broadcast %cst_225 : f32 to vector<16x16xf32>
    %610 = arith.select %608, %609, %597 : vector<16x16xi1>, vector<16x16xf32>
    %cst_226 = arith.constant 0.000000e+00 : f32
    %611 = vector.broadcast %cst_226 : f32 to vector<16x16xf32>
    %612 = arith.select %608, %611, %600 : vector<16x16xi1>, vector<16x16xf32>
    %cst_227 = arith.constant 0.000000e+00 : f32
    %613 = vector.broadcast %cst_227 : f32 to vector<16x16xf32>
    %614 = arith.select %608, %613, %603 : vector<16x16xi1>, vector<16x16xf32>
    %615 = arith.mulf %610, %610 : vector<16x16xf32>
    %616 = arith.addf %581, %615 : vector<16x16xf32>
    %617 = arith.mulf %612, %612 : vector<16x16xf32>
    %618 = arith.addf %583, %617 : vector<16x16xf32>
    %619 = arith.mulf %614, %614 : vector<16x16xf32>
    %620 = arith.addf %585, %619 : vector<16x16xf32>
    %621 = arith.mulf %610, %612 : vector<16x16xf32>
    %622 = arith.addf %587, %621 : vector<16x16xf32>
    %623 = arith.mulf %610, %614 : vector<16x16xf32>
    %624 = arith.addf %589, %623 : vector<16x16xf32>
    %625 = arith.mulf %612, %614 : vector<16x16xf32>
    %626 = arith.addf %591, %625 : vector<16x16xf32>
    %627 = arith.addf %592, %610 : vector<16x16xf32>
    %628 = arith.addf %593, %612 : vector<16x16xf32>
    %629 = arith.addf %594, %614 : vector<16x16xf32>
    %c8_i32_228 = arith.constant 8 : i32
    %c0_229 = arith.constant 0 : index
    %630 = arith.index_cast %c8_i32_228 : i32 to index
    %c0_230 = arith.constant 0 : index
    %631 = vector.load %arg4[%c0_229, %630, %c0_230] : memref<3x24x16xf32, #tpu.memory_space<vmem>>, vector<1x16x16xf32>
    %632 = vector.shape_cast %631 : vector<1x16x16xf32> to vector<16x16xf32>
    %c1_231 = arith.constant 1 : index
    %633 = arith.index_cast %c8_i32_228 : i32 to index
    %c0_232 = arith.constant 0 : index
    %634 = vector.load %arg4[%c1_231, %633, %c0_232] : memref<3x24x16xf32, #tpu.memory_space<vmem>>, vector<1x16x16xf32>
    %635 = vector.shape_cast %634 : vector<1x16x16xf32> to vector<16x16xf32>
    %c2_233 = arith.constant 2 : index
    %636 = arith.index_cast %c8_i32_228 : i32 to index
    %c0_234 = arith.constant 0 : index
    %637 = vector.load %arg4[%c2_233, %636, %c0_234] : memref<3x24x16xf32, #tpu.memory_space<vmem>>, vector<1x16x16xf32>
    %638 = vector.shape_cast %637 : vector<1x16x16xf32> to vector<16x16xf32>
    %639 = arith.subf %638, %1 : vector<16x16xf32>
    %640 = arith.mulf %639, %3 : vector<16x16xf32>
    %641 = math.absf %640 : vector<16x16xf32>
    %cst_235 = arith.constant 1.500000e-01 : f32
    %642 = vector.broadcast %cst_235 : f32 to vector<16x16xf32>
    %643 = arith.cmpf ogt, %641, %642 : vector<16x16xf32>
    %cst_236 = arith.constant 0.000000e+00 : f32
    %644 = vector.broadcast %cst_236 : f32 to vector<16x16xf32>
    %645 = arith.select %643, %644, %632 : vector<16x16xi1>, vector<16x16xf32>
    %cst_237 = arith.constant 0.000000e+00 : f32
    %646 = vector.broadcast %cst_237 : f32 to vector<16x16xf32>
    %647 = arith.select %643, %646, %635 : vector<16x16xi1>, vector<16x16xf32>
    %cst_238 = arith.constant 0.000000e+00 : f32
    %648 = vector.broadcast %cst_238 : f32 to vector<16x16xf32>
    %649 = arith.select %643, %648, %638 : vector<16x16xi1>, vector<16x16xf32>
    %650 = arith.mulf %645, %645 : vector<16x16xf32>
    %651 = arith.addf %616, %650 : vector<16x16xf32>
    %652 = arith.mulf %647, %647 : vector<16x16xf32>
    %653 = arith.addf %618, %652 : vector<16x16xf32>
    %654 = arith.mulf %649, %649 : vector<16x16xf32>
    %655 = arith.addf %620, %654 : vector<16x16xf32>
    %656 = arith.mulf %645, %647 : vector<16x16xf32>
    %657 = arith.addf %622, %656 : vector<16x16xf32>
    %658 = arith.mulf %645, %649 : vector<16x16xf32>
    %659 = arith.addf %624, %658 : vector<16x16xf32>
    %660 = arith.mulf %647, %649 : vector<16x16xf32>
    %661 = arith.addf %626, %660 : vector<16x16xf32>
    %662 = arith.addf %627, %645 : vector<16x16xf32>
    %663 = arith.addf %628, %647 : vector<16x16xf32>
    %664 = arith.addf %629, %649 : vector<16x16xf32>
    %c9_i32_239 = arith.constant 9 : i32
    %c0_240 = arith.constant 0 : index
    %c0_241 = arith.constant 0 : index
    %c0_242 = arith.constant 0 : index
    %c0_243 = arith.constant 0 : index
    %c2_244 = arith.constant 2 : index
    %665 = vector.load %arg2[%c0_240, %c0_241, %c0_242, %c0_243, %c2_244] : memref<1x1x3x24x24xf32, #tpu.memory_space<vmem>>, vector<1x1x1x24x16xf32>
    %666 = vector.shape_cast %665 : vector<1x1x1x24x16xf32> to vector<24x16xf32>
    %c0_245 = arith.constant 0 : index
    %c0_246 = arith.constant 0 : index
    %c0_247 = arith.constant 0 : index
    %667 = vector.load %arg4[%c0_245, %c0_246, %c0_247] : memref<3x24x16xf32, #tpu.memory_space<vmem>>, vector<1x24x16xf32>
    %668 = vector.shape_cast %667 : vector<1x24x16xf32> to vector<24x16xf32>
    %669 = vector.shape_cast %666 : vector<24x16xf32> to vector<1x24x16xf32>
    tpu.vector_store %arg4[%c0_245, %c0_246, %c0_247], %669 {strides = array<i32>} : memref<3x24x16xf32, #tpu.memory_space<vmem>>, vector<1x24x16xf32>,
    %c0_248 = arith.constant 0 : index
    %c0_249 = arith.constant 0 : index
    %c1_250 = arith.constant 1 : index
    %c0_251 = arith.constant 0 : index
    %c2_252 = arith.constant 2 : index
    %670 = vector.load %arg2[%c0_248, %c0_249, %c1_250, %c0_251, %c2_252] : memref<1x1x3x24x24xf32, #tpu.memory_space<vmem>>, vector<1x1x1x24x16xf32>
    %671 = vector.shape_cast %670 : vector<1x1x1x24x16xf32> to vector<24x16xf32>
    %c1_253 = arith.constant 1 : index
    %c0_254 = arith.constant 0 : index
    %c0_255 = arith.constant 0 : index
    %672 = vector.load %arg4[%c1_253, %c0_254, %c0_255] : memref<3x24x16xf32, #tpu.memory_space<vmem>>, vector<1x24x16xf32>
    %673 = vector.shape_cast %672 : vector<1x24x16xf32> to vector<24x16xf32>
    %674 = vector.shape_cast %671 : vector<24x16xf32> to vector<1x24x16xf32>
    tpu.vector_store %arg4[%c1_253, %c0_254, %c0_255], %674 {strides = array<i32>} : memref<3x24x16xf32, #tpu.memory_space<vmem>>, vector<1x24x16xf32>,
    %c0_256 = arith.constant 0 : index
    %c0_257 = arith.constant 0 : index
    %c2_258 = arith.constant 2 : index
    %c0_259 = arith.constant 0 : index
    %c2_260 = arith.constant 2 : index
    %675 = vector.load %arg2[%c0_256, %c0_257, %c2_258, %c0_259, %c2_260] : memref<1x1x3x24x24xf32, #tpu.memory_space<vmem>>, vector<1x1x1x24x16xf32>
    %676 = vector.shape_cast %675 : vector<1x1x1x24x16xf32> to vector<24x16xf32>
    %c2_261 = arith.constant 2 : index
    %c0_262 = arith.constant 0 : index
    %c0_263 = arith.constant 0 : index
    %677 = vector.load %arg4[%c2_261, %c0_262, %c0_263] : memref<3x24x16xf32, #tpu.memory_space<vmem>>, vector<1x24x16xf32>
    %678 = vector.shape_cast %677 : vector<1x24x16xf32> to vector<24x16xf32>
    %679 = vector.shape_cast %676 : vector<24x16xf32> to vector<1x24x16xf32>
    tpu.vector_store %arg4[%c2_261, %c0_262, %c0_263], %679 {strides = array<i32>} : memref<3x24x16xf32, #tpu.memory_space<vmem>>, vector<1x24x16xf32>,
    %c0_i32_264 = arith.constant 0 : i32
    %c0_265 = arith.constant 0 : index
    %680 = arith.index_cast %c0_i32_264 : i32 to index
    %c0_266 = arith.constant 0 : index
    %681 = vector.load %arg4[%c0_265, %680, %c0_266] : memref<3x24x16xf32, #tpu.memory_space<vmem>>, vector<1x16x16xf32>
    %682 = vector.shape_cast %681 : vector<1x16x16xf32> to vector<16x16xf32>
    %c1_267 = arith.constant 1 : index
    %683 = arith.index_cast %c0_i32_264 : i32 to index
    %c0_268 = arith.constant 0 : index
    %684 = vector.load %arg4[%c1_267, %683, %c0_268] : memref<3x24x16xf32, #tpu.memory_space<vmem>>, vector<1x16x16xf32>
    %685 = vector.shape_cast %684 : vector<1x16x16xf32> to vector<16x16xf32>
    %c2_269 = arith.constant 2 : index
    %686 = arith.index_cast %c0_i32_264 : i32 to index
    %c0_270 = arith.constant 0 : index
    %687 = vector.load %arg4[%c2_269, %686, %c0_270] : memref<3x24x16xf32, #tpu.memory_space<vmem>>, vector<1x16x16xf32>
    %688 = vector.shape_cast %687 : vector<1x16x16xf32> to vector<16x16xf32>
    %689 = arith.subf %688, %1 : vector<16x16xf32>
    %690 = arith.mulf %689, %3 : vector<16x16xf32>
    %691 = math.absf %690 : vector<16x16xf32>
    %cst_271 = arith.constant 1.500000e-01 : f32
    %692 = vector.broadcast %cst_271 : f32 to vector<16x16xf32>
    %693 = arith.cmpf ogt, %691, %692 : vector<16x16xf32>
    %cst_272 = arith.constant 0.000000e+00 : f32
    %694 = vector.broadcast %cst_272 : f32 to vector<16x16xf32>
    %695 = arith.select %693, %694, %682 : vector<16x16xi1>, vector<16x16xf32>
    %cst_273 = arith.constant 0.000000e+00 : f32
    %696 = vector.broadcast %cst_273 : f32 to vector<16x16xf32>
    %697 = arith.select %693, %696, %685 : vector<16x16xi1>, vector<16x16xf32>
    %cst_274 = arith.constant 0.000000e+00 : f32
    %698 = vector.broadcast %cst_274 : f32 to vector<16x16xf32>
    %699 = arith.select %693, %698, %688 : vector<16x16xi1>, vector<16x16xf32>
    %700 = arith.mulf %695, %695 : vector<16x16xf32>
    %701 = arith.addf %651, %700 : vector<16x16xf32>
    %702 = arith.mulf %697, %697 : vector<16x16xf32>
    %703 = arith.addf %653, %702 : vector<16x16xf32>
    %704 = arith.mulf %699, %699 : vector<16x16xf32>
    %705 = arith.addf %655, %704 : vector<16x16xf32>
    %706 = arith.mulf %695, %697 : vector<16x16xf32>
    %707 = arith.addf %657, %706 : vector<16x16xf32>
    %708 = arith.mulf %695, %699 : vector<16x16xf32>
    %709 = arith.addf %659, %708 : vector<16x16xf32>
    %710 = arith.mulf %697, %699 : vector<16x16xf32>
    %711 = arith.addf %661, %710 : vector<16x16xf32>
    %712 = arith.addf %662, %695 : vector<16x16xf32>
    %713 = arith.addf %663, %697 : vector<16x16xf32>
    %714 = arith.addf %664, %699 : vector<16x16xf32>
    %c1_i32_275 = arith.constant 1 : i32
    %c0_276 = arith.constant 0 : index
    %715 = arith.index_cast %c1_i32_275 : i32 to index
    %c0_277 = arith.constant 0 : index
    %716 = vector.load %arg4[%c0_276, %715, %c0_277] : memref<3x24x16xf32, #tpu.memory_space<vmem>>, vector<1x16x16xf32>
    %717 = vector.shape_cast %716 : vector<1x16x16xf32> to vector<16x16xf32>
    %c1_278 = arith.constant 1 : index
    %718 = arith.index_cast %c1_i32_275 : i32 to index
    %c0_279 = arith.constant 0 : index
    %719 = vector.load %arg4[%c1_278, %718, %c0_279] : memref<3x24x16xf32, #tpu.memory_space<vmem>>, vector<1x16x16xf32>
    %720 = vector.shape_cast %719 : vector<1x16x16xf32> to vector<16x16xf32>
    %c2_280 = arith.constant 2 : index
    %721 = arith.index_cast %c1_i32_275 : i32 to index
    %c0_281 = arith.constant 0 : index
    %722 = vector.load %arg4[%c2_280, %721, %c0_281] : memref<3x24x16xf32, #tpu.memory_space<vmem>>, vector<1x16x16xf32>
    %723 = vector.shape_cast %722 : vector<1x16x16xf32> to vector<16x16xf32>
    %724 = arith.subf %723, %1 : vector<16x16xf32>
    %725 = arith.mulf %724, %3 : vector<16x16xf32>
    %726 = math.absf %725 : vector<16x16xf32>
    %cst_282 = arith.constant 1.500000e-01 : f32
    %727 = vector.broadcast %cst_282 : f32 to vector<16x16xf32>
    %728 = arith.cmpf ogt, %726, %727 : vector<16x16xf32>
    %cst_283 = arith.constant 0.000000e+00 : f32
    %729 = vector.broadcast %cst_283 : f32 to vector<16x16xf32>
    %730 = arith.select %728, %729, %717 : vector<16x16xi1>, vector<16x16xf32>
    %cst_284 = arith.constant 0.000000e+00 : f32
    %731 = vector.broadcast %cst_284 : f32 to vector<16x16xf32>
    %732 = arith.select %728, %731, %720 : vector<16x16xi1>, vector<16x16xf32>
    %cst_285 = arith.constant 0.000000e+00 : f32
    %733 = vector.broadcast %cst_285 : f32 to vector<16x16xf32>
    %734 = arith.select %728, %733, %723 : vector<16x16xi1>, vector<16x16xf32>
    %735 = arith.mulf %730, %730 : vector<16x16xf32>
    %736 = arith.addf %701, %735 : vector<16x16xf32>
    %737 = arith.mulf %732, %732 : vector<16x16xf32>
    %738 = arith.addf %703, %737 : vector<16x16xf32>
    %739 = arith.mulf %734, %734 : vector<16x16xf32>
    %740 = arith.addf %705, %739 : vector<16x16xf32>
    %741 = arith.mulf %730, %732 : vector<16x16xf32>
    %742 = arith.addf %707, %741 : vector<16x16xf32>
    %743 = arith.mulf %730, %734 : vector<16x16xf32>
    %744 = arith.addf %709, %743 : vector<16x16xf32>
    %745 = arith.mulf %732, %734 : vector<16x16xf32>
    %746 = arith.addf %711, %745 : vector<16x16xf32>
    %747 = arith.addf %712, %730 : vector<16x16xf32>
    %748 = arith.addf %713, %732 : vector<16x16xf32>
    %749 = arith.addf %714, %734 : vector<16x16xf32>
    %c2_i32_286 = arith.constant 2 : i32
    %c0_287 = arith.constant 0 : index
    %750 = arith.index_cast %c2_i32_286 : i32 to index
    %c0_288 = arith.constant 0 : index
    %751 = vector.load %arg4[%c0_287, %750, %c0_288] : memref<3x24x16xf32, #tpu.memory_space<vmem>>, vector<1x16x16xf32>
    %752 = vector.shape_cast %751 : vector<1x16x16xf32> to vector<16x16xf32>
    %c1_289 = arith.constant 1 : index
    %753 = arith.index_cast %c2_i32_286 : i32 to index
    %c0_290 = arith.constant 0 : index
    %754 = vector.load %arg4[%c1_289, %753, %c0_290] : memref<3x24x16xf32, #tpu.memory_space<vmem>>, vector<1x16x16xf32>
    %755 = vector.shape_cast %754 : vector<1x16x16xf32> to vector<16x16xf32>
    %c2_291 = arith.constant 2 : index
    %756 = arith.index_cast %c2_i32_286 : i32 to index
    %c0_292 = arith.constant 0 : index
    %757 = vector.load %arg4[%c2_291, %756, %c0_292] : memref<3x24x16xf32, #tpu.memory_space<vmem>>, vector<1x16x16xf32>
    %758 = vector.shape_cast %757 : vector<1x16x16xf32> to vector<16x16xf32>
    %759 = arith.subf %758, %1 : vector<16x16xf32>
    %760 = arith.mulf %759, %3 : vector<16x16xf32>
    %761 = math.absf %760 : vector<16x16xf32>
    %cst_293 = arith.constant 1.500000e-01 : f32
    %762 = vector.broadcast %cst_293 : f32 to vector<16x16xf32>
    %763 = arith.cmpf ogt, %761, %762 : vector<16x16xf32>
    %cst_294 = arith.constant 0.000000e+00 : f32
    %764 = vector.broadcast %cst_294 : f32 to vector<16x16xf32>
    %765 = arith.select %763, %764, %752 : vector<16x16xi1>, vector<16x16xf32>
    %cst_295 = arith.constant 0.000000e+00 : f32
    %766 = vector.broadcast %cst_295 : f32 to vector<16x16xf32>
    %767 = arith.select %763, %766, %755 : vector<16x16xi1>, vector<16x16xf32>
    %cst_296 = arith.constant 0.000000e+00 : f32
    %768 = vector.broadcast %cst_296 : f32 to vector<16x16xf32>
    %769 = arith.select %763, %768, %758 : vector<16x16xi1>, vector<16x16xf32>
    %770 = arith.mulf %765, %765 : vector<16x16xf32>
    %771 = arith.addf %736, %770 : vector<16x16xf32>
    %772 = arith.mulf %767, %767 : vector<16x16xf32>
    %773 = arith.addf %738, %772 : vector<16x16xf32>
    %774 = arith.mulf %769, %769 : vector<16x16xf32>
    %775 = arith.addf %740, %774 : vector<16x16xf32>
    %776 = arith.mulf %765, %767 : vector<16x16xf32>
    %777 = arith.addf %742, %776 : vector<16x16xf32>
    %778 = arith.mulf %765, %769 : vector<16x16xf32>
    %779 = arith.addf %744, %778 : vector<16x16xf32>
    %780 = arith.mulf %767, %769 : vector<16x16xf32>
    %781 = arith.addf %746, %780 : vector<16x16xf32>
    %782 = arith.addf %747, %765 : vector<16x16xf32>
    %783 = arith.addf %748, %767 : vector<16x16xf32>
    %784 = arith.addf %749, %769 : vector<16x16xf32>
    %c3_i32_297 = arith.constant 3 : i32
    %c0_298 = arith.constant 0 : index
    %785 = arith.index_cast %c3_i32_297 : i32 to index
    %c0_299 = arith.constant 0 : index
    %786 = vector.load %arg4[%c0_298, %785, %c0_299] : memref<3x24x16xf32, #tpu.memory_space<vmem>>, vector<1x16x16xf32>
    %787 = vector.shape_cast %786 : vector<1x16x16xf32> to vector<16x16xf32>
    %c1_300 = arith.constant 1 : index
    %788 = arith.index_cast %c3_i32_297 : i32 to index
    %c0_301 = arith.constant 0 : index
    %789 = vector.load %arg4[%c1_300, %788, %c0_301] : memref<3x24x16xf32, #tpu.memory_space<vmem>>, vector<1x16x16xf32>
    %790 = vector.shape_cast %789 : vector<1x16x16xf32> to vector<16x16xf32>
    %c2_302 = arith.constant 2 : index
    %791 = arith.index_cast %c3_i32_297 : i32 to index
    %c0_303 = arith.constant 0 : index
    %792 = vector.load %arg4[%c2_302, %791, %c0_303] : memref<3x24x16xf32, #tpu.memory_space<vmem>>, vector<1x16x16xf32>
    %793 = vector.shape_cast %792 : vector<1x16x16xf32> to vector<16x16xf32>
    %794 = arith.subf %793, %1 : vector<16x16xf32>
    %795 = arith.mulf %794, %3 : vector<16x16xf32>
    %796 = math.absf %795 : vector<16x16xf32>
    %cst_304 = arith.constant 1.500000e-01 : f32
    %797 = vector.broadcast %cst_304 : f32 to vector<16x16xf32>
    %798 = arith.cmpf ogt, %796, %797 : vector<16x16xf32>
    %cst_305 = arith.constant 0.000000e+00 : f32
    %799 = vector.broadcast %cst_305 : f32 to vector<16x16xf32>
    %800 = arith.select %798, %799, %787 : vector<16x16xi1>, vector<16x16xf32>
    %cst_306 = arith.constant 0.000000e+00 : f32
    %801 = vector.broadcast %cst_306 : f32 to vector<16x16xf32>
    %802 = arith.select %798, %801, %790 : vector<16x16xi1>, vector<16x16xf32>
    %cst_307 = arith.constant 0.000000e+00 : f32
    %803 = vector.broadcast %cst_307 : f32 to vector<16x16xf32>
    %804 = arith.select %798, %803, %793 : vector<16x16xi1>, vector<16x16xf32>
    %805 = arith.mulf %800, %800 : vector<16x16xf32>
    %806 = arith.addf %771, %805 : vector<16x16xf32>
    %807 = arith.mulf %802, %802 : vector<16x16xf32>
    %808 = arith.addf %773, %807 : vector<16x16xf32>
    %809 = arith.mulf %804, %804 : vector<16x16xf32>
    %810 = arith.addf %775, %809 : vector<16x16xf32>
    %811 = arith.mulf %800, %802 : vector<16x16xf32>
    %812 = arith.addf %777, %811 : vector<16x16xf32>
    %813 = arith.mulf %800, %804 : vector<16x16xf32>
    %814 = arith.addf %779, %813 : vector<16x16xf32>
    %815 = arith.mulf %802, %804 : vector<16x16xf32>
    %816 = arith.addf %781, %815 : vector<16x16xf32>
    %817 = arith.addf %782, %800 : vector<16x16xf32>
    %818 = arith.addf %783, %802 : vector<16x16xf32>
    %819 = arith.addf %784, %804 : vector<16x16xf32>
    %c4_i32_308 = arith.constant 4 : i32
    %c0_309 = arith.constant 0 : index
    %820 = arith.index_cast %c4_i32_308 : i32 to index
    %c0_310 = arith.constant 0 : index
    %821 = vector.load %arg4[%c0_309, %820, %c0_310] : memref<3x24x16xf32, #tpu.memory_space<vmem>>, vector<1x16x16xf32>
    %822 = vector.shape_cast %821 : vector<1x16x16xf32> to vector<16x16xf32>
    %c1_311 = arith.constant 1 : index
    %823 = arith.index_cast %c4_i32_308 : i32 to index
    %c0_312 = arith.constant 0 : index
    %824 = vector.load %arg4[%c1_311, %823, %c0_312] : memref<3x24x16xf32, #tpu.memory_space<vmem>>, vector<1x16x16xf32>
    %825 = vector.shape_cast %824 : vector<1x16x16xf32> to vector<16x16xf32>
    %c2_313 = arith.constant 2 : index
    %826 = arith.index_cast %c4_i32_308 : i32 to index
    %c0_314 = arith.constant 0 : index
    %827 = vector.load %arg4[%c2_313, %826, %c0_314] : memref<3x24x16xf32, #tpu.memory_space<vmem>>, vector<1x16x16xf32>
    %828 = vector.shape_cast %827 : vector<1x16x16xf32> to vector<16x16xf32>
    %829 = arith.subf %828, %1 : vector<16x16xf32>
    %830 = arith.mulf %829, %3 : vector<16x16xf32>
    %831 = math.absf %830 : vector<16x16xf32>
    %cst_315 = arith.constant 1.500000e-01 : f32
    %832 = vector.broadcast %cst_315 : f32 to vector<16x16xf32>
    %833 = arith.cmpf ogt, %831, %832 : vector<16x16xf32>
    %cst_316 = arith.constant 0.000000e+00 : f32
    %834 = vector.broadcast %cst_316 : f32 to vector<16x16xf32>
    %835 = arith.select %833, %834, %822 : vector<16x16xi1>, vector<16x16xf32>
    %cst_317 = arith.constant 0.000000e+00 : f32
    %836 = vector.broadcast %cst_317 : f32 to vector<16x16xf32>
    %837 = arith.select %833, %836, %825 : vector<16x16xi1>, vector<16x16xf32>
    %cst_318 = arith.constant 0.000000e+00 : f32
    %838 = vector.broadcast %cst_318 : f32 to vector<16x16xf32>
    %839 = arith.select %833, %838, %828 : vector<16x16xi1>, vector<16x16xf32>
    %840 = arith.mulf %835, %835 : vector<16x16xf32>
    %841 = arith.addf %806, %840 : vector<16x16xf32>
    %842 = arith.mulf %837, %837 : vector<16x16xf32>
    %843 = arith.addf %808, %842 : vector<16x16xf32>
    %844 = arith.mulf %839, %839 : vector<16x16xf32>
    %845 = arith.addf %810, %844 : vector<16x16xf32>
    %846 = arith.mulf %835, %837 : vector<16x16xf32>
    %847 = arith.addf %812, %846 : vector<16x16xf32>
    %848 = arith.mulf %835, %839 : vector<16x16xf32>
    %849 = arith.addf %814, %848 : vector<16x16xf32>
    %850 = arith.mulf %837, %839 : vector<16x16xf32>
    %851 = arith.addf %816, %850 : vector<16x16xf32>
    %852 = arith.addf %817, %835 : vector<16x16xf32>
    %853 = arith.addf %818, %837 : vector<16x16xf32>
    %854 = arith.addf %819, %839 : vector<16x16xf32>
    %c5_i32_319 = arith.constant 5 : i32
    %c0_320 = arith.constant 0 : index
    %855 = arith.index_cast %c5_i32_319 : i32 to index
    %c0_321 = arith.constant 0 : index
    %856 = vector.load %arg4[%c0_320, %855, %c0_321] : memref<3x24x16xf32, #tpu.memory_space<vmem>>, vector<1x16x16xf32>
    %857 = vector.shape_cast %856 : vector<1x16x16xf32> to vector<16x16xf32>
    %c1_322 = arith.constant 1 : index
    %858 = arith.index_cast %c5_i32_319 : i32 to index
    %c0_323 = arith.constant 0 : index
    %859 = vector.load %arg4[%c1_322, %858, %c0_323] : memref<3x24x16xf32, #tpu.memory_space<vmem>>, vector<1x16x16xf32>
    %860 = vector.shape_cast %859 : vector<1x16x16xf32> to vector<16x16xf32>
    %c2_324 = arith.constant 2 : index
    %861 = arith.index_cast %c5_i32_319 : i32 to index
    %c0_325 = arith.constant 0 : index
    %862 = vector.load %arg4[%c2_324, %861, %c0_325] : memref<3x24x16xf32, #tpu.memory_space<vmem>>, vector<1x16x16xf32>
    %863 = vector.shape_cast %862 : vector<1x16x16xf32> to vector<16x16xf32>
    %864 = arith.subf %863, %1 : vector<16x16xf32>
    %865 = arith.mulf %864, %3 : vector<16x16xf32>
    %866 = math.absf %865 : vector<16x16xf32>
    %cst_326 = arith.constant 1.500000e-01 : f32
    %867 = vector.broadcast %cst_326 : f32 to vector<16x16xf32>
    %868 = arith.cmpf ogt, %866, %867 : vector<16x16xf32>
    %cst_327 = arith.constant 0.000000e+00 : f32
    %869 = vector.broadcast %cst_327 : f32 to vector<16x16xf32>
    %870 = arith.select %868, %869, %857 : vector<16x16xi1>, vector<16x16xf32>
    %cst_328 = arith.constant 0.000000e+00 : f32
    %871 = vector.broadcast %cst_328 : f32 to vector<16x16xf32>
    %872 = arith.select %868, %871, %860 : vector<16x16xi1>, vector<16x16xf32>
    %cst_329 = arith.constant 0.000000e+00 : f32
    %873 = vector.broadcast %cst_329 : f32 to vector<16x16xf32>
    %874 = arith.select %868, %873, %863 : vector<16x16xi1>, vector<16x16xf32>
    %875 = arith.mulf %870, %870 : vector<16x16xf32>
    %876 = arith.addf %841, %875 : vector<16x16xf32>
    %877 = arith.mulf %872, %872 : vector<16x16xf32>
    %878 = arith.addf %843, %877 : vector<16x16xf32>
    %879 = arith.mulf %874, %874 : vector<16x16xf32>
    %880 = arith.addf %845, %879 : vector<16x16xf32>
    %881 = arith.mulf %870, %872 : vector<16x16xf32>
    %882 = arith.addf %847, %881 : vector<16x16xf32>
    %883 = arith.mulf %870, %874 : vector<16x16xf32>
    %884 = arith.addf %849, %883 : vector<16x16xf32>
    %885 = arith.mulf %872, %874 : vector<16x16xf32>
    %886 = arith.addf %851, %885 : vector<16x16xf32>
    %887 = arith.addf %852, %870 : vector<16x16xf32>
    %888 = arith.addf %853, %872 : vector<16x16xf32>
    %889 = arith.addf %854, %874 : vector<16x16xf32>
    %c6_i32_330 = arith.constant 6 : i32
    %c0_331 = arith.constant 0 : index
    %890 = arith.index_cast %c6_i32_330 : i32 to index
    %c0_332 = arith.constant 0 : index
    %891 = vector.load %arg4[%c0_331, %890, %c0_332] : memref<3x24x16xf32, #tpu.memory_space<vmem>>, vector<1x16x16xf32>
    %892 = vector.shape_cast %891 : vector<1x16x16xf32> to vector<16x16xf32>
    %c1_333 = arith.constant 1 : index
    %893 = arith.index_cast %c6_i32_330 : i32 to index
    %c0_334 = arith.constant 0 : index
    %894 = vector.load %arg4[%c1_333, %893, %c0_334] : memref<3x24x16xf32, #tpu.memory_space<vmem>>, vector<1x16x16xf32>
    %895 = vector.shape_cast %894 : vector<1x16x16xf32> to vector<16x16xf32>
    %c2_335 = arith.constant 2 : index
    %896 = arith.index_cast %c6_i32_330 : i32 to index
    %c0_336 = arith.constant 0 : index
    %897 = vector.load %arg4[%c2_335, %896, %c0_336] : memref<3x24x16xf32, #tpu.memory_space<vmem>>, vector<1x16x16xf32>
    %898 = vector.shape_cast %897 : vector<1x16x16xf32> to vector<16x16xf32>
    %899 = arith.subf %898, %1 : vector<16x16xf32>
    %900 = arith.mulf %899, %3 : vector<16x16xf32>
    %901 = math.absf %900 : vector<16x16xf32>
    %cst_337 = arith.constant 1.500000e-01 : f32
    %902 = vector.broadcast %cst_337 : f32 to vector<16x16xf32>
    %903 = arith.cmpf ogt, %901, %902 : vector<16x16xf32>
    %cst_338 = arith.constant 0.000000e+00 : f32
    %904 = vector.broadcast %cst_338 : f32 to vector<16x16xf32>
    %905 = arith.select %903, %904, %892 : vector<16x16xi1>, vector<16x16xf32>
    %cst_339 = arith.constant 0.000000e+00 : f32
    %906 = vector.broadcast %cst_339 : f32 to vector<16x16xf32>
    %907 = arith.select %903, %906, %895 : vector<16x16xi1>, vector<16x16xf32>
    %cst_340 = arith.constant 0.000000e+00 : f32
    %908 = vector.broadcast %cst_340 : f32 to vector<16x16xf32>
    %909 = arith.select %903, %908, %898 : vector<16x16xi1>, vector<16x16xf32>
    %910 = arith.mulf %905, %905 : vector<16x16xf32>
    %911 = arith.addf %876, %910 : vector<16x16xf32>
    %912 = arith.mulf %907, %907 : vector<16x16xf32>
    %913 = arith.addf %878, %912 : vector<16x16xf32>
    %914 = arith.mulf %909, %909 : vector<16x16xf32>
    %915 = arith.addf %880, %914 : vector<16x16xf32>
    %916 = arith.mulf %905, %907 : vector<16x16xf32>
    %917 = arith.addf %882, %916 : vector<16x16xf32>
    %918 = arith.mulf %905, %909 : vector<16x16xf32>
    %919 = arith.addf %884, %918 : vector<16x16xf32>
    %920 = arith.mulf %907, %909 : vector<16x16xf32>
    %921 = arith.addf %886, %920 : vector<16x16xf32>
    %922 = arith.addf %887, %905 : vector<16x16xf32>
    %923 = arith.addf %888, %907 : vector<16x16xf32>
    %924 = arith.addf %889, %909 : vector<16x16xf32>
    %c7_i32_341 = arith.constant 7 : i32
    %c0_342 = arith.constant 0 : index
    %925 = arith.index_cast %c7_i32_341 : i32 to index
    %c0_343 = arith.constant 0 : index
    %926 = vector.load %arg4[%c0_342, %925, %c0_343] : memref<3x24x16xf32, #tpu.memory_space<vmem>>, vector<1x16x16xf32>
    %927 = vector.shape_cast %926 : vector<1x16x16xf32> to vector<16x16xf32>
    %c1_344 = arith.constant 1 : index
    %928 = arith.index_cast %c7_i32_341 : i32 to index
    %c0_345 = arith.constant 0 : index
    %929 = vector.load %arg4[%c1_344, %928, %c0_345] : memref<3x24x16xf32, #tpu.memory_space<vmem>>, vector<1x16x16xf32>
    %930 = vector.shape_cast %929 : vector<1x16x16xf32> to vector<16x16xf32>
    %c2_346 = arith.constant 2 : index
    %931 = arith.index_cast %c7_i32_341 : i32 to index
    %c0_347 = arith.constant 0 : index
    %932 = vector.load %arg4[%c2_346, %931, %c0_347] : memref<3x24x16xf32, #tpu.memory_space<vmem>>, vector<1x16x16xf32>
    %933 = vector.shape_cast %932 : vector<1x16x16xf32> to vector<16x16xf32>
    %934 = arith.subf %933, %1 : vector<16x16xf32>
    %935 = arith.mulf %934, %3 : vector<16x16xf32>
    %936 = math.absf %935 : vector<16x16xf32>
    %cst_348 = arith.constant 1.500000e-01 : f32
    %937 = vector.broadcast %cst_348 : f32 to vector<16x16xf32>
    %938 = arith.cmpf ogt, %936, %937 : vector<16x16xf32>
    %cst_349 = arith.constant 0.000000e+00 : f32
    %939 = vector.broadcast %cst_349 : f32 to vector<16x16xf32>
    %940 = arith.select %938, %939, %927 : vector<16x16xi1>, vector<16x16xf32>
    %cst_350 = arith.constant 0.000000e+00 : f32
    %941 = vector.broadcast %cst_350 : f32 to vector<16x16xf32>
    %942 = arith.select %938, %941, %930 : vector<16x16xi1>, vector<16x16xf32>
    %cst_351 = arith.constant 0.000000e+00 : f32
    %943 = vector.broadcast %cst_351 : f32 to vector<16x16xf32>
    %944 = arith.select %938, %943, %933 : vector<16x16xi1>, vector<16x16xf32>
    %945 = arith.mulf %940, %940 : vector<16x16xf32>
    %946 = arith.addf %911, %945 : vector<16x16xf32>
    %947 = arith.mulf %942, %942 : vector<16x16xf32>
    %948 = arith.addf %913, %947 : vector<16x16xf32>
    %949 = arith.mulf %944, %944 : vector<16x16xf32>
    %950 = arith.addf %915, %949 : vector<16x16xf32>
    %951 = arith.mulf %940, %942 : vector<16x16xf32>
    %952 = arith.addf %917, %951 : vector<16x16xf32>
    %953 = arith.mulf %940, %944 : vector<16x16xf32>
    %954 = arith.addf %919, %953 : vector<16x16xf32>
    %955 = arith.mulf %942, %944 : vector<16x16xf32>
    %956 = arith.addf %921, %955 : vector<16x16xf32>
    %957 = arith.addf %922, %940 : vector<16x16xf32>
    %958 = arith.addf %923, %942 : vector<16x16xf32>
    %959 = arith.addf %924, %944 : vector<16x16xf32>
    %c8_i32_352 = arith.constant 8 : i32
    %c0_353 = arith.constant 0 : index
    %960 = arith.index_cast %c8_i32_352 : i32 to index
    %c0_354 = arith.constant 0 : index
    %961 = vector.load %arg4[%c0_353, %960, %c0_354] : memref<3x24x16xf32, #tpu.memory_space<vmem>>, vector<1x16x16xf32>
    %962 = vector.shape_cast %961 : vector<1x16x16xf32> to vector<16x16xf32>
    %c1_355 = arith.constant 1 : index
    %963 = arith.index_cast %c8_i32_352 : i32 to index
    %c0_356 = arith.constant 0 : index
    %964 = vector.load %arg4[%c1_355, %963, %c0_356] : memref<3x24x16xf32, #tpu.memory_space<vmem>>, vector<1x16x16xf32>
    %965 = vector.shape_cast %964 : vector<1x16x16xf32> to vector<16x16xf32>
    %c2_357 = arith.constant 2 : index
    %966 = arith.index_cast %c8_i32_352 : i32 to index
    %c0_358 = arith.constant 0 : index
    %967 = vector.load %arg4[%c2_357, %966, %c0_358] : memref<3x24x16xf32, #tpu.memory_space<vmem>>, vector<1x16x16xf32>
    %968 = vector.shape_cast %967 : vector<1x16x16xf32> to vector<16x16xf32>
    %969 = arith.subf %968, %1 : vector<16x16xf32>
    %970 = arith.mulf %969, %3 : vector<16x16xf32>
    %971 = math.absf %970 : vector<16x16xf32>
    %cst_359 = arith.constant 1.500000e-01 : f32
    %972 = vector.broadcast %cst_359 : f32 to vector<16x16xf32>
    %973 = arith.cmpf ogt, %971, %972 : vector<16x16xf32>
    %cst_360 = arith.constant 0.000000e+00 : f32
    %974 = vector.broadcast %cst_360 : f32 to vector<16x16xf32>
    %975 = arith.select %973, %974, %962 : vector<16x16xi1>, vector<16x16xf32>
    %cst_361 = arith.constant 0.000000e+00 : f32
    %976 = vector.broadcast %cst_361 : f32 to vector<16x16xf32>
    %977 = arith.select %973, %976, %965 : vector<16x16xi1>, vector<16x16xf32>
    %cst_362 = arith.constant 0.000000e+00 : f32
    %978 = vector.broadcast %cst_362 : f32 to vector<16x16xf32>
    %979 = arith.select %973, %978, %968 : vector<16x16xi1>, vector<16x16xf32>
    %980 = arith.mulf %975, %975 : vector<16x16xf32>
    %981 = arith.addf %946, %980 : vector<16x16xf32>
    %982 = arith.mulf %977, %977 : vector<16x16xf32>
    %983 = arith.addf %948, %982 : vector<16x16xf32>
    %984 = arith.mulf %979, %979 : vector<16x16xf32>
    %985 = arith.addf %950, %984 : vector<16x16xf32>
    %986 = arith.mulf %975, %977 : vector<16x16xf32>
    %987 = arith.addf %952, %986 : vector<16x16xf32>
    %988 = arith.mulf %975, %979 : vector<16x16xf32>
    %989 = arith.addf %954, %988 : vector<16x16xf32>
    %990 = arith.mulf %977, %979 : vector<16x16xf32>
    %991 = arith.addf %956, %990 : vector<16x16xf32>
    %992 = arith.addf %957, %975 : vector<16x16xf32>
    %993 = arith.addf %958, %977 : vector<16x16xf32>
    %994 = arith.addf %959, %979 : vector<16x16xf32>
    %c9_i32_363 = arith.constant 9 : i32
    %c0_364 = arith.constant 0 : index
    %c0_365 = arith.constant 0 : index
    %c0_366 = arith.constant 0 : index
    %c0_367 = arith.constant 0 : index
    %c3 = arith.constant 3 : index
    %995 = vector.load %arg2[%c0_364, %c0_365, %c0_366, %c0_367, %c3] : memref<1x1x3x24x24xf32, #tpu.memory_space<vmem>>, vector<1x1x1x24x16xf32>
    %996 = vector.shape_cast %995 : vector<1x1x1x24x16xf32> to vector<24x16xf32>
    %c0_368 = arith.constant 0 : index
    %c0_369 = arith.constant 0 : index
    %c0_370 = arith.constant 0 : index
    %997 = vector.load %arg4[%c0_368, %c0_369, %c0_370] : memref<3x24x16xf32, #tpu.memory_space<vmem>>, vector<1x24x16xf32>
    %998 = vector.shape_cast %997 : vector<1x24x16xf32> to vector<24x16xf32>
    %999 = vector.shape_cast %996 : vector<24x16xf32> to vector<1x24x16xf32>
    tpu.vector_store %arg4[%c0_368, %c0_369, %c0_370], %999 {strides = array<i32>} : memref<3x24x16xf32, #tpu.memory_space<vmem>>, vector<1x24x16xf32>,
    %c0_371 = arith.constant 0 : index
    %c0_372 = arith.constant 0 : index
    %c1_373 = arith.constant 1 : index
    %c0_374 = arith.constant 0 : index
    %c3_375 = arith.constant 3 : index
    %1000 = vector.load %arg2[%c0_371, %c0_372, %c1_373, %c0_374, %c3_375] : memref<1x1x3x24x24xf32, #tpu.memory_space<vmem>>, vector<1x1x1x24x16xf32>
    %1001 = vector.shape_cast %1000 : vector<1x1x1x24x16xf32> to vector<24x16xf32>
    %c1_376 = arith.constant 1 : index
    %c0_377 = arith.constant 0 : index
    %c0_378 = arith.constant 0 : index
    %1002 = vector.load %arg4[%c1_376, %c0_377, %c0_378] : memref<3x24x16xf32, #tpu.memory_space<vmem>>, vector<1x24x16xf32>
    %1003 = vector.shape_cast %1002 : vector<1x24x16xf32> to vector<24x16xf32>
    %1004 = vector.shape_cast %1001 : vector<24x16xf32> to vector<1x24x16xf32>
    tpu.vector_store %arg4[%c1_376, %c0_377, %c0_378], %1004 {strides = array<i32>} : memref<3x24x16xf32, #tpu.memory_space<vmem>>, vector<1x24x16xf32>,
    %c0_379 = arith.constant 0 : index
    %c0_380 = arith.constant 0 : index
    %c2_381 = arith.constant 2 : index
    %c0_382 = arith.constant 0 : index
    %c3_383 = arith.constant 3 : index
    %1005 = vector.load %arg2[%c0_379, %c0_380, %c2_381, %c0_382, %c3_383] : memref<1x1x3x24x24xf32, #tpu.memory_space<vmem>>, vector<1x1x1x24x16xf32>
    %1006 = vector.shape_cast %1005 : vector<1x1x1x24x16xf32> to vector<24x16xf32>
    %c2_384 = arith.constant 2 : index
    %c0_385 = arith.constant 0 : index
    %c0_386 = arith.constant 0 : index
    %1007 = vector.load %arg4[%c2_384, %c0_385, %c0_386] : memref<3x24x16xf32, #tpu.memory_space<vmem>>, vector<1x24x16xf32>
    %1008 = vector.shape_cast %1007 : vector<1x24x16xf32> to vector<24x16xf32>
    %1009 = vector.shape_cast %1006 : vector<24x16xf32> to vector<1x24x16xf32>
    tpu.vector_store %arg4[%c2_384, %c0_385, %c0_386], %1009 {strides = array<i32>} : memref<3x24x16xf32, #tpu.memory_space<vmem>>, vector<1x24x16xf32>,
    %c0_i32_387 = arith.constant 0 : i32
    %c0_388 = arith.constant 0 : index
    %1010 = arith.index_cast %c0_i32_387 : i32 to index
    %c0_389 = arith.constant 0 : index
    %1011 = vector.load %arg4[%c0_388, %1010, %c0_389] : memref<3x24x16xf32, #tpu.memory_space<vmem>>, vector<1x16x16xf32>
    %1012 = vector.shape_cast %1011 : vector<1x16x16xf32> to vector<16x16xf32>
    %c1_390 = arith.constant 1 : index
    %1013 = arith.index_cast %c0_i32_387 : i32 to index
    %c0_391 = arith.constant 0 : index
    %1014 = vector.load %arg4[%c1_390, %1013, %c0_391] : memref<3x24x16xf32, #tpu.memory_space<vmem>>, vector<1x16x16xf32>
    %1015 = vector.shape_cast %1014 : vector<1x16x16xf32> to vector<16x16xf32>
    %c2_392 = arith.constant 2 : index
    %1016 = arith.index_cast %c0_i32_387 : i32 to index
    %c0_393 = arith.constant 0 : index
    %1017 = vector.load %arg4[%c2_392, %1016, %c0_393] : memref<3x24x16xf32, #tpu.memory_space<vmem>>, vector<1x16x16xf32>
    %1018 = vector.shape_cast %1017 : vector<1x16x16xf32> to vector<16x16xf32>
    %1019 = arith.subf %1018, %1 : vector<16x16xf32>
    %1020 = arith.mulf %1019, %3 : vector<16x16xf32>
    %1021 = math.absf %1020 : vector<16x16xf32>
    %cst_394 = arith.constant 1.500000e-01 : f32
    %1022 = vector.broadcast %cst_394 : f32 to vector<16x16xf32>
    %1023 = arith.cmpf ogt, %1021, %1022 : vector<16x16xf32>
    %cst_395 = arith.constant 0.000000e+00 : f32
    %1024 = vector.broadcast %cst_395 : f32 to vector<16x16xf32>
    %1025 = arith.select %1023, %1024, %1012 : vector<16x16xi1>, vector<16x16xf32>
    %cst_396 = arith.constant 0.000000e+00 : f32
    %1026 = vector.broadcast %cst_396 : f32 to vector<16x16xf32>
    %1027 = arith.select %1023, %1026, %1015 : vector<16x16xi1>, vector<16x16xf32>
    %cst_397 = arith.constant 0.000000e+00 : f32
    %1028 = vector.broadcast %cst_397 : f32 to vector<16x16xf32>
    %1029 = arith.select %1023, %1028, %1018 : vector<16x16xi1>, vector<16x16xf32>
    %1030 = arith.mulf %1025, %1025 : vector<16x16xf32>
    %1031 = arith.addf %981, %1030 : vector<16x16xf32>
    %1032 = arith.mulf %1027, %1027 : vector<16x16xf32>
    %1033 = arith.addf %983, %1032 : vector<16x16xf32>
    %1034 = arith.mulf %1029, %1029 : vector<16x16xf32>
    %1035 = arith.addf %985, %1034 : vector<16x16xf32>
    %1036 = arith.mulf %1025, %1027 : vector<16x16xf32>
    %1037 = arith.addf %987, %1036 : vector<16x16xf32>
    %1038 = arith.mulf %1025, %1029 : vector<16x16xf32>
    %1039 = arith.addf %989, %1038 : vector<16x16xf32>
    %1040 = arith.mulf %1027, %1029 : vector<16x16xf32>
    %1041 = arith.addf %991, %1040 : vector<16x16xf32>
    %1042 = arith.addf %992, %1025 : vector<16x16xf32>
    %1043 = arith.addf %993, %1027 : vector<16x16xf32>
    %1044 = arith.addf %994, %1029 : vector<16x16xf32>
    %c1_i32_398 = arith.constant 1 : i32
    %c0_399 = arith.constant 0 : index
    %1045 = arith.index_cast %c1_i32_398 : i32 to index
    %c0_400 = arith.constant 0 : index
    %1046 = vector.load %arg4[%c0_399, %1045, %c0_400] : memref<3x24x16xf32, #tpu.memory_space<vmem>>, vector<1x16x16xf32>
    %1047 = vector.shape_cast %1046 : vector<1x16x16xf32> to vector<16x16xf32>
    %c1_401 = arith.constant 1 : index
    %1048 = arith.index_cast %c1_i32_398 : i32 to index
    %c0_402 = arith.constant 0 : index
    %1049 = vector.load %arg4[%c1_401, %1048, %c0_402] : memref<3x24x16xf32, #tpu.memory_space<vmem>>, vector<1x16x16xf32>
    %1050 = vector.shape_cast %1049 : vector<1x16x16xf32> to vector<16x16xf32>
    %c2_403 = arith.constant 2 : index
    %1051 = arith.index_cast %c1_i32_398 : i32 to index
    %c0_404 = arith.constant 0 : index
    %1052 = vector.load %arg4[%c2_403, %1051, %c0_404] : memref<3x24x16xf32, #tpu.memory_space<vmem>>, vector<1x16x16xf32>
    %1053 = vector.shape_cast %1052 : vector<1x16x16xf32> to vector<16x16xf32>
    %1054 = arith.subf %1053, %1 : vector<16x16xf32>
    %1055 = arith.mulf %1054, %3 : vector<16x16xf32>
    %1056 = math.absf %1055 : vector<16x16xf32>
    %cst_405 = arith.constant 1.500000e-01 : f32
    %1057 = vector.broadcast %cst_405 : f32 to vector<16x16xf32>
    %1058 = arith.cmpf ogt, %1056, %1057 : vector<16x16xf32>
    %cst_406 = arith.constant 0.000000e+00 : f32
    %1059 = vector.broadcast %cst_406 : f32 to vector<16x16xf32>
    %1060 = arith.select %1058, %1059, %1047 : vector<16x16xi1>, vector<16x16xf32>
    %cst_407 = arith.constant 0.000000e+00 : f32
    %1061 = vector.broadcast %cst_407 : f32 to vector<16x16xf32>
    %1062 = arith.select %1058, %1061, %1050 : vector<16x16xi1>, vector<16x16xf32>
    %cst_408 = arith.constant 0.000000e+00 : f32
    %1063 = vector.broadcast %cst_408 : f32 to vector<16x16xf32>
    %1064 = arith.select %1058, %1063, %1053 : vector<16x16xi1>, vector<16x16xf32>
    %1065 = arith.mulf %1060, %1060 : vector<16x16xf32>
    %1066 = arith.addf %1031, %1065 : vector<16x16xf32>
    %1067 = arith.mulf %1062, %1062 : vector<16x16xf32>
    %1068 = arith.addf %1033, %1067 : vector<16x16xf32>
    %1069 = arith.mulf %1064, %1064 : vector<16x16xf32>
    %1070 = arith.addf %1035, %1069 : vector<16x16xf32>
    %1071 = arith.mulf %1060, %1062 : vector<16x16xf32>
    %1072 = arith.addf %1037, %1071 : vector<16x16xf32>
    %1073 = arith.mulf %1060, %1064 : vector<16x16xf32>
    %1074 = arith.addf %1039, %1073 : vector<16x16xf32>
    %1075 = arith.mulf %1062, %1064 : vector<16x16xf32>
    %1076 = arith.addf %1041, %1075 : vector<16x16xf32>
    %1077 = arith.addf %1042, %1060 : vector<16x16xf32>
    %1078 = arith.addf %1043, %1062 : vector<16x16xf32>
    %1079 = arith.addf %1044, %1064 : vector<16x16xf32>
    %c2_i32_409 = arith.constant 2 : i32
    %c0_410 = arith.constant 0 : index
    %1080 = arith.index_cast %c2_i32_409 : i32 to index
    %c0_411 = arith.constant 0 : index
    %1081 = vector.load %arg4[%c0_410, %1080, %c0_411] : memref<3x24x16xf32, #tpu.memory_space<vmem>>, vector<1x16x16xf32>
    %1082 = vector.shape_cast %1081 : vector<1x16x16xf32> to vector<16x16xf32>
    %c1_412 = arith.constant 1 : index
    %1083 = arith.index_cast %c2_i32_409 : i32 to index
    %c0_413 = arith.constant 0 : index
    %1084 = vector.load %arg4[%c1_412, %1083, %c0_413] : memref<3x24x16xf32, #tpu.memory_space<vmem>>, vector<1x16x16xf32>
    %1085 = vector.shape_cast %1084 : vector<1x16x16xf32> to vector<16x16xf32>
    %c2_414 = arith.constant 2 : index
    %1086 = arith.index_cast %c2_i32_409 : i32 to index
    %c0_415 = arith.constant 0 : index
    %1087 = vector.load %arg4[%c2_414, %1086, %c0_415] : memref<3x24x16xf32, #tpu.memory_space<vmem>>, vector<1x16x16xf32>
    %1088 = vector.shape_cast %1087 : vector<1x16x16xf32> to vector<16x16xf32>
    %1089 = arith.subf %1088, %1 : vector<16x16xf32>
    %1090 = arith.mulf %1089, %3 : vector<16x16xf32>
    %1091 = math.absf %1090 : vector<16x16xf32>
    %cst_416 = arith.constant 1.500000e-01 : f32
    %1092 = vector.broadcast %cst_416 : f32 to vector<16x16xf32>
    %1093 = arith.cmpf ogt, %1091, %1092 : vector<16x16xf32>
    %cst_417 = arith.constant 0.000000e+00 : f32
    %1094 = vector.broadcast %cst_417 : f32 to vector<16x16xf32>
    %1095 = arith.select %1093, %1094, %1082 : vector<16x16xi1>, vector<16x16xf32>
    %cst_418 = arith.constant 0.000000e+00 : f32
    %1096 = vector.broadcast %cst_418 : f32 to vector<16x16xf32>
    %1097 = arith.select %1093, %1096, %1085 : vector<16x16xi1>, vector<16x16xf32>
    %cst_419 = arith.constant 0.000000e+00 : f32
    %1098 = vector.broadcast %cst_419 : f32 to vector<16x16xf32>
    %1099 = arith.select %1093, %1098, %1088 : vector<16x16xi1>, vector<16x16xf32>
    %1100 = arith.mulf %1095, %1095 : vector<16x16xf32>
    %1101 = arith.addf %1066, %1100 : vector<16x16xf32>
    %1102 = arith.mulf %1097, %1097 : vector<16x16xf32>
    %1103 = arith.addf %1068, %1102 : vector<16x16xf32>
    %1104 = arith.mulf %1099, %1099 : vector<16x16xf32>
    %1105 = arith.addf %1070, %1104 : vector<16x16xf32>
    %1106 = arith.mulf %1095, %1097 : vector<16x16xf32>
    %1107 = arith.addf %1072, %1106 : vector<16x16xf32>
    %1108 = arith.mulf %1095, %1099 : vector<16x16xf32>
    %1109 = arith.addf %1074, %1108 : vector<16x16xf32>
    %1110 = arith.mulf %1097, %1099 : vector<16x16xf32>
    %1111 = arith.addf %1076, %1110 : vector<16x16xf32>
    %1112 = arith.addf %1077, %1095 : vector<16x16xf32>
    %1113 = arith.addf %1078, %1097 : vector<16x16xf32>
    %1114 = arith.addf %1079, %1099 : vector<16x16xf32>
    %c3_i32_420 = arith.constant 3 : i32
    %c0_421 = arith.constant 0 : index
    %1115 = arith.index_cast %c3_i32_420 : i32 to index
    %c0_422 = arith.constant 0 : index
    %1116 = vector.load %arg4[%c0_421, %1115, %c0_422] : memref<3x24x16xf32, #tpu.memory_space<vmem>>, vector<1x16x16xf32>
    %1117 = vector.shape_cast %1116 : vector<1x16x16xf32> to vector<16x16xf32>
    %c1_423 = arith.constant 1 : index
    %1118 = arith.index_cast %c3_i32_420 : i32 to index
    %c0_424 = arith.constant 0 : index
    %1119 = vector.load %arg4[%c1_423, %1118, %c0_424] : memref<3x24x16xf32, #tpu.memory_space<vmem>>, vector<1x16x16xf32>
    %1120 = vector.shape_cast %1119 : vector<1x16x16xf32> to vector<16x16xf32>
    %c2_425 = arith.constant 2 : index
    %1121 = arith.index_cast %c3_i32_420 : i32 to index
    %c0_426 = arith.constant 0 : index
    %1122 = vector.load %arg4[%c2_425, %1121, %c0_426] : memref<3x24x16xf32, #tpu.memory_space<vmem>>, vector<1x16x16xf32>
    %1123 = vector.shape_cast %1122 : vector<1x16x16xf32> to vector<16x16xf32>
    %1124 = arith.subf %1123, %1 : vector<16x16xf32>
    %1125 = arith.mulf %1124, %3 : vector<16x16xf32>
    %1126 = math.absf %1125 : vector<16x16xf32>
    %cst_427 = arith.constant 1.500000e-01 : f32
    %1127 = vector.broadcast %cst_427 : f32 to vector<16x16xf32>
    %1128 = arith.cmpf ogt, %1126, %1127 : vector<16x16xf32>
    %cst_428 = arith.constant 0.000000e+00 : f32
    %1129 = vector.broadcast %cst_428 : f32 to vector<16x16xf32>
    %1130 = arith.select %1128, %1129, %1117 : vector<16x16xi1>, vector<16x16xf32>
    %cst_429 = arith.constant 0.000000e+00 : f32
    %1131 = vector.broadcast %cst_429 : f32 to vector<16x16xf32>
    %1132 = arith.select %1128, %1131, %1120 : vector<16x16xi1>, vector<16x16xf32>
    %cst_430 = arith.constant 0.000000e+00 : f32
    %1133 = vector.broadcast %cst_430 : f32 to vector<16x16xf32>
    %1134 = arith.select %1128, %1133, %1123 : vector<16x16xi1>, vector<16x16xf32>
    %1135 = arith.mulf %1130, %1130 : vector<16x16xf32>
    %1136 = arith.addf %1101, %1135 : vector<16x16xf32>
    %1137 = arith.mulf %1132, %1132 : vector<16x16xf32>
    %1138 = arith.addf %1103, %1137 : vector<16x16xf32>
    %1139 = arith.mulf %1134, %1134 : vector<16x16xf32>
    %1140 = arith.addf %1105, %1139 : vector<16x16xf32>
    %1141 = arith.mulf %1130, %1132 : vector<16x16xf32>
    %1142 = arith.addf %1107, %1141 : vector<16x16xf32>
    %1143 = arith.mulf %1130, %1134 : vector<16x16xf32>
    %1144 = arith.addf %1109, %1143 : vector<16x16xf32>
    %1145 = arith.mulf %1132, %1134 : vector<16x16xf32>
    %1146 = arith.addf %1111, %1145 : vector<16x16xf32>
    %1147 = arith.addf %1112, %1130 : vector<16x16xf32>
    %1148 = arith.addf %1113, %1132 : vector<16x16xf32>
    %1149 = arith.addf %1114, %1134 : vector<16x16xf32>
    %c4_i32_431 = arith.constant 4 : i32
    %c0_432 = arith.constant 0 : index
    %1150 = arith.index_cast %c4_i32_431 : i32 to index
    %c0_433 = arith.constant 0 : index
    %1151 = vector.load %arg4[%c0_432, %1150, %c0_433] : memref<3x24x16xf32, #tpu.memory_space<vmem>>, vector<1x16x16xf32>
    %1152 = vector.shape_cast %1151 : vector<1x16x16xf32> to vector<16x16xf32>
    %c1_434 = arith.constant 1 : index
    %1153 = arith.index_cast %c4_i32_431 : i32 to index
    %c0_435 = arith.constant 0 : index
    %1154 = vector.load %arg4[%c1_434, %1153, %c0_435] : memref<3x24x16xf32, #tpu.memory_space<vmem>>, vector<1x16x16xf32>
    %1155 = vector.shape_cast %1154 : vector<1x16x16xf32> to vector<16x16xf32>
    %c2_436 = arith.constant 2 : index
    %1156 = arith.index_cast %c4_i32_431 : i32 to index
    %c0_437 = arith.constant 0 : index
    %1157 = vector.load %arg4[%c2_436, %1156, %c0_437] : memref<3x24x16xf32, #tpu.memory_space<vmem>>, vector<1x16x16xf32>
    %1158 = vector.shape_cast %1157 : vector<1x16x16xf32> to vector<16x16xf32>
    %1159 = arith.subf %1158, %1 : vector<16x16xf32>
    %1160 = arith.mulf %1159, %3 : vector<16x16xf32>
    %1161 = math.absf %1160 : vector<16x16xf32>
    %cst_438 = arith.constant 1.500000e-01 : f32
    %1162 = vector.broadcast %cst_438 : f32 to vector<16x16xf32>
    %1163 = arith.cmpf ogt, %1161, %1162 : vector<16x16xf32>
    %cst_439 = arith.constant 0.000000e+00 : f32
    %1164 = vector.broadcast %cst_439 : f32 to vector<16x16xf32>
    %1165 = arith.select %1163, %1164, %1152 : vector<16x16xi1>, vector<16x16xf32>
    %cst_440 = arith.constant 0.000000e+00 : f32
    %1166 = vector.broadcast %cst_440 : f32 to vector<16x16xf32>
    %1167 = arith.select %1163, %1166, %1155 : vector<16x16xi1>, vector<16x16xf32>
    %cst_441 = arith.constant 0.000000e+00 : f32
    %1168 = vector.broadcast %cst_441 : f32 to vector<16x16xf32>
    %1169 = arith.select %1163, %1168, %1158 : vector<16x16xi1>, vector<16x16xf32>
    %1170 = arith.mulf %1165, %1165 : vector<16x16xf32>
    %1171 = arith.addf %1136, %1170 : vector<16x16xf32>
    %1172 = arith.mulf %1167, %1167 : vector<16x16xf32>
    %1173 = arith.addf %1138, %1172 : vector<16x16xf32>
    %1174 = arith.mulf %1169, %1169 : vector<16x16xf32>
    %1175 = arith.addf %1140, %1174 : vector<16x16xf32>
    %1176 = arith.mulf %1165, %1167 : vector<16x16xf32>
    %1177 = arith.addf %1142, %1176 : vector<16x16xf32>
    %1178 = arith.mulf %1165, %1169 : vector<16x16xf32>
    %1179 = arith.addf %1144, %1178 : vector<16x16xf32>
    %1180 = arith.mulf %1167, %1169 : vector<16x16xf32>
    %1181 = arith.addf %1146, %1180 : vector<16x16xf32>
    %1182 = arith.addf %1147, %1165 : vector<16x16xf32>
    %1183 = arith.addf %1148, %1167 : vector<16x16xf32>
    %1184 = arith.addf %1149, %1169 : vector<16x16xf32>
    %c5_i32_442 = arith.constant 5 : i32
    %c0_443 = arith.constant 0 : index
    %1185 = arith.index_cast %c5_i32_442 : i32 to index
    %c0_444 = arith.constant 0 : index
    %1186 = vector.load %arg4[%c0_443, %1185, %c0_444] : memref<3x24x16xf32, #tpu.memory_space<vmem>>, vector<1x16x16xf32>
    %1187 = vector.shape_cast %1186 : vector<1x16x16xf32> to vector<16x16xf32>
    %c1_445 = arith.constant 1 : index
    %1188 = arith.index_cast %c5_i32_442 : i32 to index
    %c0_446 = arith.constant 0 : index
    %1189 = vector.load %arg4[%c1_445, %1188, %c0_446] : memref<3x24x16xf32, #tpu.memory_space<vmem>>, vector<1x16x16xf32>
    %1190 = vector.shape_cast %1189 : vector<1x16x16xf32> to vector<16x16xf32>
    %c2_447 = arith.constant 2 : index
    %1191 = arith.index_cast %c5_i32_442 : i32 to index
    %c0_448 = arith.constant 0 : index
    %1192 = vector.load %arg4[%c2_447, %1191, %c0_448] : memref<3x24x16xf32, #tpu.memory_space<vmem>>, vector<1x16x16xf32>
    %1193 = vector.shape_cast %1192 : vector<1x16x16xf32> to vector<16x16xf32>
    %1194 = arith.subf %1193, %1 : vector<16x16xf32>
    %1195 = arith.mulf %1194, %3 : vector<16x16xf32>
    %1196 = math.absf %1195 : vector<16x16xf32>
    %cst_449 = arith.constant 1.500000e-01 : f32
    %1197 = vector.broadcast %cst_449 : f32 to vector<16x16xf32>
    %1198 = arith.cmpf ogt, %1196, %1197 : vector<16x16xf32>
    %cst_450 = arith.constant 0.000000e+00 : f32
    %1199 = vector.broadcast %cst_450 : f32 to vector<16x16xf32>
    %1200 = arith.select %1198, %1199, %1187 : vector<16x16xi1>, vector<16x16xf32>
    %cst_451 = arith.constant 0.000000e+00 : f32
    %1201 = vector.broadcast %cst_451 : f32 to vector<16x16xf32>
    %1202 = arith.select %1198, %1201, %1190 : vector<16x16xi1>, vector<16x16xf32>
    %cst_452 = arith.constant 0.000000e+00 : f32
    %1203 = vector.broadcast %cst_452 : f32 to vector<16x16xf32>
    %1204 = arith.select %1198, %1203, %1193 : vector<16x16xi1>, vector<16x16xf32>
    %1205 = arith.mulf %1200, %1200 : vector<16x16xf32>
    %1206 = arith.addf %1171, %1205 : vector<16x16xf32>
    %1207 = arith.mulf %1202, %1202 : vector<16x16xf32>
    %1208 = arith.addf %1173, %1207 : vector<16x16xf32>
    %1209 = arith.mulf %1204, %1204 : vector<16x16xf32>
    %1210 = arith.addf %1175, %1209 : vector<16x16xf32>
    %1211 = arith.mulf %1200, %1202 : vector<16x16xf32>
    %1212 = arith.addf %1177, %1211 : vector<16x16xf32>
    %1213 = arith.mulf %1200, %1204 : vector<16x16xf32>
    %1214 = arith.addf %1179, %1213 : vector<16x16xf32>
    %1215 = arith.mulf %1202, %1204 : vector<16x16xf32>
    %1216 = arith.addf %1181, %1215 : vector<16x16xf32>
    %1217 = arith.addf %1182, %1200 : vector<16x16xf32>
    %1218 = arith.addf %1183, %1202 : vector<16x16xf32>
    %1219 = arith.addf %1184, %1204 : vector<16x16xf32>
    %c6_i32_453 = arith.constant 6 : i32
    %c0_454 = arith.constant 0 : index
    %1220 = arith.index_cast %c6_i32_453 : i32 to index
    %c0_455 = arith.constant 0 : index
    %1221 = vector.load %arg4[%c0_454, %1220, %c0_455] : memref<3x24x16xf32, #tpu.memory_space<vmem>>, vector<1x16x16xf32>
    %1222 = vector.shape_cast %1221 : vector<1x16x16xf32> to vector<16x16xf32>
    %c1_456 = arith.constant 1 : index
    %1223 = arith.index_cast %c6_i32_453 : i32 to index
    %c0_457 = arith.constant 0 : index
    %1224 = vector.load %arg4[%c1_456, %1223, %c0_457] : memref<3x24x16xf32, #tpu.memory_space<vmem>>, vector<1x16x16xf32>
    %1225 = vector.shape_cast %1224 : vector<1x16x16xf32> to vector<16x16xf32>
    %c2_458 = arith.constant 2 : index
    %1226 = arith.index_cast %c6_i32_453 : i32 to index
    %c0_459 = arith.constant 0 : index
    %1227 = vector.load %arg4[%c2_458, %1226, %c0_459] : memref<3x24x16xf32, #tpu.memory_space<vmem>>, vector<1x16x16xf32>
    %1228 = vector.shape_cast %1227 : vector<1x16x16xf32> to vector<16x16xf32>
    %1229 = arith.subf %1228, %1 : vector<16x16xf32>
    %1230 = arith.mulf %1229, %3 : vector<16x16xf32>
    %1231 = math.absf %1230 : vector<16x16xf32>
    %cst_460 = arith.constant 1.500000e-01 : f32
    %1232 = vector.broadcast %cst_460 : f32 to vector<16x16xf32>
    %1233 = arith.cmpf ogt, %1231, %1232 : vector<16x16xf32>
    %cst_461 = arith.constant 0.000000e+00 : f32
    %1234 = vector.broadcast %cst_461 : f32 to vector<16x16xf32>
    %1235 = arith.select %1233, %1234, %1222 : vector<16x16xi1>, vector<16x16xf32>
    %cst_462 = arith.constant 0.000000e+00 : f32
    %1236 = vector.broadcast %cst_462 : f32 to vector<16x16xf32>
    %1237 = arith.select %1233, %1236, %1225 : vector<16x16xi1>, vector<16x16xf32>
    %cst_463 = arith.constant 0.000000e+00 : f32
    %1238 = vector.broadcast %cst_463 : f32 to vector<16x16xf32>
    %1239 = arith.select %1233, %1238, %1228 : vector<16x16xi1>, vector<16x16xf32>
    %1240 = arith.mulf %1235, %1235 : vector<16x16xf32>
    %1241 = arith.addf %1206, %1240 : vector<16x16xf32>
    %1242 = arith.mulf %1237, %1237 : vector<16x16xf32>
    %1243 = arith.addf %1208, %1242 : vector<16x16xf32>
    %1244 = arith.mulf %1239, %1239 : vector<16x16xf32>
    %1245 = arith.addf %1210, %1244 : vector<16x16xf32>
    %1246 = arith.mulf %1235, %1237 : vector<16x16xf32>
    %1247 = arith.addf %1212, %1246 : vector<16x16xf32>
    %1248 = arith.mulf %1235, %1239 : vector<16x16xf32>
    %1249 = arith.addf %1214, %1248 : vector<16x16xf32>
    %1250 = arith.mulf %1237, %1239 : vector<16x16xf32>
    %1251 = arith.addf %1216, %1250 : vector<16x16xf32>
    %1252 = arith.addf %1217, %1235 : vector<16x16xf32>
    %1253 = arith.addf %1218, %1237 : vector<16x16xf32>
    %1254 = arith.addf %1219, %1239 : vector<16x16xf32>
    %c7_i32_464 = arith.constant 7 : i32
    %c0_465 = arith.constant 0 : index
    %1255 = arith.index_cast %c7_i32_464 : i32 to index
    %c0_466 = arith.constant 0 : index
    %1256 = vector.load %arg4[%c0_465, %1255, %c0_466] : memref<3x24x16xf32, #tpu.memory_space<vmem>>, vector<1x16x16xf32>
    %1257 = vector.shape_cast %1256 : vector<1x16x16xf32> to vector<16x16xf32>
    %c1_467 = arith.constant 1 : index
    %1258 = arith.index_cast %c7_i32_464 : i32 to index
    %c0_468 = arith.constant 0 : index
    %1259 = vector.load %arg4[%c1_467, %1258, %c0_468] : memref<3x24x16xf32, #tpu.memory_space<vmem>>, vector<1x16x16xf32>
    %1260 = vector.shape_cast %1259 : vector<1x16x16xf32> to vector<16x16xf32>
    %c2_469 = arith.constant 2 : index
    %1261 = arith.index_cast %c7_i32_464 : i32 to index
    %c0_470 = arith.constant 0 : index
    %1262 = vector.load %arg4[%c2_469, %1261, %c0_470] : memref<3x24x16xf32, #tpu.memory_space<vmem>>, vector<1x16x16xf32>
    %1263 = vector.shape_cast %1262 : vector<1x16x16xf32> to vector<16x16xf32>
    %1264 = arith.subf %1263, %1 : vector<16x16xf32>
    %1265 = arith.mulf %1264, %3 : vector<16x16xf32>
    %1266 = math.absf %1265 : vector<16x16xf32>
    %cst_471 = arith.constant 1.500000e-01 : f32
    %1267 = vector.broadcast %cst_471 : f32 to vector<16x16xf32>
    %1268 = arith.cmpf ogt, %1266, %1267 : vector<16x16xf32>
    %cst_472 = arith.constant 0.000000e+00 : f32
    %1269 = vector.broadcast %cst_472 : f32 to vector<16x16xf32>
    %1270 = arith.select %1268, %1269, %1257 : vector<16x16xi1>, vector<16x16xf32>
    %cst_473 = arith.constant 0.000000e+00 : f32
    %1271 = vector.broadcast %cst_473 : f32 to vector<16x16xf32>
    %1272 = arith.select %1268, %1271, %1260 : vector<16x16xi1>, vector<16x16xf32>
    %cst_474 = arith.constant 0.000000e+00 : f32
    %1273 = vector.broadcast %cst_474 : f32 to vector<16x16xf32>
    %1274 = arith.select %1268, %1273, %1263 : vector<16x16xi1>, vector<16x16xf32>
    %1275 = arith.mulf %1270, %1270 : vector<16x16xf32>
    %1276 = arith.addf %1241, %1275 : vector<16x16xf32>
    %1277 = arith.mulf %1272, %1272 : vector<16x16xf32>
    %1278 = arith.addf %1243, %1277 : vector<16x16xf32>
    %1279 = arith.mulf %1274, %1274 : vector<16x16xf32>
    %1280 = arith.addf %1245, %1279 : vector<16x16xf32>
    %1281 = arith.mulf %1270, %1272 : vector<16x16xf32>
    %1282 = arith.addf %1247, %1281 : vector<16x16xf32>
    %1283 = arith.mulf %1270, %1274 : vector<16x16xf32>
    %1284 = arith.addf %1249, %1283 : vector<16x16xf32>
    %1285 = arith.mulf %1272, %1274 : vector<16x16xf32>
    %1286 = arith.addf %1251, %1285 : vector<16x16xf32>
    %1287 = arith.addf %1252, %1270 : vector<16x16xf32>
    %1288 = arith.addf %1253, %1272 : vector<16x16xf32>
    %1289 = arith.addf %1254, %1274 : vector<16x16xf32>
    %c8_i32_475 = arith.constant 8 : i32
    %c0_476 = arith.constant 0 : index
    %1290 = arith.index_cast %c8_i32_475 : i32 to index
    %c0_477 = arith.constant 0 : index
    %1291 = vector.load %arg4[%c0_476, %1290, %c0_477] : memref<3x24x16xf32, #tpu.memory_space<vmem>>, vector<1x16x16xf32>
    %1292 = vector.shape_cast %1291 : vector<1x16x16xf32> to vector<16x16xf32>
    %c1_478 = arith.constant 1 : index
    %1293 = arith.index_cast %c8_i32_475 : i32 to index
    %c0_479 = arith.constant 0 : index
    %1294 = vector.load %arg4[%c1_478, %1293, %c0_479] : memref<3x24x16xf32, #tpu.memory_space<vmem>>, vector<1x16x16xf32>
    %1295 = vector.shape_cast %1294 : vector<1x16x16xf32> to vector<16x16xf32>
    %c2_480 = arith.constant 2 : index
    %1296 = arith.index_cast %c8_i32_475 : i32 to index
    %c0_481 = arith.constant 0 : index
    %1297 = vector.load %arg4[%c2_480, %1296, %c0_481] : memref<3x24x16xf32, #tpu.memory_space<vmem>>, vector<1x16x16xf32>
    %1298 = vector.shape_cast %1297 : vector<1x16x16xf32> to vector<16x16xf32>
    %1299 = arith.subf %1298, %1 : vector<16x16xf32>
    %1300 = arith.mulf %1299, %3 : vector<16x16xf32>
    %1301 = math.absf %1300 : vector<16x16xf32>
    %cst_482 = arith.constant 1.500000e-01 : f32
    %1302 = vector.broadcast %cst_482 : f32 to vector<16x16xf32>
    %1303 = arith.cmpf ogt, %1301, %1302 : vector<16x16xf32>
    %cst_483 = arith.constant 0.000000e+00 : f32
    %1304 = vector.broadcast %cst_483 : f32 to vector<16x16xf32>
    %1305 = arith.select %1303, %1304, %1292 : vector<16x16xi1>, vector<16x16xf32>
    %cst_484 = arith.constant 0.000000e+00 : f32
    %1306 = vector.broadcast %cst_484 : f32 to vector<16x16xf32>
    %1307 = arith.select %1303, %1306, %1295 : vector<16x16xi1>, vector<16x16xf32>
    %cst_485 = arith.constant 0.000000e+00 : f32
    %1308 = vector.broadcast %cst_485 : f32 to vector<16x16xf32>
    %1309 = arith.select %1303, %1308, %1298 : vector<16x16xi1>, vector<16x16xf32>
    %1310 = arith.mulf %1305, %1305 : vector<16x16xf32>
    %1311 = arith.addf %1276, %1310 : vector<16x16xf32>
    %1312 = arith.mulf %1307, %1307 : vector<16x16xf32>
    %1313 = arith.addf %1278, %1312 : vector<16x16xf32>
    %1314 = arith.mulf %1309, %1309 : vector<16x16xf32>
    %1315 = arith.addf %1280, %1314 : vector<16x16xf32>
    %1316 = arith.mulf %1305, %1307 : vector<16x16xf32>
    %1317 = arith.addf %1282, %1316 : vector<16x16xf32>
    %1318 = arith.mulf %1305, %1309 : vector<16x16xf32>
    %1319 = arith.addf %1284, %1318 : vector<16x16xf32>
    %1320 = arith.mulf %1307, %1309 : vector<16x16xf32>
    %1321 = arith.addf %1286, %1320 : vector<16x16xf32>
    %1322 = arith.addf %1287, %1305 : vector<16x16xf32>
    %1323 = arith.addf %1288, %1307 : vector<16x16xf32>
    %1324 = arith.addf %1289, %1309 : vector<16x16xf32>
    %c9_i32_486 = arith.constant 9 : i32
    %c0_487 = arith.constant 0 : index
    %c0_488 = arith.constant 0 : index
    %c0_489 = arith.constant 0 : index
    %c0_490 = arith.constant 0 : index
    %c4_491 = arith.constant 4 : index
    %1325 = vector.load %arg2[%c0_487, %c0_488, %c0_489, %c0_490, %c4_491] : memref<1x1x3x24x24xf32, #tpu.memory_space<vmem>>, vector<1x1x1x24x16xf32>
    %1326 = vector.shape_cast %1325 : vector<1x1x1x24x16xf32> to vector<24x16xf32>
    %c0_492 = arith.constant 0 : index
    %c0_493 = arith.constant 0 : index
    %c0_494 = arith.constant 0 : index
    %1327 = vector.load %arg4[%c0_492, %c0_493, %c0_494] : memref<3x24x16xf32, #tpu.memory_space<vmem>>, vector<1x24x16xf32>
    %1328 = vector.shape_cast %1327 : vector<1x24x16xf32> to vector<24x16xf32>
    %1329 = vector.shape_cast %1326 : vector<24x16xf32> to vector<1x24x16xf32>
    tpu.vector_store %arg4[%c0_492, %c0_493, %c0_494], %1329 {strides = array<i32>} : memref<3x24x16xf32, #tpu.memory_space<vmem>>, vector<1x24x16xf32>,
    %c0_495 = arith.constant 0 : index
    %c0_496 = arith.constant 0 : index
    %c1_497 = arith.constant 1 : index
    %c0_498 = arith.constant 0 : index
    %c4_499 = arith.constant 4 : index
    %1330 = vector.load %arg2[%c0_495, %c0_496, %c1_497, %c0_498, %c4_499] : memref<1x1x3x24x24xf32, #tpu.memory_space<vmem>>, vector<1x1x1x24x16xf32>
    %1331 = vector.shape_cast %1330 : vector<1x1x1x24x16xf32> to vector<24x16xf32>
    %c1_500 = arith.constant 1 : index
    %c0_501 = arith.constant 0 : index
    %c0_502 = arith.constant 0 : index
    %1332 = vector.load %arg4[%c1_500, %c0_501, %c0_502] : memref<3x24x16xf32, #tpu.memory_space<vmem>>, vector<1x24x16xf32>
    %1333 = vector.shape_cast %1332 : vector<1x24x16xf32> to vector<24x16xf32>
    %1334 = vector.shape_cast %1331 : vector<24x16xf32> to vector<1x24x16xf32>
    tpu.vector_store %arg4[%c1_500, %c0_501, %c0_502], %1334 {strides = array<i32>} : memref<3x24x16xf32, #tpu.memory_space<vmem>>, vector<1x24x16xf32>,
    %c0_503 = arith.constant 0 : index
    %c0_504 = arith.constant 0 : index
    %c2_505 = arith.constant 2 : index
    %c0_506 = arith.constant 0 : index
    %c4_507 = arith.constant 4 : index
    %1335 = vector.load %arg2[%c0_503, %c0_504, %c2_505, %c0_506, %c4_507] : memref<1x1x3x24x24xf32, #tpu.memory_space<vmem>>, vector<1x1x1x24x16xf32>
    %1336 = vector.shape_cast %1335 : vector<1x1x1x24x16xf32> to vector<24x16xf32>
    %c2_508 = arith.constant 2 : index
    %c0_509 = arith.constant 0 : index
    %c0_510 = arith.constant 0 : index
    %1337 = vector.load %arg4[%c2_508, %c0_509, %c0_510] : memref<3x24x16xf32, #tpu.memory_space<vmem>>, vector<1x24x16xf32>
    %1338 = vector.shape_cast %1337 : vector<1x24x16xf32> to vector<24x16xf32>
    %1339 = vector.shape_cast %1336 : vector<24x16xf32> to vector<1x24x16xf32>
    tpu.vector_store %arg4[%c2_508, %c0_509, %c0_510], %1339 {strides = array<i32>} : memref<3x24x16xf32, #tpu.memory_space<vmem>>, vector<1x24x16xf32>,
    %c0_i32_511 = arith.constant 0 : i32
    %c0_512 = arith.constant 0 : index
    %1340 = arith.index_cast %c0_i32_511 : i32 to index
    %c0_513 = arith.constant 0 : index
    %1341 = vector.load %arg4[%c0_512, %1340, %c0_513] : memref<3x24x16xf32, #tpu.memory_space<vmem>>, vector<1x16x16xf32>
    %1342 = vector.shape_cast %1341 : vector<1x16x16xf32> to vector<16x16xf32>
    %c1_514 = arith.constant 1 : index
    %1343 = arith.index_cast %c0_i32_511 : i32 to index
    %c0_515 = arith.constant 0 : index
    %1344 = vector.load %arg4[%c1_514, %1343, %c0_515] : memref<3x24x16xf32, #tpu.memory_space<vmem>>, vector<1x16x16xf32>
    %1345 = vector.shape_cast %1344 : vector<1x16x16xf32> to vector<16x16xf32>
    %c2_516 = arith.constant 2 : index
    %1346 = arith.index_cast %c0_i32_511 : i32 to index
    %c0_517 = arith.constant 0 : index
    %1347 = vector.load %arg4[%c2_516, %1346, %c0_517] : memref<3x24x16xf32, #tpu.memory_space<vmem>>, vector<1x16x16xf32>
    %1348 = vector.shape_cast %1347 : vector<1x16x16xf32> to vector<16x16xf32>
    %1349 = arith.subf %1348, %1 : vector<16x16xf32>
    %1350 = arith.mulf %1349, %3 : vector<16x16xf32>
    %1351 = math.absf %1350 : vector<16x16xf32>
    %cst_518 = arith.constant 1.500000e-01 : f32
    %1352 = vector.broadcast %cst_518 : f32 to vector<16x16xf32>
    %1353 = arith.cmpf ogt, %1351, %1352 : vector<16x16xf32>
    %cst_519 = arith.constant 0.000000e+00 : f32
    %1354 = vector.broadcast %cst_519 : f32 to vector<16x16xf32>
    %1355 = arith.select %1353, %1354, %1342 : vector<16x16xi1>, vector<16x16xf32>
    %cst_520 = arith.constant 0.000000e+00 : f32
    %1356 = vector.broadcast %cst_520 : f32 to vector<16x16xf32>
    %1357 = arith.select %1353, %1356, %1345 : vector<16x16xi1>, vector<16x16xf32>
    %cst_521 = arith.constant 0.000000e+00 : f32
    %1358 = vector.broadcast %cst_521 : f32 to vector<16x16xf32>
    %1359 = arith.select %1353, %1358, %1348 : vector<16x16xi1>, vector<16x16xf32>
    %1360 = arith.mulf %1355, %1355 : vector<16x16xf32>
    %1361 = arith.addf %1311, %1360 : vector<16x16xf32>
    %1362 = arith.mulf %1357, %1357 : vector<16x16xf32>
    %1363 = arith.addf %1313, %1362 : vector<16x16xf32>
    %1364 = arith.mulf %1359, %1359 : vector<16x16xf32>
    %1365 = arith.addf %1315, %1364 : vector<16x16xf32>
    %1366 = arith.mulf %1355, %1357 : vector<16x16xf32>
    %1367 = arith.addf %1317, %1366 : vector<16x16xf32>
    %1368 = arith.mulf %1355, %1359 : vector<16x16xf32>
    %1369 = arith.addf %1319, %1368 : vector<16x16xf32>
    %1370 = arith.mulf %1357, %1359 : vector<16x16xf32>
    %1371 = arith.addf %1321, %1370 : vector<16x16xf32>
    %1372 = arith.addf %1322, %1355 : vector<16x16xf32>
    %1373 = arith.addf %1323, %1357 : vector<16x16xf32>
    %1374 = arith.addf %1324, %1359 : vector<16x16xf32>
    %c1_i32_522 = arith.constant 1 : i32
    %c0_523 = arith.constant 0 : index
    %1375 = arith.index_cast %c1_i32_522 : i32 to index
    %c0_524 = arith.constant 0 : index
    %1376 = vector.load %arg4[%c0_523, %1375, %c0_524] : memref<3x24x16xf32, #tpu.memory_space<vmem>>, vector<1x16x16xf32>
    %1377 = vector.shape_cast %1376 : vector<1x16x16xf32> to vector<16x16xf32>
    %c1_525 = arith.constant 1 : index
    %1378 = arith.index_cast %c1_i32_522 : i32 to index
    %c0_526 = arith.constant 0 : index
    %1379 = vector.load %arg4[%c1_525, %1378, %c0_526] : memref<3x24x16xf32, #tpu.memory_space<vmem>>, vector<1x16x16xf32>
    %1380 = vector.shape_cast %1379 : vector<1x16x16xf32> to vector<16x16xf32>
    %c2_527 = arith.constant 2 : index
    %1381 = arith.index_cast %c1_i32_522 : i32 to index
    %c0_528 = arith.constant 0 : index
    %1382 = vector.load %arg4[%c2_527, %1381, %c0_528] : memref<3x24x16xf32, #tpu.memory_space<vmem>>, vector<1x16x16xf32>
    %1383 = vector.shape_cast %1382 : vector<1x16x16xf32> to vector<16x16xf32>
    %1384 = arith.subf %1383, %1 : vector<16x16xf32>
    %1385 = arith.mulf %1384, %3 : vector<16x16xf32>
    %1386 = math.absf %1385 : vector<16x16xf32>
    %cst_529 = arith.constant 1.500000e-01 : f32
    %1387 = vector.broadcast %cst_529 : f32 to vector<16x16xf32>
    %1388 = arith.cmpf ogt, %1386, %1387 : vector<16x16xf32>
    %cst_530 = arith.constant 0.000000e+00 : f32
    %1389 = vector.broadcast %cst_530 : f32 to vector<16x16xf32>
    %1390 = arith.select %1388, %1389, %1377 : vector<16x16xi1>, vector<16x16xf32>
    %cst_531 = arith.constant 0.000000e+00 : f32
    %1391 = vector.broadcast %cst_531 : f32 to vector<16x16xf32>
    %1392 = arith.select %1388, %1391, %1380 : vector<16x16xi1>, vector<16x16xf32>
    %cst_532 = arith.constant 0.000000e+00 : f32
    %1393 = vector.broadcast %cst_532 : f32 to vector<16x16xf32>
    %1394 = arith.select %1388, %1393, %1383 : vector<16x16xi1>, vector<16x16xf32>
    %1395 = arith.mulf %1390, %1390 : vector<16x16xf32>
    %1396 = arith.addf %1361, %1395 : vector<16x16xf32>
    %1397 = arith.mulf %1392, %1392 : vector<16x16xf32>
    %1398 = arith.addf %1363, %1397 : vector<16x16xf32>
    %1399 = arith.mulf %1394, %1394 : vector<16x16xf32>
    %1400 = arith.addf %1365, %1399 : vector<16x16xf32>
    %1401 = arith.mulf %1390, %1392 : vector<16x16xf32>
    %1402 = arith.addf %1367, %1401 : vector<16x16xf32>
    %1403 = arith.mulf %1390, %1394 : vector<16x16xf32>
    %1404 = arith.addf %1369, %1403 : vector<16x16xf32>
    %1405 = arith.mulf %1392, %1394 : vector<16x16xf32>
    %1406 = arith.addf %1371, %1405 : vector<16x16xf32>
    %1407 = arith.addf %1372, %1390 : vector<16x16xf32>
    %1408 = arith.addf %1373, %1392 : vector<16x16xf32>
    %1409 = arith.addf %1374, %1394 : vector<16x16xf32>
    %c2_i32_533 = arith.constant 2 : i32
    %c0_534 = arith.constant 0 : index
    %1410 = arith.index_cast %c2_i32_533 : i32 to index
    %c0_535 = arith.constant 0 : index
    %1411 = vector.load %arg4[%c0_534, %1410, %c0_535] : memref<3x24x16xf32, #tpu.memory_space<vmem>>, vector<1x16x16xf32>
    %1412 = vector.shape_cast %1411 : vector<1x16x16xf32> to vector<16x16xf32>
    %c1_536 = arith.constant 1 : index
    %1413 = arith.index_cast %c2_i32_533 : i32 to index
    %c0_537 = arith.constant 0 : index
    %1414 = vector.load %arg4[%c1_536, %1413, %c0_537] : memref<3x24x16xf32, #tpu.memory_space<vmem>>, vector<1x16x16xf32>
    %1415 = vector.shape_cast %1414 : vector<1x16x16xf32> to vector<16x16xf32>
    %c2_538 = arith.constant 2 : index
    %1416 = arith.index_cast %c2_i32_533 : i32 to index
    %c0_539 = arith.constant 0 : index
    %1417 = vector.load %arg4[%c2_538, %1416, %c0_539] : memref<3x24x16xf32, #tpu.memory_space<vmem>>, vector<1x16x16xf32>
    %1418 = vector.shape_cast %1417 : vector<1x16x16xf32> to vector<16x16xf32>
    %1419 = arith.subf %1418, %1 : vector<16x16xf32>
    %1420 = arith.mulf %1419, %3 : vector<16x16xf32>
    %1421 = math.absf %1420 : vector<16x16xf32>
    %cst_540 = arith.constant 1.500000e-01 : f32
    %1422 = vector.broadcast %cst_540 : f32 to vector<16x16xf32>
    %1423 = arith.cmpf ogt, %1421, %1422 : vector<16x16xf32>
    %cst_541 = arith.constant 0.000000e+00 : f32
    %1424 = vector.broadcast %cst_541 : f32 to vector<16x16xf32>
    %1425 = arith.select %1423, %1424, %1412 : vector<16x16xi1>, vector<16x16xf32>
    %cst_542 = arith.constant 0.000000e+00 : f32
    %1426 = vector.broadcast %cst_542 : f32 to vector<16x16xf32>
    %1427 = arith.select %1423, %1426, %1415 : vector<16x16xi1>, vector<16x16xf32>
    %cst_543 = arith.constant 0.000000e+00 : f32
    %1428 = vector.broadcast %cst_543 : f32 to vector<16x16xf32>
    %1429 = arith.select %1423, %1428, %1418 : vector<16x16xi1>, vector<16x16xf32>
    %1430 = arith.mulf %1425, %1425 : vector<16x16xf32>
    %1431 = arith.addf %1396, %1430 : vector<16x16xf32>
    %1432 = arith.mulf %1427, %1427 : vector<16x16xf32>
    %1433 = arith.addf %1398, %1432 : vector<16x16xf32>
    %1434 = arith.mulf %1429, %1429 : vector<16x16xf32>
    %1435 = arith.addf %1400, %1434 : vector<16x16xf32>
    %1436 = arith.mulf %1425, %1427 : vector<16x16xf32>
    %1437 = arith.addf %1402, %1436 : vector<16x16xf32>
    %1438 = arith.mulf %1425, %1429 : vector<16x16xf32>
    %1439 = arith.addf %1404, %1438 : vector<16x16xf32>
    %1440 = arith.mulf %1427, %1429 : vector<16x16xf32>
    %1441 = arith.addf %1406, %1440 : vector<16x16xf32>
    %1442 = arith.addf %1407, %1425 : vector<16x16xf32>
    %1443 = arith.addf %1408, %1427 : vector<16x16xf32>
    %1444 = arith.addf %1409, %1429 : vector<16x16xf32>
    %c3_i32_544 = arith.constant 3 : i32
    %c0_545 = arith.constant 0 : index
    %1445 = arith.index_cast %c3_i32_544 : i32 to index
    %c0_546 = arith.constant 0 : index
    %1446 = vector.load %arg4[%c0_545, %1445, %c0_546] : memref<3x24x16xf32, #tpu.memory_space<vmem>>, vector<1x16x16xf32>
    %1447 = vector.shape_cast %1446 : vector<1x16x16xf32> to vector<16x16xf32>
    %c1_547 = arith.constant 1 : index
    %1448 = arith.index_cast %c3_i32_544 : i32 to index
    %c0_548 = arith.constant 0 : index
    %1449 = vector.load %arg4[%c1_547, %1448, %c0_548] : memref<3x24x16xf32, #tpu.memory_space<vmem>>, vector<1x16x16xf32>
    %1450 = vector.shape_cast %1449 : vector<1x16x16xf32> to vector<16x16xf32>
    %c2_549 = arith.constant 2 : index
    %1451 = arith.index_cast %c3_i32_544 : i32 to index
    %c0_550 = arith.constant 0 : index
    %1452 = vector.load %arg4[%c2_549, %1451, %c0_550] : memref<3x24x16xf32, #tpu.memory_space<vmem>>, vector<1x16x16xf32>
    %1453 = vector.shape_cast %1452 : vector<1x16x16xf32> to vector<16x16xf32>
    %1454 = arith.subf %1453, %1 : vector<16x16xf32>
    %1455 = arith.mulf %1454, %3 : vector<16x16xf32>
    %1456 = math.absf %1455 : vector<16x16xf32>
    %cst_551 = arith.constant 1.500000e-01 : f32
    %1457 = vector.broadcast %cst_551 : f32 to vector<16x16xf32>
    %1458 = arith.cmpf ogt, %1456, %1457 : vector<16x16xf32>
    %cst_552 = arith.constant 0.000000e+00 : f32
    %1459 = vector.broadcast %cst_552 : f32 to vector<16x16xf32>
    %1460 = arith.select %1458, %1459, %1447 : vector<16x16xi1>, vector<16x16xf32>
    %cst_553 = arith.constant 0.000000e+00 : f32
    %1461 = vector.broadcast %cst_553 : f32 to vector<16x16xf32>
    %1462 = arith.select %1458, %1461, %1450 : vector<16x16xi1>, vector<16x16xf32>
    %cst_554 = arith.constant 0.000000e+00 : f32
    %1463 = vector.broadcast %cst_554 : f32 to vector<16x16xf32>
    %1464 = arith.select %1458, %1463, %1453 : vector<16x16xi1>, vector<16x16xf32>
    %1465 = arith.mulf %1460, %1460 : vector<16x16xf32>
    %1466 = arith.addf %1431, %1465 : vector<16x16xf32>
    %1467 = arith.mulf %1462, %1462 : vector<16x16xf32>
    %1468 = arith.addf %1433, %1467 : vector<16x16xf32>
    %1469 = arith.mulf %1464, %1464 : vector<16x16xf32>
    %1470 = arith.addf %1435, %1469 : vector<16x16xf32>
    %1471 = arith.mulf %1460, %1462 : vector<16x16xf32>
    %1472 = arith.addf %1437, %1471 : vector<16x16xf32>
    %1473 = arith.mulf %1460, %1464 : vector<16x16xf32>
    %1474 = arith.addf %1439, %1473 : vector<16x16xf32>
    %1475 = arith.mulf %1462, %1464 : vector<16x16xf32>
    %1476 = arith.addf %1441, %1475 : vector<16x16xf32>
    %1477 = arith.addf %1442, %1460 : vector<16x16xf32>
    %1478 = arith.addf %1443, %1462 : vector<16x16xf32>
    %1479 = arith.addf %1444, %1464 : vector<16x16xf32>
    %c4_i32_555 = arith.constant 4 : i32
    %c0_556 = arith.constant 0 : index
    %1480 = arith.index_cast %c4_i32_555 : i32 to index
    %c0_557 = arith.constant 0 : index
    %1481 = vector.load %arg4[%c0_556, %1480, %c0_557] : memref<3x24x16xf32, #tpu.memory_space<vmem>>, vector<1x16x16xf32>
    %1482 = vector.shape_cast %1481 : vector<1x16x16xf32> to vector<16x16xf32>
    %c1_558 = arith.constant 1 : index
    %1483 = arith.index_cast %c4_i32_555 : i32 to index
    %c0_559 = arith.constant 0 : index
    %1484 = vector.load %arg4[%c1_558, %1483, %c0_559] : memref<3x24x16xf32, #tpu.memory_space<vmem>>, vector<1x16x16xf32>
    %1485 = vector.shape_cast %1484 : vector<1x16x16xf32> to vector<16x16xf32>
    %c2_560 = arith.constant 2 : index
    %1486 = arith.index_cast %c4_i32_555 : i32 to index
    %c0_561 = arith.constant 0 : index
    %1487 = vector.load %arg4[%c2_560, %1486, %c0_561] : memref<3x24x16xf32, #tpu.memory_space<vmem>>, vector<1x16x16xf32>
    %1488 = vector.shape_cast %1487 : vector<1x16x16xf32> to vector<16x16xf32>
    %1489 = arith.subf %1488, %1 : vector<16x16xf32>
    %1490 = arith.mulf %1489, %3 : vector<16x16xf32>
    %1491 = math.absf %1490 : vector<16x16xf32>
    %cst_562 = arith.constant 1.500000e-01 : f32
    %1492 = vector.broadcast %cst_562 : f32 to vector<16x16xf32>
    %1493 = arith.cmpf ogt, %1491, %1492 : vector<16x16xf32>
    %cst_563 = arith.constant 0.000000e+00 : f32
    %1494 = vector.broadcast %cst_563 : f32 to vector<16x16xf32>
    %1495 = arith.select %1493, %1494, %1482 : vector<16x16xi1>, vector<16x16xf32>
    %cst_564 = arith.constant 0.000000e+00 : f32
    %1496 = vector.broadcast %cst_564 : f32 to vector<16x16xf32>
    %1497 = arith.select %1493, %1496, %1485 : vector<16x16xi1>, vector<16x16xf32>
    %cst_565 = arith.constant 0.000000e+00 : f32
    %1498 = vector.broadcast %cst_565 : f32 to vector<16x16xf32>
    %1499 = arith.select %1493, %1498, %1488 : vector<16x16xi1>, vector<16x16xf32>
    %1500 = arith.mulf %1495, %1495 : vector<16x16xf32>
    %1501 = arith.addf %1466, %1500 : vector<16x16xf32>
    %1502 = arith.mulf %1497, %1497 : vector<16x16xf32>
    %1503 = arith.addf %1468, %1502 : vector<16x16xf32>
    %1504 = arith.mulf %1499, %1499 : vector<16x16xf32>
    %1505 = arith.addf %1470, %1504 : vector<16x16xf32>
    %1506 = arith.mulf %1495, %1497 : vector<16x16xf32>
    %1507 = arith.addf %1472, %1506 : vector<16x16xf32>
    %1508 = arith.mulf %1495, %1499 : vector<16x16xf32>
    %1509 = arith.addf %1474, %1508 : vector<16x16xf32>
    %1510 = arith.mulf %1497, %1499 : vector<16x16xf32>
    %1511 = arith.addf %1476, %1510 : vector<16x16xf32>
    %1512 = arith.addf %1477, %1495 : vector<16x16xf32>
    %1513 = arith.addf %1478, %1497 : vector<16x16xf32>
    %1514 = arith.addf %1479, %1499 : vector<16x16xf32>
    %c5_i32_566 = arith.constant 5 : i32
    %c0_567 = arith.constant 0 : index
    %1515 = arith.index_cast %c5_i32_566 : i32 to index
    %c0_568 = arith.constant 0 : index
    %1516 = vector.load %arg4[%c0_567, %1515, %c0_568] : memref<3x24x16xf32, #tpu.memory_space<vmem>>, vector<1x16x16xf32>
    %1517 = vector.shape_cast %1516 : vector<1x16x16xf32> to vector<16x16xf32>
    %c1_569 = arith.constant 1 : index
    %1518 = arith.index_cast %c5_i32_566 : i32 to index
    %c0_570 = arith.constant 0 : index
    %1519 = vector.load %arg4[%c1_569, %1518, %c0_570] : memref<3x24x16xf32, #tpu.memory_space<vmem>>, vector<1x16x16xf32>
    %1520 = vector.shape_cast %1519 : vector<1x16x16xf32> to vector<16x16xf32>
    %c2_571 = arith.constant 2 : index
    %1521 = arith.index_cast %c5_i32_566 : i32 to index
    %c0_572 = arith.constant 0 : index
    %1522 = vector.load %arg4[%c2_571, %1521, %c0_572] : memref<3x24x16xf32, #tpu.memory_space<vmem>>, vector<1x16x16xf32>
    %1523 = vector.shape_cast %1522 : vector<1x16x16xf32> to vector<16x16xf32>
    %1524 = arith.subf %1523, %1 : vector<16x16xf32>
    %1525 = arith.mulf %1524, %3 : vector<16x16xf32>
    %1526 = math.absf %1525 : vector<16x16xf32>
    %cst_573 = arith.constant 1.500000e-01 : f32
    %1527 = vector.broadcast %cst_573 : f32 to vector<16x16xf32>
    %1528 = arith.cmpf ogt, %1526, %1527 : vector<16x16xf32>
    %cst_574 = arith.constant 0.000000e+00 : f32
    %1529 = vector.broadcast %cst_574 : f32 to vector<16x16xf32>
    %1530 = arith.select %1528, %1529, %1517 : vector<16x16xi1>, vector<16x16xf32>
    %cst_575 = arith.constant 0.000000e+00 : f32
    %1531 = vector.broadcast %cst_575 : f32 to vector<16x16xf32>
    %1532 = arith.select %1528, %1531, %1520 : vector<16x16xi1>, vector<16x16xf32>
    %cst_576 = arith.constant 0.000000e+00 : f32
    %1533 = vector.broadcast %cst_576 : f32 to vector<16x16xf32>
    %1534 = arith.select %1528, %1533, %1523 : vector<16x16xi1>, vector<16x16xf32>
    %1535 = arith.mulf %1530, %1530 : vector<16x16xf32>
    %1536 = arith.addf %1501, %1535 : vector<16x16xf32>
    %1537 = arith.mulf %1532, %1532 : vector<16x16xf32>
    %1538 = arith.addf %1503, %1537 : vector<16x16xf32>
    %1539 = arith.mulf %1534, %1534 : vector<16x16xf32>
    %1540 = arith.addf %1505, %1539 : vector<16x16xf32>
    %1541 = arith.mulf %1530, %1532 : vector<16x16xf32>
    %1542 = arith.addf %1507, %1541 : vector<16x16xf32>
    %1543 = arith.mulf %1530, %1534 : vector<16x16xf32>
    %1544 = arith.addf %1509, %1543 : vector<16x16xf32>
    %1545 = arith.mulf %1532, %1534 : vector<16x16xf32>
    %1546 = arith.addf %1511, %1545 : vector<16x16xf32>
    %1547 = arith.addf %1512, %1530 : vector<16x16xf32>
    %1548 = arith.addf %1513, %1532 : vector<16x16xf32>
    %1549 = arith.addf %1514, %1534 : vector<16x16xf32>
    %c6_i32_577 = arith.constant 6 : i32
    %c0_578 = arith.constant 0 : index
    %1550 = arith.index_cast %c6_i32_577 : i32 to index
    %c0_579 = arith.constant 0 : index
    %1551 = vector.load %arg4[%c0_578, %1550, %c0_579] : memref<3x24x16xf32, #tpu.memory_space<vmem>>, vector<1x16x16xf32>
    %1552 = vector.shape_cast %1551 : vector<1x16x16xf32> to vector<16x16xf32>
    %c1_580 = arith.constant 1 : index
    %1553 = arith.index_cast %c6_i32_577 : i32 to index
    %c0_581 = arith.constant 0 : index
    %1554 = vector.load %arg4[%c1_580, %1553, %c0_581] : memref<3x24x16xf32, #tpu.memory_space<vmem>>, vector<1x16x16xf32>
    %1555 = vector.shape_cast %1554 : vector<1x16x16xf32> to vector<16x16xf32>
    %c2_582 = arith.constant 2 : index
    %1556 = arith.index_cast %c6_i32_577 : i32 to index
    %c0_583 = arith.constant 0 : index
    %1557 = vector.load %arg4[%c2_582, %1556, %c0_583] : memref<3x24x16xf32, #tpu.memory_space<vmem>>, vector<1x16x16xf32>
    %1558 = vector.shape_cast %1557 : vector<1x16x16xf32> to vector<16x16xf32>
    %1559 = arith.subf %1558, %1 : vector<16x16xf32>
    %1560 = arith.mulf %1559, %3 : vector<16x16xf32>
    %1561 = math.absf %1560 : vector<16x16xf32>
    %cst_584 = arith.constant 1.500000e-01 : f32
    %1562 = vector.broadcast %cst_584 : f32 to vector<16x16xf32>
    %1563 = arith.cmpf ogt, %1561, %1562 : vector<16x16xf32>
    %cst_585 = arith.constant 0.000000e+00 : f32
    %1564 = vector.broadcast %cst_585 : f32 to vector<16x16xf32>
    %1565 = arith.select %1563, %1564, %1552 : vector<16x16xi1>, vector<16x16xf32>
    %cst_586 = arith.constant 0.000000e+00 : f32
    %1566 = vector.broadcast %cst_586 : f32 to vector<16x16xf32>
    %1567 = arith.select %1563, %1566, %1555 : vector<16x16xi1>, vector<16x16xf32>
    %cst_587 = arith.constant 0.000000e+00 : f32
    %1568 = vector.broadcast %cst_587 : f32 to vector<16x16xf32>
    %1569 = arith.select %1563, %1568, %1558 : vector<16x16xi1>, vector<16x16xf32>
    %1570 = arith.mulf %1565, %1565 : vector<16x16xf32>
    %1571 = arith.addf %1536, %1570 : vector<16x16xf32>
    %1572 = arith.mulf %1567, %1567 : vector<16x16xf32>
    %1573 = arith.addf %1538, %1572 : vector<16x16xf32>
    %1574 = arith.mulf %1569, %1569 : vector<16x16xf32>
    %1575 = arith.addf %1540, %1574 : vector<16x16xf32>
    %1576 = arith.mulf %1565, %1567 : vector<16x16xf32>
    %1577 = arith.addf %1542, %1576 : vector<16x16xf32>
    %1578 = arith.mulf %1565, %1569 : vector<16x16xf32>
    %1579 = arith.addf %1544, %1578 : vector<16x16xf32>
    %1580 = arith.mulf %1567, %1569 : vector<16x16xf32>
    %1581 = arith.addf %1546, %1580 : vector<16x16xf32>
    %1582 = arith.addf %1547, %1565 : vector<16x16xf32>
    %1583 = arith.addf %1548, %1567 : vector<16x16xf32>
    %1584 = arith.addf %1549, %1569 : vector<16x16xf32>
    %c7_i32_588 = arith.constant 7 : i32
    %c0_589 = arith.constant 0 : index
    %1585 = arith.index_cast %c7_i32_588 : i32 to index
    %c0_590 = arith.constant 0 : index
    %1586 = vector.load %arg4[%c0_589, %1585, %c0_590] : memref<3x24x16xf32, #tpu.memory_space<vmem>>, vector<1x16x16xf32>
    %1587 = vector.shape_cast %1586 : vector<1x16x16xf32> to vector<16x16xf32>
    %c1_591 = arith.constant 1 : index
    %1588 = arith.index_cast %c7_i32_588 : i32 to index
    %c0_592 = arith.constant 0 : index
    %1589 = vector.load %arg4[%c1_591, %1588, %c0_592] : memref<3x24x16xf32, #tpu.memory_space<vmem>>, vector<1x16x16xf32>
    %1590 = vector.shape_cast %1589 : vector<1x16x16xf32> to vector<16x16xf32>
    %c2_593 = arith.constant 2 : index
    %1591 = arith.index_cast %c7_i32_588 : i32 to index
    %c0_594 = arith.constant 0 : index
    %1592 = vector.load %arg4[%c2_593, %1591, %c0_594] : memref<3x24x16xf32, #tpu.memory_space<vmem>>, vector<1x16x16xf32>
    %1593 = vector.shape_cast %1592 : vector<1x16x16xf32> to vector<16x16xf32>
    %1594 = arith.subf %1593, %1 : vector<16x16xf32>
    %1595 = arith.mulf %1594, %3 : vector<16x16xf32>
    %1596 = math.absf %1595 : vector<16x16xf32>
    %cst_595 = arith.constant 1.500000e-01 : f32
    %1597 = vector.broadcast %cst_595 : f32 to vector<16x16xf32>
    %1598 = arith.cmpf ogt, %1596, %1597 : vector<16x16xf32>
    %cst_596 = arith.constant 0.000000e+00 : f32
    %1599 = vector.broadcast %cst_596 : f32 to vector<16x16xf32>
    %1600 = arith.select %1598, %1599, %1587 : vector<16x16xi1>, vector<16x16xf32>
    %cst_597 = arith.constant 0.000000e+00 : f32
    %1601 = vector.broadcast %cst_597 : f32 to vector<16x16xf32>
    %1602 = arith.select %1598, %1601, %1590 : vector<16x16xi1>, vector<16x16xf32>
    %cst_598 = arith.constant 0.000000e+00 : f32
    %1603 = vector.broadcast %cst_598 : f32 to vector<16x16xf32>
    %1604 = arith.select %1598, %1603, %1593 : vector<16x16xi1>, vector<16x16xf32>
    %1605 = arith.mulf %1600, %1600 : vector<16x16xf32>
    %1606 = arith.addf %1571, %1605 : vector<16x16xf32>
    %1607 = arith.mulf %1602, %1602 : vector<16x16xf32>
    %1608 = arith.addf %1573, %1607 : vector<16x16xf32>
    %1609 = arith.mulf %1604, %1604 : vector<16x16xf32>
    %1610 = arith.addf %1575, %1609 : vector<16x16xf32>
    %1611 = arith.mulf %1600, %1602 : vector<16x16xf32>
    %1612 = arith.addf %1577, %1611 : vector<16x16xf32>
    %1613 = arith.mulf %1600, %1604 : vector<16x16xf32>
    %1614 = arith.addf %1579, %1613 : vector<16x16xf32>
    %1615 = arith.mulf %1602, %1604 : vector<16x16xf32>
    %1616 = arith.addf %1581, %1615 : vector<16x16xf32>
    %1617 = arith.addf %1582, %1600 : vector<16x16xf32>
    %1618 = arith.addf %1583, %1602 : vector<16x16xf32>
    %1619 = arith.addf %1584, %1604 : vector<16x16xf32>
    %c8_i32_599 = arith.constant 8 : i32
    %c0_600 = arith.constant 0 : index
    %1620 = arith.index_cast %c8_i32_599 : i32 to index
    %c0_601 = arith.constant 0 : index
    %1621 = vector.load %arg4[%c0_600, %1620, %c0_601] : memref<3x24x16xf32, #tpu.memory_space<vmem>>, vector<1x16x16xf32>
    %1622 = vector.shape_cast %1621 : vector<1x16x16xf32> to vector<16x16xf32>
    %c1_602 = arith.constant 1 : index
    %1623 = arith.index_cast %c8_i32_599 : i32 to index
    %c0_603 = arith.constant 0 : index
    %1624 = vector.load %arg4[%c1_602, %1623, %c0_603] : memref<3x24x16xf32, #tpu.memory_space<vmem>>, vector<1x16x16xf32>
    %1625 = vector.shape_cast %1624 : vector<1x16x16xf32> to vector<16x16xf32>
    %c2_604 = arith.constant 2 : index
    %1626 = arith.index_cast %c8_i32_599 : i32 to index
    %c0_605 = arith.constant 0 : index
    %1627 = vector.load %arg4[%c2_604, %1626, %c0_605] : memref<3x24x16xf32, #tpu.memory_space<vmem>>, vector<1x16x16xf32>
    %1628 = vector.shape_cast %1627 : vector<1x16x16xf32> to vector<16x16xf32>
    %1629 = arith.subf %1628, %1 : vector<16x16xf32>
    %1630 = arith.mulf %1629, %3 : vector<16x16xf32>
    %1631 = math.absf %1630 : vector<16x16xf32>
    %cst_606 = arith.constant 1.500000e-01 : f32
    %1632 = vector.broadcast %cst_606 : f32 to vector<16x16xf32>
    %1633 = arith.cmpf ogt, %1631, %1632 : vector<16x16xf32>
    %cst_607 = arith.constant 0.000000e+00 : f32
    %1634 = vector.broadcast %cst_607 : f32 to vector<16x16xf32>
    %1635 = arith.select %1633, %1634, %1622 : vector<16x16xi1>, vector<16x16xf32>
    %cst_608 = arith.constant 0.000000e+00 : f32
    %1636 = vector.broadcast %cst_608 : f32 to vector<16x16xf32>
    %1637 = arith.select %1633, %1636, %1625 : vector<16x16xi1>, vector<16x16xf32>
    %cst_609 = arith.constant 0.000000e+00 : f32
    %1638 = vector.broadcast %cst_609 : f32 to vector<16x16xf32>
    %1639 = arith.select %1633, %1638, %1628 : vector<16x16xi1>, vector<16x16xf32>
    %1640 = arith.mulf %1635, %1635 : vector<16x16xf32>
    %1641 = arith.addf %1606, %1640 : vector<16x16xf32>
    %1642 = arith.mulf %1637, %1637 : vector<16x16xf32>
    %1643 = arith.addf %1608, %1642 : vector<16x16xf32>
    %1644 = arith.mulf %1639, %1639 : vector<16x16xf32>
    %1645 = arith.addf %1610, %1644 : vector<16x16xf32>
    %1646 = arith.mulf %1635, %1637 : vector<16x16xf32>
    %1647 = arith.addf %1612, %1646 : vector<16x16xf32>
    %1648 = arith.mulf %1635, %1639 : vector<16x16xf32>
    %1649 = arith.addf %1614, %1648 : vector<16x16xf32>
    %1650 = arith.mulf %1637, %1639 : vector<16x16xf32>
    %1651 = arith.addf %1616, %1650 : vector<16x16xf32>
    %1652 = arith.addf %1617, %1635 : vector<16x16xf32>
    %1653 = arith.addf %1618, %1637 : vector<16x16xf32>
    %1654 = arith.addf %1619, %1639 : vector<16x16xf32>
    %c9_i32_610 = arith.constant 9 : i32
    %c0_611 = arith.constant 0 : index
    %c0_612 = arith.constant 0 : index
    %c0_613 = arith.constant 0 : index
    %c0_614 = arith.constant 0 : index
    %c5 = arith.constant 5 : index
    %1655 = vector.load %arg2[%c0_611, %c0_612, %c0_613, %c0_614, %c5] : memref<1x1x3x24x24xf32, #tpu.memory_space<vmem>>, vector<1x1x1x24x16xf32>
    %1656 = vector.shape_cast %1655 : vector<1x1x1x24x16xf32> to vector<24x16xf32>
    %c0_615 = arith.constant 0 : index
    %c0_616 = arith.constant 0 : index
    %c0_617 = arith.constant 0 : index
    %1657 = vector.load %arg4[%c0_615, %c0_616, %c0_617] : memref<3x24x16xf32, #tpu.memory_space<vmem>>, vector<1x24x16xf32>
    %1658 = vector.shape_cast %1657 : vector<1x24x16xf32> to vector<24x16xf32>
    %1659 = vector.shape_cast %1656 : vector<24x16xf32> to vector<1x24x16xf32>
    tpu.vector_store %arg4[%c0_615, %c0_616, %c0_617], %1659 {strides = array<i32>} : memref<3x24x16xf32, #tpu.memory_space<vmem>>, vector<1x24x16xf32>,
    %c0_618 = arith.constant 0 : index
    %c0_619 = arith.constant 0 : index
    %c1_620 = arith.constant 1 : index
    %c0_621 = arith.constant 0 : index
    %c5_622 = arith.constant 5 : index
    %1660 = vector.load %arg2[%c0_618, %c0_619, %c1_620, %c0_621, %c5_622] : memref<1x1x3x24x24xf32, #tpu.memory_space<vmem>>, vector<1x1x1x24x16xf32>
    %1661 = vector.shape_cast %1660 : vector<1x1x1x24x16xf32> to vector<24x16xf32>
    %c1_623 = arith.constant 1 : index
    %c0_624 = arith.constant 0 : index
    %c0_625 = arith.constant 0 : index
    %1662 = vector.load %arg4[%c1_623, %c0_624, %c0_625] : memref<3x24x16xf32, #tpu.memory_space<vmem>>, vector<1x24x16xf32>
    %1663 = vector.shape_cast %1662 : vector<1x24x16xf32> to vector<24x16xf32>
    %1664 = vector.shape_cast %1661 : vector<24x16xf32> to vector<1x24x16xf32>
    tpu.vector_store %arg4[%c1_623, %c0_624, %c0_625], %1664 {strides = array<i32>} : memref<3x24x16xf32, #tpu.memory_space<vmem>>, vector<1x24x16xf32>,
    %c0_626 = arith.constant 0 : index
    %c0_627 = arith.constant 0 : index
    %c2_628 = arith.constant 2 : index
    %c0_629 = arith.constant 0 : index
    %c5_630 = arith.constant 5 : index
    %1665 = vector.load %arg2[%c0_626, %c0_627, %c2_628, %c0_629, %c5_630] : memref<1x1x3x24x24xf32, #tpu.memory_space<vmem>>, vector<1x1x1x24x16xf32>
    %1666 = vector.shape_cast %1665 : vector<1x1x1x24x16xf32> to vector<24x16xf32>
    %c2_631 = arith.constant 2 : index
    %c0_632 = arith.constant 0 : index
    %c0_633 = arith.constant 0 : index
    %1667 = vector.load %arg4[%c2_631, %c0_632, %c0_633] : memref<3x24x16xf32, #tpu.memory_space<vmem>>, vector<1x24x16xf32>
    %1668 = vector.shape_cast %1667 : vector<1x24x16xf32> to vector<24x16xf32>
    %1669 = vector.shape_cast %1666 : vector<24x16xf32> to vector<1x24x16xf32>
    tpu.vector_store %arg4[%c2_631, %c0_632, %c0_633], %1669 {strides = array<i32>} : memref<3x24x16xf32, #tpu.memory_space<vmem>>, vector<1x24x16xf32>,
    %c0_i32_634 = arith.constant 0 : i32
    %c0_635 = arith.constant 0 : index
    %1670 = arith.index_cast %c0_i32_634 : i32 to index
    %c0_636 = arith.constant 0 : index
    %1671 = vector.load %arg4[%c0_635, %1670, %c0_636] : memref<3x24x16xf32, #tpu.memory_space<vmem>>, vector<1x16x16xf32>
    %1672 = vector.shape_cast %1671 : vector<1x16x16xf32> to vector<16x16xf32>
    %c1_637 = arith.constant 1 : index
    %1673 = arith.index_cast %c0_i32_634 : i32 to index
    %c0_638 = arith.constant 0 : index
    %1674 = vector.load %arg4[%c1_637, %1673, %c0_638] : memref<3x24x16xf32, #tpu.memory_space<vmem>>, vector<1x16x16xf32>
    %1675 = vector.shape_cast %1674 : vector<1x16x16xf32> to vector<16x16xf32>
    %c2_639 = arith.constant 2 : index
    %1676 = arith.index_cast %c0_i32_634 : i32 to index
    %c0_640 = arith.constant 0 : index
    %1677 = vector.load %arg4[%c2_639, %1676, %c0_640] : memref<3x24x16xf32, #tpu.memory_space<vmem>>, vector<1x16x16xf32>
    %1678 = vector.shape_cast %1677 : vector<1x16x16xf32> to vector<16x16xf32>
    %1679 = arith.subf %1678, %1 : vector<16x16xf32>
    %1680 = arith.mulf %1679, %3 : vector<16x16xf32>
    %1681 = math.absf %1680 : vector<16x16xf32>
    %cst_641 = arith.constant 1.500000e-01 : f32
    %1682 = vector.broadcast %cst_641 : f32 to vector<16x16xf32>
    %1683 = arith.cmpf ogt, %1681, %1682 : vector<16x16xf32>
    %cst_642 = arith.constant 0.000000e+00 : f32
    %1684 = vector.broadcast %cst_642 : f32 to vector<16x16xf32>
    %1685 = arith.select %1683, %1684, %1672 : vector<16x16xi1>, vector<16x16xf32>
    %cst_643 = arith.constant 0.000000e+00 : f32
    %1686 = vector.broadcast %cst_643 : f32 to vector<16x16xf32>
    %1687 = arith.select %1683, %1686, %1675 : vector<16x16xi1>, vector<16x16xf32>
    %cst_644 = arith.constant 0.000000e+00 : f32
    %1688 = vector.broadcast %cst_644 : f32 to vector<16x16xf32>
    %1689 = arith.select %1683, %1688, %1678 : vector<16x16xi1>, vector<16x16xf32>
    %1690 = arith.mulf %1685, %1685 : vector<16x16xf32>
    %1691 = arith.addf %1641, %1690 : vector<16x16xf32>
    %1692 = arith.mulf %1687, %1687 : vector<16x16xf32>
    %1693 = arith.addf %1643, %1692 : vector<16x16xf32>
    %1694 = arith.mulf %1689, %1689 : vector<16x16xf32>
    %1695 = arith.addf %1645, %1694 : vector<16x16xf32>
    %1696 = arith.mulf %1685, %1687 : vector<16x16xf32>
    %1697 = arith.addf %1647, %1696 : vector<16x16xf32>
    %1698 = arith.mulf %1685, %1689 : vector<16x16xf32>
    %1699 = arith.addf %1649, %1698 : vector<16x16xf32>
    %1700 = arith.mulf %1687, %1689 : vector<16x16xf32>
    %1701 = arith.addf %1651, %1700 : vector<16x16xf32>
    %1702 = arith.addf %1652, %1685 : vector<16x16xf32>
    %1703 = arith.addf %1653, %1687 : vector<16x16xf32>
    %1704 = arith.addf %1654, %1689 : vector<16x16xf32>
    %c1_i32_645 = arith.constant 1 : i32
    %c0_646 = arith.constant 0 : index
    %1705 = arith.index_cast %c1_i32_645 : i32 to index
    %c0_647 = arith.constant 0 : index
    %1706 = vector.load %arg4[%c0_646, %1705, %c0_647] : memref<3x24x16xf32, #tpu.memory_space<vmem>>, vector<1x16x16xf32>
    %1707 = vector.shape_cast %1706 : vector<1x16x16xf32> to vector<16x16xf32>
    %c1_648 = arith.constant 1 : index
    %1708 = arith.index_cast %c1_i32_645 : i32 to index
    %c0_649 = arith.constant 0 : index
    %1709 = vector.load %arg4[%c1_648, %1708, %c0_649] : memref<3x24x16xf32, #tpu.memory_space<vmem>>, vector<1x16x16xf32>
    %1710 = vector.shape_cast %1709 : vector<1x16x16xf32> to vector<16x16xf32>
    %c2_650 = arith.constant 2 : index
    %1711 = arith.index_cast %c1_i32_645 : i32 to index
    %c0_651 = arith.constant 0 : index
    %1712 = vector.load %arg4[%c2_650, %1711, %c0_651] : memref<3x24x16xf32, #tpu.memory_space<vmem>>, vector<1x16x16xf32>
    %1713 = vector.shape_cast %1712 : vector<1x16x16xf32> to vector<16x16xf32>
    %1714 = arith.subf %1713, %1 : vector<16x16xf32>
    %1715 = arith.mulf %1714, %3 : vector<16x16xf32>
    %1716 = math.absf %1715 : vector<16x16xf32>
    %cst_652 = arith.constant 1.500000e-01 : f32
    %1717 = vector.broadcast %cst_652 : f32 to vector<16x16xf32>
    %1718 = arith.cmpf ogt, %1716, %1717 : vector<16x16xf32>
    %cst_653 = arith.constant 0.000000e+00 : f32
    %1719 = vector.broadcast %cst_653 : f32 to vector<16x16xf32>
    %1720 = arith.select %1718, %1719, %1707 : vector<16x16xi1>, vector<16x16xf32>
    %cst_654 = arith.constant 0.000000e+00 : f32
    %1721 = vector.broadcast %cst_654 : f32 to vector<16x16xf32>
    %1722 = arith.select %1718, %1721, %1710 : vector<16x16xi1>, vector<16x16xf32>
    %cst_655 = arith.constant 0.000000e+00 : f32
    %1723 = vector.broadcast %cst_655 : f32 to vector<16x16xf32>
    %1724 = arith.select %1718, %1723, %1713 : vector<16x16xi1>, vector<16x16xf32>
    %1725 = arith.mulf %1720, %1720 : vector<16x16xf32>
    %1726 = arith.addf %1691, %1725 : vector<16x16xf32>
    %1727 = arith.mulf %1722, %1722 : vector<16x16xf32>
    %1728 = arith.addf %1693, %1727 : vector<16x16xf32>
    %1729 = arith.mulf %1724, %1724 : vector<16x16xf32>
    %1730 = arith.addf %1695, %1729 : vector<16x16xf32>
    %1731 = arith.mulf %1720, %1722 : vector<16x16xf32>
    %1732 = arith.addf %1697, %1731 : vector<16x16xf32>
    %1733 = arith.mulf %1720, %1724 : vector<16x16xf32>
    %1734 = arith.addf %1699, %1733 : vector<16x16xf32>
    %1735 = arith.mulf %1722, %1724 : vector<16x16xf32>
    %1736 = arith.addf %1701, %1735 : vector<16x16xf32>
    %1737 = arith.addf %1702, %1720 : vector<16x16xf32>
    %1738 = arith.addf %1703, %1722 : vector<16x16xf32>
    %1739 = arith.addf %1704, %1724 : vector<16x16xf32>
    %c2_i32_656 = arith.constant 2 : i32
    %c0_657 = arith.constant 0 : index
    %1740 = arith.index_cast %c2_i32_656 : i32 to index
    %c0_658 = arith.constant 0 : index
    %1741 = vector.load %arg4[%c0_657, %1740, %c0_658] : memref<3x24x16xf32, #tpu.memory_space<vmem>>, vector<1x16x16xf32>
    %1742 = vector.shape_cast %1741 : vector<1x16x16xf32> to vector<16x16xf32>
    %c1_659 = arith.constant 1 : index
    %1743 = arith.index_cast %c2_i32_656 : i32 to index
    %c0_660 = arith.constant 0 : index
    %1744 = vector.load %arg4[%c1_659, %1743, %c0_660] : memref<3x24x16xf32, #tpu.memory_space<vmem>>, vector<1x16x16xf32>
    %1745 = vector.shape_cast %1744 : vector<1x16x16xf32> to vector<16x16xf32>
    %c2_661 = arith.constant 2 : index
    %1746 = arith.index_cast %c2_i32_656 : i32 to index
    %c0_662 = arith.constant 0 : index
    %1747 = vector.load %arg4[%c2_661, %1746, %c0_662] : memref<3x24x16xf32, #tpu.memory_space<vmem>>, vector<1x16x16xf32>
    %1748 = vector.shape_cast %1747 : vector<1x16x16xf32> to vector<16x16xf32>
    %1749 = arith.subf %1748, %1 : vector<16x16xf32>
    %1750 = arith.mulf %1749, %3 : vector<16x16xf32>
    %1751 = math.absf %1750 : vector<16x16xf32>
    %cst_663 = arith.constant 1.500000e-01 : f32
    %1752 = vector.broadcast %cst_663 : f32 to vector<16x16xf32>
    %1753 = arith.cmpf ogt, %1751, %1752 : vector<16x16xf32>
    %cst_664 = arith.constant 0.000000e+00 : f32
    %1754 = vector.broadcast %cst_664 : f32 to vector<16x16xf32>
    %1755 = arith.select %1753, %1754, %1742 : vector<16x16xi1>, vector<16x16xf32>
    %cst_665 = arith.constant 0.000000e+00 : f32
    %1756 = vector.broadcast %cst_665 : f32 to vector<16x16xf32>
    %1757 = arith.select %1753, %1756, %1745 : vector<16x16xi1>, vector<16x16xf32>
    %cst_666 = arith.constant 0.000000e+00 : f32
    %1758 = vector.broadcast %cst_666 : f32 to vector<16x16xf32>
    %1759 = arith.select %1753, %1758, %1748 : vector<16x16xi1>, vector<16x16xf32>
    %1760 = arith.mulf %1755, %1755 : vector<16x16xf32>
    %1761 = arith.addf %1726, %1760 : vector<16x16xf32>
    %1762 = arith.mulf %1757, %1757 : vector<16x16xf32>
    %1763 = arith.addf %1728, %1762 : vector<16x16xf32>
    %1764 = arith.mulf %1759, %1759 : vector<16x16xf32>
    %1765 = arith.addf %1730, %1764 : vector<16x16xf32>
    %1766 = arith.mulf %1755, %1757 : vector<16x16xf32>
    %1767 = arith.addf %1732, %1766 : vector<16x16xf32>
    %1768 = arith.mulf %1755, %1759 : vector<16x16xf32>
    %1769 = arith.addf %1734, %1768 : vector<16x16xf32>
    %1770 = arith.mulf %1757, %1759 : vector<16x16xf32>
    %1771 = arith.addf %1736, %1770 : vector<16x16xf32>
    %1772 = arith.addf %1737, %1755 : vector<16x16xf32>
    %1773 = arith.addf %1738, %1757 : vector<16x16xf32>
    %1774 = arith.addf %1739, %1759 : vector<16x16xf32>
    %c3_i32_667 = arith.constant 3 : i32
    %c0_668 = arith.constant 0 : index
    %1775 = arith.index_cast %c3_i32_667 : i32 to index
    %c0_669 = arith.constant 0 : index
    %1776 = vector.load %arg4[%c0_668, %1775, %c0_669] : memref<3x24x16xf32, #tpu.memory_space<vmem>>, vector<1x16x16xf32>
    %1777 = vector.shape_cast %1776 : vector<1x16x16xf32> to vector<16x16xf32>
    %c1_670 = arith.constant 1 : index
    %1778 = arith.index_cast %c3_i32_667 : i32 to index
    %c0_671 = arith.constant 0 : index
    %1779 = vector.load %arg4[%c1_670, %1778, %c0_671] : memref<3x24x16xf32, #tpu.memory_space<vmem>>, vector<1x16x16xf32>
    %1780 = vector.shape_cast %1779 : vector<1x16x16xf32> to vector<16x16xf32>
    %c2_672 = arith.constant 2 : index
    %1781 = arith.index_cast %c3_i32_667 : i32 to index
    %c0_673 = arith.constant 0 : index
    %1782 = vector.load %arg4[%c2_672, %1781, %c0_673] : memref<3x24x16xf32, #tpu.memory_space<vmem>>, vector<1x16x16xf32>
    %1783 = vector.shape_cast %1782 : vector<1x16x16xf32> to vector<16x16xf32>
    %1784 = arith.subf %1783, %1 : vector<16x16xf32>
    %1785 = arith.mulf %1784, %3 : vector<16x16xf32>
    %1786 = math.absf %1785 : vector<16x16xf32>
    %cst_674 = arith.constant 1.500000e-01 : f32
    %1787 = vector.broadcast %cst_674 : f32 to vector<16x16xf32>
    %1788 = arith.cmpf ogt, %1786, %1787 : vector<16x16xf32>
    %cst_675 = arith.constant 0.000000e+00 : f32
    %1789 = vector.broadcast %cst_675 : f32 to vector<16x16xf32>
    %1790 = arith.select %1788, %1789, %1777 : vector<16x16xi1>, vector<16x16xf32>
    %cst_676 = arith.constant 0.000000e+00 : f32
    %1791 = vector.broadcast %cst_676 : f32 to vector<16x16xf32>
    %1792 = arith.select %1788, %1791, %1780 : vector<16x16xi1>, vector<16x16xf32>
    %cst_677 = arith.constant 0.000000e+00 : f32
    %1793 = vector.broadcast %cst_677 : f32 to vector<16x16xf32>
    %1794 = arith.select %1788, %1793, %1783 : vector<16x16xi1>, vector<16x16xf32>
    %1795 = arith.mulf %1790, %1790 : vector<16x16xf32>
    %1796 = arith.addf %1761, %1795 : vector<16x16xf32>
    %1797 = arith.mulf %1792, %1792 : vector<16x16xf32>
    %1798 = arith.addf %1763, %1797 : vector<16x16xf32>
    %1799 = arith.mulf %1794, %1794 : vector<16x16xf32>
    %1800 = arith.addf %1765, %1799 : vector<16x16xf32>
    %1801 = arith.mulf %1790, %1792 : vector<16x16xf32>
    %1802 = arith.addf %1767, %1801 : vector<16x16xf32>
    %1803 = arith.mulf %1790, %1794 : vector<16x16xf32>
    %1804 = arith.addf %1769, %1803 : vector<16x16xf32>
    %1805 = arith.mulf %1792, %1794 : vector<16x16xf32>
    %1806 = arith.addf %1771, %1805 : vector<16x16xf32>
    %1807 = arith.addf %1772, %1790 : vector<16x16xf32>
    %1808 = arith.addf %1773, %1792 : vector<16x16xf32>
    %1809 = arith.addf %1774, %1794 : vector<16x16xf32>
    %c4_i32_678 = arith.constant 4 : i32
    %c0_679 = arith.constant 0 : index
    %1810 = arith.index_cast %c4_i32_678 : i32 to index
    %c0_680 = arith.constant 0 : index
    %1811 = vector.load %arg4[%c0_679, %1810, %c0_680] : memref<3x24x16xf32, #tpu.memory_space<vmem>>, vector<1x16x16xf32>
    %1812 = vector.shape_cast %1811 : vector<1x16x16xf32> to vector<16x16xf32>
    %c1_681 = arith.constant 1 : index
    %1813 = arith.index_cast %c4_i32_678 : i32 to index
    %c0_682 = arith.constant 0 : index
    %1814 = vector.load %arg4[%c1_681, %1813, %c0_682] : memref<3x24x16xf32, #tpu.memory_space<vmem>>, vector<1x16x16xf32>
    %1815 = vector.shape_cast %1814 : vector<1x16x16xf32> to vector<16x16xf32>
    %c2_683 = arith.constant 2 : index
    %1816 = arith.index_cast %c4_i32_678 : i32 to index
    %c0_684 = arith.constant 0 : index
    %1817 = vector.load %arg4[%c2_683, %1816, %c0_684] : memref<3x24x16xf32, #tpu.memory_space<vmem>>, vector<1x16x16xf32>
    %1818 = vector.shape_cast %1817 : vector<1x16x16xf32> to vector<16x16xf32>
    %1819 = arith.subf %1818, %1 : vector<16x16xf32>
    %1820 = arith.mulf %1819, %3 : vector<16x16xf32>
    %1821 = math.absf %1820 : vector<16x16xf32>
    %cst_685 = arith.constant 1.500000e-01 : f32
    %1822 = vector.broadcast %cst_685 : f32 to vector<16x16xf32>
    %1823 = arith.cmpf ogt, %1821, %1822 : vector<16x16xf32>
    %cst_686 = arith.constant 0.000000e+00 : f32
    %1824 = vector.broadcast %cst_686 : f32 to vector<16x16xf32>
    %1825 = arith.select %1823, %1824, %1812 : vector<16x16xi1>, vector<16x16xf32>
    %cst_687 = arith.constant 0.000000e+00 : f32
    %1826 = vector.broadcast %cst_687 : f32 to vector<16x16xf32>
    %1827 = arith.select %1823, %1826, %1815 : vector<16x16xi1>, vector<16x16xf32>
    %cst_688 = arith.constant 0.000000e+00 : f32
    %1828 = vector.broadcast %cst_688 : f32 to vector<16x16xf32>
    %1829 = arith.select %1823, %1828, %1818 : vector<16x16xi1>, vector<16x16xf32>
    %1830 = arith.mulf %1825, %1825 : vector<16x16xf32>
    %1831 = arith.addf %1796, %1830 : vector<16x16xf32>
    %1832 = arith.mulf %1827, %1827 : vector<16x16xf32>
    %1833 = arith.addf %1798, %1832 : vector<16x16xf32>
    %1834 = arith.mulf %1829, %1829 : vector<16x16xf32>
    %1835 = arith.addf %1800, %1834 : vector<16x16xf32>
    %1836 = arith.mulf %1825, %1827 : vector<16x16xf32>
    %1837 = arith.addf %1802, %1836 : vector<16x16xf32>
    %1838 = arith.mulf %1825, %1829 : vector<16x16xf32>
    %1839 = arith.addf %1804, %1838 : vector<16x16xf32>
    %1840 = arith.mulf %1827, %1829 : vector<16x16xf32>
    %1841 = arith.addf %1806, %1840 : vector<16x16xf32>
    %1842 = arith.addf %1807, %1825 : vector<16x16xf32>
    %1843 = arith.addf %1808, %1827 : vector<16x16xf32>
    %1844 = arith.addf %1809, %1829 : vector<16x16xf32>
    %c5_i32_689 = arith.constant 5 : i32
    %c0_690 = arith.constant 0 : index
    %1845 = arith.index_cast %c5_i32_689 : i32 to index
    %c0_691 = arith.constant 0 : index
    %1846 = vector.load %arg4[%c0_690, %1845, %c0_691] : memref<3x24x16xf32, #tpu.memory_space<vmem>>, vector<1x16x16xf32>
    %1847 = vector.shape_cast %1846 : vector<1x16x16xf32> to vector<16x16xf32>
    %c1_692 = arith.constant 1 : index
    %1848 = arith.index_cast %c5_i32_689 : i32 to index
    %c0_693 = arith.constant 0 : index
    %1849 = vector.load %arg4[%c1_692, %1848, %c0_693] : memref<3x24x16xf32, #tpu.memory_space<vmem>>, vector<1x16x16xf32>
    %1850 = vector.shape_cast %1849 : vector<1x16x16xf32> to vector<16x16xf32>
    %c2_694 = arith.constant 2 : index
    %1851 = arith.index_cast %c5_i32_689 : i32 to index
    %c0_695 = arith.constant 0 : index
    %1852 = vector.load %arg4[%c2_694, %1851, %c0_695] : memref<3x24x16xf32, #tpu.memory_space<vmem>>, vector<1x16x16xf32>
    %1853 = vector.shape_cast %1852 : vector<1x16x16xf32> to vector<16x16xf32>
    %1854 = arith.subf %1853, %1 : vector<16x16xf32>
    %1855 = arith.mulf %1854, %3 : vector<16x16xf32>
    %1856 = math.absf %1855 : vector<16x16xf32>
    %cst_696 = arith.constant 1.500000e-01 : f32
    %1857 = vector.broadcast %cst_696 : f32 to vector<16x16xf32>
    %1858 = arith.cmpf ogt, %1856, %1857 : vector<16x16xf32>
    %cst_697 = arith.constant 0.000000e+00 : f32
    %1859 = vector.broadcast %cst_697 : f32 to vector<16x16xf32>
    %1860 = arith.select %1858, %1859, %1847 : vector<16x16xi1>, vector<16x16xf32>
    %cst_698 = arith.constant 0.000000e+00 : f32
    %1861 = vector.broadcast %cst_698 : f32 to vector<16x16xf32>
    %1862 = arith.select %1858, %1861, %1850 : vector<16x16xi1>, vector<16x16xf32>
    %cst_699 = arith.constant 0.000000e+00 : f32
    %1863 = vector.broadcast %cst_699 : f32 to vector<16x16xf32>
    %1864 = arith.select %1858, %1863, %1853 : vector<16x16xi1>, vector<16x16xf32>
    %1865 = arith.mulf %1860, %1860 : vector<16x16xf32>
    %1866 = arith.addf %1831, %1865 : vector<16x16xf32>
    %1867 = arith.mulf %1862, %1862 : vector<16x16xf32>
    %1868 = arith.addf %1833, %1867 : vector<16x16xf32>
    %1869 = arith.mulf %1864, %1864 : vector<16x16xf32>
    %1870 = arith.addf %1835, %1869 : vector<16x16xf32>
    %1871 = arith.mulf %1860, %1862 : vector<16x16xf32>
    %1872 = arith.addf %1837, %1871 : vector<16x16xf32>
    %1873 = arith.mulf %1860, %1864 : vector<16x16xf32>
    %1874 = arith.addf %1839, %1873 : vector<16x16xf32>
    %1875 = arith.mulf %1862, %1864 : vector<16x16xf32>
    %1876 = arith.addf %1841, %1875 : vector<16x16xf32>
    %1877 = arith.addf %1842, %1860 : vector<16x16xf32>
    %1878 = arith.addf %1843, %1862 : vector<16x16xf32>
    %1879 = arith.addf %1844, %1864 : vector<16x16xf32>
    %c6_i32_700 = arith.constant 6 : i32
    %c0_701 = arith.constant 0 : index
    %1880 = arith.index_cast %c6_i32_700 : i32 to index
    %c0_702 = arith.constant 0 : index
    %1881 = vector.load %arg4[%c0_701, %1880, %c0_702] : memref<3x24x16xf32, #tpu.memory_space<vmem>>, vector<1x16x16xf32>
    %1882 = vector.shape_cast %1881 : vector<1x16x16xf32> to vector<16x16xf32>
    %c1_703 = arith.constant 1 : index
    %1883 = arith.index_cast %c6_i32_700 : i32 to index
    %c0_704 = arith.constant 0 : index
    %1884 = vector.load %arg4[%c1_703, %1883, %c0_704] : memref<3x24x16xf32, #tpu.memory_space<vmem>>, vector<1x16x16xf32>
    %1885 = vector.shape_cast %1884 : vector<1x16x16xf32> to vector<16x16xf32>
    %c2_705 = arith.constant 2 : index
    %1886 = arith.index_cast %c6_i32_700 : i32 to index
    %c0_706 = arith.constant 0 : index
    %1887 = vector.load %arg4[%c2_705, %1886, %c0_706] : memref<3x24x16xf32, #tpu.memory_space<vmem>>, vector<1x16x16xf32>
    %1888 = vector.shape_cast %1887 : vector<1x16x16xf32> to vector<16x16xf32>
    %1889 = arith.subf %1888, %1 : vector<16x16xf32>
    %1890 = arith.mulf %1889, %3 : vector<16x16xf32>
    %1891 = math.absf %1890 : vector<16x16xf32>
    %cst_707 = arith.constant 1.500000e-01 : f32
    %1892 = vector.broadcast %cst_707 : f32 to vector<16x16xf32>
    %1893 = arith.cmpf ogt, %1891, %1892 : vector<16x16xf32>
    %cst_708 = arith.constant 0.000000e+00 : f32
    %1894 = vector.broadcast %cst_708 : f32 to vector<16x16xf32>
    %1895 = arith.select %1893, %1894, %1882 : vector<16x16xi1>, vector<16x16xf32>
    %cst_709 = arith.constant 0.000000e+00 : f32
    %1896 = vector.broadcast %cst_709 : f32 to vector<16x16xf32>
    %1897 = arith.select %1893, %1896, %1885 : vector<16x16xi1>, vector<16x16xf32>
    %cst_710 = arith.constant 0.000000e+00 : f32
    %1898 = vector.broadcast %cst_710 : f32 to vector<16x16xf32>
    %1899 = arith.select %1893, %1898, %1888 : vector<16x16xi1>, vector<16x16xf32>
    %1900 = arith.mulf %1895, %1895 : vector<16x16xf32>
    %1901 = arith.addf %1866, %1900 : vector<16x16xf32>
    %1902 = arith.mulf %1897, %1897 : vector<16x16xf32>
    %1903 = arith.addf %1868, %1902 : vector<16x16xf32>
    %1904 = arith.mulf %1899, %1899 : vector<16x16xf32>
    %1905 = arith.addf %1870, %1904 : vector<16x16xf32>
    %1906 = arith.mulf %1895, %1897 : vector<16x16xf32>
    %1907 = arith.addf %1872, %1906 : vector<16x16xf32>
    %1908 = arith.mulf %1895, %1899 : vector<16x16xf32>
    %1909 = arith.addf %1874, %1908 : vector<16x16xf32>
    %1910 = arith.mulf %1897, %1899 : vector<16x16xf32>
    %1911 = arith.addf %1876, %1910 : vector<16x16xf32>
    %1912 = arith.addf %1877, %1895 : vector<16x16xf32>
    %1913 = arith.addf %1878, %1897 : vector<16x16xf32>
    %1914 = arith.addf %1879, %1899 : vector<16x16xf32>
    %c7_i32_711 = arith.constant 7 : i32
    %c0_712 = arith.constant 0 : index
    %1915 = arith.index_cast %c7_i32_711 : i32 to index
    %c0_713 = arith.constant 0 : index
    %1916 = vector.load %arg4[%c0_712, %1915, %c0_713] : memref<3x24x16xf32, #tpu.memory_space<vmem>>, vector<1x16x16xf32>
    %1917 = vector.shape_cast %1916 : vector<1x16x16xf32> to vector<16x16xf32>
    %c1_714 = arith.constant 1 : index
    %1918 = arith.index_cast %c7_i32_711 : i32 to index
    %c0_715 = arith.constant 0 : index
    %1919 = vector.load %arg4[%c1_714, %1918, %c0_715] : memref<3x24x16xf32, #tpu.memory_space<vmem>>, vector<1x16x16xf32>
    %1920 = vector.shape_cast %1919 : vector<1x16x16xf32> to vector<16x16xf32>
    %c2_716 = arith.constant 2 : index
    %1921 = arith.index_cast %c7_i32_711 : i32 to index
    %c0_717 = arith.constant 0 : index
    %1922 = vector.load %arg4[%c2_716, %1921, %c0_717] : memref<3x24x16xf32, #tpu.memory_space<vmem>>, vector<1x16x16xf32>
    %1923 = vector.shape_cast %1922 : vector<1x16x16xf32> to vector<16x16xf32>
    %1924 = arith.subf %1923, %1 : vector<16x16xf32>
    %1925 = arith.mulf %1924, %3 : vector<16x16xf32>
    %1926 = math.absf %1925 : vector<16x16xf32>
    %cst_718 = arith.constant 1.500000e-01 : f32
    %1927 = vector.broadcast %cst_718 : f32 to vector<16x16xf32>
    %1928 = arith.cmpf ogt, %1926, %1927 : vector<16x16xf32>
    %cst_719 = arith.constant 0.000000e+00 : f32
    %1929 = vector.broadcast %cst_719 : f32 to vector<16x16xf32>
    %1930 = arith.select %1928, %1929, %1917 : vector<16x16xi1>, vector<16x16xf32>
    %cst_720 = arith.constant 0.000000e+00 : f32
    %1931 = vector.broadcast %cst_720 : f32 to vector<16x16xf32>
    %1932 = arith.select %1928, %1931, %1920 : vector<16x16xi1>, vector<16x16xf32>
    %cst_721 = arith.constant 0.000000e+00 : f32
    %1933 = vector.broadcast %cst_721 : f32 to vector<16x16xf32>
    %1934 = arith.select %1928, %1933, %1923 : vector<16x16xi1>, vector<16x16xf32>
    %1935 = arith.mulf %1930, %1930 : vector<16x16xf32>
    %1936 = arith.addf %1901, %1935 : vector<16x16xf32>
    %1937 = arith.mulf %1932, %1932 : vector<16x16xf32>
    %1938 = arith.addf %1903, %1937 : vector<16x16xf32>
    %1939 = arith.mulf %1934, %1934 : vector<16x16xf32>
    %1940 = arith.addf %1905, %1939 : vector<16x16xf32>
    %1941 = arith.mulf %1930, %1932 : vector<16x16xf32>
    %1942 = arith.addf %1907, %1941 : vector<16x16xf32>
    %1943 = arith.mulf %1930, %1934 : vector<16x16xf32>
    %1944 = arith.addf %1909, %1943 : vector<16x16xf32>
    %1945 = arith.mulf %1932, %1934 : vector<16x16xf32>
    %1946 = arith.addf %1911, %1945 : vector<16x16xf32>
    %1947 = arith.addf %1912, %1930 : vector<16x16xf32>
    %1948 = arith.addf %1913, %1932 : vector<16x16xf32>
    %1949 = arith.addf %1914, %1934 : vector<16x16xf32>
    %c8_i32_722 = arith.constant 8 : i32
    %c0_723 = arith.constant 0 : index
    %1950 = arith.index_cast %c8_i32_722 : i32 to index
    %c0_724 = arith.constant 0 : index
    %1951 = vector.load %arg4[%c0_723, %1950, %c0_724] : memref<3x24x16xf32, #tpu.memory_space<vmem>>, vector<1x16x16xf32>
    %1952 = vector.shape_cast %1951 : vector<1x16x16xf32> to vector<16x16xf32>
    %c1_725 = arith.constant 1 : index
    %1953 = arith.index_cast %c8_i32_722 : i32 to index
    %c0_726 = arith.constant 0 : index
    %1954 = vector.load %arg4[%c1_725, %1953, %c0_726] : memref<3x24x16xf32, #tpu.memory_space<vmem>>, vector<1x16x16xf32>
    %1955 = vector.shape_cast %1954 : vector<1x16x16xf32> to vector<16x16xf32>
    %c2_727 = arith.constant 2 : index
    %1956 = arith.index_cast %c8_i32_722 : i32 to index
    %c0_728 = arith.constant 0 : index
    %1957 = vector.load %arg4[%c2_727, %1956, %c0_728] : memref<3x24x16xf32, #tpu.memory_space<vmem>>, vector<1x16x16xf32>
    %1958 = vector.shape_cast %1957 : vector<1x16x16xf32> to vector<16x16xf32>
    %1959 = arith.subf %1958, %1 : vector<16x16xf32>
    %1960 = arith.mulf %1959, %3 : vector<16x16xf32>
    %1961 = math.absf %1960 : vector<16x16xf32>
    %cst_729 = arith.constant 1.500000e-01 : f32
    %1962 = vector.broadcast %cst_729 : f32 to vector<16x16xf32>
    %1963 = arith.cmpf ogt, %1961, %1962 : vector<16x16xf32>
    %cst_730 = arith.constant 0.000000e+00 : f32
    %1964 = vector.broadcast %cst_730 : f32 to vector<16x16xf32>
    %1965 = arith.select %1963, %1964, %1952 : vector<16x16xi1>, vector<16x16xf32>
    %cst_731 = arith.constant 0.000000e+00 : f32
    %1966 = vector.broadcast %cst_731 : f32 to vector<16x16xf32>
    %1967 = arith.select %1963, %1966, %1955 : vector<16x16xi1>, vector<16x16xf32>
    %cst_732 = arith.constant 0.000000e+00 : f32
    %1968 = vector.broadcast %cst_732 : f32 to vector<16x16xf32>
    %1969 = arith.select %1963, %1968, %1958 : vector<16x16xi1>, vector<16x16xf32>
    %1970 = arith.mulf %1965, %1965 : vector<16x16xf32>
    %1971 = arith.addf %1936, %1970 : vector<16x16xf32>
    %1972 = arith.mulf %1967, %1967 : vector<16x16xf32>
    %1973 = arith.addf %1938, %1972 : vector<16x16xf32>
    %1974 = arith.mulf %1969, %1969 : vector<16x16xf32>
    %1975 = arith.addf %1940, %1974 : vector<16x16xf32>
    %1976 = arith.mulf %1965, %1967 : vector<16x16xf32>
    %1977 = arith.addf %1942, %1976 : vector<16x16xf32>
    %1978 = arith.mulf %1965, %1969 : vector<16x16xf32>
    %1979 = arith.addf %1944, %1978 : vector<16x16xf32>
    %1980 = arith.mulf %1967, %1969 : vector<16x16xf32>
    %1981 = arith.addf %1946, %1980 : vector<16x16xf32>
    %1982 = arith.addf %1947, %1965 : vector<16x16xf32>
    %1983 = arith.addf %1948, %1967 : vector<16x16xf32>
    %1984 = arith.addf %1949, %1969 : vector<16x16xf32>
    %c9_i32_733 = arith.constant 9 : i32
    %c0_734 = arith.constant 0 : index
    %c0_735 = arith.constant 0 : index
    %c0_736 = arith.constant 0 : index
    %c0_737 = arith.constant 0 : index
    %c6 = arith.constant 6 : index
    %1985 = vector.load %arg2[%c0_734, %c0_735, %c0_736, %c0_737, %c6] : memref<1x1x3x24x24xf32, #tpu.memory_space<vmem>>, vector<1x1x1x24x16xf32>
    %1986 = vector.shape_cast %1985 : vector<1x1x1x24x16xf32> to vector<24x16xf32>
    %c0_738 = arith.constant 0 : index
    %c0_739 = arith.constant 0 : index
    %c0_740 = arith.constant 0 : index
    %1987 = vector.load %arg4[%c0_738, %c0_739, %c0_740] : memref<3x24x16xf32, #tpu.memory_space<vmem>>, vector<1x24x16xf32>
    %1988 = vector.shape_cast %1987 : vector<1x24x16xf32> to vector<24x16xf32>
    %1989 = vector.shape_cast %1986 : vector<24x16xf32> to vector<1x24x16xf32>
    tpu.vector_store %arg4[%c0_738, %c0_739, %c0_740], %1989 {strides = array<i32>} : memref<3x24x16xf32, #tpu.memory_space<vmem>>, vector<1x24x16xf32>,
    %c0_741 = arith.constant 0 : index
    %c0_742 = arith.constant 0 : index
    %c1_743 = arith.constant 1 : index
    %c0_744 = arith.constant 0 : index
    %c6_745 = arith.constant 6 : index
    %1990 = vector.load %arg2[%c0_741, %c0_742, %c1_743, %c0_744, %c6_745] : memref<1x1x3x24x24xf32, #tpu.memory_space<vmem>>, vector<1x1x1x24x16xf32>
    %1991 = vector.shape_cast %1990 : vector<1x1x1x24x16xf32> to vector<24x16xf32>
    %c1_746 = arith.constant 1 : index
    %c0_747 = arith.constant 0 : index
    %c0_748 = arith.constant 0 : index
    %1992 = vector.load %arg4[%c1_746, %c0_747, %c0_748] : memref<3x24x16xf32, #tpu.memory_space<vmem>>, vector<1x24x16xf32>
    %1993 = vector.shape_cast %1992 : vector<1x24x16xf32> to vector<24x16xf32>
    %1994 = vector.shape_cast %1991 : vector<24x16xf32> to vector<1x24x16xf32>
    tpu.vector_store %arg4[%c1_746, %c0_747, %c0_748], %1994 {strides = array<i32>} : memref<3x24x16xf32, #tpu.memory_space<vmem>>, vector<1x24x16xf32>,
    %c0_749 = arith.constant 0 : index
    %c0_750 = arith.constant 0 : index
    %c2_751 = arith.constant 2 : index
    %c0_752 = arith.constant 0 : index
    %c6_753 = arith.constant 6 : index
    %1995 = vector.load %arg2[%c0_749, %c0_750, %c2_751, %c0_752, %c6_753] : memref<1x1x3x24x24xf32, #tpu.memory_space<vmem>>, vector<1x1x1x24x16xf32>
    %1996 = vector.shape_cast %1995 : vector<1x1x1x24x16xf32> to vector<24x16xf32>
    %c2_754 = arith.constant 2 : index
    %c0_755 = arith.constant 0 : index
    %c0_756 = arith.constant 0 : index
    %1997 = vector.load %arg4[%c2_754, %c0_755, %c0_756] : memref<3x24x16xf32, #tpu.memory_space<vmem>>, vector<1x24x16xf32>
    %1998 = vector.shape_cast %1997 : vector<1x24x16xf32> to vector<24x16xf32>
    %1999 = vector.shape_cast %1996 : vector<24x16xf32> to vector<1x24x16xf32>
    tpu.vector_store %arg4[%c2_754, %c0_755, %c0_756], %1999 {strides = array<i32>} : memref<3x24x16xf32, #tpu.memory_space<vmem>>, vector<1x24x16xf32>,
    %c0_i32_757 = arith.constant 0 : i32
    %c0_758 = arith.constant 0 : index
    %2000 = arith.index_cast %c0_i32_757 : i32 to index
    %c0_759 = arith.constant 0 : index
    %2001 = vector.load %arg4[%c0_758, %2000, %c0_759] : memref<3x24x16xf32, #tpu.memory_space<vmem>>, vector<1x16x16xf32>
    %2002 = vector.shape_cast %2001 : vector<1x16x16xf32> to vector<16x16xf32>
    %c1_760 = arith.constant 1 : index
    %2003 = arith.index_cast %c0_i32_757 : i32 to index
    %c0_761 = arith.constant 0 : index
    %2004 = vector.load %arg4[%c1_760, %2003, %c0_761] : memref<3x24x16xf32, #tpu.memory_space<vmem>>, vector<1x16x16xf32>
    %2005 = vector.shape_cast %2004 : vector<1x16x16xf32> to vector<16x16xf32>
    %c2_762 = arith.constant 2 : index
    %2006 = arith.index_cast %c0_i32_757 : i32 to index
    %c0_763 = arith.constant 0 : index
    %2007 = vector.load %arg4[%c2_762, %2006, %c0_763] : memref<3x24x16xf32, #tpu.memory_space<vmem>>, vector<1x16x16xf32>
    %2008 = vector.shape_cast %2007 : vector<1x16x16xf32> to vector<16x16xf32>
    %2009 = arith.subf %2008, %1 : vector<16x16xf32>
    %2010 = arith.mulf %2009, %3 : vector<16x16xf32>
    %2011 = math.absf %2010 : vector<16x16xf32>
    %cst_764 = arith.constant 1.500000e-01 : f32
    %2012 = vector.broadcast %cst_764 : f32 to vector<16x16xf32>
    %2013 = arith.cmpf ogt, %2011, %2012 : vector<16x16xf32>
    %cst_765 = arith.constant 0.000000e+00 : f32
    %2014 = vector.broadcast %cst_765 : f32 to vector<16x16xf32>
    %2015 = arith.select %2013, %2014, %2002 : vector<16x16xi1>, vector<16x16xf32>
    %cst_766 = arith.constant 0.000000e+00 : f32
    %2016 = vector.broadcast %cst_766 : f32 to vector<16x16xf32>
    %2017 = arith.select %2013, %2016, %2005 : vector<16x16xi1>, vector<16x16xf32>
    %cst_767 = arith.constant 0.000000e+00 : f32
    %2018 = vector.broadcast %cst_767 : f32 to vector<16x16xf32>
    %2019 = arith.select %2013, %2018, %2008 : vector<16x16xi1>, vector<16x16xf32>
    %2020 = arith.mulf %2015, %2015 : vector<16x16xf32>
    %2021 = arith.addf %1971, %2020 : vector<16x16xf32>
    %2022 = arith.mulf %2017, %2017 : vector<16x16xf32>
    %2023 = arith.addf %1973, %2022 : vector<16x16xf32>
    %2024 = arith.mulf %2019, %2019 : vector<16x16xf32>
    %2025 = arith.addf %1975, %2024 : vector<16x16xf32>
    %2026 = arith.mulf %2015, %2017 : vector<16x16xf32>
    %2027 = arith.addf %1977, %2026 : vector<16x16xf32>
    %2028 = arith.mulf %2015, %2019 : vector<16x16xf32>
    %2029 = arith.addf %1979, %2028 : vector<16x16xf32>
    %2030 = arith.mulf %2017, %2019 : vector<16x16xf32>
    %2031 = arith.addf %1981, %2030 : vector<16x16xf32>
    %2032 = arith.addf %1982, %2015 : vector<16x16xf32>
    %2033 = arith.addf %1983, %2017 : vector<16x16xf32>
    %2034 = arith.addf %1984, %2019 : vector<16x16xf32>
    %c1_i32_768 = arith.constant 1 : i32
    %c0_769 = arith.constant 0 : index
    %2035 = arith.index_cast %c1_i32_768 : i32 to index
    %c0_770 = arith.constant 0 : index
    %2036 = vector.load %arg4[%c0_769, %2035, %c0_770] : memref<3x24x16xf32, #tpu.memory_space<vmem>>, vector<1x16x16xf32>
    %2037 = vector.shape_cast %2036 : vector<1x16x16xf32> to vector<16x16xf32>
    %c1_771 = arith.constant 1 : index
    %2038 = arith.index_cast %c1_i32_768 : i32 to index
    %c0_772 = arith.constant 0 : index
    %2039 = vector.load %arg4[%c1_771, %2038, %c0_772] : memref<3x24x16xf32, #tpu.memory_space<vmem>>, vector<1x16x16xf32>
    %2040 = vector.shape_cast %2039 : vector<1x16x16xf32> to vector<16x16xf32>
    %c2_773 = arith.constant 2 : index
    %2041 = arith.index_cast %c1_i32_768 : i32 to index
    %c0_774 = arith.constant 0 : index
    %2042 = vector.load %arg4[%c2_773, %2041, %c0_774] : memref<3x24x16xf32, #tpu.memory_space<vmem>>, vector<1x16x16xf32>
    %2043 = vector.shape_cast %2042 : vector<1x16x16xf32> to vector<16x16xf32>
    %2044 = arith.subf %2043, %1 : vector<16x16xf32>
    %2045 = arith.mulf %2044, %3 : vector<16x16xf32>
    %2046 = math.absf %2045 : vector<16x16xf32>
    %cst_775 = arith.constant 1.500000e-01 : f32
    %2047 = vector.broadcast %cst_775 : f32 to vector<16x16xf32>
    %2048 = arith.cmpf ogt, %2046, %2047 : vector<16x16xf32>
    %cst_776 = arith.constant 0.000000e+00 : f32
    %2049 = vector.broadcast %cst_776 : f32 to vector<16x16xf32>
    %2050 = arith.select %2048, %2049, %2037 : vector<16x16xi1>, vector<16x16xf32>
    %cst_777 = arith.constant 0.000000e+00 : f32
    %2051 = vector.broadcast %cst_777 : f32 to vector<16x16xf32>
    %2052 = arith.select %2048, %2051, %2040 : vector<16x16xi1>, vector<16x16xf32>
    %cst_778 = arith.constant 0.000000e+00 : f32
    %2053 = vector.broadcast %cst_778 : f32 to vector<16x16xf32>
    %2054 = arith.select %2048, %2053, %2043 : vector<16x16xi1>, vector<16x16xf32>
    %2055 = arith.mulf %2050, %2050 : vector<16x16xf32>
    %2056 = arith.addf %2021, %2055 : vector<16x16xf32>
    %2057 = arith.mulf %2052, %2052 : vector<16x16xf32>
    %2058 = arith.addf %2023, %2057 : vector<16x16xf32>
    %2059 = arith.mulf %2054, %2054 : vector<16x16xf32>
    %2060 = arith.addf %2025, %2059 : vector<16x16xf32>
    %2061 = arith.mulf %2050, %2052 : vector<16x16xf32>
    %2062 = arith.addf %2027, %2061 : vector<16x16xf32>
    %2063 = arith.mulf %2050, %2054 : vector<16x16xf32>
    %2064 = arith.addf %2029, %2063 : vector<16x16xf32>
    %2065 = arith.mulf %2052, %2054 : vector<16x16xf32>
    %2066 = arith.addf %2031, %2065 : vector<16x16xf32>
    %2067 = arith.addf %2032, %2050 : vector<16x16xf32>
    %2068 = arith.addf %2033, %2052 : vector<16x16xf32>
    %2069 = arith.addf %2034, %2054 : vector<16x16xf32>
    %c2_i32_779 = arith.constant 2 : i32
    %c0_780 = arith.constant 0 : index
    %2070 = arith.index_cast %c2_i32_779 : i32 to index
    %c0_781 = arith.constant 0 : index
    %2071 = vector.load %arg4[%c0_780, %2070, %c0_781] : memref<3x24x16xf32, #tpu.memory_space<vmem>>, vector<1x16x16xf32>
    %2072 = vector.shape_cast %2071 : vector<1x16x16xf32> to vector<16x16xf32>
    %c1_782 = arith.constant 1 : index
    %2073 = arith.index_cast %c2_i32_779 : i32 to index
    %c0_783 = arith.constant 0 : index
    %2074 = vector.load %arg4[%c1_782, %2073, %c0_783] : memref<3x24x16xf32, #tpu.memory_space<vmem>>, vector<1x16x16xf32>
    %2075 = vector.shape_cast %2074 : vector<1x16x16xf32> to vector<16x16xf32>
    %c2_784 = arith.constant 2 : index
    %2076 = arith.index_cast %c2_i32_779 : i32 to index
    %c0_785 = arith.constant 0 : index
    %2077 = vector.load %arg4[%c2_784, %2076, %c0_785] : memref<3x24x16xf32, #tpu.memory_space<vmem>>, vector<1x16x16xf32>
    %2078 = vector.shape_cast %2077 : vector<1x16x16xf32> to vector<16x16xf32>
    %2079 = arith.subf %2078, %1 : vector<16x16xf32>
    %2080 = arith.mulf %2079, %3 : vector<16x16xf32>
    %2081 = math.absf %2080 : vector<16x16xf32>
    %cst_786 = arith.constant 1.500000e-01 : f32
    %2082 = vector.broadcast %cst_786 : f32 to vector<16x16xf32>
    %2083 = arith.cmpf ogt, %2081, %2082 : vector<16x16xf32>
    %cst_787 = arith.constant 0.000000e+00 : f32
    %2084 = vector.broadcast %cst_787 : f32 to vector<16x16xf32>
    %2085 = arith.select %2083, %2084, %2072 : vector<16x16xi1>, vector<16x16xf32>
    %cst_788 = arith.constant 0.000000e+00 : f32
    %2086 = vector.broadcast %cst_788 : f32 to vector<16x16xf32>
    %2087 = arith.select %2083, %2086, %2075 : vector<16x16xi1>, vector<16x16xf32>
    %cst_789 = arith.constant 0.000000e+00 : f32
    %2088 = vector.broadcast %cst_789 : f32 to vector<16x16xf32>
    %2089 = arith.select %2083, %2088, %2078 : vector<16x16xi1>, vector<16x16xf32>
    %2090 = arith.mulf %2085, %2085 : vector<16x16xf32>
    %2091 = arith.addf %2056, %2090 : vector<16x16xf32>
    %2092 = arith.mulf %2087, %2087 : vector<16x16xf32>
    %2093 = arith.addf %2058, %2092 : vector<16x16xf32>
    %2094 = arith.mulf %2089, %2089 : vector<16x16xf32>
    %2095 = arith.addf %2060, %2094 : vector<16x16xf32>
    %2096 = arith.mulf %2085, %2087 : vector<16x16xf32>
    %2097 = arith.addf %2062, %2096 : vector<16x16xf32>
    %2098 = arith.mulf %2085, %2089 : vector<16x16xf32>
    %2099 = arith.addf %2064, %2098 : vector<16x16xf32>
    %2100 = arith.mulf %2087, %2089 : vector<16x16xf32>
    %2101 = arith.addf %2066, %2100 : vector<16x16xf32>
    %2102 = arith.addf %2067, %2085 : vector<16x16xf32>
    %2103 = arith.addf %2068, %2087 : vector<16x16xf32>
    %2104 = arith.addf %2069, %2089 : vector<16x16xf32>
    %c3_i32_790 = arith.constant 3 : i32
    %c0_791 = arith.constant 0 : index
    %2105 = arith.index_cast %c3_i32_790 : i32 to index
    %c0_792 = arith.constant 0 : index
    %2106 = vector.load %arg4[%c0_791, %2105, %c0_792] : memref<3x24x16xf32, #tpu.memory_space<vmem>>, vector<1x16x16xf32>
    %2107 = vector.shape_cast %2106 : vector<1x16x16xf32> to vector<16x16xf32>
    %c1_793 = arith.constant 1 : index
    %2108 = arith.index_cast %c3_i32_790 : i32 to index
    %c0_794 = arith.constant 0 : index
    %2109 = vector.load %arg4[%c1_793, %2108, %c0_794] : memref<3x24x16xf32, #tpu.memory_space<vmem>>, vector<1x16x16xf32>
    %2110 = vector.shape_cast %2109 : vector<1x16x16xf32> to vector<16x16xf32>
    %c2_795 = arith.constant 2 : index
    %2111 = arith.index_cast %c3_i32_790 : i32 to index
    %c0_796 = arith.constant 0 : index
    %2112 = vector.load %arg4[%c2_795, %2111, %c0_796] : memref<3x24x16xf32, #tpu.memory_space<vmem>>, vector<1x16x16xf32>
    %2113 = vector.shape_cast %2112 : vector<1x16x16xf32> to vector<16x16xf32>
    %2114 = arith.subf %2113, %1 : vector<16x16xf32>
    %2115 = arith.mulf %2114, %3 : vector<16x16xf32>
    %2116 = math.absf %2115 : vector<16x16xf32>
    %cst_797 = arith.constant 1.500000e-01 : f32
    %2117 = vector.broadcast %cst_797 : f32 to vector<16x16xf32>
    %2118 = arith.cmpf ogt, %2116, %2117 : vector<16x16xf32>
    %cst_798 = arith.constant 0.000000e+00 : f32
    %2119 = vector.broadcast %cst_798 : f32 to vector<16x16xf32>
    %2120 = arith.select %2118, %2119, %2107 : vector<16x16xi1>, vector<16x16xf32>
    %cst_799 = arith.constant 0.000000e+00 : f32
    %2121 = vector.broadcast %cst_799 : f32 to vector<16x16xf32>
    %2122 = arith.select %2118, %2121, %2110 : vector<16x16xi1>, vector<16x16xf32>
    %cst_800 = arith.constant 0.000000e+00 : f32
    %2123 = vector.broadcast %cst_800 : f32 to vector<16x16xf32>
    %2124 = arith.select %2118, %2123, %2113 : vector<16x16xi1>, vector<16x16xf32>
    %2125 = arith.mulf %2120, %2120 : vector<16x16xf32>
    %2126 = arith.addf %2091, %2125 : vector<16x16xf32>
    %2127 = arith.mulf %2122, %2122 : vector<16x16xf32>
    %2128 = arith.addf %2093, %2127 : vector<16x16xf32>
    %2129 = arith.mulf %2124, %2124 : vector<16x16xf32>
    %2130 = arith.addf %2095, %2129 : vector<16x16xf32>
    %2131 = arith.mulf %2120, %2122 : vector<16x16xf32>
    %2132 = arith.addf %2097, %2131 : vector<16x16xf32>
    %2133 = arith.mulf %2120, %2124 : vector<16x16xf32>
    %2134 = arith.addf %2099, %2133 : vector<16x16xf32>
    %2135 = arith.mulf %2122, %2124 : vector<16x16xf32>
    %2136 = arith.addf %2101, %2135 : vector<16x16xf32>
    %2137 = arith.addf %2102, %2120 : vector<16x16xf32>
    %2138 = arith.addf %2103, %2122 : vector<16x16xf32>
    %2139 = arith.addf %2104, %2124 : vector<16x16xf32>
    %c4_i32_801 = arith.constant 4 : i32
    %c0_802 = arith.constant 0 : index
    %2140 = arith.index_cast %c4_i32_801 : i32 to index
    %c0_803 = arith.constant 0 : index
    %2141 = vector.load %arg4[%c0_802, %2140, %c0_803] : memref<3x24x16xf32, #tpu.memory_space<vmem>>, vector<1x16x16xf32>
    %2142 = vector.shape_cast %2141 : vector<1x16x16xf32> to vector<16x16xf32>
    %c1_804 = arith.constant 1 : index
    %2143 = arith.index_cast %c4_i32_801 : i32 to index
    %c0_805 = arith.constant 0 : index
    %2144 = vector.load %arg4[%c1_804, %2143, %c0_805] : memref<3x24x16xf32, #tpu.memory_space<vmem>>, vector<1x16x16xf32>
    %2145 = vector.shape_cast %2144 : vector<1x16x16xf32> to vector<16x16xf32>
    %c2_806 = arith.constant 2 : index
    %2146 = arith.index_cast %c4_i32_801 : i32 to index
    %c0_807 = arith.constant 0 : index
    %2147 = vector.load %arg4[%c2_806, %2146, %c0_807] : memref<3x24x16xf32, #tpu.memory_space<vmem>>, vector<1x16x16xf32>
    %2148 = vector.shape_cast %2147 : vector<1x16x16xf32> to vector<16x16xf32>
    %2149 = arith.subf %2148, %1 : vector<16x16xf32>
    %2150 = arith.mulf %2149, %3 : vector<16x16xf32>
    %2151 = math.absf %2150 : vector<16x16xf32>
    %cst_808 = arith.constant 1.500000e-01 : f32
    %2152 = vector.broadcast %cst_808 : f32 to vector<16x16xf32>
    %2153 = arith.cmpf ogt, %2151, %2152 : vector<16x16xf32>
    %cst_809 = arith.constant 0.000000e+00 : f32
    %2154 = vector.broadcast %cst_809 : f32 to vector<16x16xf32>
    %2155 = arith.select %2153, %2154, %2142 : vector<16x16xi1>, vector<16x16xf32>
    %cst_810 = arith.constant 0.000000e+00 : f32
    %2156 = vector.broadcast %cst_810 : f32 to vector<16x16xf32>
    %2157 = arith.select %2153, %2156, %2145 : vector<16x16xi1>, vector<16x16xf32>
    %cst_811 = arith.constant 0.000000e+00 : f32
    %2158 = vector.broadcast %cst_811 : f32 to vector<16x16xf32>
    %2159 = arith.select %2153, %2158, %2148 : vector<16x16xi1>, vector<16x16xf32>
    %2160 = arith.mulf %2155, %2155 : vector<16x16xf32>
    %2161 = arith.addf %2126, %2160 : vector<16x16xf32>
    %2162 = arith.mulf %2157, %2157 : vector<16x16xf32>
    %2163 = arith.addf %2128, %2162 : vector<16x16xf32>
    %2164 = arith.mulf %2159, %2159 : vector<16x16xf32>
    %2165 = arith.addf %2130, %2164 : vector<16x16xf32>
    %2166 = arith.mulf %2155, %2157 : vector<16x16xf32>
    %2167 = arith.addf %2132, %2166 : vector<16x16xf32>
    %2168 = arith.mulf %2155, %2159 : vector<16x16xf32>
    %2169 = arith.addf %2134, %2168 : vector<16x16xf32>
    %2170 = arith.mulf %2157, %2159 : vector<16x16xf32>
    %2171 = arith.addf %2136, %2170 : vector<16x16xf32>
    %2172 = arith.addf %2137, %2155 : vector<16x16xf32>
    %2173 = arith.addf %2138, %2157 : vector<16x16xf32>
    %2174 = arith.addf %2139, %2159 : vector<16x16xf32>
    %c5_i32_812 = arith.constant 5 : i32
    %c0_813 = arith.constant 0 : index
    %2175 = arith.index_cast %c5_i32_812 : i32 to index
    %c0_814 = arith.constant 0 : index
    %2176 = vector.load %arg4[%c0_813, %2175, %c0_814] : memref<3x24x16xf32, #tpu.memory_space<vmem>>, vector<1x16x16xf32>
    %2177 = vector.shape_cast %2176 : vector<1x16x16xf32> to vector<16x16xf32>
    %c1_815 = arith.constant 1 : index
    %2178 = arith.index_cast %c5_i32_812 : i32 to index
    %c0_816 = arith.constant 0 : index
    %2179 = vector.load %arg4[%c1_815, %2178, %c0_816] : memref<3x24x16xf32, #tpu.memory_space<vmem>>, vector<1x16x16xf32>
    %2180 = vector.shape_cast %2179 : vector<1x16x16xf32> to vector<16x16xf32>
    %c2_817 = arith.constant 2 : index
    %2181 = arith.index_cast %c5_i32_812 : i32 to index
    %c0_818 = arith.constant 0 : index
    %2182 = vector.load %arg4[%c2_817, %2181, %c0_818] : memref<3x24x16xf32, #tpu.memory_space<vmem>>, vector<1x16x16xf32>
    %2183 = vector.shape_cast %2182 : vector<1x16x16xf32> to vector<16x16xf32>
    %2184 = arith.subf %2183, %1 : vector<16x16xf32>
    %2185 = arith.mulf %2184, %3 : vector<16x16xf32>
    %2186 = math.absf %2185 : vector<16x16xf32>
    %cst_819 = arith.constant 1.500000e-01 : f32
    %2187 = vector.broadcast %cst_819 : f32 to vector<16x16xf32>
    %2188 = arith.cmpf ogt, %2186, %2187 : vector<16x16xf32>
    %cst_820 = arith.constant 0.000000e+00 : f32
    %2189 = vector.broadcast %cst_820 : f32 to vector<16x16xf32>
    %2190 = arith.select %2188, %2189, %2177 : vector<16x16xi1>, vector<16x16xf32>
    %cst_821 = arith.constant 0.000000e+00 : f32
    %2191 = vector.broadcast %cst_821 : f32 to vector<16x16xf32>
    %2192 = arith.select %2188, %2191, %2180 : vector<16x16xi1>, vector<16x16xf32>
    %cst_822 = arith.constant 0.000000e+00 : f32
    %2193 = vector.broadcast %cst_822 : f32 to vector<16x16xf32>
    %2194 = arith.select %2188, %2193, %2183 : vector<16x16xi1>, vector<16x16xf32>
    %2195 = arith.mulf %2190, %2190 : vector<16x16xf32>
    %2196 = arith.addf %2161, %2195 : vector<16x16xf32>
    %2197 = arith.mulf %2192, %2192 : vector<16x16xf32>
    %2198 = arith.addf %2163, %2197 : vector<16x16xf32>
    %2199 = arith.mulf %2194, %2194 : vector<16x16xf32>
    %2200 = arith.addf %2165, %2199 : vector<16x16xf32>
    %2201 = arith.mulf %2190, %2192 : vector<16x16xf32>
    %2202 = arith.addf %2167, %2201 : vector<16x16xf32>
    %2203 = arith.mulf %2190, %2194 : vector<16x16xf32>
    %2204 = arith.addf %2169, %2203 : vector<16x16xf32>
    %2205 = arith.mulf %2192, %2194 : vector<16x16xf32>
    %2206 = arith.addf %2171, %2205 : vector<16x16xf32>
    %2207 = arith.addf %2172, %2190 : vector<16x16xf32>
    %2208 = arith.addf %2173, %2192 : vector<16x16xf32>
    %2209 = arith.addf %2174, %2194 : vector<16x16xf32>
    %c6_i32_823 = arith.constant 6 : i32
    %c0_824 = arith.constant 0 : index
    %2210 = arith.index_cast %c6_i32_823 : i32 to index
    %c0_825 = arith.constant 0 : index
    %2211 = vector.load %arg4[%c0_824, %2210, %c0_825] : memref<3x24x16xf32, #tpu.memory_space<vmem>>, vector<1x16x16xf32>
    %2212 = vector.shape_cast %2211 : vector<1x16x16xf32> to vector<16x16xf32>
    %c1_826 = arith.constant 1 : index
    %2213 = arith.index_cast %c6_i32_823 : i32 to index
    %c0_827 = arith.constant 0 : index
    %2214 = vector.load %arg4[%c1_826, %2213, %c0_827] : memref<3x24x16xf32, #tpu.memory_space<vmem>>, vector<1x16x16xf32>
    %2215 = vector.shape_cast %2214 : vector<1x16x16xf32> to vector<16x16xf32>
    %c2_828 = arith.constant 2 : index
    %2216 = arith.index_cast %c6_i32_823 : i32 to index
    %c0_829 = arith.constant 0 : index
    %2217 = vector.load %arg4[%c2_828, %2216, %c0_829] : memref<3x24x16xf32, #tpu.memory_space<vmem>>, vector<1x16x16xf32>
    %2218 = vector.shape_cast %2217 : vector<1x16x16xf32> to vector<16x16xf32>
    %2219 = arith.subf %2218, %1 : vector<16x16xf32>
    %2220 = arith.mulf %2219, %3 : vector<16x16xf32>
    %2221 = math.absf %2220 : vector<16x16xf32>
    %cst_830 = arith.constant 1.500000e-01 : f32
    %2222 = vector.broadcast %cst_830 : f32 to vector<16x16xf32>
    %2223 = arith.cmpf ogt, %2221, %2222 : vector<16x16xf32>
    %cst_831 = arith.constant 0.000000e+00 : f32
    %2224 = vector.broadcast %cst_831 : f32 to vector<16x16xf32>
    %2225 = arith.select %2223, %2224, %2212 : vector<16x16xi1>, vector<16x16xf32>
    %cst_832 = arith.constant 0.000000e+00 : f32
    %2226 = vector.broadcast %cst_832 : f32 to vector<16x16xf32>
    %2227 = arith.select %2223, %2226, %2215 : vector<16x16xi1>, vector<16x16xf32>
    %cst_833 = arith.constant 0.000000e+00 : f32
    %2228 = vector.broadcast %cst_833 : f32 to vector<16x16xf32>
    %2229 = arith.select %2223, %2228, %2218 : vector<16x16xi1>, vector<16x16xf32>
    %2230 = arith.mulf %2225, %2225 : vector<16x16xf32>
    %2231 = arith.addf %2196, %2230 : vector<16x16xf32>
    %2232 = arith.mulf %2227, %2227 : vector<16x16xf32>
    %2233 = arith.addf %2198, %2232 : vector<16x16xf32>
    %2234 = arith.mulf %2229, %2229 : vector<16x16xf32>
    %2235 = arith.addf %2200, %2234 : vector<16x16xf32>
    %2236 = arith.mulf %2225, %2227 : vector<16x16xf32>
    %2237 = arith.addf %2202, %2236 : vector<16x16xf32>
    %2238 = arith.mulf %2225, %2229 : vector<16x16xf32>
    %2239 = arith.addf %2204, %2238 : vector<16x16xf32>
    %2240 = arith.mulf %2227, %2229 : vector<16x16xf32>
    %2241 = arith.addf %2206, %2240 : vector<16x16xf32>
    %2242 = arith.addf %2207, %2225 : vector<16x16xf32>
    %2243 = arith.addf %2208, %2227 : vector<16x16xf32>
    %2244 = arith.addf %2209, %2229 : vector<16x16xf32>
    %c7_i32_834 = arith.constant 7 : i32
    %c0_835 = arith.constant 0 : index
    %2245 = arith.index_cast %c7_i32_834 : i32 to index
    %c0_836 = arith.constant 0 : index
    %2246 = vector.load %arg4[%c0_835, %2245, %c0_836] : memref<3x24x16xf32, #tpu.memory_space<vmem>>, vector<1x16x16xf32>
    %2247 = vector.shape_cast %2246 : vector<1x16x16xf32> to vector<16x16xf32>
    %c1_837 = arith.constant 1 : index
    %2248 = arith.index_cast %c7_i32_834 : i32 to index
    %c0_838 = arith.constant 0 : index
    %2249 = vector.load %arg4[%c1_837, %2248, %c0_838] : memref<3x24x16xf32, #tpu.memory_space<vmem>>, vector<1x16x16xf32>
    %2250 = vector.shape_cast %2249 : vector<1x16x16xf32> to vector<16x16xf32>
    %c2_839 = arith.constant 2 : index
    %2251 = arith.index_cast %c7_i32_834 : i32 to index
    %c0_840 = arith.constant 0 : index
    %2252 = vector.load %arg4[%c2_839, %2251, %c0_840] : memref<3x24x16xf32, #tpu.memory_space<vmem>>, vector<1x16x16xf32>
    %2253 = vector.shape_cast %2252 : vector<1x16x16xf32> to vector<16x16xf32>
    %2254 = arith.subf %2253, %1 : vector<16x16xf32>
    %2255 = arith.mulf %2254, %3 : vector<16x16xf32>
    %2256 = math.absf %2255 : vector<16x16xf32>
    %cst_841 = arith.constant 1.500000e-01 : f32
    %2257 = vector.broadcast %cst_841 : f32 to vector<16x16xf32>
    %2258 = arith.cmpf ogt, %2256, %2257 : vector<16x16xf32>
    %cst_842 = arith.constant 0.000000e+00 : f32
    %2259 = vector.broadcast %cst_842 : f32 to vector<16x16xf32>
    %2260 = arith.select %2258, %2259, %2247 : vector<16x16xi1>, vector<16x16xf32>
    %cst_843 = arith.constant 0.000000e+00 : f32
    %2261 = vector.broadcast %cst_843 : f32 to vector<16x16xf32>
    %2262 = arith.select %2258, %2261, %2250 : vector<16x16xi1>, vector<16x16xf32>
    %cst_844 = arith.constant 0.000000e+00 : f32
    %2263 = vector.broadcast %cst_844 : f32 to vector<16x16xf32>
    %2264 = arith.select %2258, %2263, %2253 : vector<16x16xi1>, vector<16x16xf32>
    %2265 = arith.mulf %2260, %2260 : vector<16x16xf32>
    %2266 = arith.addf %2231, %2265 : vector<16x16xf32>
    %2267 = arith.mulf %2262, %2262 : vector<16x16xf32>
    %2268 = arith.addf %2233, %2267 : vector<16x16xf32>
    %2269 = arith.mulf %2264, %2264 : vector<16x16xf32>
    %2270 = arith.addf %2235, %2269 : vector<16x16xf32>
    %2271 = arith.mulf %2260, %2262 : vector<16x16xf32>
    %2272 = arith.addf %2237, %2271 : vector<16x16xf32>
    %2273 = arith.mulf %2260, %2264 : vector<16x16xf32>
    %2274 = arith.addf %2239, %2273 : vector<16x16xf32>
    %2275 = arith.mulf %2262, %2264 : vector<16x16xf32>
    %2276 = arith.addf %2241, %2275 : vector<16x16xf32>
    %2277 = arith.addf %2242, %2260 : vector<16x16xf32>
    %2278 = arith.addf %2243, %2262 : vector<16x16xf32>
    %2279 = arith.addf %2244, %2264 : vector<16x16xf32>
    %c8_i32_845 = arith.constant 8 : i32
    %c0_846 = arith.constant 0 : index
    %2280 = arith.index_cast %c8_i32_845 : i32 to index
    %c0_847 = arith.constant 0 : index
    %2281 = vector.load %arg4[%c0_846, %2280, %c0_847] : memref<3x24x16xf32, #tpu.memory_space<vmem>>, vector<1x16x16xf32>
    %2282 = vector.shape_cast %2281 : vector<1x16x16xf32> to vector<16x16xf32>
    %c1_848 = arith.constant 1 : index
    %2283 = arith.index_cast %c8_i32_845 : i32 to index
    %c0_849 = arith.constant 0 : index
    %2284 = vector.load %arg4[%c1_848, %2283, %c0_849] : memref<3x24x16xf32, #tpu.memory_space<vmem>>, vector<1x16x16xf32>
    %2285 = vector.shape_cast %2284 : vector<1x16x16xf32> to vector<16x16xf32>
    %c2_850 = arith.constant 2 : index
    %2286 = arith.index_cast %c8_i32_845 : i32 to index
    %c0_851 = arith.constant 0 : index
    %2287 = vector.load %arg4[%c2_850, %2286, %c0_851] : memref<3x24x16xf32, #tpu.memory_space<vmem>>, vector<1x16x16xf32>
    %2288 = vector.shape_cast %2287 : vector<1x16x16xf32> to vector<16x16xf32>
    %2289 = arith.subf %2288, %1 : vector<16x16xf32>
    %2290 = arith.mulf %2289, %3 : vector<16x16xf32>
    %2291 = math.absf %2290 : vector<16x16xf32>
    %cst_852 = arith.constant 1.500000e-01 : f32
    %2292 = vector.broadcast %cst_852 : f32 to vector<16x16xf32>
    %2293 = arith.cmpf ogt, %2291, %2292 : vector<16x16xf32>
    %cst_853 = arith.constant 0.000000e+00 : f32
    %2294 = vector.broadcast %cst_853 : f32 to vector<16x16xf32>
    %2295 = arith.select %2293, %2294, %2282 : vector<16x16xi1>, vector<16x16xf32>
    %cst_854 = arith.constant 0.000000e+00 : f32
    %2296 = vector.broadcast %cst_854 : f32 to vector<16x16xf32>
    %2297 = arith.select %2293, %2296, %2285 : vector<16x16xi1>, vector<16x16xf32>
    %cst_855 = arith.constant 0.000000e+00 : f32
    %2298 = vector.broadcast %cst_855 : f32 to vector<16x16xf32>
    %2299 = arith.select %2293, %2298, %2288 : vector<16x16xi1>, vector<16x16xf32>
    %2300 = arith.mulf %2295, %2295 : vector<16x16xf32>
    %2301 = arith.addf %2266, %2300 : vector<16x16xf32>
    %2302 = arith.mulf %2297, %2297 : vector<16x16xf32>
    %2303 = arith.addf %2268, %2302 : vector<16x16xf32>
    %2304 = arith.mulf %2299, %2299 : vector<16x16xf32>
    %2305 = arith.addf %2270, %2304 : vector<16x16xf32>
    %2306 = arith.mulf %2295, %2297 : vector<16x16xf32>
    %2307 = arith.addf %2272, %2306 : vector<16x16xf32>
    %2308 = arith.mulf %2295, %2299 : vector<16x16xf32>
    %2309 = arith.addf %2274, %2308 : vector<16x16xf32>
    %2310 = arith.mulf %2297, %2299 : vector<16x16xf32>
    %2311 = arith.addf %2276, %2310 : vector<16x16xf32>
    %2312 = arith.addf %2277, %2295 : vector<16x16xf32>
    %2313 = arith.addf %2278, %2297 : vector<16x16xf32>
    %2314 = arith.addf %2279, %2299 : vector<16x16xf32>
    %c9_i32_856 = arith.constant 9 : i32
    %c0_857 = arith.constant 0 : index
    %c0_858 = arith.constant 0 : index
    %c0_859 = arith.constant 0 : index
    %c0_860 = arith.constant 0 : index
    %c7 = arith.constant 7 : index
    %2315 = vector.load %arg2[%c0_857, %c0_858, %c0_859, %c0_860, %c7] : memref<1x1x3x24x24xf32, #tpu.memory_space<vmem>>, vector<1x1x1x24x16xf32>
    %2316 = vector.shape_cast %2315 : vector<1x1x1x24x16xf32> to vector<24x16xf32>
    %c0_861 = arith.constant 0 : index
    %c0_862 = arith.constant 0 : index
    %c0_863 = arith.constant 0 : index
    %2317 = vector.load %arg4[%c0_861, %c0_862, %c0_863] : memref<3x24x16xf32, #tpu.memory_space<vmem>>, vector<1x24x16xf32>
    %2318 = vector.shape_cast %2317 : vector<1x24x16xf32> to vector<24x16xf32>
    %2319 = vector.shape_cast %2316 : vector<24x16xf32> to vector<1x24x16xf32>
    tpu.vector_store %arg4[%c0_861, %c0_862, %c0_863], %2319 {strides = array<i32>} : memref<3x24x16xf32, #tpu.memory_space<vmem>>, vector<1x24x16xf32>,
    %c0_864 = arith.constant 0 : index
    %c0_865 = arith.constant 0 : index
    %c1_866 = arith.constant 1 : index
    %c0_867 = arith.constant 0 : index
    %c7_868 = arith.constant 7 : index
    %2320 = vector.load %arg2[%c0_864, %c0_865, %c1_866, %c0_867, %c7_868] : memref<1x1x3x24x24xf32, #tpu.memory_space<vmem>>, vector<1x1x1x24x16xf32>
    %2321 = vector.shape_cast %2320 : vector<1x1x1x24x16xf32> to vector<24x16xf32>
    %c1_869 = arith.constant 1 : index
    %c0_870 = arith.constant 0 : index
    %c0_871 = arith.constant 0 : index
    %2322 = vector.load %arg4[%c1_869, %c0_870, %c0_871] : memref<3x24x16xf32, #tpu.memory_space<vmem>>, vector<1x24x16xf32>
    %2323 = vector.shape_cast %2322 : vector<1x24x16xf32> to vector<24x16xf32>
    %2324 = vector.shape_cast %2321 : vector<24x16xf32> to vector<1x24x16xf32>
    tpu.vector_store %arg4[%c1_869, %c0_870, %c0_871], %2324 {strides = array<i32>} : memref<3x24x16xf32, #tpu.memory_space<vmem>>, vector<1x24x16xf32>,
    %c0_872 = arith.constant 0 : index
    %c0_873 = arith.constant 0 : index
    %c2_874 = arith.constant 2 : index
    %c0_875 = arith.constant 0 : index
    %c7_876 = arith.constant 7 : index
    %2325 = vector.load %arg2[%c0_872, %c0_873, %c2_874, %c0_875, %c7_876] : memref<1x1x3x24x24xf32, #tpu.memory_space<vmem>>, vector<1x1x1x24x16xf32>
    %2326 = vector.shape_cast %2325 : vector<1x1x1x24x16xf32> to vector<24x16xf32>
    %c2_877 = arith.constant 2 : index
    %c0_878 = arith.constant 0 : index
    %c0_879 = arith.constant 0 : index
    %2327 = vector.load %arg4[%c2_877, %c0_878, %c0_879] : memref<3x24x16xf32, #tpu.memory_space<vmem>>, vector<1x24x16xf32>
    %2328 = vector.shape_cast %2327 : vector<1x24x16xf32> to vector<24x16xf32>
    %2329 = vector.shape_cast %2326 : vector<24x16xf32> to vector<1x24x16xf32>
    tpu.vector_store %arg4[%c2_877, %c0_878, %c0_879], %2329 {strides = array<i32>} : memref<3x24x16xf32, #tpu.memory_space<vmem>>, vector<1x24x16xf32>,
    %c0_i32_880 = arith.constant 0 : i32
    %c0_881 = arith.constant 0 : index
    %2330 = arith.index_cast %c0_i32_880 : i32 to index
    %c0_882 = arith.constant 0 : index
    %2331 = vector.load %arg4[%c0_881, %2330, %c0_882] : memref<3x24x16xf32, #tpu.memory_space<vmem>>, vector<1x16x16xf32>
    %2332 = vector.shape_cast %2331 : vector<1x16x16xf32> to vector<16x16xf32>
    %c1_883 = arith.constant 1 : index
    %2333 = arith.index_cast %c0_i32_880 : i32 to index
    %c0_884 = arith.constant 0 : index
    %2334 = vector.load %arg4[%c1_883, %2333, %c0_884] : memref<3x24x16xf32, #tpu.memory_space<vmem>>, vector<1x16x16xf32>
    %2335 = vector.shape_cast %2334 : vector<1x16x16xf32> to vector<16x16xf32>
    %c2_885 = arith.constant 2 : index
    %2336 = arith.index_cast %c0_i32_880 : i32 to index
    %c0_886 = arith.constant 0 : index
    %2337 = vector.load %arg4[%c2_885, %2336, %c0_886] : memref<3x24x16xf32, #tpu.memory_space<vmem>>, vector<1x16x16xf32>
    %2338 = vector.shape_cast %2337 : vector<1x16x16xf32> to vector<16x16xf32>
    %2339 = arith.subf %2338, %1 : vector<16x16xf32>
    %2340 = arith.mulf %2339, %3 : vector<16x16xf32>
    %2341 = math.absf %2340 : vector<16x16xf32>
    %cst_887 = arith.constant 1.500000e-01 : f32
    %2342 = vector.broadcast %cst_887 : f32 to vector<16x16xf32>
    %2343 = arith.cmpf ogt, %2341, %2342 : vector<16x16xf32>
    %cst_888 = arith.constant 0.000000e+00 : f32
    %2344 = vector.broadcast %cst_888 : f32 to vector<16x16xf32>
    %2345 = arith.select %2343, %2344, %2332 : vector<16x16xi1>, vector<16x16xf32>
    %cst_889 = arith.constant 0.000000e+00 : f32
    %2346 = vector.broadcast %cst_889 : f32 to vector<16x16xf32>
    %2347 = arith.select %2343, %2346, %2335 : vector<16x16xi1>, vector<16x16xf32>
    %cst_890 = arith.constant 0.000000e+00 : f32
    %2348 = vector.broadcast %cst_890 : f32 to vector<16x16xf32>
    %2349 = arith.select %2343, %2348, %2338 : vector<16x16xi1>, vector<16x16xf32>
    %2350 = arith.mulf %2345, %2345 : vector<16x16xf32>
    %2351 = arith.addf %2301, %2350 : vector<16x16xf32>
    %2352 = arith.mulf %2347, %2347 : vector<16x16xf32>
    %2353 = arith.addf %2303, %2352 : vector<16x16xf32>
    %2354 = arith.mulf %2349, %2349 : vector<16x16xf32>
    %2355 = arith.addf %2305, %2354 : vector<16x16xf32>
    %2356 = arith.mulf %2345, %2347 : vector<16x16xf32>
    %2357 = arith.addf %2307, %2356 : vector<16x16xf32>
    %2358 = arith.mulf %2345, %2349 : vector<16x16xf32>
    %2359 = arith.addf %2309, %2358 : vector<16x16xf32>
    %2360 = arith.mulf %2347, %2349 : vector<16x16xf32>
    %2361 = arith.addf %2311, %2360 : vector<16x16xf32>
    %2362 = arith.addf %2312, %2345 : vector<16x16xf32>
    %2363 = arith.addf %2313, %2347 : vector<16x16xf32>
    %2364 = arith.addf %2314, %2349 : vector<16x16xf32>
    %c1_i32_891 = arith.constant 1 : i32
    %c0_892 = arith.constant 0 : index
    %2365 = arith.index_cast %c1_i32_891 : i32 to index
    %c0_893 = arith.constant 0 : index
    %2366 = vector.load %arg4[%c0_892, %2365, %c0_893] : memref<3x24x16xf32, #tpu.memory_space<vmem>>, vector<1x16x16xf32>
    %2367 = vector.shape_cast %2366 : vector<1x16x16xf32> to vector<16x16xf32>
    %c1_894 = arith.constant 1 : index
    %2368 = arith.index_cast %c1_i32_891 : i32 to index
    %c0_895 = arith.constant 0 : index
    %2369 = vector.load %arg4[%c1_894, %2368, %c0_895] : memref<3x24x16xf32, #tpu.memory_space<vmem>>, vector<1x16x16xf32>
    %2370 = vector.shape_cast %2369 : vector<1x16x16xf32> to vector<16x16xf32>
    %c2_896 = arith.constant 2 : index
    %2371 = arith.index_cast %c1_i32_891 : i32 to index
    %c0_897 = arith.constant 0 : index
    %2372 = vector.load %arg4[%c2_896, %2371, %c0_897] : memref<3x24x16xf32, #tpu.memory_space<vmem>>, vector<1x16x16xf32>
    %2373 = vector.shape_cast %2372 : vector<1x16x16xf32> to vector<16x16xf32>
    %2374 = arith.subf %2373, %1 : vector<16x16xf32>
    %2375 = arith.mulf %2374, %3 : vector<16x16xf32>
    %2376 = math.absf %2375 : vector<16x16xf32>
    %cst_898 = arith.constant 1.500000e-01 : f32
    %2377 = vector.broadcast %cst_898 : f32 to vector<16x16xf32>
    %2378 = arith.cmpf ogt, %2376, %2377 : vector<16x16xf32>
    %cst_899 = arith.constant 0.000000e+00 : f32
    %2379 = vector.broadcast %cst_899 : f32 to vector<16x16xf32>
    %2380 = arith.select %2378, %2379, %2367 : vector<16x16xi1>, vector<16x16xf32>
    %cst_900 = arith.constant 0.000000e+00 : f32
    %2381 = vector.broadcast %cst_900 : f32 to vector<16x16xf32>
    %2382 = arith.select %2378, %2381, %2370 : vector<16x16xi1>, vector<16x16xf32>
    %cst_901 = arith.constant 0.000000e+00 : f32
    %2383 = vector.broadcast %cst_901 : f32 to vector<16x16xf32>
    %2384 = arith.select %2378, %2383, %2373 : vector<16x16xi1>, vector<16x16xf32>
    %2385 = arith.mulf %2380, %2380 : vector<16x16xf32>
    %2386 = arith.addf %2351, %2385 : vector<16x16xf32>
    %2387 = arith.mulf %2382, %2382 : vector<16x16xf32>
    %2388 = arith.addf %2353, %2387 : vector<16x16xf32>
    %2389 = arith.mulf %2384, %2384 : vector<16x16xf32>
    %2390 = arith.addf %2355, %2389 : vector<16x16xf32>
    %2391 = arith.mulf %2380, %2382 : vector<16x16xf32>
    %2392 = arith.addf %2357, %2391 : vector<16x16xf32>
    %2393 = arith.mulf %2380, %2384 : vector<16x16xf32>
    %2394 = arith.addf %2359, %2393 : vector<16x16xf32>
    %2395 = arith.mulf %2382, %2384 : vector<16x16xf32>
    %2396 = arith.addf %2361, %2395 : vector<16x16xf32>
    %2397 = arith.addf %2362, %2380 : vector<16x16xf32>
    %2398 = arith.addf %2363, %2382 : vector<16x16xf32>
    %2399 = arith.addf %2364, %2384 : vector<16x16xf32>
    %c2_i32_902 = arith.constant 2 : i32
    %c0_903 = arith.constant 0 : index
    %2400 = arith.index_cast %c2_i32_902 : i32 to index
    %c0_904 = arith.constant 0 : index
    %2401 = vector.load %arg4[%c0_903, %2400, %c0_904] : memref<3x24x16xf32, #tpu.memory_space<vmem>>, vector<1x16x16xf32>
    %2402 = vector.shape_cast %2401 : vector<1x16x16xf32> to vector<16x16xf32>
    %c1_905 = arith.constant 1 : index
    %2403 = arith.index_cast %c2_i32_902 : i32 to index
    %c0_906 = arith.constant 0 : index
    %2404 = vector.load %arg4[%c1_905, %2403, %c0_906] : memref<3x24x16xf32, #tpu.memory_space<vmem>>, vector<1x16x16xf32>
    %2405 = vector.shape_cast %2404 : vector<1x16x16xf32> to vector<16x16xf32>
    %c2_907 = arith.constant 2 : index
    %2406 = arith.index_cast %c2_i32_902 : i32 to index
    %c0_908 = arith.constant 0 : index
    %2407 = vector.load %arg4[%c2_907, %2406, %c0_908] : memref<3x24x16xf32, #tpu.memory_space<vmem>>, vector<1x16x16xf32>
    %2408 = vector.shape_cast %2407 : vector<1x16x16xf32> to vector<16x16xf32>
    %2409 = arith.subf %2408, %1 : vector<16x16xf32>
    %2410 = arith.mulf %2409, %3 : vector<16x16xf32>
    %2411 = math.absf %2410 : vector<16x16xf32>
    %cst_909 = arith.constant 1.500000e-01 : f32
    %2412 = vector.broadcast %cst_909 : f32 to vector<16x16xf32>
    %2413 = arith.cmpf ogt, %2411, %2412 : vector<16x16xf32>
    %cst_910 = arith.constant 0.000000e+00 : f32
    %2414 = vector.broadcast %cst_910 : f32 to vector<16x16xf32>
    %2415 = arith.select %2413, %2414, %2402 : vector<16x16xi1>, vector<16x16xf32>
    %cst_911 = arith.constant 0.000000e+00 : f32
    %2416 = vector.broadcast %cst_911 : f32 to vector<16x16xf32>
    %2417 = arith.select %2413, %2416, %2405 : vector<16x16xi1>, vector<16x16xf32>
    %cst_912 = arith.constant 0.000000e+00 : f32
    %2418 = vector.broadcast %cst_912 : f32 to vector<16x16xf32>
    %2419 = arith.select %2413, %2418, %2408 : vector<16x16xi1>, vector<16x16xf32>
    %2420 = arith.mulf %2415, %2415 : vector<16x16xf32>
    %2421 = arith.addf %2386, %2420 : vector<16x16xf32>
    %2422 = arith.mulf %2417, %2417 : vector<16x16xf32>
    %2423 = arith.addf %2388, %2422 : vector<16x16xf32>
    %2424 = arith.mulf %2419, %2419 : vector<16x16xf32>
    %2425 = arith.addf %2390, %2424 : vector<16x16xf32>
    %2426 = arith.mulf %2415, %2417 : vector<16x16xf32>
    %2427 = arith.addf %2392, %2426 : vector<16x16xf32>
    %2428 = arith.mulf %2415, %2419 : vector<16x16xf32>
    %2429 = arith.addf %2394, %2428 : vector<16x16xf32>
    %2430 = arith.mulf %2417, %2419 : vector<16x16xf32>
    %2431 = arith.addf %2396, %2430 : vector<16x16xf32>
    %2432 = arith.addf %2397, %2415 : vector<16x16xf32>
    %2433 = arith.addf %2398, %2417 : vector<16x16xf32>
    %2434 = arith.addf %2399, %2419 : vector<16x16xf32>
    %c3_i32_913 = arith.constant 3 : i32
    %c0_914 = arith.constant 0 : index
    %2435 = arith.index_cast %c3_i32_913 : i32 to index
    %c0_915 = arith.constant 0 : index
    %2436 = vector.load %arg4[%c0_914, %2435, %c0_915] : memref<3x24x16xf32, #tpu.memory_space<vmem>>, vector<1x16x16xf32>
    %2437 = vector.shape_cast %2436 : vector<1x16x16xf32> to vector<16x16xf32>
    %c1_916 = arith.constant 1 : index
    %2438 = arith.index_cast %c3_i32_913 : i32 to index
    %c0_917 = arith.constant 0 : index
    %2439 = vector.load %arg4[%c1_916, %2438, %c0_917] : memref<3x24x16xf32, #tpu.memory_space<vmem>>, vector<1x16x16xf32>
    %2440 = vector.shape_cast %2439 : vector<1x16x16xf32> to vector<16x16xf32>
    %c2_918 = arith.constant 2 : index
    %2441 = arith.index_cast %c3_i32_913 : i32 to index
    %c0_919 = arith.constant 0 : index
    %2442 = vector.load %arg4[%c2_918, %2441, %c0_919] : memref<3x24x16xf32, #tpu.memory_space<vmem>>, vector<1x16x16xf32>
    %2443 = vector.shape_cast %2442 : vector<1x16x16xf32> to vector<16x16xf32>
    %2444 = arith.subf %2443, %1 : vector<16x16xf32>
    %2445 = arith.mulf %2444, %3 : vector<16x16xf32>
    %2446 = math.absf %2445 : vector<16x16xf32>
    %cst_920 = arith.constant 1.500000e-01 : f32
    %2447 = vector.broadcast %cst_920 : f32 to vector<16x16xf32>
    %2448 = arith.cmpf ogt, %2446, %2447 : vector<16x16xf32>
    %cst_921 = arith.constant 0.000000e+00 : f32
    %2449 = vector.broadcast %cst_921 : f32 to vector<16x16xf32>
    %2450 = arith.select %2448, %2449, %2437 : vector<16x16xi1>, vector<16x16xf32>
    %cst_922 = arith.constant 0.000000e+00 : f32
    %2451 = vector.broadcast %cst_922 : f32 to vector<16x16xf32>
    %2452 = arith.select %2448, %2451, %2440 : vector<16x16xi1>, vector<16x16xf32>
    %cst_923 = arith.constant 0.000000e+00 : f32
    %2453 = vector.broadcast %cst_923 : f32 to vector<16x16xf32>
    %2454 = arith.select %2448, %2453, %2443 : vector<16x16xi1>, vector<16x16xf32>
    %2455 = arith.mulf %2450, %2450 : vector<16x16xf32>
    %2456 = arith.addf %2421, %2455 : vector<16x16xf32>
    %2457 = arith.mulf %2452, %2452 : vector<16x16xf32>
    %2458 = arith.addf %2423, %2457 : vector<16x16xf32>
    %2459 = arith.mulf %2454, %2454 : vector<16x16xf32>
    %2460 = arith.addf %2425, %2459 : vector<16x16xf32>
    %2461 = arith.mulf %2450, %2452 : vector<16x16xf32>
    %2462 = arith.addf %2427, %2461 : vector<16x16xf32>
    %2463 = arith.mulf %2450, %2454 : vector<16x16xf32>
    %2464 = arith.addf %2429, %2463 : vector<16x16xf32>
    %2465 = arith.mulf %2452, %2454 : vector<16x16xf32>
    %2466 = arith.addf %2431, %2465 : vector<16x16xf32>
    %2467 = arith.addf %2432, %2450 : vector<16x16xf32>
    %2468 = arith.addf %2433, %2452 : vector<16x16xf32>
    %2469 = arith.addf %2434, %2454 : vector<16x16xf32>
    %c4_i32_924 = arith.constant 4 : i32
    %c0_925 = arith.constant 0 : index
    %2470 = arith.index_cast %c4_i32_924 : i32 to index
    %c0_926 = arith.constant 0 : index
    %2471 = vector.load %arg4[%c0_925, %2470, %c0_926] : memref<3x24x16xf32, #tpu.memory_space<vmem>>, vector<1x16x16xf32>
    %2472 = vector.shape_cast %2471 : vector<1x16x16xf32> to vector<16x16xf32>
    %c1_927 = arith.constant 1 : index
    %2473 = arith.index_cast %c4_i32_924 : i32 to index
    %c0_928 = arith.constant 0 : index
    %2474 = vector.load %arg4[%c1_927, %2473, %c0_928] : memref<3x24x16xf32, #tpu.memory_space<vmem>>, vector<1x16x16xf32>
    %2475 = vector.shape_cast %2474 : vector<1x16x16xf32> to vector<16x16xf32>
    %c2_929 = arith.constant 2 : index
    %2476 = arith.index_cast %c4_i32_924 : i32 to index
    %c0_930 = arith.constant 0 : index
    %2477 = vector.load %arg4[%c2_929, %2476, %c0_930] : memref<3x24x16xf32, #tpu.memory_space<vmem>>, vector<1x16x16xf32>
    %2478 = vector.shape_cast %2477 : vector<1x16x16xf32> to vector<16x16xf32>
    %2479 = arith.subf %2478, %1 : vector<16x16xf32>
    %2480 = arith.mulf %2479, %3 : vector<16x16xf32>
    %2481 = math.absf %2480 : vector<16x16xf32>
    %cst_931 = arith.constant 1.500000e-01 : f32
    %2482 = vector.broadcast %cst_931 : f32 to vector<16x16xf32>
    %2483 = arith.cmpf ogt, %2481, %2482 : vector<16x16xf32>
    %cst_932 = arith.constant 0.000000e+00 : f32
    %2484 = vector.broadcast %cst_932 : f32 to vector<16x16xf32>
    %2485 = arith.select %2483, %2484, %2472 : vector<16x16xi1>, vector<16x16xf32>
    %cst_933 = arith.constant 0.000000e+00 : f32
    %2486 = vector.broadcast %cst_933 : f32 to vector<16x16xf32>
    %2487 = arith.select %2483, %2486, %2475 : vector<16x16xi1>, vector<16x16xf32>
    %cst_934 = arith.constant 0.000000e+00 : f32
    %2488 = vector.broadcast %cst_934 : f32 to vector<16x16xf32>
    %2489 = arith.select %2483, %2488, %2478 : vector<16x16xi1>, vector<16x16xf32>
    %2490 = arith.mulf %2485, %2485 : vector<16x16xf32>
    %2491 = arith.addf %2456, %2490 : vector<16x16xf32>
    %2492 = arith.mulf %2487, %2487 : vector<16x16xf32>
    %2493 = arith.addf %2458, %2492 : vector<16x16xf32>
    %2494 = arith.mulf %2489, %2489 : vector<16x16xf32>
    %2495 = arith.addf %2460, %2494 : vector<16x16xf32>
    %2496 = arith.mulf %2485, %2487 : vector<16x16xf32>
    %2497 = arith.addf %2462, %2496 : vector<16x16xf32>
    %2498 = arith.mulf %2485, %2489 : vector<16x16xf32>
    %2499 = arith.addf %2464, %2498 : vector<16x16xf32>
    %2500 = arith.mulf %2487, %2489 : vector<16x16xf32>
    %2501 = arith.addf %2466, %2500 : vector<16x16xf32>
    %2502 = arith.addf %2467, %2485 : vector<16x16xf32>
    %2503 = arith.addf %2468, %2487 : vector<16x16xf32>
    %2504 = arith.addf %2469, %2489 : vector<16x16xf32>
    %c5_i32_935 = arith.constant 5 : i32
    %c0_936 = arith.constant 0 : index
    %2505 = arith.index_cast %c5_i32_935 : i32 to index
    %c0_937 = arith.constant 0 : index
    %2506 = vector.load %arg4[%c0_936, %2505, %c0_937] : memref<3x24x16xf32, #tpu.memory_space<vmem>>, vector<1x16x16xf32>
    %2507 = vector.shape_cast %2506 : vector<1x16x16xf32> to vector<16x16xf32>
    %c1_938 = arith.constant 1 : index
    %2508 = arith.index_cast %c5_i32_935 : i32 to index
    %c0_939 = arith.constant 0 : index
    %2509 = vector.load %arg4[%c1_938, %2508, %c0_939] : memref<3x24x16xf32, #tpu.memory_space<vmem>>, vector<1x16x16xf32>
    %2510 = vector.shape_cast %2509 : vector<1x16x16xf32> to vector<16x16xf32>
    %c2_940 = arith.constant 2 : index
    %2511 = arith.index_cast %c5_i32_935 : i32 to index
    %c0_941 = arith.constant 0 : index
    %2512 = vector.load %arg4[%c2_940, %2511, %c0_941] : memref<3x24x16xf32, #tpu.memory_space<vmem>>, vector<1x16x16xf32>
    %2513 = vector.shape_cast %2512 : vector<1x16x16xf32> to vector<16x16xf32>
    %2514 = arith.subf %2513, %1 : vector<16x16xf32>
    %2515 = arith.mulf %2514, %3 : vector<16x16xf32>
    %2516 = math.absf %2515 : vector<16x16xf32>
    %cst_942 = arith.constant 1.500000e-01 : f32
    %2517 = vector.broadcast %cst_942 : f32 to vector<16x16xf32>
    %2518 = arith.cmpf ogt, %2516, %2517 : vector<16x16xf32>
    %cst_943 = arith.constant 0.000000e+00 : f32
    %2519 = vector.broadcast %cst_943 : f32 to vector<16x16xf32>
    %2520 = arith.select %2518, %2519, %2507 : vector<16x16xi1>, vector<16x16xf32>
    %cst_944 = arith.constant 0.000000e+00 : f32
    %2521 = vector.broadcast %cst_944 : f32 to vector<16x16xf32>
    %2522 = arith.select %2518, %2521, %2510 : vector<16x16xi1>, vector<16x16xf32>
    %cst_945 = arith.constant 0.000000e+00 : f32
    %2523 = vector.broadcast %cst_945 : f32 to vector<16x16xf32>
    %2524 = arith.select %2518, %2523, %2513 : vector<16x16xi1>, vector<16x16xf32>
    %2525 = arith.mulf %2520, %2520 : vector<16x16xf32>
    %2526 = arith.addf %2491, %2525 : vector<16x16xf32>
    %2527 = arith.mulf %2522, %2522 : vector<16x16xf32>
    %2528 = arith.addf %2493, %2527 : vector<16x16xf32>
    %2529 = arith.mulf %2524, %2524 : vector<16x16xf32>
    %2530 = arith.addf %2495, %2529 : vector<16x16xf32>
    %2531 = arith.mulf %2520, %2522 : vector<16x16xf32>
    %2532 = arith.addf %2497, %2531 : vector<16x16xf32>
    %2533 = arith.mulf %2520, %2524 : vector<16x16xf32>
    %2534 = arith.addf %2499, %2533 : vector<16x16xf32>
    %2535 = arith.mulf %2522, %2524 : vector<16x16xf32>
    %2536 = arith.addf %2501, %2535 : vector<16x16xf32>
    %2537 = arith.addf %2502, %2520 : vector<16x16xf32>
    %2538 = arith.addf %2503, %2522 : vector<16x16xf32>
    %2539 = arith.addf %2504, %2524 : vector<16x16xf32>
    %c6_i32_946 = arith.constant 6 : i32
    %c0_947 = arith.constant 0 : index
    %2540 = arith.index_cast %c6_i32_946 : i32 to index
    %c0_948 = arith.constant 0 : index
    %2541 = vector.load %arg4[%c0_947, %2540, %c0_948] : memref<3x24x16xf32, #tpu.memory_space<vmem>>, vector<1x16x16xf32>
    %2542 = vector.shape_cast %2541 : vector<1x16x16xf32> to vector<16x16xf32>
    %c1_949 = arith.constant 1 : index
    %2543 = arith.index_cast %c6_i32_946 : i32 to index
    %c0_950 = arith.constant 0 : index
    %2544 = vector.load %arg4[%c1_949, %2543, %c0_950] : memref<3x24x16xf32, #tpu.memory_space<vmem>>, vector<1x16x16xf32>
    %2545 = vector.shape_cast %2544 : vector<1x16x16xf32> to vector<16x16xf32>
    %c2_951 = arith.constant 2 : index
    %2546 = arith.index_cast %c6_i32_946 : i32 to index
    %c0_952 = arith.constant 0 : index
    %2547 = vector.load %arg4[%c2_951, %2546, %c0_952] : memref<3x24x16xf32, #tpu.memory_space<vmem>>, vector<1x16x16xf32>
    %2548 = vector.shape_cast %2547 : vector<1x16x16xf32> to vector<16x16xf32>
    %2549 = arith.subf %2548, %1 : vector<16x16xf32>
    %2550 = arith.mulf %2549, %3 : vector<16x16xf32>
    %2551 = math.absf %2550 : vector<16x16xf32>
    %cst_953 = arith.constant 1.500000e-01 : f32
    %2552 = vector.broadcast %cst_953 : f32 to vector<16x16xf32>
    %2553 = arith.cmpf ogt, %2551, %2552 : vector<16x16xf32>
    %cst_954 = arith.constant 0.000000e+00 : f32
    %2554 = vector.broadcast %cst_954 : f32 to vector<16x16xf32>
    %2555 = arith.select %2553, %2554, %2542 : vector<16x16xi1>, vector<16x16xf32>
    %cst_955 = arith.constant 0.000000e+00 : f32
    %2556 = vector.broadcast %cst_955 : f32 to vector<16x16xf32>
    %2557 = arith.select %2553, %2556, %2545 : vector<16x16xi1>, vector<16x16xf32>
    %cst_956 = arith.constant 0.000000e+00 : f32
    %2558 = vector.broadcast %cst_956 : f32 to vector<16x16xf32>
    %2559 = arith.select %2553, %2558, %2548 : vector<16x16xi1>, vector<16x16xf32>
    %2560 = arith.mulf %2555, %2555 : vector<16x16xf32>
    %2561 = arith.addf %2526, %2560 : vector<16x16xf32>
    %2562 = arith.mulf %2557, %2557 : vector<16x16xf32>
    %2563 = arith.addf %2528, %2562 : vector<16x16xf32>
    %2564 = arith.mulf %2559, %2559 : vector<16x16xf32>
    %2565 = arith.addf %2530, %2564 : vector<16x16xf32>
    %2566 = arith.mulf %2555, %2557 : vector<16x16xf32>
    %2567 = arith.addf %2532, %2566 : vector<16x16xf32>
    %2568 = arith.mulf %2555, %2559 : vector<16x16xf32>
    %2569 = arith.addf %2534, %2568 : vector<16x16xf32>
    %2570 = arith.mulf %2557, %2559 : vector<16x16xf32>
    %2571 = arith.addf %2536, %2570 : vector<16x16xf32>
    %2572 = arith.addf %2537, %2555 : vector<16x16xf32>
    %2573 = arith.addf %2538, %2557 : vector<16x16xf32>
    %2574 = arith.addf %2539, %2559 : vector<16x16xf32>
    %c7_i32_957 = arith.constant 7 : i32
    %c0_958 = arith.constant 0 : index
    %2575 = arith.index_cast %c7_i32_957 : i32 to index
    %c0_959 = arith.constant 0 : index
    %2576 = vector.load %arg4[%c0_958, %2575, %c0_959] : memref<3x24x16xf32, #tpu.memory_space<vmem>>, vector<1x16x16xf32>
    %2577 = vector.shape_cast %2576 : vector<1x16x16xf32> to vector<16x16xf32>
    %c1_960 = arith.constant 1 : index
    %2578 = arith.index_cast %c7_i32_957 : i32 to index
    %c0_961 = arith.constant 0 : index
    %2579 = vector.load %arg4[%c1_960, %2578, %c0_961] : memref<3x24x16xf32, #tpu.memory_space<vmem>>, vector<1x16x16xf32>
    %2580 = vector.shape_cast %2579 : vector<1x16x16xf32> to vector<16x16xf32>
    %c2_962 = arith.constant 2 : index
    %2581 = arith.index_cast %c7_i32_957 : i32 to index
    %c0_963 = arith.constant 0 : index
    %2582 = vector.load %arg4[%c2_962, %2581, %c0_963] : memref<3x24x16xf32, #tpu.memory_space<vmem>>, vector<1x16x16xf32>
    %2583 = vector.shape_cast %2582 : vector<1x16x16xf32> to vector<16x16xf32>
    %2584 = arith.subf %2583, %1 : vector<16x16xf32>
    %2585 = arith.mulf %2584, %3 : vector<16x16xf32>
    %2586 = math.absf %2585 : vector<16x16xf32>
    %cst_964 = arith.constant 1.500000e-01 : f32
    %2587 = vector.broadcast %cst_964 : f32 to vector<16x16xf32>
    %2588 = arith.cmpf ogt, %2586, %2587 : vector<16x16xf32>
    %cst_965 = arith.constant 0.000000e+00 : f32
    %2589 = vector.broadcast %cst_965 : f32 to vector<16x16xf32>
    %2590 = arith.select %2588, %2589, %2577 : vector<16x16xi1>, vector<16x16xf32>
    %cst_966 = arith.constant 0.000000e+00 : f32
    %2591 = vector.broadcast %cst_966 : f32 to vector<16x16xf32>
    %2592 = arith.select %2588, %2591, %2580 : vector<16x16xi1>, vector<16x16xf32>
    %cst_967 = arith.constant 0.000000e+00 : f32
    %2593 = vector.broadcast %cst_967 : f32 to vector<16x16xf32>
    %2594 = arith.select %2588, %2593, %2583 : vector<16x16xi1>, vector<16x16xf32>
    %2595 = arith.mulf %2590, %2590 : vector<16x16xf32>
    %2596 = arith.addf %2561, %2595 : vector<16x16xf32>
    %2597 = arith.mulf %2592, %2592 : vector<16x16xf32>
    %2598 = arith.addf %2563, %2597 : vector<16x16xf32>
    %2599 = arith.mulf %2594, %2594 : vector<16x16xf32>
    %2600 = arith.addf %2565, %2599 : vector<16x16xf32>
    %2601 = arith.mulf %2590, %2592 : vector<16x16xf32>
    %2602 = arith.addf %2567, %2601 : vector<16x16xf32>
    %2603 = arith.mulf %2590, %2594 : vector<16x16xf32>
    %2604 = arith.addf %2569, %2603 : vector<16x16xf32>
    %2605 = arith.mulf %2592, %2594 : vector<16x16xf32>
    %2606 = arith.addf %2571, %2605 : vector<16x16xf32>
    %2607 = arith.addf %2572, %2590 : vector<16x16xf32>
    %2608 = arith.addf %2573, %2592 : vector<16x16xf32>
    %2609 = arith.addf %2574, %2594 : vector<16x16xf32>
    %c8_i32_968 = arith.constant 8 : i32
    %c0_969 = arith.constant 0 : index
    %2610 = arith.index_cast %c8_i32_968 : i32 to index
    %c0_970 = arith.constant 0 : index
    %2611 = vector.load %arg4[%c0_969, %2610, %c0_970] : memref<3x24x16xf32, #tpu.memory_space<vmem>>, vector<1x16x16xf32>
    %2612 = vector.shape_cast %2611 : vector<1x16x16xf32> to vector<16x16xf32>
    %c1_971 = arith.constant 1 : index
    %2613 = arith.index_cast %c8_i32_968 : i32 to index
    %c0_972 = arith.constant 0 : index
    %2614 = vector.load %arg4[%c1_971, %2613, %c0_972] : memref<3x24x16xf32, #tpu.memory_space<vmem>>, vector<1x16x16xf32>
    %2615 = vector.shape_cast %2614 : vector<1x16x16xf32> to vector<16x16xf32>
    %c2_973 = arith.constant 2 : index
    %2616 = arith.index_cast %c8_i32_968 : i32 to index
    %c0_974 = arith.constant 0 : index
    %2617 = vector.load %arg4[%c2_973, %2616, %c0_974] : memref<3x24x16xf32, #tpu.memory_space<vmem>>, vector<1x16x16xf32>
    %2618 = vector.shape_cast %2617 : vector<1x16x16xf32> to vector<16x16xf32>
    %2619 = arith.subf %2618, %1 : vector<16x16xf32>
    %2620 = arith.mulf %2619, %3 : vector<16x16xf32>
    %2621 = math.absf %2620 : vector<16x16xf32>
    %cst_975 = arith.constant 1.500000e-01 : f32
    %2622 = vector.broadcast %cst_975 : f32 to vector<16x16xf32>
    %2623 = arith.cmpf ogt, %2621, %2622 : vector<16x16xf32>
    %cst_976 = arith.constant 0.000000e+00 : f32
    %2624 = vector.broadcast %cst_976 : f32 to vector<16x16xf32>
    %2625 = arith.select %2623, %2624, %2612 : vector<16x16xi1>, vector<16x16xf32>
    %cst_977 = arith.constant 0.000000e+00 : f32
    %2626 = vector.broadcast %cst_977 : f32 to vector<16x16xf32>
    %2627 = arith.select %2623, %2626, %2615 : vector<16x16xi1>, vector<16x16xf32>
    %cst_978 = arith.constant 0.000000e+00 : f32
    %2628 = vector.broadcast %cst_978 : f32 to vector<16x16xf32>
    %2629 = arith.select %2623, %2628, %2618 : vector<16x16xi1>, vector<16x16xf32>
    %2630 = arith.mulf %2625, %2625 : vector<16x16xf32>
    %2631 = arith.addf %2596, %2630 : vector<16x16xf32>
    %2632 = arith.mulf %2627, %2627 : vector<16x16xf32>
    %2633 = arith.addf %2598, %2632 : vector<16x16xf32>
    %2634 = arith.mulf %2629, %2629 : vector<16x16xf32>
    %2635 = arith.addf %2600, %2634 : vector<16x16xf32>
    %2636 = arith.mulf %2625, %2627 : vector<16x16xf32>
    %2637 = arith.addf %2602, %2636 : vector<16x16xf32>
    %2638 = arith.mulf %2625, %2629 : vector<16x16xf32>
    %2639 = arith.addf %2604, %2638 : vector<16x16xf32>
    %2640 = arith.mulf %2627, %2629 : vector<16x16xf32>
    %2641 = arith.addf %2606, %2640 : vector<16x16xf32>
    %2642 = arith.addf %2607, %2625 : vector<16x16xf32>
    %2643 = arith.addf %2608, %2627 : vector<16x16xf32>
    %2644 = arith.addf %2609, %2629 : vector<16x16xf32>
    %c9_i32_979 = arith.constant 9 : i32
    %c0_980 = arith.constant 0 : index
    %c0_981 = arith.constant 0 : index
    %c0_982 = arith.constant 0 : index
    %c0_983 = arith.constant 0 : index
    %c8 = arith.constant 8 : index
    %2645 = vector.load %arg2[%c0_980, %c0_981, %c0_982, %c0_983, %c8] : memref<1x1x3x24x24xf32, #tpu.memory_space<vmem>>, vector<1x1x1x24x16xf32>
    %2646 = vector.shape_cast %2645 : vector<1x1x1x24x16xf32> to vector<24x16xf32>
    %c0_984 = arith.constant 0 : index
    %c0_985 = arith.constant 0 : index
    %c0_986 = arith.constant 0 : index
    %2647 = vector.load %arg4[%c0_984, %c0_985, %c0_986] : memref<3x24x16xf32, #tpu.memory_space<vmem>>, vector<1x24x16xf32>
    %2648 = vector.shape_cast %2647 : vector<1x24x16xf32> to vector<24x16xf32>
    %2649 = vector.shape_cast %2646 : vector<24x16xf32> to vector<1x24x16xf32>
    tpu.vector_store %arg4[%c0_984, %c0_985, %c0_986], %2649 {strides = array<i32>} : memref<3x24x16xf32, #tpu.memory_space<vmem>>, vector<1x24x16xf32>,
    %c0_987 = arith.constant 0 : index
    %c0_988 = arith.constant 0 : index
    %c1_989 = arith.constant 1 : index
    %c0_990 = arith.constant 0 : index
    %c8_991 = arith.constant 8 : index
    %2650 = vector.load %arg2[%c0_987, %c0_988, %c1_989, %c0_990, %c8_991] : memref<1x1x3x24x24xf32, #tpu.memory_space<vmem>>, vector<1x1x1x24x16xf32>
    %2651 = vector.shape_cast %2650 : vector<1x1x1x24x16xf32> to vector<24x16xf32>
    %c1_992 = arith.constant 1 : index
    %c0_993 = arith.constant 0 : index
    %c0_994 = arith.constant 0 : index
    %2652 = vector.load %arg4[%c1_992, %c0_993, %c0_994] : memref<3x24x16xf32, #tpu.memory_space<vmem>>, vector<1x24x16xf32>
    %2653 = vector.shape_cast %2652 : vector<1x24x16xf32> to vector<24x16xf32>
    %2654 = vector.shape_cast %2651 : vector<24x16xf32> to vector<1x24x16xf32>
    tpu.vector_store %arg4[%c1_992, %c0_993, %c0_994], %2654 {strides = array<i32>} : memref<3x24x16xf32, #tpu.memory_space<vmem>>, vector<1x24x16xf32>,
    %c0_995 = arith.constant 0 : index
    %c0_996 = arith.constant 0 : index
    %c2_997 = arith.constant 2 : index
    %c0_998 = arith.constant 0 : index
    %c8_999 = arith.constant 8 : index
    %2655 = vector.load %arg2[%c0_995, %c0_996, %c2_997, %c0_998, %c8_999] : memref<1x1x3x24x24xf32, #tpu.memory_space<vmem>>, vector<1x1x1x24x16xf32>
    %2656 = vector.shape_cast %2655 : vector<1x1x1x24x16xf32> to vector<24x16xf32>
    %c2_1000 = arith.constant 2 : index
    %c0_1001 = arith.constant 0 : index
    %c0_1002 = arith.constant 0 : index
    %2657 = vector.load %arg4[%c2_1000, %c0_1001, %c0_1002] : memref<3x24x16xf32, #tpu.memory_space<vmem>>, vector<1x24x16xf32>
    %2658 = vector.shape_cast %2657 : vector<1x24x16xf32> to vector<24x16xf32>
    %2659 = vector.shape_cast %2656 : vector<24x16xf32> to vector<1x24x16xf32>
    tpu.vector_store %arg4[%c2_1000, %c0_1001, %c0_1002], %2659 {strides = array<i32>} : memref<3x24x16xf32, #tpu.memory_space<vmem>>, vector<1x24x16xf32>,
    %c0_i32_1003 = arith.constant 0 : i32
    %c0_1004 = arith.constant 0 : index
    %2660 = arith.index_cast %c0_i32_1003 : i32 to index
    %c0_1005 = arith.constant 0 : index
    %2661 = vector.load %arg4[%c0_1004, %2660, %c0_1005] : memref<3x24x16xf32, #tpu.memory_space<vmem>>, vector<1x16x16xf32>
    %2662 = vector.shape_cast %2661 : vector<1x16x16xf32> to vector<16x16xf32>
    %c1_1006 = arith.constant 1 : index
    %2663 = arith.index_cast %c0_i32_1003 : i32 to index
    %c0_1007 = arith.constant 0 : index
    %2664 = vector.load %arg4[%c1_1006, %2663, %c0_1007] : memref<3x24x16xf32, #tpu.memory_space<vmem>>, vector<1x16x16xf32>
    %2665 = vector.shape_cast %2664 : vector<1x16x16xf32> to vector<16x16xf32>
    %c2_1008 = arith.constant 2 : index
    %2666 = arith.index_cast %c0_i32_1003 : i32 to index
    %c0_1009 = arith.constant 0 : index
    %2667 = vector.load %arg4[%c2_1008, %2666, %c0_1009] : memref<3x24x16xf32, #tpu.memory_space<vmem>>, vector<1x16x16xf32>
    %2668 = vector.shape_cast %2667 : vector<1x16x16xf32> to vector<16x16xf32>
    %2669 = arith.subf %2668, %1 : vector<16x16xf32>
    %2670 = arith.mulf %2669, %3 : vector<16x16xf32>
    %2671 = math.absf %2670 : vector<16x16xf32>
    %cst_1010 = arith.constant 1.500000e-01 : f32
    %2672 = vector.broadcast %cst_1010 : f32 to vector<16x16xf32>
    %2673 = arith.cmpf ogt, %2671, %2672 : vector<16x16xf32>
    %cst_1011 = arith.constant 0.000000e+00 : f32
    %2674 = vector.broadcast %cst_1011 : f32 to vector<16x16xf32>
    %2675 = arith.select %2673, %2674, %2662 : vector<16x16xi1>, vector<16x16xf32>
    %cst_1012 = arith.constant 0.000000e+00 : f32
    %2676 = vector.broadcast %cst_1012 : f32 to vector<16x16xf32>
    %2677 = arith.select %2673, %2676, %2665 : vector<16x16xi1>, vector<16x16xf32>
    %cst_1013 = arith.constant 0.000000e+00 : f32
    %2678 = vector.broadcast %cst_1013 : f32 to vector<16x16xf32>
    %2679 = arith.select %2673, %2678, %2668 : vector<16x16xi1>, vector<16x16xf32>
    %2680 = arith.mulf %2675, %2675 : vector<16x16xf32>
    %2681 = arith.addf %2631, %2680 : vector<16x16xf32>
    %2682 = arith.mulf %2677, %2677 : vector<16x16xf32>
    %2683 = arith.addf %2633, %2682 : vector<16x16xf32>
    %2684 = arith.mulf %2679, %2679 : vector<16x16xf32>
    %2685 = arith.addf %2635, %2684 : vector<16x16xf32>
    %2686 = arith.mulf %2675, %2677 : vector<16x16xf32>
    %2687 = arith.addf %2637, %2686 : vector<16x16xf32>
    %2688 = arith.mulf %2675, %2679 : vector<16x16xf32>
    %2689 = arith.addf %2639, %2688 : vector<16x16xf32>
    %2690 = arith.mulf %2677, %2679 : vector<16x16xf32>
    %2691 = arith.addf %2641, %2690 : vector<16x16xf32>
    %2692 = arith.addf %2642, %2675 : vector<16x16xf32>
    %2693 = arith.addf %2643, %2677 : vector<16x16xf32>
    %2694 = arith.addf %2644, %2679 : vector<16x16xf32>
    %c1_i32_1014 = arith.constant 1 : i32
    %c0_1015 = arith.constant 0 : index
    %2695 = arith.index_cast %c1_i32_1014 : i32 to index
    %c0_1016 = arith.constant 0 : index
    %2696 = vector.load %arg4[%c0_1015, %2695, %c0_1016] : memref<3x24x16xf32, #tpu.memory_space<vmem>>, vector<1x16x16xf32>
    %2697 = vector.shape_cast %2696 : vector<1x16x16xf32> to vector<16x16xf32>
    %c1_1017 = arith.constant 1 : index
    %2698 = arith.index_cast %c1_i32_1014 : i32 to index
    %c0_1018 = arith.constant 0 : index
    %2699 = vector.load %arg4[%c1_1017, %2698, %c0_1018] : memref<3x24x16xf32, #tpu.memory_space<vmem>>, vector<1x16x16xf32>
    %2700 = vector.shape_cast %2699 : vector<1x16x16xf32> to vector<16x16xf32>
    %c2_1019 = arith.constant 2 : index
    %2701 = arith.index_cast %c1_i32_1014 : i32 to index
    %c0_1020 = arith.constant 0 : index
    %2702 = vector.load %arg4[%c2_1019, %2701, %c0_1020] : memref<3x24x16xf32, #tpu.memory_space<vmem>>, vector<1x16x16xf32>
    %2703 = vector.shape_cast %2702 : vector<1x16x16xf32> to vector<16x16xf32>
    %2704 = arith.subf %2703, %1 : vector<16x16xf32>
    %2705 = arith.mulf %2704, %3 : vector<16x16xf32>
    %2706 = math.absf %2705 : vector<16x16xf32>
    %cst_1021 = arith.constant 1.500000e-01 : f32
    %2707 = vector.broadcast %cst_1021 : f32 to vector<16x16xf32>
    %2708 = arith.cmpf ogt, %2706, %2707 : vector<16x16xf32>
    %cst_1022 = arith.constant 0.000000e+00 : f32
    %2709 = vector.broadcast %cst_1022 : f32 to vector<16x16xf32>
    %2710 = arith.select %2708, %2709, %2697 : vector<16x16xi1>, vector<16x16xf32>
    %cst_1023 = arith.constant 0.000000e+00 : f32
    %2711 = vector.broadcast %cst_1023 : f32 to vector<16x16xf32>
    %2712 = arith.select %2708, %2711, %2700 : vector<16x16xi1>, vector<16x16xf32>
    %cst_1024 = arith.constant 0.000000e+00 : f32
    %2713 = vector.broadcast %cst_1024 : f32 to vector<16x16xf32>
    %2714 = arith.select %2708, %2713, %2703 : vector<16x16xi1>, vector<16x16xf32>
    %2715 = arith.mulf %2710, %2710 : vector<16x16xf32>
    %2716 = arith.addf %2681, %2715 : vector<16x16xf32>
    %2717 = arith.mulf %2712, %2712 : vector<16x16xf32>
    %2718 = arith.addf %2683, %2717 : vector<16x16xf32>
    %2719 = arith.mulf %2714, %2714 : vector<16x16xf32>
    %2720 = arith.addf %2685, %2719 : vector<16x16xf32>
    %2721 = arith.mulf %2710, %2712 : vector<16x16xf32>
    %2722 = arith.addf %2687, %2721 : vector<16x16xf32>
    %2723 = arith.mulf %2710, %2714 : vector<16x16xf32>
    %2724 = arith.addf %2689, %2723 : vector<16x16xf32>
    %2725 = arith.mulf %2712, %2714 : vector<16x16xf32>
    %2726 = arith.addf %2691, %2725 : vector<16x16xf32>
    %2727 = arith.addf %2692, %2710 : vector<16x16xf32>
    %2728 = arith.addf %2693, %2712 : vector<16x16xf32>
    %2729 = arith.addf %2694, %2714 : vector<16x16xf32>
    %c2_i32_1025 = arith.constant 2 : i32
    %c0_1026 = arith.constant 0 : index
    %2730 = arith.index_cast %c2_i32_1025 : i32 to index
    %c0_1027 = arith.constant 0 : index
    %2731 = vector.load %arg4[%c0_1026, %2730, %c0_1027] : memref<3x24x16xf32, #tpu.memory_space<vmem>>, vector<1x16x16xf32>
    %2732 = vector.shape_cast %2731 : vector<1x16x16xf32> to vector<16x16xf32>
    %c1_1028 = arith.constant 1 : index
    %2733 = arith.index_cast %c2_i32_1025 : i32 to index
    %c0_1029 = arith.constant 0 : index
    %2734 = vector.load %arg4[%c1_1028, %2733, %c0_1029] : memref<3x24x16xf32, #tpu.memory_space<vmem>>, vector<1x16x16xf32>
    %2735 = vector.shape_cast %2734 : vector<1x16x16xf32> to vector<16x16xf32>
    %c2_1030 = arith.constant 2 : index
    %2736 = arith.index_cast %c2_i32_1025 : i32 to index
    %c0_1031 = arith.constant 0 : index
    %2737 = vector.load %arg4[%c2_1030, %2736, %c0_1031] : memref<3x24x16xf32, #tpu.memory_space<vmem>>, vector<1x16x16xf32>
    %2738 = vector.shape_cast %2737 : vector<1x16x16xf32> to vector<16x16xf32>
    %2739 = arith.subf %2738, %1 : vector<16x16xf32>
    %2740 = arith.mulf %2739, %3 : vector<16x16xf32>
    %2741 = math.absf %2740 : vector<16x16xf32>
    %cst_1032 = arith.constant 1.500000e-01 : f32
    %2742 = vector.broadcast %cst_1032 : f32 to vector<16x16xf32>
    %2743 = arith.cmpf ogt, %2741, %2742 : vector<16x16xf32>
    %cst_1033 = arith.constant 0.000000e+00 : f32
    %2744 = vector.broadcast %cst_1033 : f32 to vector<16x16xf32>
    %2745 = arith.select %2743, %2744, %2732 : vector<16x16xi1>, vector<16x16xf32>
    %cst_1034 = arith.constant 0.000000e+00 : f32
    %2746 = vector.broadcast %cst_1034 : f32 to vector<16x16xf32>
    %2747 = arith.select %2743, %2746, %2735 : vector<16x16xi1>, vector<16x16xf32>
    %cst_1035 = arith.constant 0.000000e+00 : f32
    %2748 = vector.broadcast %cst_1035 : f32 to vector<16x16xf32>
    %2749 = arith.select %2743, %2748, %2738 : vector<16x16xi1>, vector<16x16xf32>
    %2750 = arith.mulf %2745, %2745 : vector<16x16xf32>
    %2751 = arith.addf %2716, %2750 : vector<16x16xf32>
    %2752 = arith.mulf %2747, %2747 : vector<16x16xf32>
    %2753 = arith.addf %2718, %2752 : vector<16x16xf32>
    %2754 = arith.mulf %2749, %2749 : vector<16x16xf32>
    %2755 = arith.addf %2720, %2754 : vector<16x16xf32>
    %2756 = arith.mulf %2745, %2747 : vector<16x16xf32>
    %2757 = arith.addf %2722, %2756 : vector<16x16xf32>
    %2758 = arith.mulf %2745, %2749 : vector<16x16xf32>
    %2759 = arith.addf %2724, %2758 : vector<16x16xf32>
    %2760 = arith.mulf %2747, %2749 : vector<16x16xf32>
    %2761 = arith.addf %2726, %2760 : vector<16x16xf32>
    %2762 = arith.addf %2727, %2745 : vector<16x16xf32>
    %2763 = arith.addf %2728, %2747 : vector<16x16xf32>
    %2764 = arith.addf %2729, %2749 : vector<16x16xf32>
    %c3_i32_1036 = arith.constant 3 : i32
    %c0_1037 = arith.constant 0 : index
    %2765 = arith.index_cast %c3_i32_1036 : i32 to index
    %c0_1038 = arith.constant 0 : index
    %2766 = vector.load %arg4[%c0_1037, %2765, %c0_1038] : memref<3x24x16xf32, #tpu.memory_space<vmem>>, vector<1x16x16xf32>
    %2767 = vector.shape_cast %2766 : vector<1x16x16xf32> to vector<16x16xf32>
    %c1_1039 = arith.constant 1 : index
    %2768 = arith.index_cast %c3_i32_1036 : i32 to index
    %c0_1040 = arith.constant 0 : index
    %2769 = vector.load %arg4[%c1_1039, %2768, %c0_1040] : memref<3x24x16xf32, #tpu.memory_space<vmem>>, vector<1x16x16xf32>
    %2770 = vector.shape_cast %2769 : vector<1x16x16xf32> to vector<16x16xf32>
    %c2_1041 = arith.constant 2 : index
    %2771 = arith.index_cast %c3_i32_1036 : i32 to index
    %c0_1042 = arith.constant 0 : index
    %2772 = vector.load %arg4[%c2_1041, %2771, %c0_1042] : memref<3x24x16xf32, #tpu.memory_space<vmem>>, vector<1x16x16xf32>
    %2773 = vector.shape_cast %2772 : vector<1x16x16xf32> to vector<16x16xf32>
    %2774 = arith.subf %2773, %1 : vector<16x16xf32>
    %2775 = arith.mulf %2774, %3 : vector<16x16xf32>
    %2776 = math.absf %2775 : vector<16x16xf32>
    %cst_1043 = arith.constant 1.500000e-01 : f32
    %2777 = vector.broadcast %cst_1043 : f32 to vector<16x16xf32>
    %2778 = arith.cmpf ogt, %2776, %2777 : vector<16x16xf32>
    %cst_1044 = arith.constant 0.000000e+00 : f32
    %2779 = vector.broadcast %cst_1044 : f32 to vector<16x16xf32>
    %2780 = arith.select %2778, %2779, %2767 : vector<16x16xi1>, vector<16x16xf32>
    %cst_1045 = arith.constant 0.000000e+00 : f32
    %2781 = vector.broadcast %cst_1045 : f32 to vector<16x16xf32>
    %2782 = arith.select %2778, %2781, %2770 : vector<16x16xi1>, vector<16x16xf32>
    %cst_1046 = arith.constant 0.000000e+00 : f32
    %2783 = vector.broadcast %cst_1046 : f32 to vector<16x16xf32>
    %2784 = arith.select %2778, %2783, %2773 : vector<16x16xi1>, vector<16x16xf32>
    %2785 = arith.mulf %2780, %2780 : vector<16x16xf32>
    %2786 = arith.addf %2751, %2785 : vector<16x16xf32>
    %2787 = arith.mulf %2782, %2782 : vector<16x16xf32>
    %2788 = arith.addf %2753, %2787 : vector<16x16xf32>
    %2789 = arith.mulf %2784, %2784 : vector<16x16xf32>
    %2790 = arith.addf %2755, %2789 : vector<16x16xf32>
    %2791 = arith.mulf %2780, %2782 : vector<16x16xf32>
    %2792 = arith.addf %2757, %2791 : vector<16x16xf32>
    %2793 = arith.mulf %2780, %2784 : vector<16x16xf32>
    %2794 = arith.addf %2759, %2793 : vector<16x16xf32>
    %2795 = arith.mulf %2782, %2784 : vector<16x16xf32>
    %2796 = arith.addf %2761, %2795 : vector<16x16xf32>
    %2797 = arith.addf %2762, %2780 : vector<16x16xf32>
    %2798 = arith.addf %2763, %2782 : vector<16x16xf32>
    %2799 = arith.addf %2764, %2784 : vector<16x16xf32>
    %c4_i32_1047 = arith.constant 4 : i32
    %c0_1048 = arith.constant 0 : index
    %2800 = arith.index_cast %c4_i32_1047 : i32 to index
    %c0_1049 = arith.constant 0 : index
    %2801 = vector.load %arg4[%c0_1048, %2800, %c0_1049] : memref<3x24x16xf32, #tpu.memory_space<vmem>>, vector<1x16x16xf32>
    %2802 = vector.shape_cast %2801 : vector<1x16x16xf32> to vector<16x16xf32>
    %c1_1050 = arith.constant 1 : index
    %2803 = arith.index_cast %c4_i32_1047 : i32 to index
    %c0_1051 = arith.constant 0 : index
    %2804 = vector.load %arg4[%c1_1050, %2803, %c0_1051] : memref<3x24x16xf32, #tpu.memory_space<vmem>>, vector<1x16x16xf32>
    %2805 = vector.shape_cast %2804 : vector<1x16x16xf32> to vector<16x16xf32>
    %c2_1052 = arith.constant 2 : index
    %2806 = arith.index_cast %c4_i32_1047 : i32 to index
    %c0_1053 = arith.constant 0 : index
    %2807 = vector.load %arg4[%c2_1052, %2806, %c0_1053] : memref<3x24x16xf32, #tpu.memory_space<vmem>>, vector<1x16x16xf32>
    %2808 = vector.shape_cast %2807 : vector<1x16x16xf32> to vector<16x16xf32>
    %2809 = arith.subf %2808, %1 : vector<16x16xf32>
    %2810 = arith.mulf %2809, %3 : vector<16x16xf32>
    %2811 = math.absf %2810 : vector<16x16xf32>
    %cst_1054 = arith.constant 1.500000e-01 : f32
    %2812 = vector.broadcast %cst_1054 : f32 to vector<16x16xf32>
    %2813 = arith.cmpf ogt, %2811, %2812 : vector<16x16xf32>
    %cst_1055 = arith.constant 0.000000e+00 : f32
    %2814 = vector.broadcast %cst_1055 : f32 to vector<16x16xf32>
    %2815 = arith.select %2813, %2814, %2802 : vector<16x16xi1>, vector<16x16xf32>
    %cst_1056 = arith.constant 0.000000e+00 : f32
    %2816 = vector.broadcast %cst_1056 : f32 to vector<16x16xf32>
    %2817 = arith.select %2813, %2816, %2805 : vector<16x16xi1>, vector<16x16xf32>
    %cst_1057 = arith.constant 0.000000e+00 : f32
    %2818 = vector.broadcast %cst_1057 : f32 to vector<16x16xf32>
    %2819 = arith.select %2813, %2818, %2808 : vector<16x16xi1>, vector<16x16xf32>
    %2820 = arith.mulf %2815, %2815 : vector<16x16xf32>
    %2821 = arith.addf %2786, %2820 : vector<16x16xf32>
    %2822 = arith.mulf %2817, %2817 : vector<16x16xf32>
    %2823 = arith.addf %2788, %2822 : vector<16x16xf32>
    %2824 = arith.mulf %2819, %2819 : vector<16x16xf32>
    %2825 = arith.addf %2790, %2824 : vector<16x16xf32>
    %2826 = arith.mulf %2815, %2817 : vector<16x16xf32>
    %2827 = arith.addf %2792, %2826 : vector<16x16xf32>
    %2828 = arith.mulf %2815, %2819 : vector<16x16xf32>
    %2829 = arith.addf %2794, %2828 : vector<16x16xf32>
    %2830 = arith.mulf %2817, %2819 : vector<16x16xf32>
    %2831 = arith.addf %2796, %2830 : vector<16x16xf32>
    %2832 = arith.addf %2797, %2815 : vector<16x16xf32>
    %2833 = arith.addf %2798, %2817 : vector<16x16xf32>
    %2834 = arith.addf %2799, %2819 : vector<16x16xf32>
    %c5_i32_1058 = arith.constant 5 : i32
    %c0_1059 = arith.constant 0 : index
    %2835 = arith.index_cast %c5_i32_1058 : i32 to index
    %c0_1060 = arith.constant 0 : index
    %2836 = vector.load %arg4[%c0_1059, %2835, %c0_1060] : memref<3x24x16xf32, #tpu.memory_space<vmem>>, vector<1x16x16xf32>
    %2837 = vector.shape_cast %2836 : vector<1x16x16xf32> to vector<16x16xf32>
    %c1_1061 = arith.constant 1 : index
    %2838 = arith.index_cast %c5_i32_1058 : i32 to index
    %c0_1062 = arith.constant 0 : index
    %2839 = vector.load %arg4[%c1_1061, %2838, %c0_1062] : memref<3x24x16xf32, #tpu.memory_space<vmem>>, vector<1x16x16xf32>
    %2840 = vector.shape_cast %2839 : vector<1x16x16xf32> to vector<16x16xf32>
    %c2_1063 = arith.constant 2 : index
    %2841 = arith.index_cast %c5_i32_1058 : i32 to index
    %c0_1064 = arith.constant 0 : index
    %2842 = vector.load %arg4[%c2_1063, %2841, %c0_1064] : memref<3x24x16xf32, #tpu.memory_space<vmem>>, vector<1x16x16xf32>
    %2843 = vector.shape_cast %2842 : vector<1x16x16xf32> to vector<16x16xf32>
    %2844 = arith.subf %2843, %1 : vector<16x16xf32>
    %2845 = arith.mulf %2844, %3 : vector<16x16xf32>
    %2846 = math.absf %2845 : vector<16x16xf32>
    %cst_1065 = arith.constant 1.500000e-01 : f32
    %2847 = vector.broadcast %cst_1065 : f32 to vector<16x16xf32>
    %2848 = arith.cmpf ogt, %2846, %2847 : vector<16x16xf32>
    %cst_1066 = arith.constant 0.000000e+00 : f32
    %2849 = vector.broadcast %cst_1066 : f32 to vector<16x16xf32>
    %2850 = arith.select %2848, %2849, %2837 : vector<16x16xi1>, vector<16x16xf32>
    %cst_1067 = arith.constant 0.000000e+00 : f32
    %2851 = vector.broadcast %cst_1067 : f32 to vector<16x16xf32>
    %2852 = arith.select %2848, %2851, %2840 : vector<16x16xi1>, vector<16x16xf32>
    %cst_1068 = arith.constant 0.000000e+00 : f32
    %2853 = vector.broadcast %cst_1068 : f32 to vector<16x16xf32>
    %2854 = arith.select %2848, %2853, %2843 : vector<16x16xi1>, vector<16x16xf32>
    %2855 = arith.mulf %2850, %2850 : vector<16x16xf32>
    %2856 = arith.addf %2821, %2855 : vector<16x16xf32>
    %2857 = arith.mulf %2852, %2852 : vector<16x16xf32>
    %2858 = arith.addf %2823, %2857 : vector<16x16xf32>
    %2859 = arith.mulf %2854, %2854 : vector<16x16xf32>
    %2860 = arith.addf %2825, %2859 : vector<16x16xf32>
    %2861 = arith.mulf %2850, %2852 : vector<16x16xf32>
    %2862 = arith.addf %2827, %2861 : vector<16x16xf32>
    %2863 = arith.mulf %2850, %2854 : vector<16x16xf32>
    %2864 = arith.addf %2829, %2863 : vector<16x16xf32>
    %2865 = arith.mulf %2852, %2854 : vector<16x16xf32>
    %2866 = arith.addf %2831, %2865 : vector<16x16xf32>
    %2867 = arith.addf %2832, %2850 : vector<16x16xf32>
    %2868 = arith.addf %2833, %2852 : vector<16x16xf32>
    %2869 = arith.addf %2834, %2854 : vector<16x16xf32>
    %c6_i32_1069 = arith.constant 6 : i32
    %c0_1070 = arith.constant 0 : index
    %2870 = arith.index_cast %c6_i32_1069 : i32 to index
    %c0_1071 = arith.constant 0 : index
    %2871 = vector.load %arg4[%c0_1070, %2870, %c0_1071] : memref<3x24x16xf32, #tpu.memory_space<vmem>>, vector<1x16x16xf32>
    %2872 = vector.shape_cast %2871 : vector<1x16x16xf32> to vector<16x16xf32>
    %c1_1072 = arith.constant 1 : index
    %2873 = arith.index_cast %c6_i32_1069 : i32 to index
    %c0_1073 = arith.constant 0 : index
    %2874 = vector.load %arg4[%c1_1072, %2873, %c0_1073] : memref<3x24x16xf32, #tpu.memory_space<vmem>>, vector<1x16x16xf32>
    %2875 = vector.shape_cast %2874 : vector<1x16x16xf32> to vector<16x16xf32>
    %c2_1074 = arith.constant 2 : index
    %2876 = arith.index_cast %c6_i32_1069 : i32 to index
    %c0_1075 = arith.constant 0 : index
    %2877 = vector.load %arg4[%c2_1074, %2876, %c0_1075] : memref<3x24x16xf32, #tpu.memory_space<vmem>>, vector<1x16x16xf32>
    %2878 = vector.shape_cast %2877 : vector<1x16x16xf32> to vector<16x16xf32>
    %2879 = arith.subf %2878, %1 : vector<16x16xf32>
    %2880 = arith.mulf %2879, %3 : vector<16x16xf32>
    %2881 = math.absf %2880 : vector<16x16xf32>
    %cst_1076 = arith.constant 1.500000e-01 : f32
    %2882 = vector.broadcast %cst_1076 : f32 to vector<16x16xf32>
    %2883 = arith.cmpf ogt, %2881, %2882 : vector<16x16xf32>
    %cst_1077 = arith.constant 0.000000e+00 : f32
    %2884 = vector.broadcast %cst_1077 : f32 to vector<16x16xf32>
    %2885 = arith.select %2883, %2884, %2872 : vector<16x16xi1>, vector<16x16xf32>
    %cst_1078 = arith.constant 0.000000e+00 : f32
    %2886 = vector.broadcast %cst_1078 : f32 to vector<16x16xf32>
    %2887 = arith.select %2883, %2886, %2875 : vector<16x16xi1>, vector<16x16xf32>
    %cst_1079 = arith.constant 0.000000e+00 : f32
    %2888 = vector.broadcast %cst_1079 : f32 to vector<16x16xf32>
    %2889 = arith.select %2883, %2888, %2878 : vector<16x16xi1>, vector<16x16xf32>
    %2890 = arith.mulf %2885, %2885 : vector<16x16xf32>
    %2891 = arith.addf %2856, %2890 : vector<16x16xf32>
    %2892 = arith.mulf %2887, %2887 : vector<16x16xf32>
    %2893 = arith.addf %2858, %2892 : vector<16x16xf32>
    %2894 = arith.mulf %2889, %2889 : vector<16x16xf32>
    %2895 = arith.addf %2860, %2894 : vector<16x16xf32>
    %2896 = arith.mulf %2885, %2887 : vector<16x16xf32>
    %2897 = arith.addf %2862, %2896 : vector<16x16xf32>
    %2898 = arith.mulf %2885, %2889 : vector<16x16xf32>
    %2899 = arith.addf %2864, %2898 : vector<16x16xf32>
    %2900 = arith.mulf %2887, %2889 : vector<16x16xf32>
    %2901 = arith.addf %2866, %2900 : vector<16x16xf32>
    %2902 = arith.addf %2867, %2885 : vector<16x16xf32>
    %2903 = arith.addf %2868, %2887 : vector<16x16xf32>
    %2904 = arith.addf %2869, %2889 : vector<16x16xf32>
    %c7_i32_1080 = arith.constant 7 : i32
    %c0_1081 = arith.constant 0 : index
    %2905 = arith.index_cast %c7_i32_1080 : i32 to index
    %c0_1082 = arith.constant 0 : index
    %2906 = vector.load %arg4[%c0_1081, %2905, %c0_1082] : memref<3x24x16xf32, #tpu.memory_space<vmem>>, vector<1x16x16xf32>
    %2907 = vector.shape_cast %2906 : vector<1x16x16xf32> to vector<16x16xf32>
    %c1_1083 = arith.constant 1 : index
    %2908 = arith.index_cast %c7_i32_1080 : i32 to index
    %c0_1084 = arith.constant 0 : index
    %2909 = vector.load %arg4[%c1_1083, %2908, %c0_1084] : memref<3x24x16xf32, #tpu.memory_space<vmem>>, vector<1x16x16xf32>
    %2910 = vector.shape_cast %2909 : vector<1x16x16xf32> to vector<16x16xf32>
    %c2_1085 = arith.constant 2 : index
    %2911 = arith.index_cast %c7_i32_1080 : i32 to index
    %c0_1086 = arith.constant 0 : index
    %2912 = vector.load %arg4[%c2_1085, %2911, %c0_1086] : memref<3x24x16xf32, #tpu.memory_space<vmem>>, vector<1x16x16xf32>
    %2913 = vector.shape_cast %2912 : vector<1x16x16xf32> to vector<16x16xf32>
    %2914 = arith.subf %2913, %1 : vector<16x16xf32>
    %2915 = arith.mulf %2914, %3 : vector<16x16xf32>
    %2916 = math.absf %2915 : vector<16x16xf32>
    %cst_1087 = arith.constant 1.500000e-01 : f32
    %2917 = vector.broadcast %cst_1087 : f32 to vector<16x16xf32>
    %2918 = arith.cmpf ogt, %2916, %2917 : vector<16x16xf32>
    %cst_1088 = arith.constant 0.000000e+00 : f32
    %2919 = vector.broadcast %cst_1088 : f32 to vector<16x16xf32>
    %2920 = arith.select %2918, %2919, %2907 : vector<16x16xi1>, vector<16x16xf32>
    %cst_1089 = arith.constant 0.000000e+00 : f32
    %2921 = vector.broadcast %cst_1089 : f32 to vector<16x16xf32>
    %2922 = arith.select %2918, %2921, %2910 : vector<16x16xi1>, vector<16x16xf32>
    %cst_1090 = arith.constant 0.000000e+00 : f32
    %2923 = vector.broadcast %cst_1090 : f32 to vector<16x16xf32>
    %2924 = arith.select %2918, %2923, %2913 : vector<16x16xi1>, vector<16x16xf32>
    %2925 = arith.mulf %2920, %2920 : vector<16x16xf32>
    %2926 = arith.addf %2891, %2925 : vector<16x16xf32>
    %2927 = arith.mulf %2922, %2922 : vector<16x16xf32>
    %2928 = arith.addf %2893, %2927 : vector<16x16xf32>
    %2929 = arith.mulf %2924, %2924 : vector<16x16xf32>
    %2930 = arith.addf %2895, %2929 : vector<16x16xf32>
    %2931 = arith.mulf %2920, %2922 : vector<16x16xf32>
    %2932 = arith.addf %2897, %2931 : vector<16x16xf32>
    %2933 = arith.mulf %2920, %2924 : vector<16x16xf32>
    %2934 = arith.addf %2899, %2933 : vector<16x16xf32>
    %2935 = arith.mulf %2922, %2924 : vector<16x16xf32>
    %2936 = arith.addf %2901, %2935 : vector<16x16xf32>
    %2937 = arith.addf %2902, %2920 : vector<16x16xf32>
    %2938 = arith.addf %2903, %2922 : vector<16x16xf32>
    %2939 = arith.addf %2904, %2924 : vector<16x16xf32>
    %c8_i32_1091 = arith.constant 8 : i32
    %c0_1092 = arith.constant 0 : index
    %2940 = arith.index_cast %c8_i32_1091 : i32 to index
    %c0_1093 = arith.constant 0 : index
    %2941 = vector.load %arg4[%c0_1092, %2940, %c0_1093] : memref<3x24x16xf32, #tpu.memory_space<vmem>>, vector<1x16x16xf32>
    %2942 = vector.shape_cast %2941 : vector<1x16x16xf32> to vector<16x16xf32>
    %c1_1094 = arith.constant 1 : index
    %2943 = arith.index_cast %c8_i32_1091 : i32 to index
    %c0_1095 = arith.constant 0 : index
    %2944 = vector.load %arg4[%c1_1094, %2943, %c0_1095] : memref<3x24x16xf32, #tpu.memory_space<vmem>>, vector<1x16x16xf32>
    %2945 = vector.shape_cast %2944 : vector<1x16x16xf32> to vector<16x16xf32>
    %c2_1096 = arith.constant 2 : index
    %2946 = arith.index_cast %c8_i32_1091 : i32 to index
    %c0_1097 = arith.constant 0 : index
    %2947 = vector.load %arg4[%c2_1096, %2946, %c0_1097] : memref<3x24x16xf32, #tpu.memory_space<vmem>>, vector<1x16x16xf32>
    %2948 = vector.shape_cast %2947 : vector<1x16x16xf32> to vector<16x16xf32>
    %2949 = arith.subf %2948, %1 : vector<16x16xf32>
    %2950 = arith.mulf %2949, %3 : vector<16x16xf32>
    %2951 = math.absf %2950 : vector<16x16xf32>
    %cst_1098 = arith.constant 1.500000e-01 : f32
    %2952 = vector.broadcast %cst_1098 : f32 to vector<16x16xf32>
    %2953 = arith.cmpf ogt, %2951, %2952 : vector<16x16xf32>
    %cst_1099 = arith.constant 0.000000e+00 : f32
    %2954 = vector.broadcast %cst_1099 : f32 to vector<16x16xf32>
    %2955 = arith.select %2953, %2954, %2942 : vector<16x16xi1>, vector<16x16xf32>
    %cst_1100 = arith.constant 0.000000e+00 : f32
    %2956 = vector.broadcast %cst_1100 : f32 to vector<16x16xf32>
    %2957 = arith.select %2953, %2956, %2945 : vector<16x16xi1>, vector<16x16xf32>
    %cst_1101 = arith.constant 0.000000e+00 : f32
    %2958 = vector.broadcast %cst_1101 : f32 to vector<16x16xf32>
    %2959 = arith.select %2953, %2958, %2948 : vector<16x16xi1>, vector<16x16xf32>
    %2960 = arith.mulf %2955, %2955 : vector<16x16xf32>
    %2961 = arith.addf %2926, %2960 : vector<16x16xf32>
    %2962 = arith.mulf %2957, %2957 : vector<16x16xf32>
    %2963 = arith.addf %2928, %2962 : vector<16x16xf32>
    %2964 = arith.mulf %2959, %2959 : vector<16x16xf32>
    %2965 = arith.addf %2930, %2964 : vector<16x16xf32>
    %2966 = arith.mulf %2955, %2957 : vector<16x16xf32>
    %2967 = arith.addf %2932, %2966 : vector<16x16xf32>
    %2968 = arith.mulf %2955, %2959 : vector<16x16xf32>
    %2969 = arith.addf %2934, %2968 : vector<16x16xf32>
    %2970 = arith.mulf %2957, %2959 : vector<16x16xf32>
    %2971 = arith.addf %2936, %2970 : vector<16x16xf32>
    %2972 = arith.addf %2937, %2955 : vector<16x16xf32>
    %2973 = arith.addf %2938, %2957 : vector<16x16xf32>
    %2974 = arith.addf %2939, %2959 : vector<16x16xf32>
    %c9_i32_1102 = arith.constant 9 : i32
    %2975 = arith.mulf %2963, %2965 : vector<16x16xf32>
    %2976 = arith.mulf %2971, %2971 : vector<16x16xf32>
    %2977 = arith.subf %2975, %2976 : vector<16x16xf32>
    %2978 = arith.mulf %2961, %2977 : vector<16x16xf32>
    %2979 = arith.mulf %2967, %2965 : vector<16x16xf32>
    %2980 = arith.mulf %2971, %2969 : vector<16x16xf32>
    %2981 = arith.subf %2979, %2980 : vector<16x16xf32>
    %2982 = arith.mulf %2967, %2981 : vector<16x16xf32>
    %2983 = arith.subf %2978, %2982 : vector<16x16xf32>
    %2984 = arith.mulf %2967, %2971 : vector<16x16xf32>
    %2985 = arith.mulf %2963, %2969 : vector<16x16xf32>
    %2986 = arith.subf %2984, %2985 : vector<16x16xf32>
    %2987 = arith.mulf %2969, %2986 : vector<16x16xf32>
    %2988 = arith.addf %2983, %2987 : vector<16x16xf32>
    %cst_1103 = arith.constant 9.99999974E-6 : f32
    %2989 = vector.broadcast %cst_1103 : f32 to vector<16x16xf32>
    %2990 = arith.cmpf olt, %2988, %2989 : vector<16x16xf32>
    %cst_1104 = arith.constant 1.000000e+00 : f32
    %2991 = vector.broadcast %cst_1104 : f32 to vector<16x16xf32>
    %2992 = arith.select %2990, %2991, %2961 : vector<16x16xi1>, vector<16x16xf32>
    %cst_1105 = arith.constant 1.000000e+00 : f32
    %2993 = vector.broadcast %cst_1105 : f32 to vector<16x16xf32>
    %2994 = arith.select %2990, %2993, %2963 : vector<16x16xi1>, vector<16x16xf32>
    %cst_1106 = arith.constant 1.000000e+00 : f32
    %2995 = vector.broadcast %cst_1106 : f32 to vector<16x16xf32>
    %2996 = arith.select %2990, %2995, %2965 : vector<16x16xi1>, vector<16x16xf32>
    %cst_1107 = arith.constant 0.000000e+00 : f32
    %2997 = vector.broadcast %cst_1107 : f32 to vector<16x16xf32>
    %2998 = arith.select %2990, %2997, %2967 : vector<16x16xi1>, vector<16x16xf32>
    %cst_1108 = arith.constant 0.000000e+00 : f32
    %2999 = vector.broadcast %cst_1108 : f32 to vector<16x16xf32>
    %3000 = arith.select %2990, %2999, %2969 : vector<16x16xi1>, vector<16x16xf32>
    %cst_1109 = arith.constant 0.000000e+00 : f32
    %3001 = vector.broadcast %cst_1109 : f32 to vector<16x16xf32>
    %3002 = arith.select %2990, %3001, %2971 : vector<16x16xi1>, vector<16x16xf32>
    %cst_1110 = arith.constant 1.000000e+00 : f32
    %3003 = vector.broadcast %cst_1110 : f32 to vector<16x16xf32>
    %3004 = arith.select %2990, %3003, %2988 : vector<16x16xi1>, vector<16x16xf32>
    %cst_1111 = arith.constant 1.000000e+00 : f32
    %3005 = vector.broadcast %cst_1111 : f32 to vector<16x16xf32>
    %3006 = arith.divf %3005, %3004 : vector<16x16xf32>
    %3007 = arith.mulf %2994, %2996 : vector<16x16xf32>
    %3008 = arith.mulf %3002, %3002 : vector<16x16xf32>
    %3009 = arith.subf %3007, %3008 : vector<16x16xf32>
    %3010 = arith.mulf %3009, %3006 : vector<16x16xf32>
    %3011 = arith.mulf %3000, %3002 : vector<16x16xf32>
    %3012 = arith.mulf %2998, %2996 : vector<16x16xf32>
    %3013 = arith.subf %3011, %3012 : vector<16x16xf32>
    %3014 = arith.mulf %3013, %3006 : vector<16x16xf32>
    %3015 = arith.mulf %2998, %3002 : vector<16x16xf32>
    %3016 = arith.mulf %3000, %2994 : vector<16x16xf32>
    %3017 = arith.subf %3015, %3016 : vector<16x16xf32>
    %3018 = arith.mulf %3017, %3006 : vector<16x16xf32>
    %3019 = arith.mulf %2992, %2996 : vector<16x16xf32>
    %3020 = arith.mulf %3000, %3000 : vector<16x16xf32>
    %3021 = arith.subf %3019, %3020 : vector<16x16xf32>
    %3022 = arith.mulf %3021, %3006 : vector<16x16xf32>
    %3023 = arith.mulf %2998, %3000 : vector<16x16xf32>
    %3024 = arith.mulf %2992, %3002 : vector<16x16xf32>
    %3025 = arith.subf %3023, %3024 : vector<16x16xf32>
    %3026 = arith.mulf %3025, %3006 : vector<16x16xf32>
    %3027 = arith.mulf %2992, %2994 : vector<16x16xf32>
    %3028 = arith.mulf %2998, %2998 : vector<16x16xf32>
    %3029 = arith.subf %3027, %3028 : vector<16x16xf32>
    %3030 = arith.mulf %3029, %3006 : vector<16x16xf32>
    %3031 = arith.mulf %3010, %2972 : vector<16x16xf32>
    %3032 = arith.mulf %3014, %2973 : vector<16x16xf32>
    %3033 = arith.addf %3031, %3032 : vector<16x16xf32>
    %3034 = arith.mulf %3018, %2974 : vector<16x16xf32>
    %3035 = arith.addf %3033, %3034 : vector<16x16xf32>
    %3036 = arith.mulf %3014, %2972 : vector<16x16xf32>
    %3037 = arith.mulf %3022, %2973 : vector<16x16xf32>
    %3038 = arith.addf %3036, %3037 : vector<16x16xf32>
    %3039 = arith.mulf %3026, %2974 : vector<16x16xf32>
    %3040 = arith.addf %3038, %3039 : vector<16x16xf32>
    %3041 = arith.mulf %3018, %2972 : vector<16x16xf32>
    %3042 = arith.mulf %3026, %2973 : vector<16x16xf32>
    %3043 = arith.addf %3041, %3042 : vector<16x16xf32>
    %3044 = arith.mulf %3030, %2974 : vector<16x16xf32>
    %3045 = arith.addf %3043, %3044 : vector<16x16xf32>
    %3046 = arith.mulf %3035, %3035 : vector<16x16xf32>
    %3047 = arith.mulf %3040, %3040 : vector<16x16xf32>
    %3048 = arith.addf %3046, %3047 : vector<16x16xf32>
    %3049 = arith.mulf %3045, %3045 : vector<16x16xf32>
    %3050 = arith.addf %3048, %3049 : vector<16x16xf32>
    %3051 = math.rsqrt %3050 : vector<16x16xf32>
    %3052 = arith.mulf %3035, %3051 : vector<16x16xf32>
    %3053 = arith.mulf %3040, %3051 : vector<16x16xf32>
    %3054 = arith.mulf %3045, %3051 : vector<16x16xf32>
    %3055 = arith.cmpf one, %3052, %3052 : vector<16x16xf32>
    %cst_1112 = arith.constant 0.000000e+00 : f32
    %3056 = vector.broadcast %cst_1112 : f32 to vector<16x16xf32>
    %3057 = arith.select %3055, %3056, %3052 : vector<16x16xi1>, vector<16x16xf32>
    %3058 = arith.cmpf one, %3053, %3053 : vector<16x16xf32>
    %cst_1113 = arith.constant 0.000000e+00 : f32
    %3059 = vector.broadcast %cst_1113 : f32 to vector<16x16xf32>
    %3060 = arith.select %3058, %3059, %3053 : vector<16x16xi1>, vector<16x16xf32>
    %3061 = arith.cmpf one, %3054, %3054 : vector<16x16xf32>
    %cst_1114 = arith.constant 0.000000e+00 : f32
    %3062 = vector.broadcast %cst_1114 : f32 to vector<16x16xf32>
    %3063 = arith.select %3061, %3062, %3054 : vector<16x16xi1>, vector<16x16xf32>
    %cst_1115 = arith.constant 0.000000e+00 : f32
    %3064 = vector.broadcast %cst_1115 : f32 to vector<16x16xf32>
    %3065 = arith.subf %3064, %3057 : vector<16x16xf32>
    %c0_1116 = arith.constant 0 : index
    %c0_1117 = arith.constant 0 : index
    %c0_1118 = arith.constant 0 : index
    %c0_1119 = arith.constant 0 : index
    %3066 = vector.load %arg3[%c0_1116, %c0_1117, %c0_1118, %c0_1119] : memref<1x3x16x16xf32, #tpu.memory_space<vmem>>, vector<1x1x16x16xf32>
    %3067 = vector.shape_cast %3066 : vector<1x1x16x16xf32> to vector<16x16xf32>
    %3068 = vector.shape_cast %3065 : vector<16x16xf32> to vector<1x1x16x16xf32>
    tpu.vector_store %arg3[%c0_1116, %c0_1117, %c0_1118, %c0_1119], %3068 {strides = array<i32>} : memref<1x3x16x16xf32, #tpu.memory_space<vmem>>, vector<1x1x16x16xf32>,
    %cst_1120 = arith.constant 0.000000e+00 : f32
    %3069 = vector.broadcast %cst_1120 : f32 to vector<16x16xf32>
    %3070 = arith.subf %3069, %3060 : vector<16x16xf32>
    %c0_1121 = arith.constant 0 : index
    %c1_1122 = arith.constant 1 : index
    %c0_1123 = arith.constant 0 : index
    %c0_1124 = arith.constant 0 : index
    %3071 = vector.load %arg3[%c0_1121, %c1_1122, %c0_1123, %c0_1124] : memref<1x3x16x16xf32, #tpu.memory_space<vmem>>, vector<1x1x16x16xf32>
    %3072 = vector.shape_cast %3071 : vector<1x1x16x16xf32> to vector<16x16xf32>
    %3073 = vector.shape_cast %3070 : vector<16x16xf32> to vector<1x1x16x16xf32>
    tpu.vector_store %arg3[%c0_1121, %c1_1122, %c0_1123, %c0_1124], %3073 {strides = array<i32>} : memref<1x3x16x16xf32, #tpu.memory_space<vmem>>, vector<1x1x16x16xf32>,
    %cst_1125 = arith.constant 0.000000e+00 : f32
    %3074 = vector.broadcast %cst_1125 : f32 to vector<16x16xf32>
    %3075 = arith.subf %3074, %3063 : vector<16x16xf32>
    %c0_1126 = arith.constant 0 : index
    %c2_1127 = arith.constant 2 : index
    %c0_1128 = arith.constant 0 : index
    %c0_1129 = arith.constant 0 : index
    %3076 = vector.load %arg3[%c0_1126, %c2_1127, %c0_1128, %c0_1129] : memref<1x3x16x16xf32, #tpu.memory_space<vmem>>, vector<1x1x16x16xf32>
    %3077 = vector.shape_cast %3076 : vector<1x1x16x16xf32> to vector<16x16xf32>
    %3078 = vector.shape_cast %3075 : vector<16x16xf32> to vector<1x1x16x16xf32>
    tpu.vector_store %arg3[%c0_1126, %c2_1127, %c0_1128, %c0_1129], %3078 {strides = array<i32>} : memref<1x3x16x16xf32, #tpu.memory_space<vmem>>, vector<1x1x16x16xf32>,
    return
  }
  func.func @transform_0(%arg0: i32, %arg1: i32) -> (i32, i32, i32, i32, i32) {
    %c0_i32 = arith.constant 0 : i32
    %c0_i32_0 = arith.constant 0 : i32
    %c0_i32_1 = arith.constant 0 : i32
    %c0_i32_2 = arith.constant 0 : i32
    return %arg0, %arg1, %c0_i32, %c0_i32_0, %c0_i32_1 : i32, i32, i32, i32, i32
  }
  func.func @transform_1(%arg0: i32, %arg1: i32) -> (i32, i32, i32, i32) {
    %c0_i32 = arith.constant 0 : i32
    %c0_i32_0 = arith.constant 0 : i32
    %c0_i32_1 = arith.constant 0 : i32
    return %arg0, %c0_i32, %arg1, %c0_i32_0 : i32, i32, i32, i32
  }
}

</mosaic_0001>

<llo_original>
// kernel: tpu_custom_call.1
$region0: #{tpu_custom_call.1}
  #allocation0 [shape = 'u32[]', space=smem, size = 0x4, offset = 0x4, fixed_abs, tag = 'smem constant byte address 0x4 - core index']
  #allocation1 [shape = 'u32[144,128]{1,0:T(1,128)}', space=vmem, size = 0x12000, scoped, tag = 'internal scratch']
  #allocation2 [shape = 'f32[3,24,16]{2,1,0:T(8,128)}', space=vmem, size = 0x9000, scoped, tag = 'scratch operand']
  %s0 = inlined_call_operand.hbm [shape: f32[2,1,3,24,24], index: 0, kind: input, shape index: {}]
  %s1 = inlined_call_operand.hbm [shape: f32[2,3,16,16], index: 1, kind: output, shape index: {}]
  %s2 = sld [smem:[#allocation0]]
  $region41: #{tpu_custom_call.1} parent=0
    _
  %s4 = ssub.s32 1, %s2
  %s5 = scalar_select 0, %s4, %s2
  $region1: #{tpu_custom_call.1} parent=0
    #allocation3 [shape = 'u8[73728]{0}', space=vmem, size = 0x12000, scoped, tag = 'input window, operand 0']
    #allocation4 [shape = 's32[2]{0}', space=sflag, size = 0x8, scoped, tag = 'scoped memory for tpu_custom_call.1']
    #allocation5 [shape = 's32[2]{0}', space=sflag, size = 0x8, scoped, tag = 'scoped memory for tpu_custom_call.1']
    #allocation6 [shape = 'u8[49152]{0}', space=vmem, size = 0xc000, scoped, tag = 'output window, operand 0']
    %6 = vsyncpa [#allocation4], 0
    %s7 = scalar_lea.sflag [#allocation4], 1
    %8 = vsyncpa %s7, 0
    %9 = vsyncpa [#allocation5], 0
    %s10 = scalar_lea.sflag [#allocation5], 1
    %11 = vsyncpa %s10, 0
    loop: start=0, step=1, limit=4
    $region2: #{tpu_custom_call.1} parent=1 // loop_pre_header
      _
    $region3: #{tpu_custom_call.1} parent=1 // loop_header
      %s13 = sphi 0, %s17
      %p14 = scmp.ge.s32.totalorder %s13, 4
      %s20 = sphi 0, %s32
      %s21 = sphi 0, %s28
      %s22 = sphi 0, %s20
      %s23 = sphi 0, %s21
      %s24 = sphi 0, %s22
      %s25 = sphi 0, %s23
      %s37 = sphi 0, %s39
      %s40 = sphi 0, %s37
      %s41 = sphi 0, %s40
      %s57 = sphi 0, %s41
      %s65 = sphi 0, %s67
      %s68 = sphi 0, %s65
      %s69 = sphi 0, %s68
      %s85 = sphi 0, %s69
    $region4: #{tpu_custom_call.1} parent=1 // loop_header_branch
      %16 = sbr.rel (%p14) target = $region8
    $region5: #{tpu_custom_call.1} parent=1 // loop_body
      %s18 = ssub.s32 %s13, 1
      %s19 = ssub.s32 %s13, 2
      %s26 = sadd.s32 1, %s21
      %p27 = scmp.ge.s32.totalorder %s26, 1
      %s28 = scalar_select %p27, 0, %s26
      %s29 = sadd.s32 1, %s20
      %s30 = scalar_select %p27, %s29, %s20
      %p31 = scmp.ge.s32.totalorder %s30, 2
      %s32 = scalar_select %p31, 0, %s30
      %s33 = ssub.s32 %s20, %s32
      %s34 = ssub.s32 %s21, %s28
      %s35 = sor.u32 %s33, %s34
      %p36 = scmp.eq.s32.totalorder %s35, 0
      %s38 = sadd.s32 %s37, 1
      %s39 = scalar_select %p36, %s37, %s38
      %p42 = pneg %p36
      %p43 = scmp.eq.s32.totalorder %s13, 1
      %p44 = por %p42, %p43
      %p45 = scmp.ne.s32.totalorder %s37, %s40
      %p46 = scmp.eq.s32.totalorder %s13, 0
      %p47 = por %p45, %p46
      %p48 = scmp.ne.s32.totalorder %s37, %s40
      %p49 = scmp.eq.s32.totalorder %s18, 1
      %p50 = por %p48, %p49
      %p51 = scmp.ne.s32.totalorder %s40, %s41
      %p52 = scmp.eq.s32.totalorder %s18, 0
      %p53 = por %p51, %p52
      %p54 = scmp.ne.s32.totalorder %s40, %s41
      %p55 = scmp.eq.s32.totalorder %s19, 1
      %p56 = por %p54, %p55
      %p58 = scmp.ne.s32.totalorder %s41, %s57
      %p59 = scmp.eq.s32.totalorder %s19, 0
      %p60 = por %p58, %p59
      %s61 = ssub.s32 %s20, %s32
      %s62 = ssub.s32 %s21, %s28
      %s63 = sor.u32 %s61, %s62
      %p64 = scmp.eq.s32.totalorder %s63, 0
      %s66 = sadd.s32 %s65, 1
      %s67 = scalar_select %p64, %s65, %s66
      %p70 = pneg %p64
      %p71 = scmp.eq.s32.totalorder %s13, 1
      %p72 = por %p70, %p71
      %p73 = scmp.ne.s32.totalorder %s65, %s68
      %p74 = scmp.eq.s32.totalorder %s13, 0
      %p75 = por %p73, %p74
      %p76 = scmp.ne.s32.totalorder %s65, %s68
      %p77 = scmp.eq.s32.totalorder %s18, 1
      %p78 = por %p76, %p77
      %p79 = scmp.ne.s32.totalorder %s68, %s69
      %p80 = scmp.eq.s32.totalorder %s18, 0
      %p81 = por %p79, %p80
      %p82 = scmp.ne.s32.totalorder %s68, %s69
      %p83 = scmp.eq.s32.totalorder %s19, 1
      %p84 = por %p82, %p83
      %p86 = scmp.ne.s32.totalorder %s69, %s85
      %p87 = scmp.eq.s32.totalorder %s19, 0
      %p88 = por %p86, %p87
      %p89 = scmp.le.s32.totalorder 1, %s13
      %p90 = scmp.lt.s32.totalorder %s13, 3
      %p91 = pnand %p89, %p90
      %p92 = pneg %p91
      // Predicated region
      $region9: #{tpu_custom_call.1} parent=5 // pred_check
        _
      $region10: #{tpu_custom_call.1} parent=5 // pred_check_branch
        %94 = sbr.rel (%p91) target = $region12
      $region11: #{tpu_custom_call.1} parent=5 // pred_region
        %s95 = ssub.s32 %s13, 1
      $region12: #{tpu_custom_call.1} parent=5 // pred_fallthru
        _
      %p96 = scmp.lt.s32.totalorder %s13, 2
      // Predicated region
      $region13: #{tpu_custom_call.1} parent=5 // pred_check
        %p97 = pneg %p96
      $region14: #{tpu_custom_call.1} parent=5 // pred_check_branch
        %99 = sbr.rel (%p97) target = $region16
      $region15: #{tpu_custom_call.1} parent=5 // pred_region
        // Predicated region
        $region17: #{tpu_custom_call.1} parent=15 // pred_check
          %p100 = pneg %p47
        $region18: #{tpu_custom_call.1} parent=15 // pred_check_branch
          %102 = sbr.rel (%p100) target = $region20
        $region19: #{tpu_custom_call.1} parent=15 // pred_region
          %s103 = sand.u32 %s37, 1
          %s104 = scalar_lea.sflag [#allocation4], %s103
          %s105 = sand.u32 %s37, 1
          %s106 = smul.addr %s105, 72
          %s107 = scalar_lea.vmem [#allocation3], %s106
          %s109 = ssub.s32 1152, 1152
          %110 = vsyncadd %s104, %s109
          %s111 = smul.addr %s21, 9
          %s112 = smul.addr %s20, 9
          %s113 = sadd.s32 %s111, %s112
          %s114 = smul.addr %s113, 128
          %s115 = scalar_lea.hbm %s0, %s114
          %s116 = sshll.u32 %s107, 4
          %s117 = int_to_ptr.vmem [resolvable:$true] %s116
          %122 = dma.hbm_to_vmem [thread:$0]  %s115, 1152, %s117, %s104, 128, 128, 8
        $region20: #{tpu_custom_call.1} parent=15 // pred_fallthru
          _
      $region16: #{tpu_custom_call.1} parent=5 // pred_fallthru
        _
      %p123 = scmp.le.s32.totalorder 1, %s13
      %p124 = scmp.lt.s32.totalorder %s13, 3
      %p125 = pnand %p123, %p124
      %p126 = pneg %p125
      // Predicated region
      $region21: #{tpu_custom_call.1} parent=5 // pred_check
        _
      $region22: #{tpu_custom_call.1} parent=5 // pred_check_branch
        %128 = sbr.rel (%p125) target = $region24
      $region23: #{tpu_custom_call.1} parent=5 // pred_region
        %s129 = ssub.s32 %s13, 1
        %s130 = sand.u32 %s40, 1
        %s131 = scalar_lea.sflag [#allocation4], %s130
        %s132 = sand.u32 %s40, 1
        %s133 = smul.addr %s132, 72
        %s134 = scalar_lea.vmem [#allocation3], %s133
        // Predicated region
        $region25: #{tpu_custom_call.1} parent=23 // pred_check
          %p135 = pneg %p53
        $region26: #{tpu_custom_call.1} parent=23 // pred_check_branch
          %137 = sbr.rel (%p135) target = $region28
        $region27: #{tpu_custom_call.1} parent=23 // pred_region
          %138 = dma.done %s131, 1152
        $region28: #{tpu_custom_call.1} parent=23 // pred_fallthru
          _
        %s139 = sand.u32 %s40, 1
        %s140 = scalar_lea.sflag [#allocation4], %s139
        %s141 = sand.u32 %s40, 1
        %s142 = smul.addr %s141, 72
        %s143 = scalar_lea.vmem [#allocation3], %s142
        %p144 = pneg %p53
        %p145 = pneg %p50
        %p146 = pneg %p81
        %p147 = pneg %p78
        %s148 = sand.u32 %s68, 1
        %s149 = scalar_lea.sflag [#allocation5], %s148
        %s150 = sand.u32 %s68, 1
        %s151 = smul.addr %s150, 48
        %s152 = scalar_lea.vmem [#allocation6], %s151
        %s153 = smul.u32 2, %s23
        %s154 = scalar_lea.vmem %s134, 48 [#allocation3]
        %v155 = vld [vmem:[%s154 + $0x4] sm:$0xff]
        %v156 = vld [vmem:[%s154 + $0xc] sm:$0xff]
        %v157 = vrcp.pop %v155
        %v158 = vmul.f32 1.0, %v157
        %v159 = vrcp.pop %v156
        %v160 = vmul.f32 1.0, %v159
        %v161 = vld [vmem:[%s134] sm:$0xff]
        %v162 = vld [vmem:[%s134 + $0x8] sm:$0xff]
        %v163 = vld [vmem:[%s134 + $0x10] sm:$0xff]
        %vm164 = vcmask 130048
        %165 = vst.msk [vmem:[#allocation2] sm:$0xff] %vm164, %v161
        %166 = vst.msk [vmem:[#allocation2 + $0x8] sm:$0xff] %vm164, %v162
        %167 = vst.msk [vmem:[#allocation2 + $0x10] sm:$0xff] %vm164, %v163
        %s168 = scalar_lea.vmem %s134, 24 [#allocation3]
        %v169 = vld [vmem:[%s168] sm:$0xff]
        %v170 = vld [vmem:[%s168 + $0x8] sm:$0xff]
        %v171 = vld [vmem:[%s168 + $0x10] sm:$0xff]
        %s172 = scalar_lea.vmem [#allocation2], 24
        %173 = vst.msk [vmem:[%s172] sm:$0xff] %vm164, %v169
        %174 = vst.msk [vmem:[%s172 + $0x8] sm:$0xff] %vm164, %v170
        %175 = vst.msk [vmem:[%s172 + $0x10] sm:$0xff] %vm164, %v171
        %v176 = vld [vmem:[%s154] sm:$0xff]
        %v177 = vld [vmem:[%s154 + $0x8] sm:$0xff]
        %v178 = vld [vmem:[%s154 + $0x10] sm:$0xff]
        %s179 = scalar_lea.vmem [#allocation2], 48
        %180 = vst.msk [vmem:[%s179] sm:$0xff] %vm164, %v176
        %181 = vst.msk [vmem:[%s179 + $0x8] sm:$0xff] %vm164, %v177
        %182 = vst.msk [vmem:[%s179 + $0x10] sm:$0xff] %vm164, %v178
        %v183 = vld [vmem:[#allocation2] sm:$0xff]
        %v184 = vld [vmem:[#allocation2 + $0x8] sm:$0xff]
        %v185 = vld [vmem:[%s172] sm:$0xff]
        %v186 = vld [vmem:[%s172 + $0x8] sm:$0xff]
        %v187 = vld [vmem:[%s179] sm:$0xff]
        %v188 = vld [vmem:[%s179 + $0x8] sm:$0xff]
        %191 = vrot.lane.b32.xlu0 %v155, 124
        %v192 = vpop.permute.xlu0 %191
        %193 = vrot.lane.b32.xlu0 %v156, 124
        %v194 = vpop.permute.xlu0 %193
        %v197 = vsub.f32 %v187, %v192
        %v198 = vsub.f32 %v188, %v194
        %201 = vrot.lane.b32.xlu0 %v158, 124
        %v202 = vpop.permute.xlu0 %201
        %203 = vrot.lane.b32.xlu0 %v160, 124
        %v204 = vpop.permute.xlu0 %203
        %v207 = vmul.f32 %v197, %v202
        %v208 = vmul.f32 %v198, %v204
        %v209 = vand.u32 2147483647, %v207
        %v210 = vand.u32 2147483647, %v208
        %vm211 = vcmp.gt.f32.partialorder %v209, 0.15
        %vm212 = vcmp.gt.f32.partialorder %v210, 0.15
        %v213 = vsel %vm211, 0.0, %v183
        %v214 = vsel %vm212, 0.0, %v184
        %v215 = vsel %vm211, 0.0, %v185
        %v216 = vsel %vm212, 0.0, %v186
        %v217 = vsel %vm211, 0.0, %v187
        %v218 = vsel %vm212, 0.0, %v188
        %v219 = vmul.f32 %v213, %v213
        %v220 = vmul.f32 %v214, %v214
        %v221 = vadd.f32 %v219, 0.0
        %v222 = vadd.f32 %v220, 0.0
        %v223 = vmul.f32 %v215, %v215
        %v224 = vmul.f32 %v216, %v216
        %v225 = vadd.f32 %v223, 0.0
        %v226 = vadd.f32 %v224, 0.0
        %v227 = vmul.f32 %v217, %v217
        %v228 = vmul.f32 %v218, %v218
        %v229 = vadd.f32 %v227, 0.0
        %v230 = vadd.f32 %v228, 0.0
        %v231 = vmul.f32 %v213, %v215
        %v232 = vmul.f32 %v214, %v216
        %v233 = vadd.f32 %v231, 0.0
        %v234 = vadd.f32 %v232, 0.0
        %v235 = vmul.f32 %v213, %v217
        %v236 = vmul.f32 %v214, %v218
        %v237 = vadd.f32 %v235, 0.0
        %v238 = vadd.f32 %v236, 0.0
        %v239 = vmul.f32 %v215, %v217
        %v240 = vmul.f32 %v216, %v218
        %v241 = vadd.f32 %v239, 0.0
        %v242 = vadd.f32 %v240, 0.0
        %v243 = vadd.f32 %v213, 0.0
        %v244 = vadd.f32 %v214, 0.0
        %v245 = vadd.f32 %v215, 0.0
        %v246 = vadd.f32 %v216, 0.0
        %v247 = vadd.f32 %v217, 0.0
        %v248 = vadd.f32 %v218, 0.0
        %v249 = vld [vmem:[#allocation2 + $0x1] sm:$0xff]
        %v250 = vld [vmem:[#allocation2 + $0x9] sm:$0xff]
        %v251 = vld [vmem:[%s172 + $0x1] sm:$0xff]
        %v252 = vld [vmem:[%s172 + $0x9] sm:$0xff]
        %v253 = vld [vmem:[%s179 + $0x1] sm:$0xff]
        %v254 = vld [vmem:[%s179 + $0x9] sm:$0xff]
        %v255 = vsub.f32 %v253, %v192
        %v256 = vsub.f32 %v254, %v194
        %v257 = vmul.f32 %v255, %v202
        %v258 = vmul.f32 %v256, %v204
        %v259 = vand.u32 2147483647, %v257
        %v260 = vand.u32 2147483647, %v258
        %vm261 = vcmp.gt.f32.partialorder %v259, 0.15
        %vm262 = vcmp.gt.f32.partialorder %v260, 0.15
        %v263 = vsel %vm261, 0.0, %v249
        %v264 = vsel %vm262, 0.0, %v250
        %v265 = vsel %vm261, 0.0, %v251
        %v266 = vsel %vm262, 0.0, %v252
        %v267 = vsel %vm261, 0.0, %v253
        %v268 = vsel %vm262, 0.0, %v254
        %v269 = vmul.f32 %v263, %v263
        %v270 = vmul.f32 %v264, %v264
        %v271 = vadd.f32 %v221, %v269
        %v272 = vadd.f32 %v222, %v270
        %v273 = vmul.f32 %v265, %v265
        %v274 = vmul.f32 %v266, %v266
        %v275 = vadd.f32 %v225, %v273
        %v276 = vadd.f32 %v226, %v274
        %v277 = vmul.f32 %v267, %v267
        %v278 = vmul.f32 %v268, %v268
        %v279 = vadd.f32 %v229, %v277
        %v280 = vadd.f32 %v230, %v278
        %v281 = vmul.f32 %v263, %v265
        %v282 = vmul.f32 %v264, %v266
        %v283 = vadd.f32 %v233, %v281
        %v284 = vadd.f32 %v234, %v282
        %v285 = vmul.f32 %v263, %v267
        %v286 = vmul.f32 %v264, %v268
        %v287 = vadd.f32 %v237, %v285
        %v288 = vadd.f32 %v238, %v286
        %v289 = vmul.f32 %v265, %v267
        %v290 = vmul.f32 %v266, %v268
        %v291 = vadd.f32 %v241, %v289
        %v292 = vadd.f32 %v242, %v290
        %v293 = vadd.f32 %v243, %v263
        %v294 = vadd.f32 %v244, %v264
        %v295 = vadd.f32 %v245, %v265
        %v296 = vadd.f32 %v246, %v266
        %v297 = vadd.f32 %v247, %v267
        %v298 = vadd.f32 %v248, %v268
        %v299 = vld [vmem:[#allocation2 + $0x2] sm:$0xff]
        %v300 = vld [vmem:[#allocation2 + $0xa] sm:$0xff]
        %v301 = vld [vmem:[%s172 + $0x2] sm:$0xff]
        %v302 = vld [vmem:[%s172 + $0xa] sm:$0xff]
        %v303 = vld [vmem:[%s179 + $0x2] sm:$0xff]
        %v304 = vld [vmem:[%s179 + $0xa] sm:$0xff]
        %v305 = vsub.f32 %v303, %v192
        %v306 = vsub.f32 %v304, %v194
        %v307 = vmul.f32 %v305, %v202
        %v308 = vmul.f32 %v306, %v204
        %v309 = vand.u32 2147483647, %v307
        %v310 = vand.u32 2147483647, %v308
        %vm311 = vcmp.gt.f32.partialorder %v309, 0.15
        %vm312 = vcmp.gt.f32.partialorder %v310, 0.15
        %v313 = vsel %vm311, 0.0, %v299
        %v314 = vsel %vm312, 0.0, %v300
        %v315 = vsel %vm311, 0.0, %v301
        %v316 = vsel %vm312, 0.0, %v302
        %v317 = vsel %vm311, 0.0, %v303
        %v318 = vsel %vm312, 0.0, %v304
        %v319 = vmul.f32 %v313, %v313
        %v320 = vmul.f32 %v314, %v314
        %v321 = vadd.f32 %v271, %v319
        %v322 = vadd.f32 %v272, %v320
        %v323 = vmul.f32 %v315, %v315
        %v324 = vmul.f32 %v316, %v316
        %v325 = vadd.f32 %v275, %v323
        %v326 = vadd.f32 %v276, %v324
        %v327 = vmul.f32 %v317, %v317
        %v328 = vmul.f32 %v318, %v318
        %v329 = vadd.f32 %v279, %v327
        %v330 = vadd.f32 %v280, %v328
        %v331 = vmul.f32 %v313, %v315
        %v332 = vmul.f32 %v314, %v316
        %v333 = vadd.f32 %v283, %v331
        %v334 = vadd.f32 %v284, %v332
        %v335 = vmul.f32 %v313, %v317
        %v336 = vmul.f32 %v314, %v318
        %v337 = vadd.f32 %v287, %v335
        %v338 = vadd.f32 %v288, %v336
        %v339 = vmul.f32 %v315, %v317
        %v340 = vmul.f32 %v316, %v318
        %v341 = vadd.f32 %v291, %v339
        %v342 = vadd.f32 %v292, %v340
        %v343 = vadd.f32 %v293, %v313
        %v344 = vadd.f32 %v294, %v314
        %v345 = vadd.f32 %v295, %v315
        %v346 = vadd.f32 %v296, %v316
        %v347 = vadd.f32 %v297, %v317
        %v348 = vadd.f32 %v298, %v318
        %v349 = vld [vmem:[#allocation2 + $0x3] sm:$0xff]
        %v350 = vld [vmem:[#allocation2 + $0xb] sm:$0xff]
        %v351 = vld [vmem:[%s172 + $0x3] sm:$0xff]
        %v352 = vld [vmem:[%s172 + $0xb] sm:$0xff]
        %v353 = vld [vmem:[%s179 + $0x3] sm:$0xff]
        %v354 = vld [vmem:[%s179 + $0xb] sm:$0xff]
        %v355 = vsub.f32 %v353, %v192
        %v356 = vsub.f32 %v354, %v194
        %v357 = vmul.f32 %v355, %v202
        %v358 = vmul.f32 %v356, %v204
        %v359 = vand.u32 2147483647, %v357
        %v360 = vand.u32 2147483647, %v358
        %vm361 = vcmp.gt.f32.partialorder %v359, 0.15
        %vm362 = vcmp.gt.f32.partialorder %v360, 0.15
        %v363 = vsel %vm361, 0.0, %v349
        %v364 = vsel %vm362, 0.0, %v350
        %v365 = vsel %vm361, 0.0, %v351
        %v366 = vsel %vm362, 0.0, %v352
        %v367 = vsel %vm361, 0.0, %v353
        %v368 = vsel %vm362, 0.0, %v354
        %v369 = vmul.f32 %v363, %v363
        %v370 = vmul.f32 %v364, %v364
        %v371 = vadd.f32 %v321, %v369
        %v372 = vadd.f32 %v322, %v370
        %v373 = vmul.f32 %v365, %v365
        %v374 = vmul.f32 %v366, %v366
        %v375 = vadd.f32 %v325, %v373
        %v376 = vadd.f32 %v326, %v374
        %v377 = vmul.f32 %v367, %v367
        %v378 = vmul.f32 %v368, %v368
        %v379 = vadd.f32 %v329, %v377
        %v380 = vadd.f32 %v330, %v378
        %v381 = vmul.f32 %v363, %v365
        %v382 = vmul.f32 %v364, %v366
        %v383 = vadd.f32 %v333, %v381
        %v384 = vadd.f32 %v334, %v382
        %v385 = vmul.f32 %v363, %v367
        %v386 = vmul.f32 %v364, %v368
        %v387 = vadd.f32 %v337, %v385
        %v388 = vadd.f32 %v338, %v386
        %v389 = vmul.f32 %v365, %v367
        %v390 = vmul.f32 %v366, %v368
        %v391 = vadd.f32 %v341, %v389
        %v392 = vadd.f32 %v342, %v390
        %v393 = vadd.f32 %v343, %v363
        %v394 = vadd.f32 %v344, %v364
        %v395 = vadd.f32 %v345, %v365
        %v396 = vadd.f32 %v346, %v366
        %v397 = vadd.f32 %v347, %v367
        %v398 = vadd.f32 %v348, %v368
        %v399 = vld [vmem:[#allocation2 + $0x4] sm:$0xff]
        %v400 = vld [vmem:[#allocation2 + $0xc] sm:$0xff]
        %v401 = vld [vmem:[%s172 + $0x4] sm:$0xff]
        %v402 = vld [vmem:[%s172 + $0xc] sm:$0xff]
        %v403 = vld [vmem:[%s179 + $0x4] sm:$0xff]
        %v404 = vld [vmem:[%s179 + $0xc] sm:$0xff]
        %v405 = vsub.f32 %v403, %v192
        %v406 = vsub.f32 %v404, %v194
        %v407 = vmul.f32 %v405, %v202
        %v408 = vmul.f32 %v406, %v204
        %v409 = vand.u32 2147483647, %v407
        %v410 = vand.u32 2147483647, %v408
        %vm411 = vcmp.gt.f32.partialorder %v409, 0.15
        %vm412 = vcmp.gt.f32.partialorder %v410, 0.15
        %v413 = vsel %vm411, 0.0, %v399
        %v414 = vsel %vm412, 0.0, %v400
        %v415 = vsel %vm411, 0.0, %v401
        %v416 = vsel %vm412, 0.0, %v402
        %v417 = vsel %vm411, 0.0, %v403
        %v418 = vsel %vm412, 0.0, %v404
        %v419 = vmul.f32 %v413, %v413
        %v420 = vmul.f32 %v414, %v414
        %v421 = vadd.f32 %v371, %v419
        %v422 = vadd.f32 %v372, %v420
        %v423 = vmul.f32 %v415, %v415
        %v424 = vmul.f32 %v416, %v416
        %v425 = vadd.f32 %v375, %v423
        %v426 = vadd.f32 %v376, %v424
        %v427 = vmul.f32 %v417, %v417
        %v428 = vmul.f32 %v418, %v418
        %v429 = vadd.f32 %v379, %v427
        %v430 = vadd.f32 %v380, %v428
        %v431 = vmul.f32 %v413, %v415
        %v432 = vmul.f32 %v414, %v416
        %v433 = vadd.f32 %v383, %v431
        %v434 = vadd.f32 %v384, %v432
        %v435 = vmul.f32 %v413, %v417
        %v436 = vmul.f32 %v414, %v418
        %v437 = vadd.f32 %v387, %v435
        %v438 = vadd.f32 %v388, %v436
        %v439 = vmul.f32 %v415, %v417
        %v440 = vmul.f32 %v416, %v418
        %v441 = vadd.f32 %v391, %v439
        %v442 = vadd.f32 %v392, %v440
        %v443 = vadd.f32 %v393, %v413
        %v444 = vadd.f32 %v394, %v414
        %v445 = vadd.f32 %v395, %v415
        %v446 = vadd.f32 %v396, %v416
        %v447 = vadd.f32 %v397, %v417
        %v448 = vadd.f32 %v398, %v418
        %v449 = vld [vmem:[#allocation2 + $0x5] sm:$0xff]
        %v450 = vld [vmem:[#allocation2 + $0xd] sm:$0xff]
        %v451 = vld [vmem:[%s172 + $0x5] sm:$0xff]
        %v452 = vld [vmem:[%s172 + $0xd] sm:$0xff]
        %v453 = vld [vmem:[%s179 + $0x5] sm:$0xff]
        %v454 = vld [vmem:[%s179 + $0xd] sm:$0xff]
        %v455 = vsub.f32 %v453, %v192
        %v456 = vsub.f32 %v454, %v194
        %v457 = vmul.f32 %v455, %v202
        %v458 = vmul.f32 %v456, %v204
        %v459 = vand.u32 2147483647, %v457
        %v460 = vand.u32 2147483647, %v458
        %vm461 = vcmp.gt.f32.partialorder %v459, 0.15
        %vm462 = vcmp.gt.f32.partialorder %v460, 0.15
        %v463 = vsel %vm461, 0.0, %v449
        %v464 = vsel %vm462, 0.0, %v450
        %v465 = vsel %vm461, 0.0, %v451
        %v466 = vsel %vm462, 0.0, %v452
        %v467 = vsel %vm461, 0.0, %v453
        %v468 = vsel %vm462, 0.0, %v454
        %v469 = vmul.f32 %v463, %v463
        %v470 = vmul.f32 %v464, %v464
        %v471 = vadd.f32 %v421, %v469
        %v472 = vadd.f32 %v422, %v470
        %v473 = vmul.f32 %v465, %v465
        %v474 = vmul.f32 %v466, %v466
        %v475 = vadd.f32 %v425, %v473
        %v476 = vadd.f32 %v426, %v474
        %v477 = vmul.f32 %v467, %v467
        %v478 = vmul.f32 %v468, %v468
        %v479 = vadd.f32 %v429, %v477
        %v480 = vadd.f32 %v430, %v478
        %v481 = vmul.f32 %v463, %v465
        %v482 = vmul.f32 %v464, %v466
        %v483 = vadd.f32 %v433, %v481
        %v484 = vadd.f32 %v434, %v482
        %v485 = vmul.f32 %v463, %v467
        %v486 = vmul.f32 %v464, %v468
        %v487 = vadd.f32 %v437, %v485
        %v488 = vadd.f32 %v438, %v486
        %v489 = vmul.f32 %v465, %v467
        %v490 = vmul.f32 %v466, %v468
        %v491 = vadd.f32 %v441, %v489
        %v492 = vadd.f32 %v442, %v490
        %v493 = vadd.f32 %v443, %v463
        %v494 = vadd.f32 %v444, %v464
        %v495 = vadd.f32 %v445, %v465
        %v496 = vadd.f32 %v446, %v466
        %v497 = vadd.f32 %v447, %v467
        %v498 = vadd.f32 %v448, %v468
        %v499 = vld [vmem:[#allocation2 + $0x6] sm:$0xff]
        %v500 = vld [vmem:[#allocation2 + $0xe] sm:$0xff]
        %v501 = vld [vmem:[%s172 + $0x6] sm:$0xff]
        %v502 = vld [vmem:[%s172 + $0xe] sm:$0xff]
        %v503 = vld [vmem:[%s179 + $0x6] sm:$0xff]
        %v504 = vld [vmem:[%s179 + $0xe] sm:$0xff]
        %v505 = vsub.f32 %v503, %v192
        %v506 = vsub.f32 %v504, %v194
        %v507 = vmul.f32 %v505, %v202
        %v508 = vmul.f32 %v506, %v204
        %v509 = vand.u32 2147483647, %v507
        %v510 = vand.u32 2147483647, %v508
        %vm511 = vcmp.gt.f32.partialorder %v509, 0.15
        %vm512 = vcmp.gt.f32.partialorder %v510, 0.15
        %v513 = vsel %vm511, 0.0, %v499
        %v514 = vsel %vm512, 0.0, %v500
        %v515 = vsel %vm511, 0.0, %v501
        %v516 = vsel %vm512, 0.0, %v502
        %v517 = vsel %vm511, 0.0, %v503
        %v518 = vsel %vm512, 0.0, %v504
        %v519 = vmul.f32 %v513, %v513
        %v520 = vmul.f32 %v514, %v514
        %v521 = vadd.f32 %v471, %v519
        %v522 = vadd.f32 %v472, %v520
        %v523 = vmul.f32 %v515, %v515
        %v524 = vmul.f32 %v516, %v516
        %v525 = vadd.f32 %v475, %v523
        %v526 = vadd.f32 %v476, %v524
        %v527 = vmul.f32 %v517, %v517
        %v528 = vmul.f32 %v518, %v518
        %v529 = vadd.f32 %v479, %v527
        %v530 = vadd.f32 %v480, %v528
        %v531 = vmul.f32 %v513, %v515
        %v532 = vmul.f32 %v514, %v516
        %v533 = vadd.f32 %v483, %v531
        %v534 = vadd.f32 %v484, %v532
        %v535 = vmul.f32 %v513, %v517
        %v536 = vmul.f32 %v514, %v518
        %v537 = vadd.f32 %v487, %v535
        %v538 = vadd.f32 %v488, %v536
        %v539 = vmul.f32 %v515, %v517
        %v540 = vmul.f32 %v516, %v518
        %v541 = vadd.f32 %v491, %v539
        %v542 = vadd.f32 %v492, %v540
        %v543 = vadd.f32 %v493, %v513
        %v544 = vadd.f32 %v494, %v514
        %v545 = vadd.f32 %v495, %v515
        %v546 = vadd.f32 %v496, %v516
        %v547 = vadd.f32 %v497, %v517
        %v548 = vadd.f32 %v498, %v518
        %v549 = vld [vmem:[#allocation2 + $0x7] sm:$0xff]
        %v550 = vld [vmem:[#allocation2 + $0xf] sm:$0xff]
        %v551 = vld [vmem:[%s172 + $0x7] sm:$0xff]
        %v552 = vld [vmem:[%s172 + $0xf] sm:$0xff]
        %v553 = vld [vmem:[%s179 + $0x7] sm:$0xff]
        %v554 = vld [vmem:[%s179 + $0xf] sm:$0xff]
        %v555 = vsub.f32 %v553, %v192
        %v556 = vsub.f32 %v554, %v194
        %v557 = vmul.f32 %v555, %v202
        %v558 = vmul.f32 %v556, %v204
        %v559 = vand.u32 2147483647, %v557
        %v560 = vand.u32 2147483647, %v558
        %vm561 = vcmp.gt.f32.partialorder %v559, 0.15
        %vm562 = vcmp.gt.f32.partialorder %v560, 0.15
        %v563 = vsel %vm561, 0.0, %v549
        %v564 = vsel %vm562, 0.0, %v550
        %v565 = vsel %vm561, 0.0, %v551
        %v566 = vsel %vm562, 0.0, %v552
        %v567 = vsel %vm561, 0.0, %v553
        %v568 = vsel %vm562, 0.0, %v554
        %v569 = vmul.f32 %v563, %v563
        %v570 = vmul.f32 %v564, %v564
        %v571 = vadd.f32 %v521, %v569
        %v572 = vadd.f32 %v522, %v570
        %v573 = vmul.f32 %v565, %v565
        %v574 = vmul.f32 %v566, %v566
        %v575 = vadd.f32 %v525, %v573
        %v576 = vadd.f32 %v526, %v574
        %v577 = vmul.f32 %v567, %v567
        %v578 = vmul.f32 %v568, %v568
        %v579 = vadd.f32 %v529, %v577
        %v580 = vadd.f32 %v530, %v578
        %v581 = vmul.f32 %v563, %v565
        %v582 = vmul.f32 %v564, %v566
        %v583 = vadd.f32 %v533, %v581
        %v584 = vadd.f32 %v534, %v582
        %v585 = vmul.f32 %v563, %v567
        %v586 = vmul.f32 %v564, %v568
        %v587 = vadd.f32 %v537, %v585
        %v588 = vadd.f32 %v538, %v586
        %v589 = vmul.f32 %v565, %v567
        %v590 = vmul.f32 %v566, %v568
        %v591 = vadd.f32 %v541, %v589
        %v592 = vadd.f32 %v542, %v590
        %v593 = vadd.f32 %v543, %v563
        %v594 = vadd.f32 %v544, %v564
        %v595 = vadd.f32 %v545, %v565
        %v596 = vadd.f32 %v546, %v566
        %v597 = vadd.f32 %v547, %v567
        %v598 = vadd.f32 %v548, %v568
        %v599 = vld [vmem:[#allocation2 + $0x10] sm:$0xff]
        %v600 = vld [vmem:[%s172 + $0x10] sm:$0xff]
        %v601 = vld [vmem:[%s179 + $0x10] sm:$0xff]
        %v602 = vsub.f32 %v188, %v192
        %v603 = vsub.f32 %v601, %v194
        %v604 = vmul.f32 %v602, %v202
        %v605 = vmul.f32 %v603, %v204
        %v606 = vand.u32 2147483647, %v604
        %v607 = vand.u32 2147483647, %v605
        %vm608 = vcmp.gt.f32.partialorder %v606, 0.15
        %vm609 = vcmp.gt.f32.partialorder %v607, 0.15
        %v610 = vsel %vm608, 0.0, %v184
        %v611 = vsel %vm609, 0.0, %v599
        %v612 = vsel %vm608, 0.0, %v186
        %v613 = vsel %vm609, 0.0, %v600
        %v614 = vsel %vm608, 0.0, %v188
        %v615 = vsel %vm609, 0.0, %v601
        %v616 = vmul.f32 %v610, %v610
        %v617 = vmul.f32 %v611, %v611
        %v618 = vadd.f32 %v571, %v616
        %v619 = vadd.f32 %v572, %v617
        %v620 = vmul.f32 %v612, %v612
        %v621 = vmul.f32 %v613, %v613
        %v622 = vadd.f32 %v575, %v620
        %v623 = vadd.f32 %v576, %v621
        %v624 = vmul.f32 %v614, %v614
        %v625 = vmul.f32 %v615, %v615
        %v626 = vadd.f32 %v579, %v624
        %v627 = vadd.f32 %v580, %v625
        %v628 = vmul.f32 %v610, %v612
        %v629 = vmul.f32 %v611, %v613
        %v630 = vadd.f32 %v583, %v628
        %v631 = vadd.f32 %v584, %v629
        %v632 = vmul.f32 %v610, %v614
        %v633 = vmul.f32 %v611, %v615
        %v634 = vadd.f32 %v587, %v632
        %v635 = vadd.f32 %v588, %v633
        %v636 = vmul.f32 %v612, %v614
        %v637 = vmul.f32 %v613, %v615
        %v638 = vadd.f32 %v591, %v636
        %v639 = vadd.f32 %v592, %v637
        %v640 = vadd.f32 %v593, %v610
        %v641 = vadd.f32 %v594, %v611
        %v642 = vadd.f32 %v595, %v612
        %v643 = vadd.f32 %v596, %v613
        %v644 = vadd.f32 %v597, %v614
        %v645 = vadd.f32 %v598, %v615
        %v646 = vld [vmem:[%s134] sm:$0xff]
        %v647 = vld [vmem:[%s134 + $0x8] sm:$0xff]
        %v648 = vld [vmem:[%s134 + $0x10] sm:$0xff]
        %652 = vrot.lane.b32.xlu0 %v646, 127
        %v653 = vpop.permute.xlu0 %652
        %654 = vrot.lane.b32.xlu0 %v647, 127
        %v655 = vpop.permute.xlu0 %654
        %656 = vrot.lane.b32.xlu0 %v648, 127
        %v657 = vpop.permute.xlu0 %656
        %661 = vst.msk [vmem:[#allocation2] sm:$0xff] %vm164, %v653
        %662 = vst.msk [vmem:[#allocation2 + $0x8] sm:$0xff] %vm164, %v655
        %663 = vst.msk [vmem:[#allocation2 + $0x10] sm:$0xff] %vm164, %v657
        %v664 = vld [vmem:[%s168] sm:$0xff]
        %v665 = vld [vmem:[%s168 + $0x8] sm:$0xff]
        %v666 = vld [vmem:[%s168 + $0x10] sm:$0xff]
        %670 = vrot.lane.b32.xlu0 %v664, 127
        %v671 = vpop.permute.xlu0 %670
        %672 = vrot.lane.b32.xlu0 %v665, 127
        %v673 = vpop.permute.xlu0 %672
        %674 = vrot.lane.b32.xlu0 %v666, 127
        %v675 = vpop.permute.xlu0 %674
        %679 = vst.msk [vmem:[%s172] sm:$0xff] %vm164, %v671
        %680 = vst.msk [vmem:[%s172 + $0x8] sm:$0xff] %vm164, %v673
        %681 = vst.msk [vmem:[%s172 + $0x10] sm:$0xff] %vm164, %v675
        %v682 = vld [vmem:[%s154] sm:$0xff]
        %v683 = vld [vmem:[%s154 + $0x8] sm:$0xff]
        %v684 = vld [vmem:[%s154 + $0x10] sm:$0xff]
        %688 = vrot.lane.b32.xlu0 %v682, 127
        %v689 = vpop.permute.xlu0 %688
        %690 = vrot.lane.b32.xlu0 %v683, 127
        %v691 = vpop.permute.xlu0 %690
        %692 = vrot.lane.b32.xlu0 %v684, 127
        %v693 = vpop.permute.xlu0 %692
        %697 = vst.msk [vmem:[%s179] sm:$0xff] %vm164, %v689
        %698 = vst.msk [vmem:[%s179 + $0x8] sm:$0xff] %vm164, %v691
        %699 = vst.msk [vmem:[%s179 + $0x10] sm:$0xff] %vm164, %v693
        %v700 = vld [vmem:[#allocation2] sm:$0xff]
        %v701 = vld [vmem:[#allocation2 + $0x8] sm:$0xff]
        %v702 = vld [vmem:[%s172] sm:$0xff]
        %v703 = vld [vmem:[%s172 + $0x8] sm:$0xff]
        %v704 = vld [vmem:[%s179] sm:$0xff]
        %v705 = vld [vmem:[%s179 + $0x8] sm:$0xff]
        %v706 = vsub.f32 %v704, %v192
        %v707 = vsub.f32 %v705, %v194
        %v708 = vmul.f32 %v706, %v202
        %v709 = vmul.f32 %v707, %v204
        %v710 = vand.u32 2147483647, %v708
        %v711 = vand.u32 2147483647, %v709
        %vm712 = vcmp.gt.f32.partialorder %v710, 0.15
        %vm713 = vcmp.gt.f32.partialorder %v711, 0.15
        %v714 = vsel %vm712, 0.0, %v700
        %v715 = vsel %vm713, 0.0, %v701
        %v716 = vsel %vm712, 0.0, %v702
        %v717 = vsel %vm713, 0.0, %v703
        %v718 = vsel %vm712, 0.0, %v704
        %v719 = vsel %vm713, 0.0, %v705
        %v720 = vmul.f32 %v714, %v714
        %v721 = vmul.f32 %v715, %v715
        %v722 = vadd.f32 %v618, %v720
        %v723 = vadd.f32 %v619, %v721
        %v724 = vmul.f32 %v716, %v716
        %v725 = vmul.f32 %v717, %v717
        %v726 = vadd.f32 %v622, %v724
        %v727 = vadd.f32 %v623, %v725
        %v728 = vmul.f32 %v718, %v718
        %v729 = vmul.f32 %v719, %v719
        %v730 = vadd.f32 %v626, %v728
        %v731 = vadd.f32 %v627, %v729
        %v732 = vmul.f32 %v714, %v716
        %v733 = vmul.f32 %v715, %v717
        %v734 = vadd.f32 %v630, %v732
        %v735 = vadd.f32 %v631, %v733
        %v736 = vmul.f32 %v714, %v718
        %v737 = vmul.f32 %v715, %v719
        %v738 = vadd.f32 %v634, %v736
        %v739 = vadd.f32 %v635, %v737
        %v740 = vmul.f32 %v716, %v718
        %v741 = vmul.f32 %v717, %v719
        %v742 = vadd.f32 %v638, %v740
        %v743 = vadd.f32 %v639, %v741
        %v744 = vadd.f32 %v640, %v714
        %v745 = vadd.f32 %v641, %v715
        %v746 = vadd.f32 %v642, %v716
        %v747 = vadd.f32 %v643, %v717
        %v748 = vadd.f32 %v644, %v718
        %v749 = vadd.f32 %v645, %v719
        %v750 = vld [vmem:[#allocation2 + $0x1] sm:$0xff]
        %v751 = vld [vmem:[#allocation2 + $0x9] sm:$0xff]
        %v752 = vld [vmem:[%s172 + $0x1] sm:$0xff]
        %v753 = vld [vmem:[%s172 + $0x9] sm:$0xff]
        %v754 = vld [vmem:[%s179 + $0x1] sm:$0xff]
        %v755 = vld [vmem:[%s179 + $0x9] sm:$0xff]
        %v756 = vsub.f32 %v754, %v192
        %v757 = vsub.f32 %v755, %v194
        %v758 = vmul.f32 %v756, %v202
        %v759 = vmul.f32 %v757, %v204
        %v760 = vand.u32 2147483647, %v758
        %v761 = vand.u32 2147483647, %v759
        %vm762 = vcmp.gt.f32.partialorder %v760, 0.15
        %vm763 = vcmp.gt.f32.partialorder %v761, 0.15
        %v764 = vsel %vm762, 0.0, %v750
        %v765 = vsel %vm763, 0.0, %v751
        %v766 = vsel %vm762, 0.0, %v752
        %v767 = vsel %vm763, 0.0, %v753
        %v768 = vsel %vm762, 0.0, %v754
        %v769 = vsel %vm763, 0.0, %v755
        %v770 = vmul.f32 %v764, %v764
        %v771 = vmul.f32 %v765, %v765
        %v772 = vadd.f32 %v722, %v770
        %v773 = vadd.f32 %v723, %v771
        %v774 = vmul.f32 %v766, %v766
        %v775 = vmul.f32 %v767, %v767
        %v776 = vadd.f32 %v726, %v774
        %v777 = vadd.f32 %v727, %v775
        %v778 = vmul.f32 %v768, %v768
        %v779 = vmul.f32 %v769, %v769
        %v780 = vadd.f32 %v730, %v778
        %v781 = vadd.f32 %v731, %v779
        %v782 = vmul.f32 %v764, %v766
        %v783 = vmul.f32 %v765, %v767
        %v784 = vadd.f32 %v734, %v782
        %v785 = vadd.f32 %v735, %v783
        %v786 = vmul.f32 %v764, %v768
        %v787 = vmul.f32 %v765, %v769
        %v788 = vadd.f32 %v738, %v786
        %v789 = vadd.f32 %v739, %v787
        %v790 = vmul.f32 %v766, %v768
        %v791 = vmul.f32 %v767, %v769
        %v792 = vadd.f32 %v742, %v790
        %v793 = vadd.f32 %v743, %v791
        %v794 = vadd.f32 %v744, %v764
        %v795 = vadd.f32 %v745, %v765
        %v796 = vadd.f32 %v746, %v766
        %v797 = vadd.f32 %v747, %v767
        %v798 = vadd.f32 %v748, %v768
        %v799 = vadd.f32 %v749, %v769
        %v800 = vld [vmem:[#allocation2 + $0x2] sm:$0xff]
        %v801 = vld [vmem:[#allocation2 + $0xa] sm:$0xff]
        %v802 = vld [vmem:[%s172 + $0x2] sm:$0xff]
        %v803 = vld [vmem:[%s172 + $0xa] sm:$0xff]
        %v804 = vld [vmem:[%s179 + $0x2] sm:$0xff]
        %v805 = vld [vmem:[%s179 + $0xa] sm:$0xff]
        %v806 = vsub.f32 %v804, %v192
        %v807 = vsub.f32 %v805, %v194
        %v808 = vmul.f32 %v806, %v202
        %v809 = vmul.f32 %v807, %v204
        %v810 = vand.u32 2147483647, %v808
        %v811 = vand.u32 2147483647, %v809
        %vm812 = vcmp.gt.f32.partialorder %v810, 0.15
        %vm813 = vcmp.gt.f32.partialorder %v811, 0.15
        %v814 = vsel %vm812, 0.0, %v800
        %v815 = vsel %vm813, 0.0, %v801
        %v816 = vsel %vm812, 0.0, %v802
        %v817 = vsel %vm813, 0.0, %v803
        %v818 = vsel %vm812, 0.0, %v804
        %v819 = vsel %vm813, 0.0, %v805
        %v820 = vmul.f32 %v814, %v814
        %v821 = vmul.f32 %v815, %v815
        %v822 = vadd.f32 %v772, %v820
        %v823 = vadd.f32 %v773, %v821
        %v824 = vmul.f32 %v816, %v816
        %v825 = vmul.f32 %v817, %v817
        %v826 = vadd.f32 %v776, %v824
        %v827 = vadd.f32 %v777, %v825
        %v828 = vmul.f32 %v818, %v818
        %v829 = vmul.f32 %v819, %v819
        %v830 = vadd.f32 %v780, %v828
        %v831 = vadd.f32 %v781, %v829
        %v832 = vmul.f32 %v814, %v816
        %v833 = vmul.f32 %v815, %v817
        %v834 = vadd.f32 %v784, %v832
        %v835 = vadd.f32 %v785, %v833
        %v836 = vmul.f32 %v814, %v818
        %v837 = vmul.f32 %v815, %v819
        %v838 = vadd.f32 %v788, %v836
        %v839 = vadd.f32 %v789, %v837
        %v840 = vmul.f32 %v816, %v818
        %v841 = vmul.f32 %v817, %v819
        %v842 = vadd.f32 %v792, %v840
        %v843 = vadd.f32 %v793, %v841
        %v844 = vadd.f32 %v794, %v814
        %v845 = vadd.f32 %v795, %v815
        %v846 = vadd.f32 %v796, %v816
        %v847 = vadd.f32 %v797, %v817
        %v848 = vadd.f32 %v798, %v818
        %v849 = vadd.f32 %v799, %v819
        %v850 = vld [vmem:[#allocation2 + $0x3] sm:$0xff]
        %v851 = vld [vmem:[#allocation2 + $0xb] sm:$0xff]
        %v852 = vld [vmem:[%s172 + $0x3] sm:$0xff]
        %v853 = vld [vmem:[%s172 + $0xb] sm:$0xff]
        %v854 = vld [vmem:[%s179 + $0x3] sm:$0xff]
        %v855 = vld [vmem:[%s179 + $0xb] sm:$0xff]
        %v856 = vsub.f32 %v854, %v192
        %v857 = vsub.f32 %v855, %v194
        %v858 = vmul.f32 %v856, %v202
        %v859 = vmul.f32 %v857, %v204
        %v860 = vand.u32 2147483647, %v858
        %v861 = vand.u32 2147483647, %v859
        %vm862 = vcmp.gt.f32.partialorder %v860, 0.15
        %vm863 = vcmp.gt.f32.partialorder %v861, 0.15
        %v864 = vsel %vm862, 0.0, %v850
        %v865 = vsel %vm863, 0.0, %v851
        %v866 = vsel %vm862, 0.0, %v852
        %v867 = vsel %vm863, 0.0, %v853
        %v868 = vsel %vm862, 0.0, %v854
        %v869 = vsel %vm863, 0.0, %v855
        %v870 = vmul.f32 %v864, %v864
        %v871 = vmul.f32 %v865, %v865
        %v872 = vadd.f32 %v822, %v870
        %v873 = vadd.f32 %v823, %v871
        %v874 = vmul.f32 %v866, %v866
        %v875 = vmul.f32 %v867, %v867
        %v876 = vadd.f32 %v826, %v874
        %v877 = vadd.f32 %v827, %v875
        %v878 = vmul.f32 %v868, %v868
        %v879 = vmul.f32 %v869, %v869
        %v880 = vadd.f32 %v830, %v878
        %v881 = vadd.f32 %v831, %v879
        %v882 = vmul.f32 %v864, %v866
        %v883 = vmul.f32 %v865, %v867
        %v884 = vadd.f32 %v834, %v882
        %v885 = vadd.f32 %v835, %v883
        %v886 = vmul.f32 %v864, %v868
        %v887 = vmul.f32 %v865, %v869
        %v888 = vadd.f32 %v838, %v886
        %v889 = vadd.f32 %v839, %v887
        %v890 = vmul.f32 %v866, %v868
        %v891 = vmul.f32 %v867, %v869
        %v892 = vadd.f32 %v842, %v890
        %v893 = vadd.f32 %v843, %v891
        %v894 = vadd.f32 %v844, %v864
        %v895 = vadd.f32 %v845, %v865
        %v896 = vadd.f32 %v846, %v866
        %v897 = vadd.f32 %v847, %v867
        %v898 = vadd.f32 %v848, %v868
        %v899 = vadd.f32 %v849, %v869
        %v900 = vld [vmem:[#allocation2 + $0x4] sm:$0xff]
        %v901 = vld [vmem:[#allocation2 + $0xc] sm:$0xff]
        %v902 = vld [vmem:[%s172 + $0x4] sm:$0xff]
        %v903 = vld [vmem:[%s172 + $0xc] sm:$0xff]
        %v904 = vld [vmem:[%s179 + $0x4] sm:$0xff]
        %v905 = vld [vmem:[%s179 + $0xc] sm:$0xff]
        %v906 = vsub.f32 %v904, %v192
        %v907 = vsub.f32 %v905, %v194
        %v908 = vmul.f32 %v906, %v202
        %v909 = vmul.f32 %v907, %v204
        %v910 = vand.u32 2147483647, %v908
        %v911 = vand.u32 2147483647, %v909
        %vm912 = vcmp.gt.f32.partialorder %v910, 0.15
        %vm913 = vcmp.gt.f32.partialorder %v911, 0.15
        %v914 = vsel %vm912, 0.0, %v900
        %v915 = vsel %vm913, 0.0, %v901
        %v916 = vsel %vm912, 0.0, %v902
        %v917 = vsel %vm913, 0.0, %v903
        %v918 = vsel %vm912, 0.0, %v904
        %v919 = vsel %vm913, 0.0, %v905
        %v920 = vmul.f32 %v914, %v914
        %v921 = vmul.f32 %v915, %v915
        %v922 = vadd.f32 %v872, %v920
        %v923 = vadd.f32 %v873, %v921
        %v924 = vmul.f32 %v916, %v916
        %v925 = vmul.f32 %v917, %v917
        %v926 = vadd.f32 %v876, %v924
        %v927 = vadd.f32 %v877, %v925
        %v928 = vmul.f32 %v918, %v918
        %v929 = vmul.f32 %v919, %v919
        %v930 = vadd.f32 %v880, %v928
        %v931 = vadd.f32 %v881, %v929
        %v932 = vmul.f32 %v914, %v916
        %v933 = vmul.f32 %v915, %v917
        %v934 = vadd.f32 %v884, %v932
        %v935 = vadd.f32 %v885, %v933
        %v936 = vmul.f32 %v914, %v918
        %v937 = vmul.f32 %v915, %v919
        %v938 = vadd.f32 %v888, %v936
        %v939 = vadd.f32 %v889, %v937
        %v940 = vmul.f32 %v916, %v918
        %v941 = vmul.f32 %v917, %v919
        %v942 = vadd.f32 %v892, %v940
        %v943 = vadd.f32 %v893, %v941
        %v944 = vadd.f32 %v894, %v914
        %v945 = vadd.f32 %v895, %v915
        %v946 = vadd.f32 %v896, %v916
        %v947 = vadd.f32 %v897, %v917
        %v948 = vadd.f32 %v898, %v918
        %v949 = vadd.f32 %v899, %v919
        %v950 = vld [vmem:[#allocation2 + $0x5] sm:$0xff]
        %v951 = vld [vmem:[#allocation2 + $0xd] sm:$0xff]
        %v952 = vld [vmem:[%s172 + $0x5] sm:$0xff]
        %v953 = vld [vmem:[%s172 + $0xd] sm:$0xff]
        %v954 = vld [vmem:[%s179 + $0x5] sm:$0xff]
        %v955 = vld [vmem:[%s179 + $0xd] sm:$0xff]
        %v956 = vsub.f32 %v954, %v192
        %v957 = vsub.f32 %v955, %v194
        %v958 = vmul.f32 %v956, %v202
        %v959 = vmul.f32 %v957, %v204
        %v960 = vand.u32 2147483647, %v958
        %v961 = vand.u32 2147483647, %v959
        %vm962 = vcmp.gt.f32.partialorder %v960, 0.15
        %vm963 = vcmp.gt.f32.partialorder %v961, 0.15
        %v964 = vsel %vm962, 0.0, %v950
        %v965 = vsel %vm963, 0.0, %v951
        %v966 = vsel %vm962, 0.0, %v952
        %v967 = vsel %vm963, 0.0, %v953
        %v968 = vsel %vm962, 0.0, %v954
        %v969 = vsel %vm963, 0.0, %v955
        %v970 = vmul.f32 %v964, %v964
        %v971 = vmul.f32 %v965, %v965
        %v972 = vadd.f32 %v922, %v970
        %v973 = vadd.f32 %v923, %v971
        %v974 = vmul.f32 %v966, %v966
        %v975 = vmul.f32 %v967, %v967
        %v976 = vadd.f32 %v926, %v974
        %v977 = vadd.f32 %v927, %v975
        %v978 = vmul.f32 %v968, %v968
        %v979 = vmul.f32 %v969, %v969
        %v980 = vadd.f32 %v930, %v978
        %v981 = vadd.f32 %v931, %v979
        %v982 = vmul.f32 %v964, %v966
        %v983 = vmul.f32 %v965, %v967
        %v984 = vadd.f32 %v934, %v982
        %v985 = vadd.f32 %v935, %v983
        %v986 = vmul.f32 %v964, %v968
        %v987 = vmul.f32 %v965, %v969
        %v988 = vadd.f32 %v938, %v986
        %v989 = vadd.f32 %v939, %v987
        %v990 = vmul.f32 %v966, %v968
        %v991 = vmul.f32 %v967, %v969
        %v992 = vadd.f32 %v942, %v990
        %v993 = vadd.f32 %v943, %v991
        %v994 = vadd.f32 %v944, %v964
        %v995 = vadd.f32 %v945, %v965
        %v996 = vadd.f32 %v946, %v966
        %v997 = vadd.f32 %v947, %v967
        %v998 = vadd.f32 %v948, %v968
        %v999 = vadd.f32 %v949, %v969
        %v1000 = vld [vmem:[#allocation2 + $0x6] sm:$0xff]
        %v1001 = vld [vmem:[#allocation2 + $0xe] sm:$0xff]
        %v1002 = vld [vmem:[%s172 + $0x6] sm:$0xff]
        %v1003 = vld [vmem:[%s172 + $0xe] sm:$0xff]
        %v1004 = vld [vmem:[%s179 + $0x6] sm:$0xff]
        %v1005 = vld [vmem:[%s179 + $0xe] sm:$0xff]
        %v1006 = vsub.f32 %v1004, %v192
        %v1007 = vsub.f32 %v1005, %v194
        %v1008 = vmul.f32 %v1006, %v202
        %v1009 = vmul.f32 %v1007, %v204
        %v1010 = vand.u32 2147483647, %v1008
        %v1011 = vand.u32 2147483647, %v1009
        %vm1012 = vcmp.gt.f32.partialorder %v1010, 0.15
        %vm1013 = vcmp.gt.f32.partialorder %v1011, 0.15
        %v1014 = vsel %vm1012, 0.0, %v1000
        %v1015 = vsel %vm1013, 0.0, %v1001
        %v1016 = vsel %vm1012, 0.0, %v1002
        %v1017 = vsel %vm1013, 0.0, %v1003
        %v1018 = vsel %vm1012, 0.0, %v1004
        %v1019 = vsel %vm1013, 0.0, %v1005
        %v1020 = vmul.f32 %v1014, %v1014
        %v1021 = vmul.f32 %v1015, %v1015
        %v1022 = vadd.f32 %v972, %v1020
        %v1023 = vadd.f32 %v973, %v1021
        %v1024 = vmul.f32 %v1016, %v1016
        %v1025 = vmul.f32 %v1017, %v1017
        %v1026 = vadd.f32 %v976, %v1024
        %v1027 = vadd.f32 %v977, %v1025
        %v1028 = vmul.f32 %v1018, %v1018
        %v1029 = vmul.f32 %v1019, %v1019
        %v1030 = vadd.f32 %v980, %v1028
        %v1031 = vadd.f32 %v981, %v1029
        %v1032 = vmul.f32 %v1014, %v1016
        %v1033 = vmul.f32 %v1015, %v1017
        %v1034 = vadd.f32 %v984, %v1032
        %v1035 = vadd.f32 %v985, %v1033
        %v1036 = vmul.f32 %v1014, %v1018
        %v1037 = vmul.f32 %v1015, %v1019
        %v1038 = vadd.f32 %v988, %v1036
        %v1039 = vadd.f32 %v989, %v1037
        %v1040 = vmul.f32 %v1016, %v1018
        %v1041 = vmul.f32 %v1017, %v1019
        %v1042 = vadd.f32 %v992, %v1040
        %v1043 = vadd.f32 %v993, %v1041
        %v1044 = vadd.f32 %v994, %v1014
        %v1045 = vadd.f32 %v995, %v1015
        %v1046 = vadd.f32 %v996, %v1016
        %v1047 = vadd.f32 %v997, %v1017
        %v1048 = vadd.f32 %v998, %v1018
        %v1049 = vadd.f32 %v999, %v1019
        %v1050 = vld [vmem:[#allocation2 + $0x7] sm:$0xff]
        %v1051 = vld [vmem:[#allocation2 + $0xf] sm:$0xff]
        %v1052 = vld [vmem:[%s172 + $0x7] sm:$0xff]
        %v1053 = vld [vmem:[%s172 + $0xf] sm:$0xff]
        %v1054 = vld [vmem:[%s179 + $0x7] sm:$0xff]
        %v1055 = vld [vmem:[%s179 + $0xf] sm:$0xff]
        %v1056 = vsub.f32 %v1054, %v192
        %v1057 = vsub.f32 %v1055, %v194
        %v1058 = vmul.f32 %v1056, %v202
        %v1059 = vmul.f32 %v1057, %v204
        %v1060 = vand.u32 2147483647, %v1058
        %v1061 = vand.u32 2147483647, %v1059
        %vm1062 = vcmp.gt.f32.partialorder %v1060, 0.15
        %vm1063 = vcmp.gt.f32.partialorder %v1061, 0.15
        %v1064 = vsel %vm1062, 0.0, %v1050
        %v1065 = vsel %vm1063, 0.0, %v1051
        %v1066 = vsel %vm1062, 0.0, %v1052
        %v1067 = vsel %vm1063, 0.0, %v1053
        %v1068 = vsel %vm1062, 0.0, %v1054
        %v1069 = vsel %vm1063, 0.0, %v1055
        %v1070 = vmul.f32 %v1064, %v1064
        %v1071 = vmul.f32 %v1065, %v1065
        %v1072 = vadd.f32 %v1022, %v1070
        %v1073 = vadd.f32 %v1023, %v1071
        %v1074 = vmul.f32 %v1066, %v1066
        %v1075 = vmul.f32 %v1067, %v1067
        %v1076 = vadd.f32 %v1026, %v1074
        %v1077 = vadd.f32 %v1027, %v1075
        %v1078 = vmul.f32 %v1068, %v1068
        %v1079 = vmul.f32 %v1069, %v1069
        %v1080 = vadd.f32 %v1030, %v1078
        %v1081 = vadd.f32 %v1031, %v1079
        %v1082 = vmul.f32 %v1064, %v1066
        %v1083 = vmul.f32 %v1065, %v1067
        %v1084 = vadd.f32 %v1034, %v1082
        %v1085 = vadd.f32 %v1035, %v1083
        %v1086 = vmul.f32 %v1064, %v1068
        %v1087 = vmul.f32 %v1065, %v1069
        %v1088 = vadd.f32 %v1038, %v1086
        %v1089 = vadd.f32 %v1039, %v1087
        %v1090 = vmul.f32 %v1066, %v1068
        %v1091 = vmul.f32 %v1067, %v1069
        %v1092 = vadd.f32 %v1042, %v1090
        %v1093 = vadd.f32 %v1043, %v1091
        %v1094 = vadd.f32 %v1044, %v1064
        %v1095 = vadd.f32 %v1045, %v1065
        %v1096 = vadd.f32 %v1046, %v1066
        %v1097 = vadd.f32 %v1047, %v1067
        %v1098 = vadd.f32 %v1048, %v1068
        %v1099 = vadd.f32 %v1049, %v1069
        %v1100 = vld [vmem:[#allocation2 + $0x10] sm:$0xff]
        %v1101 = vld [vmem:[%s172 + $0x10] sm:$0xff]
        %v1102 = vld [vmem:[%s179 + $0x10] sm:$0xff]
        %v1103 = vsub.f32 %v705, %v192
        %v1104 = vsub.f32 %v1102, %v194
        %v1105 = vmul.f32 %v1103, %v202
        %v1106 = vmul.f32 %v1104, %v204
        %v1107 = vand.u32 2147483647, %v1105
        %v1108 = vand.u32 2147483647, %v1106
        %vm1109 = vcmp.gt.f32.partialorder %v1107, 0.15
        %vm1110 = vcmp.gt.f32.partialorder %v1108, 0.15
        %v1111 = vsel %vm1109, 0.0, %v701
        %v1112 = vsel %vm1110, 0.0, %v1100
        %v1113 = vsel %vm1109, 0.0, %v703
        %v1114 = vsel %vm1110, 0.0, %v1101
        %v1115 = vsel %vm1109, 0.0, %v705
        %v1116 = vsel %vm1110, 0.0, %v1102
        %v1117 = vmul.f32 %v1111, %v1111
        %v1118 = vmul.f32 %v1112, %v1112
        %v1119 = vadd.f32 %v1072, %v1117
        %v1120 = vadd.f32 %v1073, %v1118
        %v1121 = vmul.f32 %v1113, %v1113
        %v1122 = vmul.f32 %v1114, %v1114
        %v1123 = vadd.f32 %v1076, %v1121
        %v1124 = vadd.f32 %v1077, %v1122
        %v1125 = vmul.f32 %v1115, %v1115
        %v1126 = vmul.f32 %v1116, %v1116
        %v1127 = vadd.f32 %v1080, %v1125
        %v1128 = vadd.f32 %v1081, %v1126
        %v1129 = vmul.f32 %v1111, %v1113
        %v1130 = vmul.f32 %v1112, %v1114
        %v1131 = vadd.f32 %v1084, %v1129
        %v1132 = vadd.f32 %v1085, %v1130
        %v1133 = vmul.f32 %v1111, %v1115
        %v1134 = vmul.f32 %v1112, %v1116
        %v1135 = vadd.f32 %v1088, %v1133
        %v1136 = vadd.f32 %v1089, %v1134
        %v1137 = vmul.f32 %v1113, %v1115
        %v1138 = vmul.f32 %v1114, %v1116
        %v1139 = vadd.f32 %v1092, %v1137
        %v1140 = vadd.f32 %v1093, %v1138
        %v1141 = vadd.f32 %v1094, %v1111
        %v1142 = vadd.f32 %v1095, %v1112
        %v1143 = vadd.f32 %v1096, %v1113
        %v1144 = vadd.f32 %v1097, %v1114
        %v1145 = vadd.f32 %v1098, %v1115
        %v1146 = vadd.f32 %v1099, %v1116
        %v1147 = vld [vmem:[%s134] sm:$0xff]
        %v1148 = vld [vmem:[%s134 + $0x8] sm:$0xff]
        %v1149 = vld [vmem:[%s134 + $0x10] sm:$0xff]
        %1153 = vrot.lane.b32.xlu0 %v1147, 126
        %v1154 = vpop.permute.xlu0 %1153
        %1155 = vrot.lane.b32.xlu0 %v1148, 126
        %v1156 = vpop.permute.xlu0 %1155
        %1157 = vrot.lane.b32.xlu0 %v1149, 126
        %v1158 = vpop.permute.xlu0 %1157
        %1162 = vst.msk [vmem:[#allocation2] sm:$0xff] %vm164, %v1154
        %1163 = vst.msk [vmem:[#allocation2 + $0x8] sm:$0xff] %vm164, %v1156
        %1164 = vst.msk [vmem:[#allocation2 + $0x10] sm:$0xff] %vm164, %v1158
        %v1165 = vld [vmem:[%s168] sm:$0xff]
        %v1166 = vld [vmem:[%s168 + $0x8] sm:$0xff]
        %v1167 = vld [vmem:[%s168 + $0x10] sm:$0xff]
        %1171 = vrot.lane.b32.xlu0 %v1165, 126
        %v1172 = vpop.permute.xlu0 %1171
        %1173 = vrot.lane.b32.xlu0 %v1166, 126
        %v1174 = vpop.permute.xlu0 %1173
        %1175 = vrot.lane.b32.xlu0 %v1167, 126
        %v1176 = vpop.permute.xlu0 %1175
        %1180 = vst.msk [vmem:[%s172] sm:$0xff] %vm164, %v1172
        %1181 = vst.msk [vmem:[%s172 + $0x8] sm:$0xff] %vm164, %v1174
        %1182 = vst.msk [vmem:[%s172 + $0x10] sm:$0xff] %vm164, %v1176
        %v1183 = vld [vmem:[%s154] sm:$0xff]
        %v1184 = vld [vmem:[%s154 + $0x8] sm:$0xff]
        %v1185 = vld [vmem:[%s154 + $0x10] sm:$0xff]
        %1189 = vrot.lane.b32.xlu0 %v1183, 126
        %v1190 = vpop.permute.xlu0 %1189
        %1191 = vrot.lane.b32.xlu0 %v1184, 126
        %v1192 = vpop.permute.xlu0 %1191
        %1193 = vrot.lane.b32.xlu0 %v1185, 126
        %v1194 = vpop.permute.xlu0 %1193
        %1198 = vst.msk [vmem:[%s179] sm:$0xff] %vm164, %v1190
        %1199 = vst.msk [vmem:[%s179 + $0x8] sm:$0xff] %vm164, %v1192
        %1200 = vst.msk [vmem:[%s179 + $0x10] sm:$0xff] %vm164, %v1194
        %v1201 = vld [vmem:[#allocation2] sm:$0xff]
        %v1202 = vld [vmem:[#allocation2 + $0x8] sm:$0xff]
        %v1203 = vld [vmem:[%s172] sm:$0xff]
        %v1204 = vld [vmem:[%s172 + $0x8] sm:$0xff]
        %v1205 = vld [vmem:[%s179] sm:$0xff]
        %v1206 = vld [vmem:[%s179 + $0x8] sm:$0xff]
        %v1207 = vsub.f32 %v1205, %v192
        %v1208 = vsub.f32 %v1206, %v194
        %v1209 = vmul.f32 %v1207, %v202
        %v1210 = vmul.f32 %v1208, %v204
        %v1211 = vand.u32 2147483647, %v1209
        %v1212 = vand.u32 2147483647, %v1210
        %vm1213 = vcmp.gt.f32.partialorder %v1211, 0.15
        %vm1214 = vcmp.gt.f32.partialorder %v1212, 0.15
        %v1215 = vsel %vm1213, 0.0, %v1201
        %v1216 = vsel %vm1214, 0.0, %v1202
        %v1217 = vsel %vm1213, 0.0, %v1203
        %v1218 = vsel %vm1214, 0.0, %v1204
        %v1219 = vsel %vm1213, 0.0, %v1205
        %v1220 = vsel %vm1214, 0.0, %v1206
        %v1221 = vmul.f32 %v1215, %v1215
        %v1222 = vmul.f32 %v1216, %v1216
        %v1223 = vadd.f32 %v1119, %v1221
        %v1224 = vadd.f32 %v1120, %v1222
        %v1225 = vmul.f32 %v1217, %v1217
        %v1226 = vmul.f32 %v1218, %v1218
        %v1227 = vadd.f32 %v1123, %v1225
        %v1228 = vadd.f32 %v1124, %v1226
        %v1229 = vmul.f32 %v1219, %v1219
        %v1230 = vmul.f32 %v1220, %v1220
        %v1231 = vadd.f32 %v1127, %v1229
        %v1232 = vadd.f32 %v1128, %v1230
        %v1233 = vmul.f32 %v1215, %v1217
        %v1234 = vmul.f32 %v1216, %v1218
        %v1235 = vadd.f32 %v1131, %v1233
        %v1236 = vadd.f32 %v1132, %v1234
        %v1237 = vmul.f32 %v1215, %v1219
        %v1238 = vmul.f32 %v1216, %v1220
        %v1239 = vadd.f32 %v1135, %v1237
        %v1240 = vadd.f32 %v1136, %v1238
        %v1241 = vmul.f32 %v1217, %v1219
        %v1242 = vmul.f32 %v1218, %v1220
        %v1243 = vadd.f32 %v1139, %v1241
        %v1244 = vadd.f32 %v1140, %v1242
        %v1245 = vadd.f32 %v1141, %v1215
        %v1246 = vadd.f32 %v1142, %v1216
        %v1247 = vadd.f32 %v1143, %v1217
        %v1248 = vadd.f32 %v1144, %v1218
        %v1249 = vadd.f32 %v1145, %v1219
        %v1250 = vadd.f32 %v1146, %v1220
        %v1251 = vld [vmem:[#allocation2 + $0x1] sm:$0xff]
        %v1252 = vld [vmem:[#allocation2 + $0x9] sm:$0xff]
        %v1253 = vld [vmem:[%s172 + $0x1] sm:$0xff]
        %v1254 = vld [vmem:[%s172 + $0x9] sm:$0xff]
        %v1255 = vld [vmem:[%s179 + $0x1] sm:$0xff]
        %v1256 = vld [vmem:[%s179 + $0x9] sm:$0xff]
        %v1257 = vsub.f32 %v1255, %v192
        %v1258 = vsub.f32 %v1256, %v194
        %v1259 = vmul.f32 %v1257, %v202
        %v1260 = vmul.f32 %v1258, %v204
        %v1261 = vand.u32 2147483647, %v1259
        %v1262 = vand.u32 2147483647, %v1260
        %vm1263 = vcmp.gt.f32.partialorder %v1261, 0.15
        %vm1264 = vcmp.gt.f32.partialorder %v1262, 0.15
        %v1265 = vsel %vm1263, 0.0, %v1251
        %v1266 = vsel %vm1264, 0.0, %v1252
        %v1267 = vsel %vm1263, 0.0, %v1253
        %v1268 = vsel %vm1264, 0.0, %v1254
        %v1269 = vsel %vm1263, 0.0, %v1255
        %v1270 = vsel %vm1264, 0.0, %v1256
        %v1271 = vmul.f32 %v1265, %v1265
        %v1272 = vmul.f32 %v1266, %v1266
        %v1273 = vadd.f32 %v1223, %v1271
        %v1274 = vadd.f32 %v1224, %v1272
        %v1275 = vmul.f32 %v1267, %v1267
        %v1276 = vmul.f32 %v1268, %v1268
        %v1277 = vadd.f32 %v1227, %v1275
        %v1278 = vadd.f32 %v1228, %v1276
        %v1279 = vmul.f32 %v1269, %v1269
        %v1280 = vmul.f32 %v1270, %v1270
        %v1281 = vadd.f32 %v1231, %v1279
        %v1282 = vadd.f32 %v1232, %v1280
        %v1283 = vmul.f32 %v1265, %v1267
        %v1284 = vmul.f32 %v1266, %v1268
        %v1285 = vadd.f32 %v1235, %v1283
        %v1286 = vadd.f32 %v1236, %v1284
        %v1287 = vmul.f32 %v1265, %v1269
        %v1288 = vmul.f32 %v1266, %v1270
        %v1289 = vadd.f32 %v1239, %v1287
        %v1290 = vadd.f32 %v1240, %v1288
        %v1291 = vmul.f32 %v1267, %v1269
        %v1292 = vmul.f32 %v1268, %v1270
        %v1293 = vadd.f32 %v1243, %v1291
        %v1294 = vadd.f32 %v1244, %v1292
        %v1295 = vadd.f32 %v1245, %v1265
        %v1296 = vadd.f32 %v1246, %v1266
        %v1297 = vadd.f32 %v1247, %v1267
        %v1298 = vadd.f32 %v1248, %v1268
        %v1299 = vadd.f32 %v1249, %v1269
        %v1300 = vadd.f32 %v1250, %v1270
        %v1301 = vld [vmem:[#allocation2 + $0x2] sm:$0xff]
        %v1302 = vld [vmem:[#allocation2 + $0xa] sm:$0xff]
        %v1303 = vld [vmem:[%s172 + $0x2] sm:$0xff]
        %v1304 = vld [vmem:[%s172 + $0xa] sm:$0xff]
        %v1305 = vld [vmem:[%s179 + $0x2] sm:$0xff]
        %v1306 = vld [vmem:[%s179 + $0xa] sm:$0xff]
        %v1307 = vsub.f32 %v1305, %v192
        %v1308 = vsub.f32 %v1306, %v194
        %v1309 = vmul.f32 %v1307, %v202
        %v1310 = vmul.f32 %v1308, %v204
        %v1311 = vand.u32 2147483647, %v1309
        %v1312 = vand.u32 2147483647, %v1310
        %vm1313 = vcmp.gt.f32.partialorder %v1311, 0.15
        %vm1314 = vcmp.gt.f32.partialorder %v1312, 0.15
        %v1315 = vsel %vm1313, 0.0, %v1301
        %v1316 = vsel %vm1314, 0.0, %v1302
        %v1317 = vsel %vm1313, 0.0, %v1303
        %v1318 = vsel %vm1314, 0.0, %v1304
        %v1319 = vsel %vm1313, 0.0, %v1305
        %v1320 = vsel %vm1314, 0.0, %v1306
        %v1321 = vmul.f32 %v1315, %v1315
        %v1322 = vmul.f32 %v1316, %v1316
        %v1323 = vadd.f32 %v1273, %v1321
        %v1324 = vadd.f32 %v1274, %v1322
        %v1325 = vmul.f32 %v1317, %v1317
        %v1326 = vmul.f32 %v1318, %v1318
        %v1327 = vadd.f32 %v1277, %v1325
        %v1328 = vadd.f32 %v1278, %v1326
        %v1329 = vmul.f32 %v1319, %v1319
        %v1330 = vmul.f32 %v1320, %v1320
        %v1331 = vadd.f32 %v1281, %v1329
        %v1332 = vadd.f32 %v1282, %v1330
        %v1333 = vmul.f32 %v1315, %v1317
        %v1334 = vmul.f32 %v1316, %v1318
        %v1335 = vadd.f32 %v1285, %v1333
        %v1336 = vadd.f32 %v1286, %v1334
        %v1337 = vmul.f32 %v1315, %v1319
        %v1338 = vmul.f32 %v1316, %v1320
        %v1339 = vadd.f32 %v1289, %v1337
        %v1340 = vadd.f32 %v1290, %v1338
        %v1341 = vmul.f32 %v1317, %v1319
        %v1342 = vmul.f32 %v1318, %v1320
        %v1343 = vadd.f32 %v1293, %v1341
        %v1344 = vadd.f32 %v1294, %v1342
        %v1345 = vadd.f32 %v1295, %v1315
        %v1346 = vadd.f32 %v1296, %v1316
        %v1347 = vadd.f32 %v1297, %v1317
        %v1348 = vadd.f32 %v1298, %v1318
        %v1349 = vadd.f32 %v1299, %v1319
        %v1350 = vadd.f32 %v1300, %v1320
        %v1351 = vld [vmem:[#allocation2 + $0x3] sm:$0xff]
        %v1352 = vld [vmem:[#allocation2 + $0xb] sm:$0xff]
        %v1353 = vld [vmem:[%s172 + $0x3] sm:$0xff]
        %v1354 = vld [vmem:[%s172 + $0xb] sm:$0xff]
        %v1355 = vld [vmem:[%s179 + $0x3] sm:$0xff]
        %v1356 = vld [vmem:[%s179 + $0xb] sm:$0xff]
        %v1357 = vsub.f32 %v1355, %v192
        %v1358 = vsub.f32 %v1356, %v194
        %v1359 = vmul.f32 %v1357, %v202
        %v1360 = vmul.f32 %v1358, %v204
        %v1361 = vand.u32 2147483647, %v1359
        %v1362 = vand.u32 2147483647, %v1360
        %vm1363 = vcmp.gt.f32.partialorder %v1361, 0.15
        %vm1364 = vcmp.gt.f32.partialorder %v1362, 0.15
        %v1365 = vsel %vm1363, 0.0, %v1351
        %v1366 = vsel %vm1364, 0.0, %v1352
        %v1367 = vsel %vm1363, 0.0, %v1353
        %v1368 = vsel %vm1364, 0.0, %v1354
        %v1369 = vsel %vm1363, 0.0, %v1355
        %v1370 = vsel %vm1364, 0.0, %v1356
        %v1371 = vmul.f32 %v1365, %v1365
        %v1372 = vmul.f32 %v1366, %v1366
        %v1373 = vadd.f32 %v1323, %v1371
        %v1374 = vadd.f32 %v1324, %v1372
        %v1375 = vmul.f32 %v1367, %v1367
        %v1376 = vmul.f32 %v1368, %v1368
        %v1377 = vadd.f32 %v1327, %v1375
        %v1378 = vadd.f32 %v1328, %v1376
        %v1379 = vmul.f32 %v1369, %v1369
        %v1380 = vmul.f32 %v1370, %v1370
        %v1381 = vadd.f32 %v1331, %v1379
        %v1382 = vadd.f32 %v1332, %v1380
        %v1383 = vmul.f32 %v1365, %v1367
        %v1384 = vmul.f32 %v1366, %v1368
        %v1385 = vadd.f32 %v1335, %v1383
        %v1386 = vadd.f32 %v1336, %v1384
        %v1387 = vmul.f32 %v1365, %v1369
        %v1388 = vmul.f32 %v1366, %v1370
        %v1389 = vadd.f32 %v1339, %v1387
        %v1390 = vadd.f32 %v1340, %v1388
        %v1391 = vmul.f32 %v1367, %v1369
        %v1392 = vmul.f32 %v1368, %v1370
        %v1393 = vadd.f32 %v1343, %v1391
        %v1394 = vadd.f32 %v1344, %v1392
        %v1395 = vadd.f32 %v1345, %v1365
        %v1396 = vadd.f32 %v1346, %v1366
        %v1397 = vadd.f32 %v1347, %v1367
        %v1398 = vadd.f32 %v1348, %v1368
        %v1399 = vadd.f32 %v1349, %v1369
        %v1400 = vadd.f32 %v1350, %v1370
        %v1401 = vld [vmem:[#allocation2 + $0x4] sm:$0xff]
        %v1402 = vld [vmem:[#allocation2 + $0xc] sm:$0xff]
        %v1403 = vld [vmem:[%s172 + $0x4] sm:$0xff]
        %v1404 = vld [vmem:[%s172 + $0xc] sm:$0xff]
        %v1405 = vld [vmem:[%s179 + $0x4] sm:$0xff]
        %v1406 = vld [vmem:[%s179 + $0xc] sm:$0xff]
        %v1407 = vsub.f32 %v1405, %v192
        %v1408 = vsub.f32 %v1406, %v194
        %v1409 = vmul.f32 %v1407, %v202
        %v1410 = vmul.f32 %v1408, %v204
        %v1411 = vand.u32 2147483647, %v1409
        %v1412 = vand.u32 2147483647, %v1410
        %vm1413 = vcmp.gt.f32.partialorder %v1411, 0.15
        %vm1414 = vcmp.gt.f32.partialorder %v1412, 0.15
        %v1415 = vsel %vm1413, 0.0, %v1401
        %v1416 = vsel %vm1414, 0.0, %v1402
        %v1417 = vsel %vm1413, 0.0, %v1403
        %v1418 = vsel %vm1414, 0.0, %v1404
        %v1419 = vsel %vm1413, 0.0, %v1405
        %v1420 = vsel %vm1414, 0.0, %v1406
        %v1421 = vmul.f32 %v1415, %v1415
        %v1422 = vmul.f32 %v1416, %v1416
        %v1423 = vadd.f32 %v1373, %v1421
        %v1424 = vadd.f32 %v1374, %v1422
        %v1425 = vmul.f32 %v1417, %v1417
        %v1426 = vmul.f32 %v1418, %v1418
        %v1427 = vadd.f32 %v1377, %v1425
        %v1428 = vadd.f32 %v1378, %v1426
        %v1429 = vmul.f32 %v1419, %v1419
        %v1430 = vmul.f32 %v1420, %v1420
        %v1431 = vadd.f32 %v1381, %v1429
        %v1432 = vadd.f32 %v1382, %v1430
        %v1433 = vmul.f32 %v1415, %v1417
        %v1434 = vmul.f32 %v1416, %v1418
        %v1435 = vadd.f32 %v1385, %v1433
        %v1436 = vadd.f32 %v1386, %v1434
        %v1437 = vmul.f32 %v1415, %v1419
        %v1438 = vmul.f32 %v1416, %v1420
        %v1439 = vadd.f32 %v1389, %v1437
        %v1440 = vadd.f32 %v1390, %v1438
        %v1441 = vmul.f32 %v1417, %v1419
        %v1442 = vmul.f32 %v1418, %v1420
        %v1443 = vadd.f32 %v1393, %v1441
        %v1444 = vadd.f32 %v1394, %v1442
        %v1445 = vadd.f32 %v1395, %v1415
        %v1446 = vadd.f32 %v1396, %v1416
        %v1447 = vadd.f32 %v1397, %v1417
        %v1448 = vadd.f32 %v1398, %v1418
        %v1449 = vadd.f32 %v1399, %v1419
        %v1450 = vadd.f32 %v1400, %v1420
        %v1451 = vld [vmem:[#allocation2 + $0x5] sm:$0xff]
        %v1452 = vld [vmem:[#allocation2 + $0xd] sm:$0xff]
        %v1453 = vld [vmem:[%s172 + $0x5] sm:$0xff]
        %v1454 = vld [vmem:[%s172 + $0xd] sm:$0xff]
        %v1455 = vld [vmem:[%s179 + $0x5] sm:$0xff]
        %v1456 = vld [vmem:[%s179 + $0xd] sm:$0xff]
        %v1457 = vsub.f32 %v1455, %v192
        %v1458 = vsub.f32 %v1456, %v194
        %v1459 = vmul.f32 %v1457, %v202
        %v1460 = vmul.f32 %v1458, %v204
        %v1461 = vand.u32 2147483647, %v1459
        %v1462 = vand.u32 2147483647, %v1460
        %vm1463 = vcmp.gt.f32.partialorder %v1461, 0.15
        %vm1464 = vcmp.gt.f32.partialorder %v1462, 0.15
        %v1465 = vsel %vm1463, 0.0, %v1451
        %v1466 = vsel %vm1464, 0.0, %v1452
        %v1467 = vsel %vm1463, 0.0, %v1453
        %v1468 = vsel %vm1464, 0.0, %v1454
        %v1469 = vsel %vm1463, 0.0, %v1455
        %v1470 = vsel %vm1464, 0.0, %v1456
        %v1471 = vmul.f32 %v1465, %v1465
        %v1472 = vmul.f32 %v1466, %v1466
        %v1473 = vadd.f32 %v1423, %v1471
        %v1474 = vadd.f32 %v1424, %v1472
        %v1475 = vmul.f32 %v1467, %v1467
        %v1476 = vmul.f32 %v1468, %v1468
        %v1477 = vadd.f32 %v1427, %v1475
        %v1478 = vadd.f32 %v1428, %v1476
        %v1479 = vmul.f32 %v1469, %v1469
        %v1480 = vmul.f32 %v1470, %v1470
        %v1481 = vadd.f32 %v1431, %v1479
        %v1482 = vadd.f32 %v1432, %v1480
        %v1483 = vmul.f32 %v1465, %v1467
        %v1484 = vmul.f32 %v1466, %v1468
        %v1485 = vadd.f32 %v1435, %v1483
        %v1486 = vadd.f32 %v1436, %v1484
        %v1487 = vmul.f32 %v1465, %v1469
        %v1488 = vmul.f32 %v1466, %v1470
        %v1489 = vadd.f32 %v1439, %v1487
        %v1490 = vadd.f32 %v1440, %v1488
        %v1491 = vmul.f32 %v1467, %v1469
        %v1492 = vmul.f32 %v1468, %v1470
        %v1493 = vadd.f32 %v1443, %v1491
        %v1494 = vadd.f32 %v1444, %v1492
        %v1495 = vadd.f32 %v1445, %v1465
        %v1496 = vadd.f32 %v1446, %v1466
        %v1497 = vadd.f32 %v1447, %v1467
        %v1498 = vadd.f32 %v1448, %v1468
        %v1499 = vadd.f32 %v1449, %v1469
        %v1500 = vadd.f32 %v1450, %v1470
        %v1501 = vld [vmem:[#allocation2 + $0x6] sm:$0xff]
        %v1502 = vld [vmem:[#allocation2 + $0xe] sm:$0xff]
        %v1503 = vld [vmem:[%s172 + $0x6] sm:$0xff]
        %v1504 = vld [vmem:[%s172 + $0xe] sm:$0xff]
        %v1505 = vld [vmem:[%s179 + $0x6] sm:$0xff]
        %v1506 = vld [vmem:[%s179 + $0xe] sm:$0xff]
        %v1507 = vsub.f32 %v1505, %v192
        %v1508 = vsub.f32 %v1506, %v194
        %v1509 = vmul.f32 %v1507, %v202
        %v1510 = vmul.f32 %v1508, %v204
        %v1511 = vand.u32 2147483647, %v1509
        %v1512 = vand.u32 2147483647, %v1510
        %vm1513 = vcmp.gt.f32.partialorder %v1511, 0.15
        %vm1514 = vcmp.gt.f32.partialorder %v1512, 0.15
        %v1515 = vsel %vm1513, 0.0, %v1501
        %v1516 = vsel %vm1514, 0.0, %v1502
        %v1517 = vsel %vm1513, 0.0, %v1503
        %v1518 = vsel %vm1514, 0.0, %v1504
        %v1519 = vsel %vm1513, 0.0, %v1505
        %v1520 = vsel %vm1514, 0.0, %v1506
        %v1521 = vmul.f32 %v1515, %v1515
        %v1522 = vmul.f32 %v1516, %v1516
        %v1523 = vadd.f32 %v1473, %v1521
        %v1524 = vadd.f32 %v1474, %v1522
        %v1525 = vmul.f32 %v1517, %v1517
        %v1526 = vmul.f32 %v1518, %v1518
        %v1527 = vadd.f32 %v1477, %v1525
        %v1528 = vadd.f32 %v1478, %v1526
        %v1529 = vmul.f32 %v1519, %v1519
        %v1530 = vmul.f32 %v1520, %v1520
        %v1531 = vadd.f32 %v1481, %v1529
        %v1532 = vadd.f32 %v1482, %v1530
        %v1533 = vmul.f32 %v1515, %v1517
        %v1534 = vmul.f32 %v1516, %v1518
        %v1535 = vadd.f32 %v1485, %v1533
        %v1536 = vadd.f32 %v1486, %v1534
        %v1537 = vmul.f32 %v1515, %v1519
        %v1538 = vmul.f32 %v1516, %v1520
        %v1539 = vadd.f32 %v1489, %v1537
        %v1540 = vadd.f32 %v1490, %v1538
        %v1541 = vmul.f32 %v1517, %v1519
        %v1542 = vmul.f32 %v1518, %v1520
        %v1543 = vadd.f32 %v1493, %v1541
        %v1544 = vadd.f32 %v1494, %v1542
        %v1545 = vadd.f32 %v1495, %v1515
        %v1546 = vadd.f32 %v1496, %v1516
        %v1547 = vadd.f32 %v1497, %v1517
        %v1548 = vadd.f32 %v1498, %v1518
        %v1549 = vadd.f32 %v1499, %v1519
        %v1550 = vadd.f32 %v1500, %v1520
        %v1551 = vld [vmem:[#allocation2 + $0x7] sm:$0xff]
        %v1552 = vld [vmem:[#allocation2 + $0xf] sm:$0xff]
        %v1553 = vld [vmem:[%s172 + $0x7] sm:$0xff]
        %v1554 = vld [vmem:[%s172 + $0xf] sm:$0xff]
        %v1555 = vld [vmem:[%s179 + $0x7] sm:$0xff]
        %v1556 = vld [vmem:[%s179 + $0xf] sm:$0xff]
        %v1557 = vsub.f32 %v1555, %v192
        %v1558 = vsub.f32 %v1556, %v194
        %v1559 = vmul.f32 %v1557, %v202
        %v1560 = vmul.f32 %v1558, %v204
        %v1561 = vand.u32 2147483647, %v1559
        %v1562 = vand.u32 2147483647, %v1560
        %vm1563 = vcmp.gt.f32.partialorder %v1561, 0.15
        %vm1564 = vcmp.gt.f32.partialorder %v1562, 0.15
        %v1565 = vsel %vm1563, 0.0, %v1551
        %v1566 = vsel %vm1564, 0.0, %v1552
        %v1567 = vsel %vm1563, 0.0, %v1553
        %v1568 = vsel %vm1564, 0.0, %v1554
        %v1569 = vsel %vm1563, 0.0, %v1555
        %v1570 = vsel %vm1564, 0.0, %v1556
        %v1571 = vmul.f32 %v1565, %v1565
        %v1572 = vmul.f32 %v1566, %v1566
        %v1573 = vadd.f32 %v1523, %v1571
        %v1574 = vadd.f32 %v1524, %v1572
        %v1575 = vmul.f32 %v1567, %v1567
        %v1576 = vmul.f32 %v1568, %v1568
        %v1577 = vadd.f32 %v1527, %v1575
        %v1578 = vadd.f32 %v1528, %v1576
        %v1579 = vmul.f32 %v1569, %v1569
        %v1580 = vmul.f32 %v1570, %v1570
        %v1581 = vadd.f32 %v1531, %v1579
        %v1582 = vadd.f32 %v1532, %v1580
        %v1583 = vmul.f32 %v1565, %v1567
        %v1584 = vmul.f32 %v1566, %v1568
        %v1585 = vadd.f32 %v1535, %v1583
        %v1586 = vadd.f32 %v1536, %v1584
        %v1587 = vmul.f32 %v1565, %v1569
        %v1588 = vmul.f32 %v1566, %v1570
        %v1589 = vadd.f32 %v1539, %v1587
        %v1590 = vadd.f32 %v1540, %v1588
        %v1591 = vmul.f32 %v1567, %v1569
        %v1592 = vmul.f32 %v1568, %v1570
        %v1593 = vadd.f32 %v1543, %v1591
        %v1594 = vadd.f32 %v1544, %v1592
        %v1595 = vadd.f32 %v1545, %v1565
        %v1596 = vadd.f32 %v1546, %v1566
        %v1597 = vadd.f32 %v1547, %v1567
        %v1598 = vadd.f32 %v1548, %v1568
        %v1599 = vadd.f32 %v1549, %v1569
        %v1600 = vadd.f32 %v1550, %v1570
        %v1601 = vld [vmem:[#allocation2 + $0x10] sm:$0xff]
        %v1602 = vld [vmem:[%s172 + $0x10] sm:$0xff]
        %v1603 = vld [vmem:[%s179 + $0x10] sm:$0xff]
        %v1604 = vsub.f32 %v1206, %v192
        %v1605 = vsub.f32 %v1603, %v194
        %v1606 = vmul.f32 %v1604, %v202
        %v1607 = vmul.f32 %v1605, %v204
        %v1608 = vand.u32 2147483647, %v1606
        %v1609 = vand.u32 2147483647, %v1607
        %vm1610 = vcmp.gt.f32.partialorder %v1608, 0.15
        %vm1611 = vcmp.gt.f32.partialorder %v1609, 0.15
        %v1612 = vsel %vm1610, 0.0, %v1202
        %v1613 = vsel %vm1611, 0.0, %v1601
        %v1614 = vsel %vm1610, 0.0, %v1204
        %v1615 = vsel %vm1611, 0.0, %v1602
        %v1616 = vsel %vm1610, 0.0, %v1206
        %v1617 = vsel %vm1611, 0.0, %v1603
        %v1618 = vmul.f32 %v1612, %v1612
        %v1619 = vmul.f32 %v1613, %v1613
        %v1620 = vadd.f32 %v1573, %v1618
        %v1621 = vadd.f32 %v1574, %v1619
        %v1622 = vmul.f32 %v1614, %v1614
        %v1623 = vmul.f32 %v1615, %v1615
        %v1624 = vadd.f32 %v1577, %v1622
        %v1625 = vadd.f32 %v1578, %v1623
        %v1626 = vmul.f32 %v1616, %v1616
        %v1627 = vmul.f32 %v1617, %v1617
        %v1628 = vadd.f32 %v1581, %v1626
        %v1629 = vadd.f32 %v1582, %v1627
        %v1630 = vmul.f32 %v1612, %v1614
        %v1631 = vmul.f32 %v1613, %v1615
        %v1632 = vadd.f32 %v1585, %v1630
        %v1633 = vadd.f32 %v1586, %v1631
        %v1634 = vmul.f32 %v1612, %v1616
        %v1635 = vmul.f32 %v1613, %v1617
        %v1636 = vadd.f32 %v1589, %v1634
        %v1637 = vadd.f32 %v1590, %v1635
        %v1638 = vmul.f32 %v1614, %v1616
        %v1639 = vmul.f32 %v1615, %v1617
        %v1640 = vadd.f32 %v1593, %v1638
        %v1641 = vadd.f32 %v1594, %v1639
        %v1642 = vadd.f32 %v1595, %v1612
        %v1643 = vadd.f32 %v1596, %v1613
        %v1644 = vadd.f32 %v1597, %v1614
        %v1645 = vadd.f32 %v1598, %v1615
        %v1646 = vadd.f32 %v1599, %v1616
        %v1647 = vadd.f32 %v1600, %v1617
        %v1648 = vld [vmem:[%s134] sm:$0xff]
        %v1649 = vld [vmem:[%s134 + $0x8] sm:$0xff]
        %v1650 = vld [vmem:[%s134 + $0x10] sm:$0xff]
        %1654 = vrot.lane.b32.xlu0 %v1648, 125
        %v1655 = vpop.permute.xlu0 %1654
        %1656 = vrot.lane.b32.xlu0 %v1649, 125
        %v1657 = vpop.permute.xlu0 %1656
        %1658 = vrot.lane.b32.xlu0 %v1650, 125
        %v1659 = vpop.permute.xlu0 %1658
        %1663 = vst.msk [vmem:[#allocation2] sm:$0xff] %vm164, %v1655
        %1664 = vst.msk [vmem:[#allocation2 + $0x8] sm:$0xff] %vm164, %v1657
        %1665 = vst.msk [vmem:[#allocation2 + $0x10] sm:$0xff] %vm164, %v1659
        %v1666 = vld [vmem:[%s168] sm:$0xff]
        %v1667 = vld [vmem:[%s168 + $0x8] sm:$0xff]
        %v1668 = vld [vmem:[%s168 + $0x10] sm:$0xff]
        %1672 = vrot.lane.b32.xlu0 %v1666, 125
        %v1673 = vpop.permute.xlu0 %1672
        %1674 = vrot.lane.b32.xlu0 %v1667, 125
        %v1675 = vpop.permute.xlu0 %1674
        %1676 = vrot.lane.b32.xlu0 %v1668, 125
        %v1677 = vpop.permute.xlu0 %1676
        %1681 = vst.msk [vmem:[%s172] sm:$0xff] %vm164, %v1673
        %1682 = vst.msk [vmem:[%s172 + $0x8] sm:$0xff] %vm164, %v1675
        %1683 = vst.msk [vmem:[%s172 + $0x10] sm:$0xff] %vm164, %v1677
        %v1684 = vld [vmem:[%s154] sm:$0xff]
        %v1685 = vld [vmem:[%s154 + $0x8] sm:$0xff]
        %v1686 = vld [vmem:[%s154 + $0x10] sm:$0xff]
        %1690 = vrot.lane.b32.xlu0 %v1684, 125
        %v1691 = vpop.permute.xlu0 %1690
        %1692 = vrot.lane.b32.xlu0 %v1685, 125
        %v1693 = vpop.permute.xlu0 %1692
        %1694 = vrot.lane.b32.xlu0 %v1686, 125
        %v1695 = vpop.permute.xlu0 %1694
        %1699 = vst.msk [vmem:[%s179] sm:$0xff] %vm164, %v1691
        %1700 = vst.msk [vmem:[%s179 + $0x8] sm:$0xff] %vm164, %v1693
        %1701 = vst.msk [vmem:[%s179 + $0x10] sm:$0xff] %vm164, %v1695
        %v1702 = vld [vmem:[#allocation2] sm:$0xff]
        %v1703 = vld [vmem:[#allocation2 + $0x8] sm:$0xff]
        %v1704 = vld [vmem:[%s172] sm:$0xff]
        %v1705 = vld [vmem:[%s172 + $0x8] sm:$0xff]
        %v1706 = vld [vmem:[%s179] sm:$0xff]
        %v1707 = vld [vmem:[%s179 + $0x8] sm:$0xff]
        %v1708 = vsub.f32 %v1706, %v192
        %v1709 = vsub.f32 %v1707, %v194
        %v1710 = vmul.f32 %v1708, %v202
        %v1711 = vmul.f32 %v1709, %v204
        %v1712 = vand.u32 2147483647, %v1710
        %v1713 = vand.u32 2147483647, %v1711
        %vm1714 = vcmp.gt.f32.partialorder %v1712, 0.15
        %vm1715 = vcmp.gt.f32.partialorder %v1713, 0.15
        %v1716 = vsel %vm1714, 0.0, %v1702
        %v1717 = vsel %vm1715, 0.0, %v1703
        %v1718 = vsel %vm1714, 0.0, %v1704
        %v1719 = vsel %vm1715, 0.0, %v1705
        %v1720 = vsel %vm1714, 0.0, %v1706
        %v1721 = vsel %vm1715, 0.0, %v1707
        %v1722 = vmul.f32 %v1716, %v1716
        %v1723 = vmul.f32 %v1717, %v1717
        %v1724 = vadd.f32 %v1620, %v1722
        %v1725 = vadd.f32 %v1621, %v1723
        %v1726 = vmul.f32 %v1718, %v1718
        %v1727 = vmul.f32 %v1719, %v1719
        %v1728 = vadd.f32 %v1624, %v1726
        %v1729 = vadd.f32 %v1625, %v1727
        %v1730 = vmul.f32 %v1720, %v1720
        %v1731 = vmul.f32 %v1721, %v1721
        %v1732 = vadd.f32 %v1628, %v1730
        %v1733 = vadd.f32 %v1629, %v1731
        %v1734 = vmul.f32 %v1716, %v1718
        %v1735 = vmul.f32 %v1717, %v1719
        %v1736 = vadd.f32 %v1632, %v1734
        %v1737 = vadd.f32 %v1633, %v1735
        %v1738 = vmul.f32 %v1716, %v1720
        %v1739 = vmul.f32 %v1717, %v1721
        %v1740 = vadd.f32 %v1636, %v1738
        %v1741 = vadd.f32 %v1637, %v1739
        %v1742 = vmul.f32 %v1718, %v1720
        %v1743 = vmul.f32 %v1719, %v1721
        %v1744 = vadd.f32 %v1640, %v1742
        %v1745 = vadd.f32 %v1641, %v1743
        %v1746 = vadd.f32 %v1642, %v1716
        %v1747 = vadd.f32 %v1643, %v1717
        %v1748 = vadd.f32 %v1644, %v1718
        %v1749 = vadd.f32 %v1645, %v1719
        %v1750 = vadd.f32 %v1646, %v1720
        %v1751 = vadd.f32 %v1647, %v1721
        %v1752 = vld [vmem:[#allocation2 + $0x1] sm:$0xff]
        %v1753 = vld [vmem:[#allocation2 + $0x9] sm:$0xff]
        %v1754 = vld [vmem:[%s172 + $0x1] sm:$0xff]
        %v1755 = vld [vmem:[%s172 + $0x9] sm:$0xff]
        %v1756 = vld [vmem:[%s179 + $0x1] sm:$0xff]
        %v1757 = vld [vmem:[%s179 + $0x9] sm:$0xff]
        %v1758 = vsub.f32 %v1756, %v192
        %v1759 = vsub.f32 %v1757, %v194
        %v1760 = vmul.f32 %v1758, %v202
        %v1761 = vmul.f32 %v1759, %v204
        %v1762 = vand.u32 2147483647, %v1760
        %v1763 = vand.u32 2147483647, %v1761
        %vm1764 = vcmp.gt.f32.partialorder %v1762, 0.15
        %vm1765 = vcmp.gt.f32.partialorder %v1763, 0.15
        %v1766 = vsel %vm1764, 0.0, %v1752
        %v1767 = vsel %vm1765, 0.0, %v1753
        %v1768 = vsel %vm1764, 0.0, %v1754
        %v1769 = vsel %vm1765, 0.0, %v1755
        %v1770 = vsel %vm1764, 0.0, %v1756
        %v1771 = vsel %vm1765, 0.0, %v1757
        %v1772 = vmul.f32 %v1766, %v1766
        %v1773 = vmul.f32 %v1767, %v1767
        %v1774 = vadd.f32 %v1724, %v1772
        %v1775 = vadd.f32 %v1725, %v1773
        %v1776 = vmul.f32 %v1768, %v1768
        %v1777 = vmul.f32 %v1769, %v1769
        %v1778 = vadd.f32 %v1728, %v1776
        %v1779 = vadd.f32 %v1729, %v1777
        %v1780 = vmul.f32 %v1770, %v1770
        %v1781 = vmul.f32 %v1771, %v1771
        %v1782 = vadd.f32 %v1732, %v1780
        %v1783 = vadd.f32 %v1733, %v1781
        %v1784 = vmul.f32 %v1766, %v1768
        %v1785 = vmul.f32 %v1767, %v1769
        %v1786 = vadd.f32 %v1736, %v1784
        %v1787 = vadd.f32 %v1737, %v1785
        %v1788 = vmul.f32 %v1766, %v1770
        %v1789 = vmul.f32 %v1767, %v1771
        %v1790 = vadd.f32 %v1740, %v1788
        %v1791 = vadd.f32 %v1741, %v1789
        %v1792 = vmul.f32 %v1768, %v1770
        %v1793 = vmul.f32 %v1769, %v1771
        %v1794 = vadd.f32 %v1744, %v1792
        %v1795 = vadd.f32 %v1745, %v1793
        %v1796 = vadd.f32 %v1746, %v1766
        %v1797 = vadd.f32 %v1747, %v1767
        %v1798 = vadd.f32 %v1748, %v1768
        %v1799 = vadd.f32 %v1749, %v1769
        %v1800 = vadd.f32 %v1750, %v1770
        %v1801 = vadd.f32 %v1751, %v1771
        %v1802 = vld [vmem:[#allocation2 + $0x2] sm:$0xff]
        %v1803 = vld [vmem:[#allocation2 + $0xa] sm:$0xff]
        %v1804 = vld [vmem:[%s172 + $0x2] sm:$0xff]
        %v1805 = vld [vmem:[%s172 + $0xa] sm:$0xff]
        %v1806 = vld [vmem:[%s179 + $0x2] sm:$0xff]
        %v1807 = vld [vmem:[%s179 + $0xa] sm:$0xff]
        %v1808 = vsub.f32 %v1806, %v192
        %v1809 = vsub.f32 %v1807, %v194
        %v1810 = vmul.f32 %v1808, %v202
        %v1811 = vmul.f32 %v1809, %v204
        %v1812 = vand.u32 2147483647, %v1810
        %v1813 = vand.u32 2147483647, %v1811
        %vm1814 = vcmp.gt.f32.partialorder %v1812, 0.15
        %vm1815 = vcmp.gt.f32.partialorder %v1813, 0.15
        %v1816 = vsel %vm1814, 0.0, %v1802
        %v1817 = vsel %vm1815, 0.0, %v1803
        %v1818 = vsel %vm1814, 0.0, %v1804
        %v1819 = vsel %vm1815, 0.0, %v1805
        %v1820 = vsel %vm1814, 0.0, %v1806
        %v1821 = vsel %vm1815, 0.0, %v1807
        %v1822 = vmul.f32 %v1816, %v1816
        %v1823 = vmul.f32 %v1817, %v1817
        %v1824 = vadd.f32 %v1774, %v1822
        %v1825 = vadd.f32 %v1775, %v1823
        %v1826 = vmul.f32 %v1818, %v1818
        %v1827 = vmul.f32 %v1819, %v1819
        %v1828 = vadd.f32 %v1778, %v1826
        %v1829 = vadd.f32 %v1779, %v1827
        %v1830 = vmul.f32 %v1820, %v1820
        %v1831 = vmul.f32 %v1821, %v1821
        %v1832 = vadd.f32 %v1782, %v1830
        %v1833 = vadd.f32 %v1783, %v1831
        %v1834 = vmul.f32 %v1816, %v1818
        %v1835 = vmul.f32 %v1817, %v1819
        %v1836 = vadd.f32 %v1786, %v1834
        %v1837 = vadd.f32 %v1787, %v1835
        %v1838 = vmul.f32 %v1816, %v1820
        %v1839 = vmul.f32 %v1817, %v1821
        %v1840 = vadd.f32 %v1790, %v1838
        %v1841 = vadd.f32 %v1791, %v1839
        %v1842 = vmul.f32 %v1818, %v1820
        %v1843 = vmul.f32 %v1819, %v1821
        %v1844 = vadd.f32 %v1794, %v1842
        %v1845 = vadd.f32 %v1795, %v1843
        %v1846 = vadd.f32 %v1796, %v1816
        %v1847 = vadd.f32 %v1797, %v1817
        %v1848 = vadd.f32 %v1798, %v1818
        %v1849 = vadd.f32 %v1799, %v1819
        %v1850 = vadd.f32 %v1800, %v1820
        %v1851 = vadd.f32 %v1801, %v1821
        %v1852 = vld [vmem:[#allocation2 + $0x3] sm:$0xff]
        %v1853 = vld [vmem:[#allocation2 + $0xb] sm:$0xff]
        %v1854 = vld [vmem:[%s172 + $0x3] sm:$0xff]
        %v1855 = vld [vmem:[%s172 + $0xb] sm:$0xff]
        %v1856 = vld [vmem:[%s179 + $0x3] sm:$0xff]
        %v1857 = vld [vmem:[%s179 + $0xb] sm:$0xff]
        %v1858 = vsub.f32 %v1856, %v192
        %v1859 = vsub.f32 %v1857, %v194
        %v1860 = vmul.f32 %v1858, %v202
        %v1861 = vmul.f32 %v1859, %v204
        %v1862 = vand.u32 2147483647, %v1860
        %v1863 = vand.u32 2147483647, %v1861
        %vm1864 = vcmp.gt.f32.partialorder %v1862, 0.15
        %vm1865 = vcmp.gt.f32.partialorder %v1863, 0.15
        %v1866 = vsel %vm1864, 0.0, %v1852
        %v1867 = vsel %vm1865, 0.0, %v1853
        %v1868 = vsel %vm1864, 0.0, %v1854
        %v1869 = vsel %vm1865, 0.0, %v1855
        %v1870 = vsel %vm1864, 0.0, %v1856
        %v1871 = vsel %vm1865, 0.0, %v1857
        %v1872 = vmul.f32 %v1866, %v1866
        %v1873 = vmul.f32 %v1867, %v1867
        %v1874 = vadd.f32 %v1824, %v1872
        %v1875 = vadd.f32 %v1825, %v1873
        %v1876 = vmul.f32 %v1868, %v1868
        %v1877 = vmul.f32 %v1869, %v1869
        %v1878 = vadd.f32 %v1828, %v1876
        %v1879 = vadd.f32 %v1829, %v1877
        %v1880 = vmul.f32 %v1870, %v1870
        %v1881 = vmul.f32 %v1871, %v1871
        %v1882 = vadd.f32 %v1832, %v1880
        %v1883 = vadd.f32 %v1833, %v1881
        %v1884 = vmul.f32 %v1866, %v1868
        %v1885 = vmul.f32 %v1867, %v1869
        %v1886 = vadd.f32 %v1836, %v1884
        %v1887 = vadd.f32 %v1837, %v1885
        %v1888 = vmul.f32 %v1866, %v1870
        %v1889 = vmul.f32 %v1867, %v1871
        %v1890 = vadd.f32 %v1840, %v1888
        %v1891 = vadd.f32 %v1841, %v1889
        %v1892 = vmul.f32 %v1868, %v1870
        %v1893 = vmul.f32 %v1869, %v1871
        %v1894 = vadd.f32 %v1844, %v1892
        %v1895 = vadd.f32 %v1845, %v1893
        %v1896 = vadd.f32 %v1846, %v1866
        %v1897 = vadd.f32 %v1847, %v1867
        %v1898 = vadd.f32 %v1848, %v1868
        %v1899 = vadd.f32 %v1849, %v1869
        %v1900 = vadd.f32 %v1850, %v1870
        %v1901 = vadd.f32 %v1851, %v1871
        %v1902 = vld [vmem:[#allocation2 + $0x4] sm:$0xff]
        %v1903 = vld [vmem:[#allocation2 + $0xc] sm:$0xff]
        %v1904 = vld [vmem:[%s172 + $0x4] sm:$0xff]
        %v1905 = vld [vmem:[%s172 + $0xc] sm:$0xff]
        %v1906 = vld [vmem:[%s179 + $0x4] sm:$0xff]
        %v1907 = vld [vmem:[%s179 + $0xc] sm:$0xff]
        %v1908 = vsub.f32 %v1906, %v192
        %v1909 = vsub.f32 %v1907, %v194
        %v1910 = vmul.f32 %v1908, %v202
        %v1911 = vmul.f32 %v1909, %v204
        %v1912 = vand.u32 2147483647, %v1910
        %v1913 = vand.u32 2147483647, %v1911
        %vm1914 = vcmp.gt.f32.partialorder %v1912, 0.15
        %vm1915 = vcmp.gt.f32.partialorder %v1913, 0.15
        %v1916 = vsel %vm1914, 0.0, %v1902
        %v1917 = vsel %vm1915, 0.0, %v1903
        %v1918 = vsel %vm1914, 0.0, %v1904
        %v1919 = vsel %vm1915, 0.0, %v1905
        %v1920 = vsel %vm1914, 0.0, %v1906
        %v1921 = vsel %vm1915, 0.0, %v1907
        %v1922 = vmul.f32 %v1916, %v1916
        %v1923 = vmul.f32 %v1917, %v1917
        %v1924 = vadd.f32 %v1874, %v1922
        %v1925 = vadd.f32 %v1875, %v1923
        %v1926 = vmul.f32 %v1918, %v1918
        %v1927 = vmul.f32 %v1919, %v1919
        %v1928 = vadd.f32 %v1878, %v1926
        %v1929 = vadd.f32 %v1879, %v1927
        %v1930 = vmul.f32 %v1920, %v1920
        %v1931 = vmul.f32 %v1921, %v1921
        %v1932 = vadd.f32 %v1882, %v1930
        %v1933 = vadd.f32 %v1883, %v1931
        %v1934 = vmul.f32 %v1916, %v1918
        %v1935 = vmul.f32 %v1917, %v1919
        %v1936 = vadd.f32 %v1886, %v1934
        %v1937 = vadd.f32 %v1887, %v1935
        %v1938 = vmul.f32 %v1916, %v1920
        %v1939 = vmul.f32 %v1917, %v1921
        %v1940 = vadd.f32 %v1890, %v1938
        %v1941 = vadd.f32 %v1891, %v1939
        %v1942 = vmul.f32 %v1918, %v1920
        %v1943 = vmul.f32 %v1919, %v1921
        %v1944 = vadd.f32 %v1894, %v1942
        %v1945 = vadd.f32 %v1895, %v1943
        %v1946 = vadd.f32 %v1896, %v1916
        %v1947 = vadd.f32 %v1897, %v1917
        %v1948 = vadd.f32 %v1898, %v1918
        %v1949 = vadd.f32 %v1899, %v1919
        %v1950 = vadd.f32 %v1900, %v1920
        %v1951 = vadd.f32 %v1901, %v1921
        %v1952 = vld [vmem:[#allocation2 + $0x5] sm:$0xff]
        %v1953 = vld [vmem:[#allocation2 + $0xd] sm:$0xff]
        %v1954 = vld [vmem:[%s172 + $0x5] sm:$0xff]
        %v1955 = vld [vmem:[%s172 + $0xd] sm:$0xff]
        %v1956 = vld [vmem:[%s179 + $0x5] sm:$0xff]
        %v1957 = vld [vmem:[%s179 + $0xd] sm:$0xff]
        %v1958 = vsub.f32 %v1956, %v192
        %v1959 = vsub.f32 %v1957, %v194
        %v1960 = vmul.f32 %v1958, %v202
        %v1961 = vmul.f32 %v1959, %v204
        %v1962 = vand.u32 2147483647, %v1960
        %v1963 = vand.u32 2147483647, %v1961
        %vm1964 = vcmp.gt.f32.partialorder %v1962, 0.15
        %vm1965 = vcmp.gt.f32.partialorder %v1963, 0.15
        %v1966 = vsel %vm1964, 0.0, %v1952
        %v1967 = vsel %vm1965, 0.0, %v1953
        %v1968 = vsel %vm1964, 0.0, %v1954
        %v1969 = vsel %vm1965, 0.0, %v1955
        %v1970 = vsel %vm1964, 0.0, %v1956
        %v1971 = vsel %vm1965, 0.0, %v1957
        %v1972 = vmul.f32 %v1966, %v1966
        %v1973 = vmul.f32 %v1967, %v1967
        %v1974 = vadd.f32 %v1924, %v1972
        %v1975 = vadd.f32 %v1925, %v1973
        %v1976 = vmul.f32 %v1968, %v1968
        %v1977 = vmul.f32 %v1969, %v1969
        %v1978 = vadd.f32 %v1928, %v1976
        %v1979 = vadd.f32 %v1929, %v1977
        %v1980 = vmul.f32 %v1970, %v1970
        %v1981 = vmul.f32 %v1971, %v1971
        %v1982 = vadd.f32 %v1932, %v1980
        %v1983 = vadd.f32 %v1933, %v1981
        %v1984 = vmul.f32 %v1966, %v1968
        %v1985 = vmul.f32 %v1967, %v1969
        %v1986 = vadd.f32 %v1936, %v1984
        %v1987 = vadd.f32 %v1937, %v1985
        %v1988 = vmul.f32 %v1966, %v1970
        %v1989 = vmul.f32 %v1967, %v1971
        %v1990 = vadd.f32 %v1940, %v1988
        %v1991 = vadd.f32 %v1941, %v1989
        %v1992 = vmul.f32 %v1968, %v1970
        %v1993 = vmul.f32 %v1969, %v1971
        %v1994 = vadd.f32 %v1944, %v1992
        %v1995 = vadd.f32 %v1945, %v1993
        %v1996 = vadd.f32 %v1946, %v1966
        %v1997 = vadd.f32 %v1947, %v1967
        %v1998 = vadd.f32 %v1948, %v1968
        %v1999 = vadd.f32 %v1949, %v1969
        %v2000 = vadd.f32 %v1950, %v1970
        %v2001 = vadd.f32 %v1951, %v1971
        %v2002 = vld [vmem:[#allocation2 + $0x6] sm:$0xff]
        %v2003 = vld [vmem:[#allocation2 + $0xe] sm:$0xff]
        %v2004 = vld [vmem:[%s172 + $0x6] sm:$0xff]
        %v2005 = vld [vmem:[%s172 + $0xe] sm:$0xff]
        %v2006 = vld [vmem:[%s179 + $0x6] sm:$0xff]
        %v2007 = vld [vmem:[%s179 + $0xe] sm:$0xff]
        %v2008 = vsub.f32 %v2006, %v192
        %v2009 = vsub.f32 %v2007, %v194
        %v2010 = vmul.f32 %v2008, %v202
        %v2011 = vmul.f32 %v2009, %v204
        %v2012 = vand.u32 2147483647, %v2010
        %v2013 = vand.u32 2147483647, %v2011
        %vm2014 = vcmp.gt.f32.partialorder %v2012, 0.15
        %vm2015 = vcmp.gt.f32.partialorder %v2013, 0.15
        %v2016 = vsel %vm2014, 0.0, %v2002
        %v2017 = vsel %vm2015, 0.0, %v2003
        %v2018 = vsel %vm2014, 0.0, %v2004
        %v2019 = vsel %vm2015, 0.0, %v2005
        %v2020 = vsel %vm2014, 0.0, %v2006
        %v2021 = vsel %vm2015, 0.0, %v2007
        %v2022 = vmul.f32 %v2016, %v2016
        %v2023 = vmul.f32 %v2017, %v2017
        %v2024 = vadd.f32 %v1974, %v2022
        %v2025 = vadd.f32 %v1975, %v2023
        %v2026 = vmul.f32 %v2018, %v2018
        %v2027 = vmul.f32 %v2019, %v2019
        %v2028 = vadd.f32 %v1978, %v2026
        %v2029 = vadd.f32 %v1979, %v2027
        %v2030 = vmul.f32 %v2020, %v2020
        %v2031 = vmul.f32 %v2021, %v2021
        %v2032 = vadd.f32 %v1982, %v2030
        %v2033 = vadd.f32 %v1983, %v2031
        %v2034 = vmul.f32 %v2016, %v2018
        %v2035 = vmul.f32 %v2017, %v2019
        %v2036 = vadd.f32 %v1986, %v2034
        %v2037 = vadd.f32 %v1987, %v2035
        %v2038 = vmul.f32 %v2016, %v2020
        %v2039 = vmul.f32 %v2017, %v2021
        %v2040 = vadd.f32 %v1990, %v2038
        %v2041 = vadd.f32 %v1991, %v2039
        %v2042 = vmul.f32 %v2018, %v2020
        %v2043 = vmul.f32 %v2019, %v2021
        %v2044 = vadd.f32 %v1994, %v2042
        %v2045 = vadd.f32 %v1995, %v2043
        %v2046 = vadd.f32 %v1996, %v2016
        %v2047 = vadd.f32 %v1997, %v2017
        %v2048 = vadd.f32 %v1998, %v2018
        %v2049 = vadd.f32 %v1999, %v2019
        %v2050 = vadd.f32 %v2000, %v2020
        %v2051 = vadd.f32 %v2001, %v2021
        %v2052 = vld [vmem:[#allocation2 + $0x7] sm:$0xff]
        %v2053 = vld [vmem:[#allocation2 + $0xf] sm:$0xff]
        %v2054 = vld [vmem:[%s172 + $0x7] sm:$0xff]
        %v2055 = vld [vmem:[%s172 + $0xf] sm:$0xff]
        %v2056 = vld [vmem:[%s179 + $0x7] sm:$0xff]
        %v2057 = vld [vmem:[%s179 + $0xf] sm:$0xff]
        %v2058 = vsub.f32 %v2056, %v192
        %v2059 = vsub.f32 %v2057, %v194
        %v2060 = vmul.f32 %v2058, %v202
        %v2061 = vmul.f32 %v2059, %v204
        %v2062 = vand.u32 2147483647, %v2060
        %v2063 = vand.u32 2147483647, %v2061
        %vm2064 = vcmp.gt.f32.partialorder %v2062, 0.15
        %vm2065 = vcmp.gt.f32.partialorder %v2063, 0.15
        %v2066 = vsel %vm2064, 0.0, %v2052
        %v2067 = vsel %vm2065, 0.0, %v2053
        %v2068 = vsel %vm2064, 0.0, %v2054
        %v2069 = vsel %vm2065, 0.0, %v2055
        %v2070 = vsel %vm2064, 0.0, %v2056
        %v2071 = vsel %vm2065, 0.0, %v2057
        %v2072 = vmul.f32 %v2066, %v2066
        %v2073 = vmul.f32 %v2067, %v2067
        %v2074 = vadd.f32 %v2024, %v2072
        %v2075 = vadd.f32 %v2025, %v2073
        %v2076 = vmul.f32 %v2068, %v2068
        %v2077 = vmul.f32 %v2069, %v2069
        %v2078 = vadd.f32 %v2028, %v2076
        %v2079 = vadd.f32 %v2029, %v2077
        %v2080 = vmul.f32 %v2070, %v2070
        %v2081 = vmul.f32 %v2071, %v2071
        %v2082 = vadd.f32 %v2032, %v2080
        %v2083 = vadd.f32 %v2033, %v2081
        %v2084 = vmul.f32 %v2066, %v2068
        %v2085 = vmul.f32 %v2067, %v2069
        %v2086 = vadd.f32 %v2036, %v2084
        %v2087 = vadd.f32 %v2037, %v2085
        %v2088 = vmul.f32 %v2066, %v2070
        %v2089 = vmul.f32 %v2067, %v2071
        %v2090 = vadd.f32 %v2040, %v2088
        %v2091 = vadd.f32 %v2041, %v2089
        %v2092 = vmul.f32 %v2068, %v2070
        %v2093 = vmul.f32 %v2069, %v2071
        %v2094 = vadd.f32 %v2044, %v2092
        %v2095 = vadd.f32 %v2045, %v2093
        %v2096 = vadd.f32 %v2046, %v2066
        %v2097 = vadd.f32 %v2047, %v2067
        %v2098 = vadd.f32 %v2048, %v2068
        %v2099 = vadd.f32 %v2049, %v2069
        %v2100 = vadd.f32 %v2050, %v2070
        %v2101 = vadd.f32 %v2051, %v2071
        %v2102 = vld [vmem:[#allocation2 + $0x10] sm:$0xff]
        %v2103 = vld [vmem:[%s172 + $0x10] sm:$0xff]
        %v2104 = vld [vmem:[%s179 + $0x10] sm:$0xff]
        %v2105 = vsub.f32 %v1707, %v192
        %v2106 = vsub.f32 %v2104, %v194
        %v2107 = vmul.f32 %v2105, %v202
        %v2108 = vmul.f32 %v2106, %v204
        %v2109 = vand.u32 2147483647, %v2107
        %v2110 = vand.u32 2147483647, %v2108
        %vm2111 = vcmp.gt.f32.partialorder %v2109, 0.15
        %vm2112 = vcmp.gt.f32.partialorder %v2110, 0.15
        %v2113 = vsel %vm2111, 0.0, %v1703
        %v2114 = vsel %vm2112, 0.0, %v2102
        %v2115 = vsel %vm2111, 0.0, %v1705
        %v2116 = vsel %vm2112, 0.0, %v2103
        %v2117 = vsel %vm2111, 0.0, %v1707
        %v2118 = vsel %vm2112, 0.0, %v2104
        %v2119 = vmul.f32 %v2113, %v2113
        %v2120 = vmul.f32 %v2114, %v2114
        %v2121 = vadd.f32 %v2074, %v2119
        %v2122 = vadd.f32 %v2075, %v2120
        %v2123 = vmul.f32 %v2115, %v2115
        %v2124 = vmul.f32 %v2116, %v2116
        %v2125 = vadd.f32 %v2078, %v2123
        %v2126 = vadd.f32 %v2079, %v2124
        %v2127 = vmul.f32 %v2117, %v2117
        %v2128 = vmul.f32 %v2118, %v2118
        %v2129 = vadd.f32 %v2082, %v2127
        %v2130 = vadd.f32 %v2083, %v2128
        %v2131 = vmul.f32 %v2113, %v2115
        %v2132 = vmul.f32 %v2114, %v2116
        %v2133 = vadd.f32 %v2086, %v2131
        %v2134 = vadd.f32 %v2087, %v2132
        %v2135 = vmul.f32 %v2113, %v2117
        %v2136 = vmul.f32 %v2114, %v2118
        %v2137 = vadd.f32 %v2090, %v2135
        %v2138 = vadd.f32 %v2091, %v2136
        %v2139 = vmul.f32 %v2115, %v2117
        %v2140 = vmul.f32 %v2116, %v2118
        %v2141 = vadd.f32 %v2094, %v2139
        %v2142 = vadd.f32 %v2095, %v2140
        %v2143 = vadd.f32 %v2096, %v2113
        %v2144 = vadd.f32 %v2097, %v2114
        %v2145 = vadd.f32 %v2098, %v2115
        %v2146 = vadd.f32 %v2099, %v2116
        %v2147 = vadd.f32 %v2100, %v2117
        %v2148 = vadd.f32 %v2101, %v2118
        %v2149 = vld [vmem:[%s134] sm:$0xff]
        %v2150 = vld [vmem:[%s134 + $0x8] sm:$0xff]
        %v2151 = vld [vmem:[%s134 + $0x10] sm:$0xff]
        %2155 = vrot.lane.b32.xlu0 %v2149, 124
        %v2156 = vpop.permute.xlu0 %2155
        %2157 = vrot.lane.b32.xlu0 %v2150, 124
        %v2158 = vpop.permute.xlu0 %2157
        %2159 = vrot.lane.b32.xlu0 %v2151, 124
        %v2160 = vpop.permute.xlu0 %2159
        %2164 = vst.msk [vmem:[#allocation2] sm:$0xff] %vm164, %v2156
        %2165 = vst.msk [vmem:[#allocation2 + $0x8] sm:$0xff] %vm164, %v2158
        %2166 = vst.msk [vmem:[#allocation2 + $0x10] sm:$0xff] %vm164, %v2160
        %v2167 = vld [vmem:[%s168] sm:$0xff]
        %v2168 = vld [vmem:[%s168 + $0x8] sm:$0xff]
        %v2169 = vld [vmem:[%s168 + $0x10] sm:$0xff]
        %2173 = vrot.lane.b32.xlu0 %v2167, 124
        %v2174 = vpop.permute.xlu0 %2173
        %2175 = vrot.lane.b32.xlu0 %v2168, 124
        %v2176 = vpop.permute.xlu0 %2175
        %2177 = vrot.lane.b32.xlu0 %v2169, 124
        %v2178 = vpop.permute.xlu0 %2177
        %2182 = vst.msk [vmem:[%s172] sm:$0xff] %vm164, %v2174
        %2183 = vst.msk [vmem:[%s172 + $0x8] sm:$0xff] %vm164, %v2176
        %2184 = vst.msk [vmem:[%s172 + $0x10] sm:$0xff] %vm164, %v2178
        %v2185 = vld [vmem:[%s154] sm:$0xff]
        %v2186 = vld [vmem:[%s154 + $0x8] sm:$0xff]
        %v2187 = vld [vmem:[%s154 + $0x10] sm:$0xff]
        %2191 = vrot.lane.b32.xlu0 %v2185, 124
        %v2192 = vpop.permute.xlu0 %2191
        %2193 = vrot.lane.b32.xlu0 %v2186, 124
        %v2194 = vpop.permute.xlu0 %2193
        %2195 = vrot.lane.b32.xlu0 %v2187, 124
        %v2196 = vpop.permute.xlu0 %2195
        %2200 = vst.msk [vmem:[%s179] sm:$0xff] %vm164, %v2192
        %2201 = vst.msk [vmem:[%s179 + $0x8] sm:$0xff] %vm164, %v2194
        %2202 = vst.msk [vmem:[%s179 + $0x10] sm:$0xff] %vm164, %v2196
        %v2203 = vld [vmem:[#allocation2] sm:$0xff]
        %v2204 = vld [vmem:[#allocation2 + $0x8] sm:$0xff]
        %v2205 = vld [vmem:[%s172] sm:$0xff]
        %v2206 = vld [vmem:[%s172 + $0x8] sm:$0xff]
        %v2207 = vld [vmem:[%s179] sm:$0xff]
        %v2208 = vld [vmem:[%s179 + $0x8] sm:$0xff]
        %v2209 = vsub.f32 %v2207, %v192
        %v2210 = vsub.f32 %v2208, %v194
        %v2211 = vmul.f32 %v2209, %v202
        %v2212 = vmul.f32 %v2210, %v204
        %v2213 = vand.u32 2147483647, %v2211
        %v2214 = vand.u32 2147483647, %v2212
        %vm2215 = vcmp.gt.f32.partialorder %v2213, 0.15
        %vm2216 = vcmp.gt.f32.partialorder %v2214, 0.15
        %v2217 = vsel %vm2215, 0.0, %v2203
        %v2218 = vsel %vm2216, 0.0, %v2204
        %v2219 = vsel %vm2215, 0.0, %v2205
        %v2220 = vsel %vm2216, 0.0, %v2206
        %v2221 = vsel %vm2215, 0.0, %v2207
        %v2222 = vsel %vm2216, 0.0, %v2208
        %v2223 = vmul.f32 %v2217, %v2217
        %v2224 = vmul.f32 %v2218, %v2218
        %v2225 = vadd.f32 %v2121, %v2223
        %v2226 = vadd.f32 %v2122, %v2224
        %v2227 = vmul.f32 %v2219, %v2219
        %v2228 = vmul.f32 %v2220, %v2220
        %v2229 = vadd.f32 %v2125, %v2227
        %v2230 = vadd.f32 %v2126, %v2228
        %v2231 = vmul.f32 %v2221, %v2221
        %v2232 = vmul.f32 %v2222, %v2222
        %v2233 = vadd.f32 %v2129, %v2231
        %v2234 = vadd.f32 %v2130, %v2232
        %v2235 = vmul.f32 %v2217, %v2219
        %v2236 = vmul.f32 %v2218, %v2220
        %v2237 = vadd.f32 %v2133, %v2235
        %v2238 = vadd.f32 %v2134, %v2236
        %v2239 = vmul.f32 %v2217, %v2221
        %v2240 = vmul.f32 %v2218, %v2222
        %v2241 = vadd.f32 %v2137, %v2239
        %v2242 = vadd.f32 %v2138, %v2240
        %v2243 = vmul.f32 %v2219, %v2221
        %v2244 = vmul.f32 %v2220, %v2222
        %v2245 = vadd.f32 %v2141, %v2243
        %v2246 = vadd.f32 %v2142, %v2244
        %v2247 = vadd.f32 %v2143, %v2217
        %v2248 = vadd.f32 %v2144, %v2218
        %v2249 = vadd.f32 %v2145, %v2219
        %v2250 = vadd.f32 %v2146, %v2220
        %v2251 = vadd.f32 %v2147, %v2221
        %v2252 = vadd.f32 %v2148, %v2222
        %v2253 = vld [vmem:[#allocation2 + $0x1] sm:$0xff]
        %v2254 = vld [vmem:[#allocation2 + $0x9] sm:$0xff]
        %v2255 = vld [vmem:[%s172 + $0x1] sm:$0xff]
        %v2256 = vld [vmem:[%s172 + $0x9] sm:$0xff]
        %v2257 = vld [vmem:[%s179 + $0x1] sm:$0xff]
        %v2258 = vld [vmem:[%s179 + $0x9] sm:$0xff]
        %v2259 = vsub.f32 %v2257, %v192
        %v2260 = vsub.f32 %v2258, %v194
        %v2261 = vmul.f32 %v2259, %v202
        %v2262 = vmul.f32 %v2260, %v204
        %v2263 = vand.u32 2147483647, %v2261
        %v2264 = vand.u32 2147483647, %v2262
        %vm2265 = vcmp.gt.f32.partialorder %v2263, 0.15
        %vm2266 = vcmp.gt.f32.partialorder %v2264, 0.15
        %v2267 = vsel %vm2265, 0.0, %v2253
        %v2268 = vsel %vm2266, 0.0, %v2254
        %v2269 = vsel %vm2265, 0.0, %v2255
        %v2270 = vsel %vm2266, 0.0, %v2256
        %v2271 = vsel %vm2265, 0.0, %v2257
        %v2272 = vsel %vm2266, 0.0, %v2258
        %v2273 = vmul.f32 %v2267, %v2267
        %v2274 = vmul.f32 %v2268, %v2268
        %v2275 = vadd.f32 %v2225, %v2273
        %v2276 = vadd.f32 %v2226, %v2274
        %v2277 = vmul.f32 %v2269, %v2269
        %v2278 = vmul.f32 %v2270, %v2270
        %v2279 = vadd.f32 %v2229, %v2277
        %v2280 = vadd.f32 %v2230, %v2278
        %v2281 = vmul.f32 %v2271, %v2271
        %v2282 = vmul.f32 %v2272, %v2272
        %v2283 = vadd.f32 %v2233, %v2281
        %v2284 = vadd.f32 %v2234, %v2282
        %v2285 = vmul.f32 %v2267, %v2269
        %v2286 = vmul.f32 %v2268, %v2270
        %v2287 = vadd.f32 %v2237, %v2285
        %v2288 = vadd.f32 %v2238, %v2286
        %v2289 = vmul.f32 %v2267, %v2271
        %v2290 = vmul.f32 %v2268, %v2272
        %v2291 = vadd.f32 %v2241, %v2289
        %v2292 = vadd.f32 %v2242, %v2290
        %v2293 = vmul.f32 %v2269, %v2271
        %v2294 = vmul.f32 %v2270, %v2272
        %v2295 = vadd.f32 %v2245, %v2293
        %v2296 = vadd.f32 %v2246, %v2294
        %v2297 = vadd.f32 %v2247, %v2267
        %v2298 = vadd.f32 %v2248, %v2268
        %v2299 = vadd.f32 %v2249, %v2269
        %v2300 = vadd.f32 %v2250, %v2270
        %v2301 = vadd.f32 %v2251, %v2271
        %v2302 = vadd.f32 %v2252, %v2272
        %v2303 = vld [vmem:[#allocation2 + $0x2] sm:$0xff]
        %v2304 = vld [vmem:[#allocation2 + $0xa] sm:$0xff]
        %v2305 = vld [vmem:[%s172 + $0x2] sm:$0xff]
        %v2306 = vld [vmem:[%s172 + $0xa] sm:$0xff]
        %v2307 = vld [vmem:[%s179 + $0x2] sm:$0xff]
        %v2308 = vld [vmem:[%s179 + $0xa] sm:$0xff]
        %v2309 = vsub.f32 %v2307, %v192
        %v2310 = vsub.f32 %v2308, %v194
        %v2311 = vmul.f32 %v2309, %v202
        %v2312 = vmul.f32 %v2310, %v204
        %v2313 = vand.u32 2147483647, %v2311
        %v2314 = vand.u32 2147483647, %v2312
        %vm2315 = vcmp.gt.f32.partialorder %v2313, 0.15
        %vm2316 = vcmp.gt.f32.partialorder %v2314, 0.15
        %v2317 = vsel %vm2315, 0.0, %v2303
        %v2318 = vsel %vm2316, 0.0, %v2304
        %v2319 = vsel %vm2315, 0.0, %v2305
        %v2320 = vsel %vm2316, 0.0, %v2306
        %v2321 = vsel %vm2315, 0.0, %v2307
        %v2322 = vsel %vm2316, 0.0, %v2308
        %v2323 = vmul.f32 %v2317, %v2317
        %v2324 = vmul.f32 %v2318, %v2318
        %v2325 = vadd.f32 %v2275, %v2323
        %v2326 = vadd.f32 %v2276, %v2324
        %v2327 = vmul.f32 %v2319, %v2319
        %v2328 = vmul.f32 %v2320, %v2320
        %v2329 = vadd.f32 %v2279, %v2327
        %v2330 = vadd.f32 %v2280, %v2328
        %v2331 = vmul.f32 %v2321, %v2321
        %v2332 = vmul.f32 %v2322, %v2322
        %v2333 = vadd.f32 %v2283, %v2331
        %v2334 = vadd.f32 %v2284, %v2332
        %v2335 = vmul.f32 %v2317, %v2319
        %v2336 = vmul.f32 %v2318, %v2320
        %v2337 = vadd.f32 %v2287, %v2335
        %v2338 = vadd.f32 %v2288, %v2336
        %v2339 = vmul.f32 %v2317, %v2321
        %v2340 = vmul.f32 %v2318, %v2322
        %v2341 = vadd.f32 %v2291, %v2339
        %v2342 = vadd.f32 %v2292, %v2340
        %v2343 = vmul.f32 %v2319, %v2321
        %v2344 = vmul.f32 %v2320, %v2322
        %v2345 = vadd.f32 %v2295, %v2343
        %v2346 = vadd.f32 %v2296, %v2344
        %v2347 = vadd.f32 %v2297, %v2317
        %v2348 = vadd.f32 %v2298, %v2318
        %v2349 = vadd.f32 %v2299, %v2319
        %v2350 = vadd.f32 %v2300, %v2320
        %v2351 = vadd.f32 %v2301, %v2321
        %v2352 = vadd.f32 %v2302, %v2322
        %v2353 = vld [vmem:[#allocation2 + $0x3] sm:$0xff]
        %v2354 = vld [vmem:[#allocation2 + $0xb] sm:$0xff]
        %v2355 = vld [vmem:[%s172 + $0x3] sm:$0xff]
        %v2356 = vld [vmem:[%s172 + $0xb] sm:$0xff]
        %v2357 = vld [vmem:[%s179 + $0x3] sm:$0xff]
        %v2358 = vld [vmem:[%s179 + $0xb] sm:$0xff]
        %v2359 = vsub.f32 %v2357, %v192
        %v2360 = vsub.f32 %v2358, %v194
        %v2361 = vmul.f32 %v2359, %v202
        %v2362 = vmul.f32 %v2360, %v204
        %v2363 = vand.u32 2147483647, %v2361
        %v2364 = vand.u32 2147483647, %v2362
        %vm2365 = vcmp.gt.f32.partialorder %v2363, 0.15
        %vm2366 = vcmp.gt.f32.partialorder %v2364, 0.15
        %v2367 = vsel %vm2365, 0.0, %v2353
        %v2368 = vsel %vm2366, 0.0, %v2354
        %v2369 = vsel %vm2365, 0.0, %v2355
        %v2370 = vsel %vm2366, 0.0, %v2356
        %v2371 = vsel %vm2365, 0.0, %v2357
        %v2372 = vsel %vm2366, 0.0, %v2358
        %v2373 = vmul.f32 %v2367, %v2367
        %v2374 = vmul.f32 %v2368, %v2368
        %v2375 = vadd.f32 %v2325, %v2373
        %v2376 = vadd.f32 %v2326, %v2374
        %v2377 = vmul.f32 %v2369, %v2369
        %v2378 = vmul.f32 %v2370, %v2370
        %v2379 = vadd.f32 %v2329, %v2377
        %v2380 = vadd.f32 %v2330, %v2378
        %v2381 = vmul.f32 %v2371, %v2371
        %v2382 = vmul.f32 %v2372, %v2372
        %v2383 = vadd.f32 %v2333, %v2381
        %v2384 = vadd.f32 %v2334, %v2382
        %v2385 = vmul.f32 %v2367, %v2369
        %v2386 = vmul.f32 %v2368, %v2370
        %v2387 = vadd.f32 %v2337, %v2385
        %v2388 = vadd.f32 %v2338, %v2386
        %v2389 = vmul.f32 %v2367, %v2371
        %v2390 = vmul.f32 %v2368, %v2372
        %v2391 = vadd.f32 %v2341, %v2389
        %v2392 = vadd.f32 %v2342, %v2390
        %v2393 = vmul.f32 %v2369, %v2371
        %v2394 = vmul.f32 %v2370, %v2372
        %v2395 = vadd.f32 %v2345, %v2393
        %v2396 = vadd.f32 %v2346, %v2394
        %v2397 = vadd.f32 %v2347, %v2367
        %v2398 = vadd.f32 %v2348, %v2368
        %v2399 = vadd.f32 %v2349, %v2369
        %v2400 = vadd.f32 %v2350, %v2370
        %v2401 = vadd.f32 %v2351, %v2371
        %v2402 = vadd.f32 %v2352, %v2372
        %v2403 = vld [vmem:[#allocation2 + $0x4] sm:$0xff]
        %v2404 = vld [vmem:[#allocation2 + $0xc] sm:$0xff]
        %v2405 = vld [vmem:[%s172 + $0x4] sm:$0xff]
        %v2406 = vld [vmem:[%s172 + $0xc] sm:$0xff]
        %v2407 = vld [vmem:[%s179 + $0x4] sm:$0xff]
        %v2408 = vld [vmem:[%s179 + $0xc] sm:$0xff]
        %v2409 = vsub.f32 %v2407, %v192
        %v2410 = vsub.f32 %v2408, %v194
        %v2411 = vmul.f32 %v2409, %v202
        %v2412 = vmul.f32 %v2410, %v204
        %v2413 = vand.u32 2147483647, %v2411
        %v2414 = vand.u32 2147483647, %v2412
        %vm2415 = vcmp.gt.f32.partialorder %v2413, 0.15
        %vm2416 = vcmp.gt.f32.partialorder %v2414, 0.15
        %v2417 = vsel %vm2415, 0.0, %v2403
        %v2418 = vsel %vm2416, 0.0, %v2404
        %v2419 = vsel %vm2415, 0.0, %v2405
        %v2420 = vsel %vm2416, 0.0, %v2406
        %v2421 = vsel %vm2415, 0.0, %v2407
        %v2422 = vsel %vm2416, 0.0, %v2408
        %v2423 = vmul.f32 %v2417, %v2417
        %v2424 = vmul.f32 %v2418, %v2418
        %v2425 = vadd.f32 %v2375, %v2423
        %v2426 = vadd.f32 %v2376, %v2424
        %v2427 = vmul.f32 %v2419, %v2419
        %v2428 = vmul.f32 %v2420, %v2420
        %v2429 = vadd.f32 %v2379, %v2427
        %v2430 = vadd.f32 %v2380, %v2428
        %v2431 = vmul.f32 %v2421, %v2421
        %v2432 = vmul.f32 %v2422, %v2422
        %v2433 = vadd.f32 %v2383, %v2431
        %v2434 = vadd.f32 %v2384, %v2432
        %v2435 = vmul.f32 %v2417, %v2419
        %v2436 = vmul.f32 %v2418, %v2420
        %v2437 = vadd.f32 %v2387, %v2435
        %v2438 = vadd.f32 %v2388, %v2436
        %v2439 = vmul.f32 %v2417, %v2421
        %v2440 = vmul.f32 %v2418, %v2422
        %v2441 = vadd.f32 %v2391, %v2439
        %v2442 = vadd.f32 %v2392, %v2440
        %v2443 = vmul.f32 %v2419, %v2421
        %v2444 = vmul.f32 %v2420, %v2422
        %v2445 = vadd.f32 %v2395, %v2443
        %v2446 = vadd.f32 %v2396, %v2444
        %v2447 = vadd.f32 %v2397, %v2417
        %v2448 = vadd.f32 %v2398, %v2418
        %v2449 = vadd.f32 %v2399, %v2419
        %v2450 = vadd.f32 %v2400, %v2420
        %v2451 = vadd.f32 %v2401, %v2421
        %v2452 = vadd.f32 %v2402, %v2422
        %v2453 = vld [vmem:[#allocation2 + $0x5] sm:$0xff]
        %v2454 = vld [vmem:[#allocation2 + $0xd] sm:$0xff]
        %v2455 = vld [vmem:[%s172 + $0x5] sm:$0xff]
        %v2456 = vld [vmem:[%s172 + $0xd] sm:$0xff]
        %v2457 = vld [vmem:[%s179 + $0x5] sm:$0xff]
        %v2458 = vld [vmem:[%s179 + $0xd] sm:$0xff]
        %v2459 = vsub.f32 %v2457, %v192
        %v2460 = vsub.f32 %v2458, %v194
        %v2461 = vmul.f32 %v2459, %v202
        %v2462 = vmul.f32 %v2460, %v204
        %v2463 = vand.u32 2147483647, %v2461
        %v2464 = vand.u32 2147483647, %v2462
        %vm2465 = vcmp.gt.f32.partialorder %v2463, 0.15
        %vm2466 = vcmp.gt.f32.partialorder %v2464, 0.15
        %v2467 = vsel %vm2465, 0.0, %v2453
        %v2468 = vsel %vm2466, 0.0, %v2454
        %v2469 = vsel %vm2465, 0.0, %v2455
        %v2470 = vsel %vm2466, 0.0, %v2456
        %v2471 = vsel %vm2465, 0.0, %v2457
        %v2472 = vsel %vm2466, 0.0, %v2458
        %v2473 = vmul.f32 %v2467, %v2467
        %v2474 = vmul.f32 %v2468, %v2468
        %v2475 = vadd.f32 %v2425, %v2473
        %v2476 = vadd.f32 %v2426, %v2474
        %v2477 = vmul.f32 %v2469, %v2469
        %v2478 = vmul.f32 %v2470, %v2470
        %v2479 = vadd.f32 %v2429, %v2477
        %v2480 = vadd.f32 %v2430, %v2478
        %v2481 = vmul.f32 %v2471, %v2471
        %v2482 = vmul.f32 %v2472, %v2472
        %v2483 = vadd.f32 %v2433, %v2481
        %v2484 = vadd.f32 %v2434, %v2482
        %v2485 = vmul.f32 %v2467, %v2469
        %v2486 = vmul.f32 %v2468, %v2470
        %v2487 = vadd.f32 %v2437, %v2485
        %v2488 = vadd.f32 %v2438, %v2486
        %v2489 = vmul.f32 %v2467, %v2471
        %v2490 = vmul.f32 %v2468, %v2472
        %v2491 = vadd.f32 %v2441, %v2489
        %v2492 = vadd.f32 %v2442, %v2490
        %v2493 = vmul.f32 %v2469, %v2471
        %v2494 = vmul.f32 %v2470, %v2472
        %v2495 = vadd.f32 %v2445, %v2493
        %v2496 = vadd.f32 %v2446, %v2494
        %v2497 = vadd.f32 %v2447, %v2467
        %v2498 = vadd.f32 %v2448, %v2468
        %v2499 = vadd.f32 %v2449, %v2469
        %v2500 = vadd.f32 %v2450, %v2470
        %v2501 = vadd.f32 %v2451, %v2471
        %v2502 = vadd.f32 %v2452, %v2472
        %v2503 = vld [vmem:[#allocation2 + $0x6] sm:$0xff]
        %v2504 = vld [vmem:[#allocation2 + $0xe] sm:$0xff]
        %v2505 = vld [vmem:[%s172 + $0x6] sm:$0xff]
        %v2506 = vld [vmem:[%s172 + $0xe] sm:$0xff]
        %v2507 = vld [vmem:[%s179 + $0x6] sm:$0xff]
        %v2508 = vld [vmem:[%s179 + $0xe] sm:$0xff]
        %v2509 = vsub.f32 %v2507, %v192
        %v2510 = vsub.f32 %v2508, %v194
        %v2511 = vmul.f32 %v2509, %v202
        %v2512 = vmul.f32 %v2510, %v204
        %v2513 = vand.u32 2147483647, %v2511
        %v2514 = vand.u32 2147483647, %v2512
        %vm2515 = vcmp.gt.f32.partialorder %v2513, 0.15
        %vm2516 = vcmp.gt.f32.partialorder %v2514, 0.15
        %v2517 = vsel %vm2515, 0.0, %v2503
        %v2518 = vsel %vm2516, 0.0, %v2504
        %v2519 = vsel %vm2515, 0.0, %v2505
        %v2520 = vsel %vm2516, 0.0, %v2506
        %v2521 = vsel %vm2515, 0.0, %v2507
        %v2522 = vsel %vm2516, 0.0, %v2508
        %v2523 = vmul.f32 %v2517, %v2517
        %v2524 = vmul.f32 %v2518, %v2518
        %v2525 = vadd.f32 %v2475, %v2523
        %v2526 = vadd.f32 %v2476, %v2524
        %v2527 = vmul.f32 %v2519, %v2519
        %v2528 = vmul.f32 %v2520, %v2520
        %v2529 = vadd.f32 %v2479, %v2527
        %v2530 = vadd.f32 %v2480, %v2528
        %v2531 = vmul.f32 %v2521, %v2521
        %v2532 = vmul.f32 %v2522, %v2522
        %v2533 = vadd.f32 %v2483, %v2531
        %v2534 = vadd.f32 %v2484, %v2532
        %v2535 = vmul.f32 %v2517, %v2519
        %v2536 = vmul.f32 %v2518, %v2520
        %v2537 = vadd.f32 %v2487, %v2535
        %v2538 = vadd.f32 %v2488, %v2536
        %v2539 = vmul.f32 %v2517, %v2521
        %v2540 = vmul.f32 %v2518, %v2522
        %v2541 = vadd.f32 %v2491, %v2539
        %v2542 = vadd.f32 %v2492, %v2540
        %v2543 = vmul.f32 %v2519, %v2521
        %v2544 = vmul.f32 %v2520, %v2522
        %v2545 = vadd.f32 %v2495, %v2543
        %v2546 = vadd.f32 %v2496, %v2544
        %v2547 = vadd.f32 %v2497, %v2517
        %v2548 = vadd.f32 %v2498, %v2518
        %v2549 = vadd.f32 %v2499, %v2519
        %v2550 = vadd.f32 %v2500, %v2520
        %v2551 = vadd.f32 %v2501, %v2521
        %v2552 = vadd.f32 %v2502, %v2522
        %v2553 = vld [vmem:[#allocation2 + $0x7] sm:$0xff]
        %v2554 = vld [vmem:[#allocation2 + $0xf] sm:$0xff]
        %v2555 = vld [vmem:[%s172 + $0x7] sm:$0xff]
        %v2556 = vld [vmem:[%s172 + $0xf] sm:$0xff]
        %v2557 = vld [vmem:[%s179 + $0x7] sm:$0xff]
        %v2558 = vld [vmem:[%s179 + $0xf] sm:$0xff]
        %v2559 = vsub.f32 %v2557, %v192
        %v2560 = vsub.f32 %v2558, %v194
        %v2561 = vmul.f32 %v2559, %v202
        %v2562 = vmul.f32 %v2560, %v204
        %v2563 = vand.u32 2147483647, %v2561
        %v2564 = vand.u32 2147483647, %v2562
        %vm2565 = vcmp.gt.f32.partialorder %v2563, 0.15
        %vm2566 = vcmp.gt.f32.partialorder %v2564, 0.15
        %v2567 = vsel %vm2565, 0.0, %v2553
        %v2568 = vsel %vm2566, 0.0, %v2554
        %v2569 = vsel %vm2565, 0.0, %v2555
        %v2570 = vsel %vm2566, 0.0, %v2556
        %v2571 = vsel %vm2565, 0.0, %v2557
        %v2572 = vsel %vm2566, 0.0, %v2558
        %v2573 = vmul.f32 %v2567, %v2567
        %v2574 = vmul.f32 %v2568, %v2568
        %v2575 = vadd.f32 %v2525, %v2573
        %v2576 = vadd.f32 %v2526, %v2574
        %v2577 = vmul.f32 %v2569, %v2569
        %v2578 = vmul.f32 %v2570, %v2570
        %v2579 = vadd.f32 %v2529, %v2577
        %v2580 = vadd.f32 %v2530, %v2578
        %v2581 = vmul.f32 %v2571, %v2571
        %v2582 = vmul.f32 %v2572, %v2572
        %v2583 = vadd.f32 %v2533, %v2581
        %v2584 = vadd.f32 %v2534, %v2582
        %v2585 = vmul.f32 %v2567, %v2569
        %v2586 = vmul.f32 %v2568, %v2570
        %v2587 = vadd.f32 %v2537, %v2585
        %v2588 = vadd.f32 %v2538, %v2586
        %v2589 = vmul.f32 %v2567, %v2571
        %v2590 = vmul.f32 %v2568, %v2572
        %v2591 = vadd.f32 %v2541, %v2589
        %v2592 = vadd.f32 %v2542, %v2590
        %v2593 = vmul.f32 %v2569, %v2571
        %v2594 = vmul.f32 %v2570, %v2572
        %v2595 = vadd.f32 %v2545, %v2593
        %v2596 = vadd.f32 %v2546, %v2594
        %v2597 = vadd.f32 %v2547, %v2567
        %v2598 = vadd.f32 %v2548, %v2568
        %v2599 = vadd.f32 %v2549, %v2569
        %v2600 = vadd.f32 %v2550, %v2570
        %v2601 = vadd.f32 %v2551, %v2571
        %v2602 = vadd.f32 %v2552, %v2572
        %v2603 = vld [vmem:[#allocation2 + $0x10] sm:$0xff]
        %v2604 = vld [vmem:[%s172 + $0x10] sm:$0xff]
        %v2605 = vld [vmem:[%s179 + $0x10] sm:$0xff]
        %v2606 = vsub.f32 %v2208, %v192
        %v2607 = vsub.f32 %v2605, %v194
        %v2608 = vmul.f32 %v2606, %v202
        %v2609 = vmul.f32 %v2607, %v204
        %v2610 = vand.u32 2147483647, %v2608
        %v2611 = vand.u32 2147483647, %v2609
        %vm2612 = vcmp.gt.f32.partialorder %v2610, 0.15
        %vm2613 = vcmp.gt.f32.partialorder %v2611, 0.15
        %v2614 = vsel %vm2612, 0.0, %v2204
        %v2615 = vsel %vm2613, 0.0, %v2603
        %v2616 = vsel %vm2612, 0.0, %v2206
        %v2617 = vsel %vm2613, 0.0, %v2604
        %v2618 = vsel %vm2612, 0.0, %v2208
        %v2619 = vsel %vm2613, 0.0, %v2605
        %v2620 = vmul.f32 %v2614, %v2614
        %v2621 = vmul.f32 %v2615, %v2615
        %v2622 = vadd.f32 %v2575, %v2620
        %v2623 = vadd.f32 %v2576, %v2621
        %v2624 = vmul.f32 %v2616, %v2616
        %v2625 = vmul.f32 %v2617, %v2617
        %v2626 = vadd.f32 %v2579, %v2624
        %v2627 = vadd.f32 %v2580, %v2625
        %v2628 = vmul.f32 %v2618, %v2618
        %v2629 = vmul.f32 %v2619, %v2619
        %v2630 = vadd.f32 %v2583, %v2628
        %v2631 = vadd.f32 %v2584, %v2629
        %v2632 = vmul.f32 %v2614, %v2616
        %v2633 = vmul.f32 %v2615, %v2617
        %v2634 = vadd.f32 %v2587, %v2632
        %v2635 = vadd.f32 %v2588, %v2633
        %v2636 = vmul.f32 %v2614, %v2618
        %v2637 = vmul.f32 %v2615, %v2619
        %v2638 = vadd.f32 %v2591, %v2636
        %v2639 = vadd.f32 %v2592, %v2637
        %v2640 = vmul.f32 %v2616, %v2618
        %v2641 = vmul.f32 %v2617, %v2619
        %v2642 = vadd.f32 %v2595, %v2640
        %v2643 = vadd.f32 %v2596, %v2641
        %v2644 = vadd.f32 %v2597, %v2614
        %v2645 = vadd.f32 %v2598, %v2615
        %v2646 = vadd.f32 %v2599, %v2616
        %v2647 = vadd.f32 %v2600, %v2617
        %v2648 = vadd.f32 %v2601, %v2618
        %v2649 = vadd.f32 %v2602, %v2619
        %v2650 = vld [vmem:[%s134] sm:$0xff]
        %v2651 = vld [vmem:[%s134 + $0x8] sm:$0xff]
        %v2652 = vld [vmem:[%s134 + $0x10] sm:$0xff]
        %2656 = vrot.lane.b32.xlu0 %v2650, 123
        %v2657 = vpop.permute.xlu0 %2656
        %2658 = vrot.lane.b32.xlu0 %v2651, 123
        %v2659 = vpop.permute.xlu0 %2658
        %2660 = vrot.lane.b32.xlu0 %v2652, 123
        %v2661 = vpop.permute.xlu0 %2660
        %2665 = vst.msk [vmem:[#allocation2] sm:$0xff] %vm164, %v2657
        %2666 = vst.msk [vmem:[#allocation2 + $0x8] sm:$0xff] %vm164, %v2659
        %2667 = vst.msk [vmem:[#allocation2 + $0x10] sm:$0xff] %vm164, %v2661
        %v2668 = vld [vmem:[%s168] sm:$0xff]
        %v2669 = vld [vmem:[%s168 + $0x8] sm:$0xff]
        %v2670 = vld [vmem:[%s168 + $0x10] sm:$0xff]
        %2674 = vrot.lane.b32.xlu0 %v2668, 123
        %v2675 = vpop.permute.xlu0 %2674
        %2676 = vrot.lane.b32.xlu0 %v2669, 123
        %v2677 = vpop.permute.xlu0 %2676
        %2678 = vrot.lane.b32.xlu0 %v2670, 123
        %v2679 = vpop.permute.xlu0 %2678
        %2683 = vst.msk [vmem:[%s172] sm:$0xff] %vm164, %v2675
        %2684 = vst.msk [vmem:[%s172 + $0x8] sm:$0xff] %vm164, %v2677
        %2685 = vst.msk [vmem:[%s172 + $0x10] sm:$0xff] %vm164, %v2679
        %v2686 = vld [vmem:[%s154] sm:$0xff]
        %v2687 = vld [vmem:[%s154 + $0x8] sm:$0xff]
        %v2688 = vld [vmem:[%s154 + $0x10] sm:$0xff]
        %2692 = vrot.lane.b32.xlu0 %v2686, 123
        %v2693 = vpop.permute.xlu0 %2692
        %2694 = vrot.lane.b32.xlu0 %v2687, 123
        %v2695 = vpop.permute.xlu0 %2694
        %2696 = vrot.lane.b32.xlu0 %v2688, 123
        %v2697 = vpop.permute.xlu0 %2696
        %2701 = vst.msk [vmem:[%s179] sm:$0xff] %vm164, %v2693
        %2702 = vst.msk [vmem:[%s179 + $0x8] sm:$0xff] %vm164, %v2695
        %2703 = vst.msk [vmem:[%s179 + $0x10] sm:$0xff] %vm164, %v2697
        %v2704 = vld [vmem:[#allocation2] sm:$0xff]
        %v2705 = vld [vmem:[#allocation2 + $0x8] sm:$0xff]
        %v2706 = vld [vmem:[%s172] sm:$0xff]
        %v2707 = vld [vmem:[%s172 + $0x8] sm:$0xff]
        %v2708 = vld [vmem:[%s179] sm:$0xff]
        %v2709 = vld [vmem:[%s179 + $0x8] sm:$0xff]
        %v2710 = vsub.f32 %v2708, %v192
        %v2711 = vsub.f32 %v2709, %v194
        %v2712 = vmul.f32 %v2710, %v202
        %v2713 = vmul.f32 %v2711, %v204
        %v2714 = vand.u32 2147483647, %v2712
        %v2715 = vand.u32 2147483647, %v2713
        %vm2716 = vcmp.gt.f32.partialorder %v2714, 0.15
        %vm2717 = vcmp.gt.f32.partialorder %v2715, 0.15
        %v2718 = vsel %vm2716, 0.0, %v2704
        %v2719 = vsel %vm2717, 0.0, %v2705
        %v2720 = vsel %vm2716, 0.0, %v2706
        %v2721 = vsel %vm2717, 0.0, %v2707
        %v2722 = vsel %vm2716, 0.0, %v2708
        %v2723 = vsel %vm2717, 0.0, %v2709
        %v2724 = vmul.f32 %v2718, %v2718
        %v2725 = vmul.f32 %v2719, %v2719
        %v2726 = vadd.f32 %v2622, %v2724
        %v2727 = vadd.f32 %v2623, %v2725
        %v2728 = vmul.f32 %v2720, %v2720
        %v2729 = vmul.f32 %v2721, %v2721
        %v2730 = vadd.f32 %v2626, %v2728
        %v2731 = vadd.f32 %v2627, %v2729
        %v2732 = vmul.f32 %v2722, %v2722
        %v2733 = vmul.f32 %v2723, %v2723
        %v2734 = vadd.f32 %v2630, %v2732
        %v2735 = vadd.f32 %v2631, %v2733
        %v2736 = vmul.f32 %v2718, %v2720
        %v2737 = vmul.f32 %v2719, %v2721
        %v2738 = vadd.f32 %v2634, %v2736
        %v2739 = vadd.f32 %v2635, %v2737
        %v2740 = vmul.f32 %v2718, %v2722
        %v2741 = vmul.f32 %v2719, %v2723
        %v2742 = vadd.f32 %v2638, %v2740
        %v2743 = vadd.f32 %v2639, %v2741
        %v2744 = vmul.f32 %v2720, %v2722
        %v2745 = vmul.f32 %v2721, %v2723
        %v2746 = vadd.f32 %v2642, %v2744
        %v2747 = vadd.f32 %v2643, %v2745
        %v2748 = vadd.f32 %v2644, %v2718
        %v2749 = vadd.f32 %v2645, %v2719
        %v2750 = vadd.f32 %v2646, %v2720
        %v2751 = vadd.f32 %v2647, %v2721
        %v2752 = vadd.f32 %v2648, %v2722
        %v2753 = vadd.f32 %v2649, %v2723
        %v2754 = vld [vmem:[#allocation2 + $0x1] sm:$0xff]
        %v2755 = vld [vmem:[#allocation2 + $0x9] sm:$0xff]
        %v2756 = vld [vmem:[%s172 + $0x1] sm:$0xff]
        %v2757 = vld [vmem:[%s172 + $0x9] sm:$0xff]
        %v2758 = vld [vmem:[%s179 + $0x1] sm:$0xff]
        %v2759 = vld [vmem:[%s179 + $0x9] sm:$0xff]
        %v2760 = vsub.f32 %v2758, %v192
        %v2761 = vsub.f32 %v2759, %v194
        %v2762 = vmul.f32 %v2760, %v202
        %v2763 = vmul.f32 %v2761, %v204
        %v2764 = vand.u32 2147483647, %v2762
        %v2765 = vand.u32 2147483647, %v2763
        %vm2766 = vcmp.gt.f32.partialorder %v2764, 0.15
        %vm2767 = vcmp.gt.f32.partialorder %v2765, 0.15
        %v2768 = vsel %vm2766, 0.0, %v2754
        %v2769 = vsel %vm2767, 0.0, %v2755
        %v2770 = vsel %vm2766, 0.0, %v2756
        %v2771 = vsel %vm2767, 0.0, %v2757
        %v2772 = vsel %vm2766, 0.0, %v2758
        %v2773 = vsel %vm2767, 0.0, %v2759
        %v2774 = vmul.f32 %v2768, %v2768
        %v2775 = vmul.f32 %v2769, %v2769
        %v2776 = vadd.f32 %v2726, %v2774
        %v2777 = vadd.f32 %v2727, %v2775
        %v2778 = vmul.f32 %v2770, %v2770
        %v2779 = vmul.f32 %v2771, %v2771
        %v2780 = vadd.f32 %v2730, %v2778
        %v2781 = vadd.f32 %v2731, %v2779
        %v2782 = vmul.f32 %v2772, %v2772
        %v2783 = vmul.f32 %v2773, %v2773
        %v2784 = vadd.f32 %v2734, %v2782
        %v2785 = vadd.f32 %v2735, %v2783
        %v2786 = vmul.f32 %v2768, %v2770
        %v2787 = vmul.f32 %v2769, %v2771
        %v2788 = vadd.f32 %v2738, %v2786
        %v2789 = vadd.f32 %v2739, %v2787
        %v2790 = vmul.f32 %v2768, %v2772
        %v2791 = vmul.f32 %v2769, %v2773
        %v2792 = vadd.f32 %v2742, %v2790
        %v2793 = vadd.f32 %v2743, %v2791
        %v2794 = vmul.f32 %v2770, %v2772
        %v2795 = vmul.f32 %v2771, %v2773
        %v2796 = vadd.f32 %v2746, %v2794
        %v2797 = vadd.f32 %v2747, %v2795
        %v2798 = vadd.f32 %v2748, %v2768
        %v2799 = vadd.f32 %v2749, %v2769
        %v2800 = vadd.f32 %v2750, %v2770
        %v2801 = vadd.f32 %v2751, %v2771
        %v2802 = vadd.f32 %v2752, %v2772
        %v2803 = vadd.f32 %v2753, %v2773
        %v2804 = vld [vmem:[#allocation2 + $0x2] sm:$0xff]
        %v2805 = vld [vmem:[#allocation2 + $0xa] sm:$0xff]
        %v2806 = vld [vmem:[%s172 + $0x2] sm:$0xff]
        %v2807 = vld [vmem:[%s172 + $0xa] sm:$0xff]
        %v2808 = vld [vmem:[%s179 + $0x2] sm:$0xff]
        %v2809 = vld [vmem:[%s179 + $0xa] sm:$0xff]
        %v2810 = vsub.f32 %v2808, %v192
        %v2811 = vsub.f32 %v2809, %v194
        %v2812 = vmul.f32 %v2810, %v202
        %v2813 = vmul.f32 %v2811, %v204
        %v2814 = vand.u32 2147483647, %v2812
        %v2815 = vand.u32 2147483647, %v2813
        %vm2816 = vcmp.gt.f32.partialorder %v2814, 0.15
        %vm2817 = vcmp.gt.f32.partialorder %v2815, 0.15
        %v2818 = vsel %vm2816, 0.0, %v2804
        %v2819 = vsel %vm2817, 0.0, %v2805
        %v2820 = vsel %vm2816, 0.0, %v2806
        %v2821 = vsel %vm2817, 0.0, %v2807
        %v2822 = vsel %vm2816, 0.0, %v2808
        %v2823 = vsel %vm2817, 0.0, %v2809
        %v2824 = vmul.f32 %v2818, %v2818
        %v2825 = vmul.f32 %v2819, %v2819
        %v2826 = vadd.f32 %v2776, %v2824
        %v2827 = vadd.f32 %v2777, %v2825
        %v2828 = vmul.f32 %v2820, %v2820
        %v2829 = vmul.f32 %v2821, %v2821
        %v2830 = vadd.f32 %v2780, %v2828
        %v2831 = vadd.f32 %v2781, %v2829
        %v2832 = vmul.f32 %v2822, %v2822
        %v2833 = vmul.f32 %v2823, %v2823
        %v2834 = vadd.f32 %v2784, %v2832
        %v2835 = vadd.f32 %v2785, %v2833
        %v2836 = vmul.f32 %v2818, %v2820
        %v2837 = vmul.f32 %v2819, %v2821
        %v2838 = vadd.f32 %v2788, %v2836
        %v2839 = vadd.f32 %v2789, %v2837
        %v2840 = vmul.f32 %v2818, %v2822
        %v2841 = vmul.f32 %v2819, %v2823
        %v2842 = vadd.f32 %v2792, %v2840
        %v2843 = vadd.f32 %v2793, %v2841
        %v2844 = vmul.f32 %v2820, %v2822
        %v2845 = vmul.f32 %v2821, %v2823
        %v2846 = vadd.f32 %v2796, %v2844
        %v2847 = vadd.f32 %v2797, %v2845
        %v2848 = vadd.f32 %v2798, %v2818
        %v2849 = vadd.f32 %v2799, %v2819
        %v2850 = vadd.f32 %v2800, %v2820
        %v2851 = vadd.f32 %v2801, %v2821
        %v2852 = vadd.f32 %v2802, %v2822
        %v2853 = vadd.f32 %v2803, %v2823
        %v2854 = vld [vmem:[#allocation2 + $0x3] sm:$0xff]
        %v2855 = vld [vmem:[#allocation2 + $0xb] sm:$0xff]
        %v2856 = vld [vmem:[%s172 + $0x3] sm:$0xff]
        %v2857 = vld [vmem:[%s172 + $0xb] sm:$0xff]
        %v2858 = vld [vmem:[%s179 + $0x3] sm:$0xff]
        %v2859 = vld [vmem:[%s179 + $0xb] sm:$0xff]
        %v2860 = vsub.f32 %v2858, %v192
        %v2861 = vsub.f32 %v2859, %v194
        %v2862 = vmul.f32 %v2860, %v202
        %v2863 = vmul.f32 %v2861, %v204
        %v2864 = vand.u32 2147483647, %v2862
        %v2865 = vand.u32 2147483647, %v2863
        %vm2866 = vcmp.gt.f32.partialorder %v2864, 0.15
        %vm2867 = vcmp.gt.f32.partialorder %v2865, 0.15
        %v2868 = vsel %vm2866, 0.0, %v2854
        %v2869 = vsel %vm2867, 0.0, %v2855
        %v2870 = vsel %vm2866, 0.0, %v2856
        %v2871 = vsel %vm2867, 0.0, %v2857
        %v2872 = vsel %vm2866, 0.0, %v2858
        %v2873 = vsel %vm2867, 0.0, %v2859
        %v2874 = vmul.f32 %v2868, %v2868
        %v2875 = vmul.f32 %v2869, %v2869
        %v2876 = vadd.f32 %v2826, %v2874
        %v2877 = vadd.f32 %v2827, %v2875
        %v2878 = vmul.f32 %v2870, %v2870
        %v2879 = vmul.f32 %v2871, %v2871
        %v2880 = vadd.f32 %v2830, %v2878
        %v2881 = vadd.f32 %v2831, %v2879
        %v2882 = vmul.f32 %v2872, %v2872
        %v2883 = vmul.f32 %v2873, %v2873
        %v2884 = vadd.f32 %v2834, %v2882
        %v2885 = vadd.f32 %v2835, %v2883
        %v2886 = vmul.f32 %v2868, %v2870
        %v2887 = vmul.f32 %v2869, %v2871
        %v2888 = vadd.f32 %v2838, %v2886
        %v2889 = vadd.f32 %v2839, %v2887
        %v2890 = vmul.f32 %v2868, %v2872
        %v2891 = vmul.f32 %v2869, %v2873
        %v2892 = vadd.f32 %v2842, %v2890
        %v2893 = vadd.f32 %v2843, %v2891
        %v2894 = vmul.f32 %v2870, %v2872
        %v2895 = vmul.f32 %v2871, %v2873
        %v2896 = vadd.f32 %v2846, %v2894
        %v2897 = vadd.f32 %v2847, %v2895
        %v2898 = vadd.f32 %v2848, %v2868
        %v2899 = vadd.f32 %v2849, %v2869
        %v2900 = vadd.f32 %v2850, %v2870
        %v2901 = vadd.f32 %v2851, %v2871
        %v2902 = vadd.f32 %v2852, %v2872
        %v2903 = vadd.f32 %v2853, %v2873
        %v2904 = vld [vmem:[#allocation2 + $0x4] sm:$0xff]
        %v2905 = vld [vmem:[#allocation2 + $0xc] sm:$0xff]
        %v2906 = vld [vmem:[%s172 + $0x4] sm:$0xff]
        %v2907 = vld [vmem:[%s172 + $0xc] sm:$0xff]
        %v2908 = vld [vmem:[%s179 + $0x4] sm:$0xff]
        %v2909 = vld [vmem:[%s179 + $0xc] sm:$0xff]
        %v2910 = vsub.f32 %v2908, %v192
        %v2911 = vsub.f32 %v2909, %v194
        %v2912 = vmul.f32 %v2910, %v202
        %v2913 = vmul.f32 %v2911, %v204
        %v2914 = vand.u32 2147483647, %v2912
        %v2915 = vand.u32 2147483647, %v2913
        %vm2916 = vcmp.gt.f32.partialorder %v2914, 0.15
        %vm2917 = vcmp.gt.f32.partialorder %v2915, 0.15
        %v2918 = vsel %vm2916, 0.0, %v2904
        %v2919 = vsel %vm2917, 0.0, %v2905
        %v2920 = vsel %vm2916, 0.0, %v2906
        %v2921 = vsel %vm2917, 0.0, %v2907
        %v2922 = vsel %vm2916, 0.0, %v2908
        %v2923 = vsel %vm2917, 0.0, %v2909
        %v2924 = vmul.f32 %v2918, %v2918
        %v2925 = vmul.f32 %v2919, %v2919
        %v2926 = vadd.f32 %v2876, %v2924
        %v2927 = vadd.f32 %v2877, %v2925
        %v2928 = vmul.f32 %v2920, %v2920
        %v2929 = vmul.f32 %v2921, %v2921
        %v2930 = vadd.f32 %v2880, %v2928
        %v2931 = vadd.f32 %v2881, %v2929
        %v2932 = vmul.f32 %v2922, %v2922
        %v2933 = vmul.f32 %v2923, %v2923
        %v2934 = vadd.f32 %v2884, %v2932
        %v2935 = vadd.f32 %v2885, %v2933
        %v2936 = vmul.f32 %v2918, %v2920
        %v2937 = vmul.f32 %v2919, %v2921
        %v2938 = vadd.f32 %v2888, %v2936
        %v2939 = vadd.f32 %v2889, %v2937
        %v2940 = vmul.f32 %v2918, %v2922
        %v2941 = vmul.f32 %v2919, %v2923
        %v2942 = vadd.f32 %v2892, %v2940
        %v2943 = vadd.f32 %v2893, %v2941
        %v2944 = vmul.f32 %v2920, %v2922
        %v2945 = vmul.f32 %v2921, %v2923
        %v2946 = vadd.f32 %v2896, %v2944
        %v2947 = vadd.f32 %v2897, %v2945
        %v2948 = vadd.f32 %v2898, %v2918
        %v2949 = vadd.f32 %v2899, %v2919
        %v2950 = vadd.f32 %v2900, %v2920
        %v2951 = vadd.f32 %v2901, %v2921
        %v2952 = vadd.f32 %v2902, %v2922
        %v2953 = vadd.f32 %v2903, %v2923
        %v2954 = vld [vmem:[#allocation2 + $0x5] sm:$0xff]
        %v2955 = vld [vmem:[#allocation2 + $0xd] sm:$0xff]
        %v2956 = vld [vmem:[%s172 + $0x5] sm:$0xff]
        %v2957 = vld [vmem:[%s172 + $0xd] sm:$0xff]
        %v2958 = vld [vmem:[%s179 + $0x5] sm:$0xff]
        %v2959 = vld [vmem:[%s179 + $0xd] sm:$0xff]
        %v2960 = vsub.f32 %v2958, %v192
        %v2961 = vsub.f32 %v2959, %v194
        %v2962 = vmul.f32 %v2960, %v202
        %v2963 = vmul.f32 %v2961, %v204
        %v2964 = vand.u32 2147483647, %v2962
        %v2965 = vand.u32 2147483647, %v2963
        %vm2966 = vcmp.gt.f32.partialorder %v2964, 0.15
        %vm2967 = vcmp.gt.f32.partialorder %v2965, 0.15
        %v2968 = vsel %vm2966, 0.0, %v2954
        %v2969 = vsel %vm2967, 0.0, %v2955
        %v2970 = vsel %vm2966, 0.0, %v2956
        %v2971 = vsel %vm2967, 0.0, %v2957
        %v2972 = vsel %vm2966, 0.0, %v2958
        %v2973 = vsel %vm2967, 0.0, %v2959
        %v2974 = vmul.f32 %v2968, %v2968
        %v2975 = vmul.f32 %v2969, %v2969
        %v2976 = vadd.f32 %v2926, %v2974
        %v2977 = vadd.f32 %v2927, %v2975
        %v2978 = vmul.f32 %v2970, %v2970
        %v2979 = vmul.f32 %v2971, %v2971
        %v2980 = vadd.f32 %v2930, %v2978
        %v2981 = vadd.f32 %v2931, %v2979
        %v2982 = vmul.f32 %v2972, %v2972
        %v2983 = vmul.f32 %v2973, %v2973
        %v2984 = vadd.f32 %v2934, %v2982
        %v2985 = vadd.f32 %v2935, %v2983
        %v2986 = vmul.f32 %v2968, %v2970
        %v2987 = vmul.f32 %v2969, %v2971
        %v2988 = vadd.f32 %v2938, %v2986
        %v2989 = vadd.f32 %v2939, %v2987
        %v2990 = vmul.f32 %v2968, %v2972
        %v2991 = vmul.f32 %v2969, %v2973
        %v2992 = vadd.f32 %v2942, %v2990
        %v2993 = vadd.f32 %v2943, %v2991
        %v2994 = vmul.f32 %v2970, %v2972
        %v2995 = vmul.f32 %v2971, %v2973
        %v2996 = vadd.f32 %v2946, %v2994
        %v2997 = vadd.f32 %v2947, %v2995
        %v2998 = vadd.f32 %v2948, %v2968
        %v2999 = vadd.f32 %v2949, %v2969
        %v3000 = vadd.f32 %v2950, %v2970
        %v3001 = vadd.f32 %v2951, %v2971
        %v3002 = vadd.f32 %v2952, %v2972
        %v3003 = vadd.f32 %v2953, %v2973
        %v3004 = vld [vmem:[#allocation2 + $0x6] sm:$0xff]
        %v3005 = vld [vmem:[#allocation2 + $0xe] sm:$0xff]
        %v3006 = vld [vmem:[%s172 + $0x6] sm:$0xff]
        %v3007 = vld [vmem:[%s172 + $0xe] sm:$0xff]
        %v3008 = vld [vmem:[%s179 + $0x6] sm:$0xff]
        %v3009 = vld [vmem:[%s179 + $0xe] sm:$0xff]
        %v3010 = vsub.f32 %v3008, %v192
        %v3011 = vsub.f32 %v3009, %v194
        %v3012 = vmul.f32 %v3010, %v202
        %v3013 = vmul.f32 %v3011, %v204
        %v3014 = vand.u32 2147483647, %v3012
        %v3015 = vand.u32 2147483647, %v3013
        %vm3016 = vcmp.gt.f32.partialorder %v3014, 0.15
        %vm3017 = vcmp.gt.f32.partialorder %v3015, 0.15
        %v3018 = vsel %vm3016, 0.0, %v3004
        %v3019 = vsel %vm3017, 0.0, %v3005
        %v3020 = vsel %vm3016, 0.0, %v3006
        %v3021 = vsel %vm3017, 0.0, %v3007
        %v3022 = vsel %vm3016, 0.0, %v3008
        %v3023 = vsel %vm3017, 0.0, %v3009
        %v3024 = vmul.f32 %v3018, %v3018
        %v3025 = vmul.f32 %v3019, %v3019
        %v3026 = vadd.f32 %v2976, %v3024
        %v3027 = vadd.f32 %v2977, %v3025
        %v3028 = vmul.f32 %v3020, %v3020
        %v3029 = vmul.f32 %v3021, %v3021
        %v3030 = vadd.f32 %v2980, %v3028
        %v3031 = vadd.f32 %v2981, %v3029
        %v3032 = vmul.f32 %v3022, %v3022
        %v3033 = vmul.f32 %v3023, %v3023
        %v3034 = vadd.f32 %v2984, %v3032
        %v3035 = vadd.f32 %v2985, %v3033
        %v3036 = vmul.f32 %v3018, %v3020
        %v3037 = vmul.f32 %v3019, %v3021
        %v3038 = vadd.f32 %v2988, %v3036
        %v3039 = vadd.f32 %v2989, %v3037
        %v3040 = vmul.f32 %v3018, %v3022
        %v3041 = vmul.f32 %v3019, %v3023
        %v3042 = vadd.f32 %v2992, %v3040
        %v3043 = vadd.f32 %v2993, %v3041
        %v3044 = vmul.f32 %v3020, %v3022
        %v3045 = vmul.f32 %v3021, %v3023
        %v3046 = vadd.f32 %v2996, %v3044
        %v3047 = vadd.f32 %v2997, %v3045
        %v3048 = vadd.f32 %v2998, %v3018
        %v3049 = vadd.f32 %v2999, %v3019
        %v3050 = vadd.f32 %v3000, %v3020
        %v3051 = vadd.f32 %v3001, %v3021
        %v3052 = vadd.f32 %v3002, %v3022
        %v3053 = vadd.f32 %v3003, %v3023
        %v3054 = vld [vmem:[#allocation2 + $0x7] sm:$0xff]
        %v3055 = vld [vmem:[#allocation2 + $0xf] sm:$0xff]
        %v3056 = vld [vmem:[%s172 + $0x7] sm:$0xff]
        %v3057 = vld [vmem:[%s172 + $0xf] sm:$0xff]
        %v3058 = vld [vmem:[%s179 + $0x7] sm:$0xff]
        %v3059 = vld [vmem:[%s179 + $0xf] sm:$0xff]
        %v3060 = vsub.f32 %v3058, %v192
        %v3061 = vsub.f32 %v3059, %v194
        %v3062 = vmul.f32 %v3060, %v202
        %v3063 = vmul.f32 %v3061, %v204
        %v3064 = vand.u32 2147483647, %v3062
        %v3065 = vand.u32 2147483647, %v3063
        %vm3066 = vcmp.gt.f32.partialorder %v3064, 0.15
        %vm3067 = vcmp.gt.f32.partialorder %v3065, 0.15
        %v3068 = vsel %vm3066, 0.0, %v3054
        %v3069 = vsel %vm3067, 0.0, %v3055
        %v3070 = vsel %vm3066, 0.0, %v3056
        %v3071 = vsel %vm3067, 0.0, %v3057
        %v3072 = vsel %vm3066, 0.0, %v3058
        %v3073 = vsel %vm3067, 0.0, %v3059
        %v3074 = vmul.f32 %v3068, %v3068
        %v3075 = vmul.f32 %v3069, %v3069
        %v3076 = vadd.f32 %v3026, %v3074
        %v3077 = vadd.f32 %v3027, %v3075
        %v3078 = vmul.f32 %v3070, %v3070
        %v3079 = vmul.f32 %v3071, %v3071
        %v3080 = vadd.f32 %v3030, %v3078
        %v3081 = vadd.f32 %v3031, %v3079
        %v3082 = vmul.f32 %v3072, %v3072
        %v3083 = vmul.f32 %v3073, %v3073
        %v3084 = vadd.f32 %v3034, %v3082
        %v3085 = vadd.f32 %v3035, %v3083
        %v3086 = vmul.f32 %v3068, %v3070
        %v3087 = vmul.f32 %v3069, %v3071
        %v3088 = vadd.f32 %v3038, %v3086
        %v3089 = vadd.f32 %v3039, %v3087
        %v3090 = vmul.f32 %v3068, %v3072
        %v3091 = vmul.f32 %v3069, %v3073
        %v3092 = vadd.f32 %v3042, %v3090
        %v3093 = vadd.f32 %v3043, %v3091
        %v3094 = vmul.f32 %v3070, %v3072
        %v3095 = vmul.f32 %v3071, %v3073
        %v3096 = vadd.f32 %v3046, %v3094
        %v3097 = vadd.f32 %v3047, %v3095
        %v3098 = vadd.f32 %v3048, %v3068
        %v3099 = vadd.f32 %v3049, %v3069
        %v3100 = vadd.f32 %v3050, %v3070
        %v3101 = vadd.f32 %v3051, %v3071
        %v3102 = vadd.f32 %v3052, %v3072
        %v3103 = vadd.f32 %v3053, %v3073
        %v3104 = vld [vmem:[#allocation2 + $0x10] sm:$0xff]
        %v3105 = vld [vmem:[%s172 + $0x10] sm:$0xff]
        %v3106 = vld [vmem:[%s179 + $0x10] sm:$0xff]
        %v3107 = vsub.f32 %v2709, %v192
        %v3108 = vsub.f32 %v3106, %v194
        %v3109 = vmul.f32 %v3107, %v202
        %v3110 = vmul.f32 %v3108, %v204
        %v3111 = vand.u32 2147483647, %v3109
        %v3112 = vand.u32 2147483647, %v3110
        %vm3113 = vcmp.gt.f32.partialorder %v3111, 0.15
        %vm3114 = vcmp.gt.f32.partialorder %v3112, 0.15
        %v3115 = vsel %vm3113, 0.0, %v2705
        %v3116 = vsel %vm3114, 0.0, %v3104
        %v3117 = vsel %vm3113, 0.0, %v2707
        %v3118 = vsel %vm3114, 0.0, %v3105
        %v3119 = vsel %vm3113, 0.0, %v2709
        %v3120 = vsel %vm3114, 0.0, %v3106
        %v3121 = vmul.f32 %v3115, %v3115
        %v3122 = vmul.f32 %v3116, %v3116
        %v3123 = vadd.f32 %v3076, %v3121
        %v3124 = vadd.f32 %v3077, %v3122
        %v3125 = vmul.f32 %v3117, %v3117
        %v3126 = vmul.f32 %v3118, %v3118
        %v3127 = vadd.f32 %v3080, %v3125
        %v3128 = vadd.f32 %v3081, %v3126
        %v3129 = vmul.f32 %v3119, %v3119
        %v3130 = vmul.f32 %v3120, %v3120
        %v3131 = vadd.f32 %v3084, %v3129
        %v3132 = vadd.f32 %v3085, %v3130
        %v3133 = vmul.f32 %v3115, %v3117
        %v3134 = vmul.f32 %v3116, %v3118
        %v3135 = vadd.f32 %v3088, %v3133
        %v3136 = vadd.f32 %v3089, %v3134
        %v3137 = vmul.f32 %v3115, %v3119
        %v3138 = vmul.f32 %v3116, %v3120
        %v3139 = vadd.f32 %v3092, %v3137
        %v3140 = vadd.f32 %v3093, %v3138
        %v3141 = vmul.f32 %v3117, %v3119
        %v3142 = vmul.f32 %v3118, %v3120
        %v3143 = vadd.f32 %v3096, %v3141
        %v3144 = vadd.f32 %v3097, %v3142
        %v3145 = vadd.f32 %v3098, %v3115
        %v3146 = vadd.f32 %v3099, %v3116
        %v3147 = vadd.f32 %v3100, %v3117
        %v3148 = vadd.f32 %v3101, %v3118
        %v3149 = vadd.f32 %v3102, %v3119
        %v3150 = vadd.f32 %v3103, %v3120
        %v3151 = vld [vmem:[%s134] sm:$0xff]
        %v3152 = vld [vmem:[%s134 + $0x8] sm:$0xff]
        %v3153 = vld [vmem:[%s134 + $0x10] sm:$0xff]
        %3157 = vrot.lane.b32.xlu0 %v3151, 122
        %v3158 = vpop.permute.xlu0 %3157
        %3159 = vrot.lane.b32.xlu0 %v3152, 122
        %v3160 = vpop.permute.xlu0 %3159
        %3161 = vrot.lane.b32.xlu0 %v3153, 122
        %v3162 = vpop.permute.xlu0 %3161
        %3166 = vst.msk [vmem:[#allocation2] sm:$0xff] %vm164, %v3158
        %3167 = vst.msk [vmem:[#allocation2 + $0x8] sm:$0xff] %vm164, %v3160
        %3168 = vst.msk [vmem:[#allocation2 + $0x10] sm:$0xff] %vm164, %v3162
        %v3169 = vld [vmem:[%s168] sm:$0xff]
        %v3170 = vld [vmem:[%s168 + $0x8] sm:$0xff]
        %v3171 = vld [vmem:[%s168 + $0x10] sm:$0xff]
        %3175 = vrot.lane.b32.xlu0 %v3169, 122
        %v3176 = vpop.permute.xlu0 %3175
        %3177 = vrot.lane.b32.xlu0 %v3170, 122
        %v3178 = vpop.permute.xlu0 %3177
        %3179 = vrot.lane.b32.xlu0 %v3171, 122
        %v3180 = vpop.permute.xlu0 %3179
        %3184 = vst.msk [vmem:[%s172] sm:$0xff] %vm164, %v3176
        %3185 = vst.msk [vmem:[%s172 + $0x8] sm:$0xff] %vm164, %v3178
        %3186 = vst.msk [vmem:[%s172 + $0x10] sm:$0xff] %vm164, %v3180
        %v3187 = vld [vmem:[%s154] sm:$0xff]
        %v3188 = vld [vmem:[%s154 + $0x8] sm:$0xff]
        %v3189 = vld [vmem:[%s154 + $0x10] sm:$0xff]
        %3193 = vrot.lane.b32.xlu0 %v3187, 122
        %v3194 = vpop.permute.xlu0 %3193
        %3195 = vrot.lane.b32.xlu0 %v3188, 122
        %v3196 = vpop.permute.xlu0 %3195
        %3197 = vrot.lane.b32.xlu0 %v3189, 122
        %v3198 = vpop.permute.xlu0 %3197
        %3202 = vst.msk [vmem:[%s179] sm:$0xff] %vm164, %v3194
        %3203 = vst.msk [vmem:[%s179 + $0x8] sm:$0xff] %vm164, %v3196
        %3204 = vst.msk [vmem:[%s179 + $0x10] sm:$0xff] %vm164, %v3198
        %v3205 = vld [vmem:[#allocation2] sm:$0xff]
        %v3206 = vld [vmem:[#allocation2 + $0x8] sm:$0xff]
        %v3207 = vld [vmem:[%s172] sm:$0xff]
        %v3208 = vld [vmem:[%s172 + $0x8] sm:$0xff]
        %v3209 = vld [vmem:[%s179] sm:$0xff]
        %v3210 = vld [vmem:[%s179 + $0x8] sm:$0xff]
        %v3211 = vsub.f32 %v3209, %v192
        %v3212 = vsub.f32 %v3210, %v194
        %v3213 = vmul.f32 %v3211, %v202
        %v3214 = vmul.f32 %v3212, %v204
        %v3215 = vand.u32 2147483647, %v3213
        %v3216 = vand.u32 2147483647, %v3214
        %vm3217 = vcmp.gt.f32.partialorder %v3215, 0.15
        %vm3218 = vcmp.gt.f32.partialorder %v3216, 0.15
        %v3219 = vsel %vm3217, 0.0, %v3205
        %v3220 = vsel %vm3218, 0.0, %v3206
        %v3221 = vsel %vm3217, 0.0, %v3207
        %v3222 = vsel %vm3218, 0.0, %v3208
        %v3223 = vsel %vm3217, 0.0, %v3209
        %v3224 = vsel %vm3218, 0.0, %v3210
        %v3225 = vmul.f32 %v3219, %v3219
        %v3226 = vmul.f32 %v3220, %v3220
        %v3227 = vadd.f32 %v3123, %v3225
        %v3228 = vadd.f32 %v3124, %v3226
        %v3229 = vmul.f32 %v3221, %v3221
        %v3230 = vmul.f32 %v3222, %v3222
        %v3231 = vadd.f32 %v3127, %v3229
        %v3232 = vadd.f32 %v3128, %v3230
        %v3233 = vmul.f32 %v3223, %v3223
        %v3234 = vmul.f32 %v3224, %v3224
        %v3235 = vadd.f32 %v3131, %v3233
        %v3236 = vadd.f32 %v3132, %v3234
        %v3237 = vmul.f32 %v3219, %v3221
        %v3238 = vmul.f32 %v3220, %v3222
        %v3239 = vadd.f32 %v3135, %v3237
        %v3240 = vadd.f32 %v3136, %v3238
        %v3241 = vmul.f32 %v3219, %v3223
        %v3242 = vmul.f32 %v3220, %v3224
        %v3243 = vadd.f32 %v3139, %v3241
        %v3244 = vadd.f32 %v3140, %v3242
        %v3245 = vmul.f32 %v3221, %v3223
        %v3246 = vmul.f32 %v3222, %v3224
        %v3247 = vadd.f32 %v3143, %v3245
        %v3248 = vadd.f32 %v3144, %v3246
        %v3249 = vadd.f32 %v3145, %v3219
        %v3250 = vadd.f32 %v3146, %v3220
        %v3251 = vadd.f32 %v3147, %v3221
        %v3252 = vadd.f32 %v3148, %v3222
        %v3253 = vadd.f32 %v3149, %v3223
        %v3254 = vadd.f32 %v3150, %v3224
        %v3255 = vld [vmem:[#allocation2 + $0x1] sm:$0xff]
        %v3256 = vld [vmem:[#allocation2 + $0x9] sm:$0xff]
        %v3257 = vld [vmem:[%s172 + $0x1] sm:$0xff]
        %v3258 = vld [vmem:[%s172 + $0x9] sm:$0xff]
        %v3259 = vld [vmem:[%s179 + $0x1] sm:$0xff]
        %v3260 = vld [vmem:[%s179 + $0x9] sm:$0xff]
        %v3261 = vsub.f32 %v3259, %v192
        %v3262 = vsub.f32 %v3260, %v194
        %v3263 = vmul.f32 %v3261, %v202
        %v3264 = vmul.f32 %v3262, %v204
        %v3265 = vand.u32 2147483647, %v3263
        %v3266 = vand.u32 2147483647, %v3264
        %vm3267 = vcmp.gt.f32.partialorder %v3265, 0.15
        %vm3268 = vcmp.gt.f32.partialorder %v3266, 0.15
        %v3269 = vsel %vm3267, 0.0, %v3255
        %v3270 = vsel %vm3268, 0.0, %v3256
        %v3271 = vsel %vm3267, 0.0, %v3257
        %v3272 = vsel %vm3268, 0.0, %v3258
        %v3273 = vsel %vm3267, 0.0, %v3259
        %v3274 = vsel %vm3268, 0.0, %v3260
        %v3275 = vmul.f32 %v3269, %v3269
        %v3276 = vmul.f32 %v3270, %v3270
        %v3277 = vadd.f32 %v3227, %v3275
        %v3278 = vadd.f32 %v3228, %v3276
        %v3279 = vmul.f32 %v3271, %v3271
        %v3280 = vmul.f32 %v3272, %v3272
        %v3281 = vadd.f32 %v3231, %v3279
        %v3282 = vadd.f32 %v3232, %v3280
        %v3283 = vmul.f32 %v3273, %v3273
        %v3284 = vmul.f32 %v3274, %v3274
        %v3285 = vadd.f32 %v3235, %v3283
        %v3286 = vadd.f32 %v3236, %v3284
        %v3287 = vmul.f32 %v3269, %v3271
        %v3288 = vmul.f32 %v3270, %v3272
        %v3289 = vadd.f32 %v3239, %v3287
        %v3290 = vadd.f32 %v3240, %v3288
        %v3291 = vmul.f32 %v3269, %v3273
        %v3292 = vmul.f32 %v3270, %v3274
        %v3293 = vadd.f32 %v3243, %v3291
        %v3294 = vadd.f32 %v3244, %v3292
        %v3295 = vmul.f32 %v3271, %v3273
        %v3296 = vmul.f32 %v3272, %v3274
        %v3297 = vadd.f32 %v3247, %v3295
        %v3298 = vadd.f32 %v3248, %v3296
        %v3299 = vadd.f32 %v3249, %v3269
        %v3300 = vadd.f32 %v3250, %v3270
        %v3301 = vadd.f32 %v3251, %v3271
        %v3302 = vadd.f32 %v3252, %v3272
        %v3303 = vadd.f32 %v3253, %v3273
        %v3304 = vadd.f32 %v3254, %v3274
        %v3305 = vld [vmem:[#allocation2 + $0x2] sm:$0xff]
        %v3306 = vld [vmem:[#allocation2 + $0xa] sm:$0xff]
        %v3307 = vld [vmem:[%s172 + $0x2] sm:$0xff]
        %v3308 = vld [vmem:[%s172 + $0xa] sm:$0xff]
        %v3309 = vld [vmem:[%s179 + $0x2] sm:$0xff]
        %v3310 = vld [vmem:[%s179 + $0xa] sm:$0xff]
        %v3311 = vsub.f32 %v3309, %v192
        %v3312 = vsub.f32 %v3310, %v194
        %v3313 = vmul.f32 %v3311, %v202
        %v3314 = vmul.f32 %v3312, %v204
        %v3315 = vand.u32 2147483647, %v3313
        %v3316 = vand.u32 2147483647, %v3314
        %vm3317 = vcmp.gt.f32.partialorder %v3315, 0.15
        %vm3318 = vcmp.gt.f32.partialorder %v3316, 0.15
        %v3319 = vsel %vm3317, 0.0, %v3305
        %v3320 = vsel %vm3318, 0.0, %v3306
        %v3321 = vsel %vm3317, 0.0, %v3307
        %v3322 = vsel %vm3318, 0.0, %v3308
        %v3323 = vsel %vm3317, 0.0, %v3309
        %v3324 = vsel %vm3318, 0.0, %v3310
        %v3325 = vmul.f32 %v3319, %v3319
        %v3326 = vmul.f32 %v3320, %v3320
        %v3327 = vadd.f32 %v3277, %v3325
        %v3328 = vadd.f32 %v3278, %v3326
        %v3329 = vmul.f32 %v3321, %v3321
        %v3330 = vmul.f32 %v3322, %v3322
        %v3331 = vadd.f32 %v3281, %v3329
        %v3332 = vadd.f32 %v3282, %v3330
        %v3333 = vmul.f32 %v3323, %v3323
        %v3334 = vmul.f32 %v3324, %v3324
        %v3335 = vadd.f32 %v3285, %v3333
        %v3336 = vadd.f32 %v3286, %v3334
        %v3337 = vmul.f32 %v3319, %v3321
        %v3338 = vmul.f32 %v3320, %v3322
        %v3339 = vadd.f32 %v3289, %v3337
        %v3340 = vadd.f32 %v3290, %v3338
        %v3341 = vmul.f32 %v3319, %v3323
        %v3342 = vmul.f32 %v3320, %v3324
        %v3343 = vadd.f32 %v3293, %v3341
        %v3344 = vadd.f32 %v3294, %v3342
        %v3345 = vmul.f32 %v3321, %v3323
        %v3346 = vmul.f32 %v3322, %v3324
        %v3347 = vadd.f32 %v3297, %v3345
        %v3348 = vadd.f32 %v3298, %v3346
        %v3349 = vadd.f32 %v3299, %v3319
        %v3350 = vadd.f32 %v3300, %v3320
        %v3351 = vadd.f32 %v3301, %v3321
        %v3352 = vadd.f32 %v3302, %v3322
        %v3353 = vadd.f32 %v3303, %v3323
        %v3354 = vadd.f32 %v3304, %v3324
        %v3355 = vld [vmem:[#allocation2 + $0x3] sm:$0xff]
        %v3356 = vld [vmem:[#allocation2 + $0xb] sm:$0xff]
        %v3357 = vld [vmem:[%s172 + $0x3] sm:$0xff]
        %v3358 = vld [vmem:[%s172 + $0xb] sm:$0xff]
        %v3359 = vld [vmem:[%s179 + $0x3] sm:$0xff]
        %v3360 = vld [vmem:[%s179 + $0xb] sm:$0xff]
        %v3361 = vsub.f32 %v3359, %v192
        %v3362 = vsub.f32 %v3360, %v194
        %v3363 = vmul.f32 %v3361, %v202
        %v3364 = vmul.f32 %v3362, %v204
        %v3365 = vand.u32 2147483647, %v3363
        %v3366 = vand.u32 2147483647, %v3364
        %vm3367 = vcmp.gt.f32.partialorder %v3365, 0.15
        %vm3368 = vcmp.gt.f32.partialorder %v3366, 0.15
        %v3369 = vsel %vm3367, 0.0, %v3355
        %v3370 = vsel %vm3368, 0.0, %v3356
        %v3371 = vsel %vm3367, 0.0, %v3357
        %v3372 = vsel %vm3368, 0.0, %v3358
        %v3373 = vsel %vm3367, 0.0, %v3359
        %v3374 = vsel %vm3368, 0.0, %v3360
        %v3375 = vmul.f32 %v3369, %v3369
        %v3376 = vmul.f32 %v3370, %v3370
        %v3377 = vadd.f32 %v3327, %v3375
        %v3378 = vadd.f32 %v3328, %v3376
        %v3379 = vmul.f32 %v3371, %v3371
        %v3380 = vmul.f32 %v3372, %v3372
        %v3381 = vadd.f32 %v3331, %v3379
        %v3382 = vadd.f32 %v3332, %v3380
        %v3383 = vmul.f32 %v3373, %v3373
        %v3384 = vmul.f32 %v3374, %v3374
        %v3385 = vadd.f32 %v3335, %v3383
        %v3386 = vadd.f32 %v3336, %v3384
        %v3387 = vmul.f32 %v3369, %v3371
        %v3388 = vmul.f32 %v3370, %v3372
        %v3389 = vadd.f32 %v3339, %v3387
        %v3390 = vadd.f32 %v3340, %v3388
        %v3391 = vmul.f32 %v3369, %v3373
        %v3392 = vmul.f32 %v3370, %v3374
        %v3393 = vadd.f32 %v3343, %v3391
        %v3394 = vadd.f32 %v3344, %v3392
        %v3395 = vmul.f32 %v3371, %v3373
        %v3396 = vmul.f32 %v3372, %v3374
        %v3397 = vadd.f32 %v3347, %v3395
        %v3398 = vadd.f32 %v3348, %v3396
        %v3399 = vadd.f32 %v3349, %v3369
        %v3400 = vadd.f32 %v3350, %v3370
        %v3401 = vadd.f32 %v3351, %v3371
        %v3402 = vadd.f32 %v3352, %v3372
        %v3403 = vadd.f32 %v3353, %v3373
        %v3404 = vadd.f32 %v3354, %v3374
        %v3405 = vld [vmem:[#allocation2 + $0x4] sm:$0xff]
        %v3406 = vld [vmem:[#allocation2 + $0xc] sm:$0xff]
        %v3407 = vld [vmem:[%s172 + $0x4] sm:$0xff]
        %v3408 = vld [vmem:[%s172 + $0xc] sm:$0xff]
        %v3409 = vld [vmem:[%s179 + $0x4] sm:$0xff]
        %v3410 = vld [vmem:[%s179 + $0xc] sm:$0xff]
        %v3411 = vsub.f32 %v3409, %v192
        %v3412 = vsub.f32 %v3410, %v194
        %v3413 = vmul.f32 %v3411, %v202
        %v3414 = vmul.f32 %v3412, %v204
        %v3415 = vand.u32 2147483647, %v3413
        %v3416 = vand.u32 2147483647, %v3414
        %vm3417 = vcmp.gt.f32.partialorder %v3415, 0.15
        %vm3418 = vcmp.gt.f32.partialorder %v3416, 0.15
        %v3419 = vsel %vm3417, 0.0, %v3405
        %v3420 = vsel %vm3418, 0.0, %v3406
        %v3421 = vsel %vm3417, 0.0, %v3407
        %v3422 = vsel %vm3418, 0.0, %v3408
        %v3423 = vsel %vm3417, 0.0, %v3409
        %v3424 = vsel %vm3418, 0.0, %v3410
        %v3425 = vmul.f32 %v3419, %v3419
        %v3426 = vmul.f32 %v3420, %v3420
        %v3427 = vadd.f32 %v3377, %v3425
        %v3428 = vadd.f32 %v3378, %v3426
        %v3429 = vmul.f32 %v3421, %v3421
        %v3430 = vmul.f32 %v3422, %v3422
        %v3431 = vadd.f32 %v3381, %v3429
        %v3432 = vadd.f32 %v3382, %v3430
        %v3433 = vmul.f32 %v3423, %v3423
        %v3434 = vmul.f32 %v3424, %v3424
        %v3435 = vadd.f32 %v3385, %v3433
        %v3436 = vadd.f32 %v3386, %v3434
        %v3437 = vmul.f32 %v3419, %v3421
        %v3438 = vmul.f32 %v3420, %v3422
        %v3439 = vadd.f32 %v3389, %v3437
        %v3440 = vadd.f32 %v3390, %v3438
        %v3441 = vmul.f32 %v3419, %v3423
        %v3442 = vmul.f32 %v3420, %v3424
        %v3443 = vadd.f32 %v3393, %v3441
        %v3444 = vadd.f32 %v3394, %v3442
        %v3445 = vmul.f32 %v3421, %v3423
        %v3446 = vmul.f32 %v3422, %v3424
        %v3447 = vadd.f32 %v3397, %v3445
        %v3448 = vadd.f32 %v3398, %v3446
        %v3449 = vadd.f32 %v3399, %v3419
        %v3450 = vadd.f32 %v3400, %v3420
        %v3451 = vadd.f32 %v3401, %v3421
        %v3452 = vadd.f32 %v3402, %v3422
        %v3453 = vadd.f32 %v3403, %v3423
        %v3454 = vadd.f32 %v3404, %v3424
        %v3455 = vld [vmem:[#allocation2 + $0x5] sm:$0xff]
        %v3456 = vld [vmem:[#allocation2 + $0xd] sm:$0xff]
        %v3457 = vld [vmem:[%s172 + $0x5] sm:$0xff]
        %v3458 = vld [vmem:[%s172 + $0xd] sm:$0xff]
        %v3459 = vld [vmem:[%s179 + $0x5] sm:$0xff]
        %v3460 = vld [vmem:[%s179 + $0xd] sm:$0xff]
        %v3461 = vsub.f32 %v3459, %v192
        %v3462 = vsub.f32 %v3460, %v194
        %v3463 = vmul.f32 %v3461, %v202
        %v3464 = vmul.f32 %v3462, %v204
        %v3465 = vand.u32 2147483647, %v3463
        %v3466 = vand.u32 2147483647, %v3464
        %vm3467 = vcmp.gt.f32.partialorder %v3465, 0.15
        %vm3468 = vcmp.gt.f32.partialorder %v3466, 0.15
        %v3469 = vsel %vm3467, 0.0, %v3455
        %v3470 = vsel %vm3468, 0.0, %v3456
        %v3471 = vsel %vm3467, 0.0, %v3457
        %v3472 = vsel %vm3468, 0.0, %v3458
        %v3473 = vsel %vm3467, 0.0, %v3459
        %v3474 = vsel %vm3468, 0.0, %v3460
        %v3475 = vmul.f32 %v3469, %v3469
        %v3476 = vmul.f32 %v3470, %v3470
        %v3477 = vadd.f32 %v3427, %v3475
        %v3478 = vadd.f32 %v3428, %v3476
        %v3479 = vmul.f32 %v3471, %v3471
        %v3480 = vmul.f32 %v3472, %v3472
        %v3481 = vadd.f32 %v3431, %v3479
        %v3482 = vadd.f32 %v3432, %v3480
        %v3483 = vmul.f32 %v3473, %v3473
        %v3484 = vmul.f32 %v3474, %v3474
        %v3485 = vadd.f32 %v3435, %v3483
        %v3486 = vadd.f32 %v3436, %v3484
        %v3487 = vmul.f32 %v3469, %v3471
        %v3488 = vmul.f32 %v3470, %v3472
        %v3489 = vadd.f32 %v3439, %v3487
        %v3490 = vadd.f32 %v3440, %v3488
        %v3491 = vmul.f32 %v3469, %v3473
        %v3492 = vmul.f32 %v3470, %v3474
        %v3493 = vadd.f32 %v3443, %v3491
        %v3494 = vadd.f32 %v3444, %v3492
        %v3495 = vmul.f32 %v3471, %v3473
        %v3496 = vmul.f32 %v3472, %v3474
        %v3497 = vadd.f32 %v3447, %v3495
        %v3498 = vadd.f32 %v3448, %v3496
        %v3499 = vadd.f32 %v3449, %v3469
        %v3500 = vadd.f32 %v3450, %v3470
        %v3501 = vadd.f32 %v3451, %v3471
        %v3502 = vadd.f32 %v3452, %v3472
        %v3503 = vadd.f32 %v3453, %v3473
        %v3504 = vadd.f32 %v3454, %v3474
        %v3505 = vld [vmem:[#allocation2 + $0x6] sm:$0xff]
        %v3506 = vld [vmem:[#allocation2 + $0xe] sm:$0xff]
        %v3507 = vld [vmem:[%s172 + $0x6] sm:$0xff]
        %v3508 = vld [vmem:[%s172 + $0xe] sm:$0xff]
        %v3509 = vld [vmem:[%s179 + $0x6] sm:$0xff]
        %v3510 = vld [vmem:[%s179 + $0xe] sm:$0xff]
        %v3511 = vsub.f32 %v3509, %v192
        %v3512 = vsub.f32 %v3510, %v194
        %v3513 = vmul.f32 %v3511, %v202
        %v3514 = vmul.f32 %v3512, %v204
        %v3515 = vand.u32 2147483647, %v3513
        %v3516 = vand.u32 2147483647, %v3514
        %vm3517 = vcmp.gt.f32.partialorder %v3515, 0.15
        %vm3518 = vcmp.gt.f32.partialorder %v3516, 0.15
        %v3519 = vsel %vm3517, 0.0, %v3505
        %v3520 = vsel %vm3518, 0.0, %v3506
        %v3521 = vsel %vm3517, 0.0, %v3507
        %v3522 = vsel %vm3518, 0.0, %v3508
        %v3523 = vsel %vm3517, 0.0, %v3509
        %v3524 = vsel %vm3518, 0.0, %v3510
        %v3525 = vmul.f32 %v3519, %v3519
        %v3526 = vmul.f32 %v3520, %v3520
        %v3527 = vadd.f32 %v3477, %v3525
        %v3528 = vadd.f32 %v3478, %v3526
        %v3529 = vmul.f32 %v3521, %v3521
        %v3530 = vmul.f32 %v3522, %v3522
        %v3531 = vadd.f32 %v3481, %v3529
        %v3532 = vadd.f32 %v3482, %v3530
        %v3533 = vmul.f32 %v3523, %v3523
        %v3534 = vmul.f32 %v3524, %v3524
        %v3535 = vadd.f32 %v3485, %v3533
        %v3536 = vadd.f32 %v3486, %v3534
        %v3537 = vmul.f32 %v3519, %v3521
        %v3538 = vmul.f32 %v3520, %v3522
        %v3539 = vadd.f32 %v3489, %v3537
        %v3540 = vadd.f32 %v3490, %v3538
        %v3541 = vmul.f32 %v3519, %v3523
        %v3542 = vmul.f32 %v3520, %v3524
        %v3543 = vadd.f32 %v3493, %v3541
        %v3544 = vadd.f32 %v3494, %v3542
        %v3545 = vmul.f32 %v3521, %v3523
        %v3546 = vmul.f32 %v3522, %v3524
        %v3547 = vadd.f32 %v3497, %v3545
        %v3548 = vadd.f32 %v3498, %v3546
        %v3549 = vadd.f32 %v3499, %v3519
        %v3550 = vadd.f32 %v3500, %v3520
        %v3551 = vadd.f32 %v3501, %v3521
        %v3552 = vadd.f32 %v3502, %v3522
        %v3553 = vadd.f32 %v3503, %v3523
        %v3554 = vadd.f32 %v3504, %v3524
        %v3555 = vld [vmem:[#allocation2 + $0x7] sm:$0xff]
        %v3556 = vld [vmem:[#allocation2 + $0xf] sm:$0xff]
        %v3557 = vld [vmem:[%s172 + $0x7] sm:$0xff]
        %v3558 = vld [vmem:[%s172 + $0xf] sm:$0xff]
        %v3559 = vld [vmem:[%s179 + $0x7] sm:$0xff]
        %v3560 = vld [vmem:[%s179 + $0xf] sm:$0xff]
        %v3561 = vsub.f32 %v3559, %v192
        %v3562 = vsub.f32 %v3560, %v194
        %v3563 = vmul.f32 %v3561, %v202
        %v3564 = vmul.f32 %v3562, %v204
        %v3565 = vand.u32 2147483647, %v3563
        %v3566 = vand.u32 2147483647, %v3564
        %vm3567 = vcmp.gt.f32.partialorder %v3565, 0.15
        %vm3568 = vcmp.gt.f32.partialorder %v3566, 0.15
        %v3569 = vsel %vm3567, 0.0, %v3555
        %v3570 = vsel %vm3568, 0.0, %v3556
        %v3571 = vsel %vm3567, 0.0, %v3557
        %v3572 = vsel %vm3568, 0.0, %v3558
        %v3573 = vsel %vm3567, 0.0, %v3559
        %v3574 = vsel %vm3568, 0.0, %v3560
        %v3575 = vmul.f32 %v3569, %v3569
        %v3576 = vmul.f32 %v3570, %v3570
        %v3577 = vadd.f32 %v3527, %v3575
        %v3578 = vadd.f32 %v3528, %v3576
        %v3579 = vmul.f32 %v3571, %v3571
        %v3580 = vmul.f32 %v3572, %v3572
        %v3581 = vadd.f32 %v3531, %v3579
        %v3582 = vadd.f32 %v3532, %v3580
        %v3583 = vmul.f32 %v3573, %v3573
        %v3584 = vmul.f32 %v3574, %v3574
        %v3585 = vadd.f32 %v3535, %v3583
        %v3586 = vadd.f32 %v3536, %v3584
        %v3587 = vmul.f32 %v3569, %v3571
        %v3588 = vmul.f32 %v3570, %v3572
        %v3589 = vadd.f32 %v3539, %v3587
        %v3590 = vadd.f32 %v3540, %v3588
        %v3591 = vmul.f32 %v3569, %v3573
        %v3592 = vmul.f32 %v3570, %v3574
        %v3593 = vadd.f32 %v3543, %v3591
        %v3594 = vadd.f32 %v3544, %v3592
        %v3595 = vmul.f32 %v3571, %v3573
        %v3596 = vmul.f32 %v3572, %v3574
        %v3597 = vadd.f32 %v3547, %v3595
        %v3598 = vadd.f32 %v3548, %v3596
        %v3599 = vadd.f32 %v3549, %v3569
        %v3600 = vadd.f32 %v3550, %v3570
        %v3601 = vadd.f32 %v3551, %v3571
        %v3602 = vadd.f32 %v3552, %v3572
        %v3603 = vadd.f32 %v3553, %v3573
        %v3604 = vadd.f32 %v3554, %v3574
        %v3605 = vld [vmem:[#allocation2 + $0x10] sm:$0xff]
        %v3606 = vld [vmem:[%s172 + $0x10] sm:$0xff]
        %v3607 = vld [vmem:[%s179 + $0x10] sm:$0xff]
        %v3608 = vsub.f32 %v3210, %v192
        %v3609 = vsub.f32 %v3607, %v194
        %v3610 = vmul.f32 %v3608, %v202
        %v3611 = vmul.f32 %v3609, %v204
        %v3612 = vand.u32 2147483647, %v3610
        %v3613 = vand.u32 2147483647, %v3611
        %vm3614 = vcmp.gt.f32.partialorder %v3612, 0.15
        %vm3615 = vcmp.gt.f32.partialorder %v3613, 0.15
        %v3616 = vsel %vm3614, 0.0, %v3206
        %v3617 = vsel %vm3615, 0.0, %v3605
        %v3618 = vsel %vm3614, 0.0, %v3208
        %v3619 = vsel %vm3615, 0.0, %v3606
        %v3620 = vsel %vm3614, 0.0, %v3210
        %v3621 = vsel %vm3615, 0.0, %v3607
        %v3622 = vmul.f32 %v3616, %v3616
        %v3623 = vmul.f32 %v3617, %v3617
        %v3624 = vadd.f32 %v3577, %v3622
        %v3625 = vadd.f32 %v3578, %v3623
        %v3626 = vmul.f32 %v3618, %v3618
        %v3627 = vmul.f32 %v3619, %v3619
        %v3628 = vadd.f32 %v3581, %v3626
        %v3629 = vadd.f32 %v3582, %v3627
        %v3630 = vmul.f32 %v3620, %v3620
        %v3631 = vmul.f32 %v3621, %v3621
        %v3632 = vadd.f32 %v3585, %v3630
        %v3633 = vadd.f32 %v3586, %v3631
        %v3634 = vmul.f32 %v3616, %v3618
        %v3635 = vmul.f32 %v3617, %v3619
        %v3636 = vadd.f32 %v3589, %v3634
        %v3637 = vadd.f32 %v3590, %v3635
        %v3638 = vmul.f32 %v3616, %v3620
        %v3639 = vmul.f32 %v3617, %v3621
        %v3640 = vadd.f32 %v3593, %v3638
        %v3641 = vadd.f32 %v3594, %v3639
        %v3642 = vmul.f32 %v3618, %v3620
        %v3643 = vmul.f32 %v3619, %v3621
        %v3644 = vadd.f32 %v3597, %v3642
        %v3645 = vadd.f32 %v3598, %v3643
        %v3646 = vadd.f32 %v3599, %v3616
        %v3647 = vadd.f32 %v3600, %v3617
        %v3648 = vadd.f32 %v3601, %v3618
        %v3649 = vadd.f32 %v3602, %v3619
        %v3650 = vadd.f32 %v3603, %v3620
        %v3651 = vadd.f32 %v3604, %v3621
        %v3652 = vld [vmem:[%s134] sm:$0xff]
        %v3653 = vld [vmem:[%s134 + $0x8] sm:$0xff]
        %v3654 = vld [vmem:[%s134 + $0x10] sm:$0xff]
        %3658 = vrot.lane.b32.xlu0 %v3652, 121
        %v3659 = vpop.permute.xlu0 %3658
        %3660 = vrot.lane.b32.xlu0 %v3653, 121
        %v3661 = vpop.permute.xlu0 %3660
        %3662 = vrot.lane.b32.xlu0 %v3654, 121
        %v3663 = vpop.permute.xlu0 %3662
        %3667 = vst.msk [vmem:[#allocation2] sm:$0xff] %vm164, %v3659
        %3668 = vst.msk [vmem:[#allocation2 + $0x8] sm:$0xff] %vm164, %v3661
        %3669 = vst.msk [vmem:[#allocation2 + $0x10] sm:$0xff] %vm164, %v3663
        %v3670 = vld [vmem:[%s168] sm:$0xff]
        %v3671 = vld [vmem:[%s168 + $0x8] sm:$0xff]
        %v3672 = vld [vmem:[%s168 + $0x10] sm:$0xff]
        %3676 = vrot.lane.b32.xlu0 %v3670, 121
        %v3677 = vpop.permute.xlu0 %3676
        %3678 = vrot.lane.b32.xlu0 %v3671, 121
        %v3679 = vpop.permute.xlu0 %3678
        %3680 = vrot.lane.b32.xlu0 %v3672, 121
        %v3681 = vpop.permute.xlu0 %3680
        %3685 = vst.msk [vmem:[%s172] sm:$0xff] %vm164, %v3677
        %3686 = vst.msk [vmem:[%s172 + $0x8] sm:$0xff] %vm164, %v3679
        %3687 = vst.msk [vmem:[%s172 + $0x10] sm:$0xff] %vm164, %v3681
        %v3688 = vld [vmem:[%s154] sm:$0xff]
        %v3689 = vld [vmem:[%s154 + $0x8] sm:$0xff]
        %v3690 = vld [vmem:[%s154 + $0x10] sm:$0xff]
        %3694 = vrot.lane.b32.xlu0 %v3688, 121
        %v3695 = vpop.permute.xlu0 %3694
        %3696 = vrot.lane.b32.xlu0 %v3689, 121
        %v3697 = vpop.permute.xlu0 %3696
        %3698 = vrot.lane.b32.xlu0 %v3690, 121
        %v3699 = vpop.permute.xlu0 %3698
        %3703 = vst.msk [vmem:[%s179] sm:$0xff] %vm164, %v3695
        %3704 = vst.msk [vmem:[%s179 + $0x8] sm:$0xff] %vm164, %v3697
        %3705 = vst.msk [vmem:[%s179 + $0x10] sm:$0xff] %vm164, %v3699
        %v3706 = vld [vmem:[#allocation2] sm:$0xff]
        %v3707 = vld [vmem:[#allocation2 + $0x8] sm:$0xff]
        %v3708 = vld [vmem:[%s172] sm:$0xff]
        %v3709 = vld [vmem:[%s172 + $0x8] sm:$0xff]
        %v3710 = vld [vmem:[%s179] sm:$0xff]
        %v3711 = vld [vmem:[%s179 + $0x8] sm:$0xff]
        %v3712 = vsub.f32 %v3710, %v192
        %v3713 = vsub.f32 %v3711, %v194
        %v3714 = vmul.f32 %v3712, %v202
        %v3715 = vmul.f32 %v3713, %v204
        %v3716 = vand.u32 2147483647, %v3714
        %v3717 = vand.u32 2147483647, %v3715
        %vm3718 = vcmp.gt.f32.partialorder %v3716, 0.15
        %vm3719 = vcmp.gt.f32.partialorder %v3717, 0.15
        %v3720 = vsel %vm3718, 0.0, %v3706
        %v3721 = vsel %vm3719, 0.0, %v3707
        %v3722 = vsel %vm3718, 0.0, %v3708
        %v3723 = vsel %vm3719, 0.0, %v3709
        %v3724 = vsel %vm3718, 0.0, %v3710
        %v3725 = vsel %vm3719, 0.0, %v3711
        %v3726 = vmul.f32 %v3720, %v3720
        %v3727 = vmul.f32 %v3721, %v3721
        %v3728 = vadd.f32 %v3624, %v3726
        %v3729 = vadd.f32 %v3625, %v3727
        %v3730 = vmul.f32 %v3722, %v3722
        %v3731 = vmul.f32 %v3723, %v3723
        %v3732 = vadd.f32 %v3628, %v3730
        %v3733 = vadd.f32 %v3629, %v3731
        %v3734 = vmul.f32 %v3724, %v3724
        %v3735 = vmul.f32 %v3725, %v3725
        %v3736 = vadd.f32 %v3632, %v3734
        %v3737 = vadd.f32 %v3633, %v3735
        %v3738 = vmul.f32 %v3720, %v3722
        %v3739 = vmul.f32 %v3721, %v3723
        %v3740 = vadd.f32 %v3636, %v3738
        %v3741 = vadd.f32 %v3637, %v3739
        %v3742 = vmul.f32 %v3720, %v3724
        %v3743 = vmul.f32 %v3721, %v3725
        %v3744 = vadd.f32 %v3640, %v3742
        %v3745 = vadd.f32 %v3641, %v3743
        %v3746 = vmul.f32 %v3722, %v3724
        %v3747 = vmul.f32 %v3723, %v3725
        %v3748 = vadd.f32 %v3644, %v3746
        %v3749 = vadd.f32 %v3645, %v3747
        %v3750 = vadd.f32 %v3646, %v3720
        %v3751 = vadd.f32 %v3647, %v3721
        %v3752 = vadd.f32 %v3648, %v3722
        %v3753 = vadd.f32 %v3649, %v3723
        %v3754 = vadd.f32 %v3650, %v3724
        %v3755 = vadd.f32 %v3651, %v3725
        %v3756 = vld [vmem:[#allocation2 + $0x1] sm:$0xff]
        %v3757 = vld [vmem:[#allocation2 + $0x9] sm:$0xff]
        %v3758 = vld [vmem:[%s172 + $0x1] sm:$0xff]
        %v3759 = vld [vmem:[%s172 + $0x9] sm:$0xff]
        %v3760 = vld [vmem:[%s179 + $0x1] sm:$0xff]
        %v3761 = vld [vmem:[%s179 + $0x9] sm:$0xff]
        %v3762 = vsub.f32 %v3760, %v192
        %v3763 = vsub.f32 %v3761, %v194
        %v3764 = vmul.f32 %v3762, %v202
        %v3765 = vmul.f32 %v3763, %v204
        %v3766 = vand.u32 2147483647, %v3764
        %v3767 = vand.u32 2147483647, %v3765
        %vm3768 = vcmp.gt.f32.partialorder %v3766, 0.15
        %vm3769 = vcmp.gt.f32.partialorder %v3767, 0.15
        %v3770 = vsel %vm3768, 0.0, %v3756
        %v3771 = vsel %vm3769, 0.0, %v3757
        %v3772 = vsel %vm3768, 0.0, %v3758
        %v3773 = vsel %vm3769, 0.0, %v3759
        %v3774 = vsel %vm3768, 0.0, %v3760
        %v3775 = vsel %vm3769, 0.0, %v3761
        %v3776 = vmul.f32 %v3770, %v3770
        %v3777 = vmul.f32 %v3771, %v3771
        %v3778 = vadd.f32 %v3728, %v3776
        %v3779 = vadd.f32 %v3729, %v3777
        %v3780 = vmul.f32 %v3772, %v3772
        %v3781 = vmul.f32 %v3773, %v3773
        %v3782 = vadd.f32 %v3732, %v3780
        %v3783 = vadd.f32 %v3733, %v3781
        %v3784 = vmul.f32 %v3774, %v3774
        %v3785 = vmul.f32 %v3775, %v3775
        %v3786 = vadd.f32 %v3736, %v3784
        %v3787 = vadd.f32 %v3737, %v3785
        %v3788 = vmul.f32 %v3770, %v3772
        %v3789 = vmul.f32 %v3771, %v3773
        %v3790 = vadd.f32 %v3740, %v3788
        %v3791 = vadd.f32 %v3741, %v3789
        %v3792 = vmul.f32 %v3770, %v3774
        %v3793 = vmul.f32 %v3771, %v3775
        %v3794 = vadd.f32 %v3744, %v3792
        %v3795 = vadd.f32 %v3745, %v3793
        %v3796 = vmul.f32 %v3772, %v3774
        %v3797 = vmul.f32 %v3773, %v3775
        %v3798 = vadd.f32 %v3748, %v3796
        %v3799 = vadd.f32 %v3749, %v3797
        %v3800 = vadd.f32 %v3750, %v3770
        %v3801 = vadd.f32 %v3751, %v3771
        %v3802 = vadd.f32 %v3752, %v3772
        %v3803 = vadd.f32 %v3753, %v3773
        %v3804 = vadd.f32 %v3754, %v3774
        %v3805 = vadd.f32 %v3755, %v3775
        %v3806 = vld [vmem:[#allocation2 + $0x2] sm:$0xff]
        %v3807 = vld [vmem:[#allocation2 + $0xa] sm:$0xff]
        %v3808 = vld [vmem:[%s172 + $0x2] sm:$0xff]
        %v3809 = vld [vmem:[%s172 + $0xa] sm:$0xff]
        %v3810 = vld [vmem:[%s179 + $0x2] sm:$0xff]
        %v3811 = vld [vmem:[%s179 + $0xa] sm:$0xff]
        %v3812 = vsub.f32 %v3810, %v192
        %v3813 = vsub.f32 %v3811, %v194
        %v3814 = vmul.f32 %v3812, %v202
        %v3815 = vmul.f32 %v3813, %v204
        %v3816 = vand.u32 2147483647, %v3814
        %v3817 = vand.u32 2147483647, %v3815
        %vm3818 = vcmp.gt.f32.partialorder %v3816, 0.15
        %vm3819 = vcmp.gt.f32.partialorder %v3817, 0.15
        %v3820 = vsel %vm3818, 0.0, %v3806
        %v3821 = vsel %vm3819, 0.0, %v3807
        %v3822 = vsel %vm3818, 0.0, %v3808
        %v3823 = vsel %vm3819, 0.0, %v3809
        %v3824 = vsel %vm3818, 0.0, %v3810
        %v3825 = vsel %vm3819, 0.0, %v3811
        %v3826 = vmul.f32 %v3820, %v3820
        %v3827 = vmul.f32 %v3821, %v3821
        %v3828 = vadd.f32 %v3778, %v3826
        %v3829 = vadd.f32 %v3779, %v3827
        %v3830 = vmul.f32 %v3822, %v3822
        %v3831 = vmul.f32 %v3823, %v3823
        %v3832 = vadd.f32 %v3782, %v3830
        %v3833 = vadd.f32 %v3783, %v3831
        %v3834 = vmul.f32 %v3824, %v3824
        %v3835 = vmul.f32 %v3825, %v3825
        %v3836 = vadd.f32 %v3786, %v3834
        %v3837 = vadd.f32 %v3787, %v3835
        %v3838 = vmul.f32 %v3820, %v3822
        %v3839 = vmul.f32 %v3821, %v3823
        %v3840 = vadd.f32 %v3790, %v3838
        %v3841 = vadd.f32 %v3791, %v3839
        %v3842 = vmul.f32 %v3820, %v3824
        %v3843 = vmul.f32 %v3821, %v3825
        %v3844 = vadd.f32 %v3794, %v3842
        %v3845 = vadd.f32 %v3795, %v3843
        %v3846 = vmul.f32 %v3822, %v3824
        %v3847 = vmul.f32 %v3823, %v3825
        %v3848 = vadd.f32 %v3798, %v3846
        %v3849 = vadd.f32 %v3799, %v3847
        %v3850 = vadd.f32 %v3800, %v3820
        %v3851 = vadd.f32 %v3801, %v3821
        %v3852 = vadd.f32 %v3802, %v3822
        %v3853 = vadd.f32 %v3803, %v3823
        %v3854 = vadd.f32 %v3804, %v3824
        %v3855 = vadd.f32 %v3805, %v3825
        %v3856 = vld [vmem:[#allocation2 + $0x3] sm:$0xff]
        %v3857 = vld [vmem:[#allocation2 + $0xb] sm:$0xff]
        %v3858 = vld [vmem:[%s172 + $0x3] sm:$0xff]
        %v3859 = vld [vmem:[%s172 + $0xb] sm:$0xff]
        %v3860 = vld [vmem:[%s179 + $0x3] sm:$0xff]
        %v3861 = vld [vmem:[%s179 + $0xb] sm:$0xff]
        %v3862 = vsub.f32 %v3860, %v192
        %v3863 = vsub.f32 %v3861, %v194
        %v3864 = vmul.f32 %v3862, %v202
        %v3865 = vmul.f32 %v3863, %v204
        %v3866 = vand.u32 2147483647, %v3864
        %v3867 = vand.u32 2147483647, %v3865
        %vm3868 = vcmp.gt.f32.partialorder %v3866, 0.15
        %vm3869 = vcmp.gt.f32.partialorder %v3867, 0.15
        %v3870 = vsel %vm3868, 0.0, %v3856
        %v3871 = vsel %vm3869, 0.0, %v3857
        %v3872 = vsel %vm3868, 0.0, %v3858
        %v3873 = vsel %vm3869, 0.0, %v3859
        %v3874 = vsel %vm3868, 0.0, %v3860
        %v3875 = vsel %vm3869, 0.0, %v3861
        %v3876 = vmul.f32 %v3870, %v3870
        %v3877 = vmul.f32 %v3871, %v3871
        %v3878 = vadd.f32 %v3828, %v3876
        %v3879 = vadd.f32 %v3829, %v3877
        %v3880 = vmul.f32 %v3872, %v3872
        %v3881 = vmul.f32 %v3873, %v3873
        %v3882 = vadd.f32 %v3832, %v3880
        %v3883 = vadd.f32 %v3833, %v3881
        %v3884 = vmul.f32 %v3874, %v3874
        %v3885 = vmul.f32 %v3875, %v3875
        %v3886 = vadd.f32 %v3836, %v3884
        %v3887 = vadd.f32 %v3837, %v3885
        %v3888 = vmul.f32 %v3870, %v3872
        %v3889 = vmul.f32 %v3871, %v3873
        %v3890 = vadd.f32 %v3840, %v3888
        %v3891 = vadd.f32 %v3841, %v3889
        %v3892 = vmul.f32 %v3870, %v3874
        %v3893 = vmul.f32 %v3871, %v3875
        %v3894 = vadd.f32 %v3844, %v3892
        %v3895 = vadd.f32 %v3845, %v3893
        %v3896 = vmul.f32 %v3872, %v3874
        %v3897 = vmul.f32 %v3873, %v3875
        %v3898 = vadd.f32 %v3848, %v3896
        %v3899 = vadd.f32 %v3849, %v3897
        %v3900 = vadd.f32 %v3850, %v3870
        %v3901 = vadd.f32 %v3851, %v3871
        %v3902 = vadd.f32 %v3852, %v3872
        %v3903 = vadd.f32 %v3853, %v3873
        %v3904 = vadd.f32 %v3854, %v3874
        %v3905 = vadd.f32 %v3855, %v3875
        %v3906 = vld [vmem:[#allocation2 + $0x4] sm:$0xff]
        %v3907 = vld [vmem:[#allocation2 + $0xc] sm:$0xff]
        %v3908 = vld [vmem:[%s172 + $0x4] sm:$0xff]
        %v3909 = vld [vmem:[%s172 + $0xc] sm:$0xff]
        %v3910 = vld [vmem:[%s179 + $0x4] sm:$0xff]
        %v3911 = vld [vmem:[%s179 + $0xc] sm:$0xff]
        %v3912 = vsub.f32 %v3910, %v192
        %v3913 = vsub.f32 %v3911, %v194
        %v3914 = vmul.f32 %v3912, %v202
        %v3915 = vmul.f32 %v3913, %v204
        %v3916 = vand.u32 2147483647, %v3914
        %v3917 = vand.u32 2147483647, %v3915
        %vm3918 = vcmp.gt.f32.partialorder %v3916, 0.15
        %vm3919 = vcmp.gt.f32.partialorder %v3917, 0.15
        %v3920 = vsel %vm3918, 0.0, %v3906
        %v3921 = vsel %vm3919, 0.0, %v3907
        %v3922 = vsel %vm3918, 0.0, %v3908
        %v3923 = vsel %vm3919, 0.0, %v3909
        %v3924 = vsel %vm3918, 0.0, %v3910
        %v3925 = vsel %vm3919, 0.0, %v3911
        %v3926 = vmul.f32 %v3920, %v3920
        %v3927 = vmul.f32 %v3921, %v3921
        %v3928 = vadd.f32 %v3878, %v3926
        %v3929 = vadd.f32 %v3879, %v3927
        %v3930 = vmul.f32 %v3922, %v3922
        %v3931 = vmul.f32 %v3923, %v3923
        %v3932 = vadd.f32 %v3882, %v3930
        %v3933 = vadd.f32 %v3883, %v3931
        %v3934 = vmul.f32 %v3924, %v3924
        %v3935 = vmul.f32 %v3925, %v3925
        %v3936 = vadd.f32 %v3886, %v3934
        %v3937 = vadd.f32 %v3887, %v3935
        %v3938 = vmul.f32 %v3920, %v3922
        %v3939 = vmul.f32 %v3921, %v3923
        %v3940 = vadd.f32 %v3890, %v3938
        %v3941 = vadd.f32 %v3891, %v3939
        %v3942 = vmul.f32 %v3920, %v3924
        %v3943 = vmul.f32 %v3921, %v3925
        %v3944 = vadd.f32 %v3894, %v3942
        %v3945 = vadd.f32 %v3895, %v3943
        %v3946 = vmul.f32 %v3922, %v3924
        %v3947 = vmul.f32 %v3923, %v3925
        %v3948 = vadd.f32 %v3898, %v3946
        %v3949 = vadd.f32 %v3899, %v3947
        %v3950 = vadd.f32 %v3900, %v3920
        %v3951 = vadd.f32 %v3901, %v3921
        %v3952 = vadd.f32 %v3902, %v3922
        %v3953 = vadd.f32 %v3903, %v3923
        %v3954 = vadd.f32 %v3904, %v3924
        %v3955 = vadd.f32 %v3905, %v3925
        %v3956 = vld [vmem:[#allocation2 + $0x5] sm:$0xff]
        %v3957 = vld [vmem:[#allocation2 + $0xd] sm:$0xff]
        %v3958 = vld [vmem:[%s172 + $0x5] sm:$0xff]
        %v3959 = vld [vmem:[%s172 + $0xd] sm:$0xff]
        %v3960 = vld [vmem:[%s179 + $0x5] sm:$0xff]
        %v3961 = vld [vmem:[%s179 + $0xd] sm:$0xff]
        %v3962 = vsub.f32 %v3960, %v192
        %v3963 = vsub.f32 %v3961, %v194
        %v3964 = vmul.f32 %v3962, %v202
        %v3965 = vmul.f32 %v3963, %v204
        %v3966 = vand.u32 2147483647, %v3964
        %v3967 = vand.u32 2147483647, %v3965
        %vm3968 = vcmp.gt.f32.partialorder %v3966, 0.15
        %vm3969 = vcmp.gt.f32.partialorder %v3967, 0.15
        %v3970 = vsel %vm3968, 0.0, %v3956
        %v3971 = vsel %vm3969, 0.0, %v3957
        %v3972 = vsel %vm3968, 0.0, %v3958
        %v3973 = vsel %vm3969, 0.0, %v3959
        %v3974 = vsel %vm3968, 0.0, %v3960
        %v3975 = vsel %vm3969, 0.0, %v3961
        %v3976 = vmul.f32 %v3970, %v3970
        %v3977 = vmul.f32 %v3971, %v3971
        %v3978 = vadd.f32 %v3928, %v3976
        %v3979 = vadd.f32 %v3929, %v3977
        %v3980 = vmul.f32 %v3972, %v3972
        %v3981 = vmul.f32 %v3973, %v3973
        %v3982 = vadd.f32 %v3932, %v3980
        %v3983 = vadd.f32 %v3933, %v3981
        %v3984 = vmul.f32 %v3974, %v3974
        %v3985 = vmul.f32 %v3975, %v3975
        %v3986 = vadd.f32 %v3936, %v3984
        %v3987 = vadd.f32 %v3937, %v3985
        %v3988 = vmul.f32 %v3970, %v3972
        %v3989 = vmul.f32 %v3971, %v3973
        %v3990 = vadd.f32 %v3940, %v3988
        %v3991 = vadd.f32 %v3941, %v3989
        %v3992 = vmul.f32 %v3970, %v3974
        %v3993 = vmul.f32 %v3971, %v3975
        %v3994 = vadd.f32 %v3944, %v3992
        %v3995 = vadd.f32 %v3945, %v3993
        %v3996 = vmul.f32 %v3972, %v3974
        %v3997 = vmul.f32 %v3973, %v3975
        %v3998 = vadd.f32 %v3948, %v3996
        %v3999 = vadd.f32 %v3949, %v3997
        %v4000 = vadd.f32 %v3950, %v3970
        %v4001 = vadd.f32 %v3951, %v3971
        %v4002 = vadd.f32 %v3952, %v3972
        %v4003 = vadd.f32 %v3953, %v3973
        %v4004 = vadd.f32 %v3954, %v3974
        %v4005 = vadd.f32 %v3955, %v3975
        %v4006 = vld [vmem:[#allocation2 + $0x6] sm:$0xff]
        %v4007 = vld [vmem:[#allocation2 + $0xe] sm:$0xff]
        %v4008 = vld [vmem:[%s172 + $0x6] sm:$0xff]
        %v4009 = vld [vmem:[%s172 + $0xe] sm:$0xff]
        %v4010 = vld [vmem:[%s179 + $0x6] sm:$0xff]
        %v4011 = vld [vmem:[%s179 + $0xe] sm:$0xff]
        %v4012 = vsub.f32 %v4010, %v192
        %v4013 = vsub.f32 %v4011, %v194
        %v4014 = vmul.f32 %v4012, %v202
        %v4015 = vmul.f32 %v4013, %v204
        %v4016 = vand.u32 2147483647, %v4014
        %v4017 = vand.u32 2147483647, %v4015
        %vm4018 = vcmp.gt.f32.partialorder %v4016, 0.15
        %vm4019 = vcmp.gt.f32.partialorder %v4017, 0.15
        %v4020 = vsel %vm4018, 0.0, %v4006
        %v4021 = vsel %vm4019, 0.0, %v4007
        %v4022 = vsel %vm4018, 0.0, %v4008
        %v4023 = vsel %vm4019, 0.0, %v4009
        %v4024 = vsel %vm4018, 0.0, %v4010
        %v4025 = vsel %vm4019, 0.0, %v4011
        %v4026 = vmul.f32 %v4020, %v4020
        %v4027 = vmul.f32 %v4021, %v4021
        %v4028 = vadd.f32 %v3978, %v4026
        %v4029 = vadd.f32 %v3979, %v4027
        %v4030 = vmul.f32 %v4022, %v4022
        %v4031 = vmul.f32 %v4023, %v4023
        %v4032 = vadd.f32 %v3982, %v4030
        %v4033 = vadd.f32 %v3983, %v4031
        %v4034 = vmul.f32 %v4024, %v4024
        %v4035 = vmul.f32 %v4025, %v4025
        %v4036 = vadd.f32 %v3986, %v4034
        %v4037 = vadd.f32 %v3987, %v4035
        %v4038 = vmul.f32 %v4020, %v4022
        %v4039 = vmul.f32 %v4021, %v4023
        %v4040 = vadd.f32 %v3990, %v4038
        %v4041 = vadd.f32 %v3991, %v4039
        %v4042 = vmul.f32 %v4020, %v4024
        %v4043 = vmul.f32 %v4021, %v4025
        %v4044 = vadd.f32 %v3994, %v4042
        %v4045 = vadd.f32 %v3995, %v4043
        %v4046 = vmul.f32 %v4022, %v4024
        %v4047 = vmul.f32 %v4023, %v4025
        %v4048 = vadd.f32 %v3998, %v4046
        %v4049 = vadd.f32 %v3999, %v4047
        %v4050 = vadd.f32 %v4000, %v4020
        %v4051 = vadd.f32 %v4001, %v4021
        %v4052 = vadd.f32 %v4002, %v4022
        %v4053 = vadd.f32 %v4003, %v4023
        %v4054 = vadd.f32 %v4004, %v4024
        %v4055 = vadd.f32 %v4005, %v4025
        %v4056 = vld [vmem:[#allocation2 + $0x7] sm:$0xff]
        %v4057 = vld [vmem:[#allocation2 + $0xf] sm:$0xff]
        %v4058 = vld [vmem:[%s172 + $0x7] sm:$0xff]
        %v4059 = vld [vmem:[%s172 + $0xf] sm:$0xff]
        %v4060 = vld [vmem:[%s179 + $0x7] sm:$0xff]
        %v4061 = vld [vmem:[%s179 + $0xf] sm:$0xff]
        %v4062 = vsub.f32 %v4060, %v192
        %v4063 = vsub.f32 %v4061, %v194
        %v4064 = vmul.f32 %v4062, %v202
        %v4065 = vmul.f32 %v4063, %v204
        %v4066 = vand.u32 2147483647, %v4064
        %v4067 = vand.u32 2147483647, %v4065
        %vm4068 = vcmp.gt.f32.partialorder %v4066, 0.15
        %vm4069 = vcmp.gt.f32.partialorder %v4067, 0.15
        %v4070 = vsel %vm4068, 0.0, %v4056
        %v4071 = vsel %vm4069, 0.0, %v4057
        %v4072 = vsel %vm4068, 0.0, %v4058
        %v4073 = vsel %vm4069, 0.0, %v4059
        %v4074 = vsel %vm4068, 0.0, %v4060
        %v4075 = vsel %vm4069, 0.0, %v4061
        %v4076 = vmul.f32 %v4070, %v4070
        %v4077 = vmul.f32 %v4071, %v4071
        %v4078 = vadd.f32 %v4028, %v4076
        %v4079 = vadd.f32 %v4029, %v4077
        %v4080 = vmul.f32 %v4072, %v4072
        %v4081 = vmul.f32 %v4073, %v4073
        %v4082 = vadd.f32 %v4032, %v4080
        %v4083 = vadd.f32 %v4033, %v4081
        %v4084 = vmul.f32 %v4074, %v4074
        %v4085 = vmul.f32 %v4075, %v4075
        %v4086 = vadd.f32 %v4036, %v4084
        %v4087 = vadd.f32 %v4037, %v4085
        %v4088 = vmul.f32 %v4070, %v4072
        %v4089 = vmul.f32 %v4071, %v4073
        %v4090 = vadd.f32 %v4040, %v4088
        %v4091 = vadd.f32 %v4041, %v4089
        %v4092 = vmul.f32 %v4070, %v4074
        %v4093 = vmul.f32 %v4071, %v4075
        %v4094 = vadd.f32 %v4044, %v4092
        %v4095 = vadd.f32 %v4045, %v4093
        %v4096 = vmul.f32 %v4072, %v4074
        %v4097 = vmul.f32 %v4073, %v4075
        %v4098 = vadd.f32 %v4048, %v4096
        %v4099 = vadd.f32 %v4049, %v4097
        %v4100 = vadd.f32 %v4050, %v4070
        %v4101 = vadd.f32 %v4051, %v4071
        %v4102 = vadd.f32 %v4052, %v4072
        %v4103 = vadd.f32 %v4053, %v4073
        %v4104 = vadd.f32 %v4054, %v4074
        %v4105 = vadd.f32 %v4055, %v4075
        %v4106 = vld [vmem:[#allocation2 + $0x10] sm:$0xff]
        %v4107 = vld [vmem:[%s172 + $0x10] sm:$0xff]
        %v4108 = vld [vmem:[%s179 + $0x10] sm:$0xff]
        %v4109 = vsub.f32 %v3711, %v192
        %v4110 = vsub.f32 %v4108, %v194
        %v4111 = vmul.f32 %v4109, %v202
        %v4112 = vmul.f32 %v4110, %v204
        %v4113 = vand.u32 2147483647, %v4111
        %v4114 = vand.u32 2147483647, %v4112
        %vm4115 = vcmp.gt.f32.partialorder %v4113, 0.15
        %vm4116 = vcmp.gt.f32.partialorder %v4114, 0.15
        %v4117 = vsel %vm4115, 0.0, %v3707
        %v4118 = vsel %vm4116, 0.0, %v4106
        %v4119 = vsel %vm4115, 0.0, %v3709
        %v4120 = vsel %vm4116, 0.0, %v4107
        %v4121 = vsel %vm4115, 0.0, %v3711
        %v4122 = vsel %vm4116, 0.0, %v4108
        %v4123 = vmul.f32 %v4117, %v4117
        %v4124 = vmul.f32 %v4118, %v4118
        %v4125 = vadd.f32 %v4078, %v4123
        %v4126 = vadd.f32 %v4079, %v4124
        %v4127 = vmul.f32 %v4119, %v4119
        %v4128 = vmul.f32 %v4120, %v4120
        %v4129 = vadd.f32 %v4082, %v4127
        %v4130 = vadd.f32 %v4083, %v4128
        %v4131 = vmul.f32 %v4121, %v4121
        %v4132 = vmul.f32 %v4122, %v4122
        %v4133 = vadd.f32 %v4086, %v4131
        %v4134 = vadd.f32 %v4087, %v4132
        %v4135 = vmul.f32 %v4117, %v4119
        %v4136 = vmul.f32 %v4118, %v4120
        %v4137 = vadd.f32 %v4090, %v4135
        %v4138 = vadd.f32 %v4091, %v4136
        %v4139 = vmul.f32 %v4117, %v4121
        %v4140 = vmul.f32 %v4118, %v4122
        %v4141 = vadd.f32 %v4094, %v4139
        %v4142 = vadd.f32 %v4095, %v4140
        %v4143 = vmul.f32 %v4119, %v4121
        %v4144 = vmul.f32 %v4120, %v4122
        %v4145 = vadd.f32 %v4098, %v4143
        %v4146 = vadd.f32 %v4099, %v4144
        %v4147 = vadd.f32 %v4100, %v4117
        %v4148 = vadd.f32 %v4101, %v4118
        %v4149 = vadd.f32 %v4102, %v4119
        %v4150 = vadd.f32 %v4103, %v4120
        %v4151 = vadd.f32 %v4104, %v4121
        %v4152 = vadd.f32 %v4105, %v4122
        %v4153 = vld [vmem:[%s134] sm:$0xff]
        %v4154 = vld [vmem:[%s134 + $0x8] sm:$0xff]
        %v4155 = vld [vmem:[%s134 + $0x10] sm:$0xff]
        %4159 = vrot.lane.b32.xlu0 %v4153, 120
        %v4160 = vpop.permute.xlu0 %4159
        %4161 = vrot.lane.b32.xlu0 %v4154, 120
        %v4162 = vpop.permute.xlu0 %4161
        %4163 = vrot.lane.b32.xlu0 %v4155, 120
        %v4164 = vpop.permute.xlu0 %4163
        %4168 = vst.msk [vmem:[#allocation2] sm:$0xff] %vm164, %v4160
        %4169 = vst.msk [vmem:[#allocation2 + $0x8] sm:$0xff] %vm164, %v4162
        %4170 = vst.msk [vmem:[#allocation2 + $0x10] sm:$0xff] %vm164, %v4164
        %v4171 = vld [vmem:[%s168] sm:$0xff]
        %v4172 = vld [vmem:[%s168 + $0x8] sm:$0xff]
        %v4173 = vld [vmem:[%s168 + $0x10] sm:$0xff]
        %4177 = vrot.lane.b32.xlu0 %v4171, 120
        %v4178 = vpop.permute.xlu0 %4177
        %4179 = vrot.lane.b32.xlu0 %v4172, 120
        %v4180 = vpop.permute.xlu0 %4179
        %4181 = vrot.lane.b32.xlu0 %v4173, 120
        %v4182 = vpop.permute.xlu0 %4181
        %4186 = vst.msk [vmem:[%s172] sm:$0xff] %vm164, %v4178
        %4187 = vst.msk [vmem:[%s172 + $0x8] sm:$0xff] %vm164, %v4180
        %4188 = vst.msk [vmem:[%s172 + $0x10] sm:$0xff] %vm164, %v4182
        %v4189 = vld [vmem:[%s154] sm:$0xff]
        %v4190 = vld [vmem:[%s154 + $0x8] sm:$0xff]
        %v4191 = vld [vmem:[%s154 + $0x10] sm:$0xff]
        %4195 = vrot.lane.b32.xlu0 %v4189, 120
        %v4196 = vpop.permute.xlu0 %4195
        %4197 = vrot.lane.b32.xlu0 %v4190, 120
        %v4198 = vpop.permute.xlu0 %4197
        %4199 = vrot.lane.b32.xlu0 %v4191, 120
        %v4200 = vpop.permute.xlu0 %4199
        %4204 = vst.msk [vmem:[%s179] sm:$0xff] %vm164, %v4196
        %4205 = vst.msk [vmem:[%s179 + $0x8] sm:$0xff] %vm164, %v4198
        %4206 = vst.msk [vmem:[%s179 + $0x10] sm:$0xff] %vm164, %v4200
        %v4207 = vld [vmem:[#allocation2] sm:$0xff]
        %v4208 = vld [vmem:[#allocation2 + $0x8] sm:$0xff]
        %v4209 = vld [vmem:[%s172] sm:$0xff]
        %v4210 = vld [vmem:[%s172 + $0x8] sm:$0xff]
        %v4211 = vld [vmem:[%s179] sm:$0xff]
        %v4212 = vld [vmem:[%s179 + $0x8] sm:$0xff]
        %v4213 = vsub.f32 %v4211, %v192
        %v4214 = vsub.f32 %v4212, %v194
        %v4215 = vmul.f32 %v4213, %v202
        %v4216 = vmul.f32 %v4214, %v204
        %v4217 = vand.u32 2147483647, %v4215
        %v4218 = vand.u32 2147483647, %v4216
        %vm4219 = vcmp.gt.f32.partialorder %v4217, 0.15
        %vm4220 = vcmp.gt.f32.partialorder %v4218, 0.15
        %v4221 = vsel %vm4219, 0.0, %v4207
        %v4222 = vsel %vm4220, 0.0, %v4208
        %v4223 = vsel %vm4219, 0.0, %v4209
        %v4224 = vsel %vm4220, 0.0, %v4210
        %v4225 = vsel %vm4219, 0.0, %v4211
        %v4226 = vsel %vm4220, 0.0, %v4212
        %v4227 = vmul.f32 %v4221, %v4221
        %v4228 = vmul.f32 %v4222, %v4222
        %v4229 = vadd.f32 %v4125, %v4227
        %v4230 = vadd.f32 %v4126, %v4228
        %v4231 = vmul.f32 %v4223, %v4223
        %v4232 = vmul.f32 %v4224, %v4224
        %v4233 = vadd.f32 %v4129, %v4231
        %v4234 = vadd.f32 %v4130, %v4232
        %v4235 = vmul.f32 %v4225, %v4225
        %v4236 = vmul.f32 %v4226, %v4226
        %v4237 = vadd.f32 %v4133, %v4235
        %v4238 = vadd.f32 %v4134, %v4236
        %v4239 = vmul.f32 %v4221, %v4223
        %v4240 = vmul.f32 %v4222, %v4224
        %v4241 = vadd.f32 %v4137, %v4239
        %v4242 = vadd.f32 %v4138, %v4240
        %v4243 = vmul.f32 %v4221, %v4225
        %v4244 = vmul.f32 %v4222, %v4226
        %v4245 = vadd.f32 %v4141, %v4243
        %v4246 = vadd.f32 %v4142, %v4244
        %v4247 = vmul.f32 %v4223, %v4225
        %v4248 = vmul.f32 %v4224, %v4226
        %v4249 = vadd.f32 %v4145, %v4247
        %v4250 = vadd.f32 %v4146, %v4248
        %v4251 = vadd.f32 %v4147, %v4221
        %v4252 = vadd.f32 %v4148, %v4222
        %v4253 = vadd.f32 %v4149, %v4223
        %v4254 = vadd.f32 %v4150, %v4224
        %v4255 = vadd.f32 %v4151, %v4225
        %v4256 = vadd.f32 %v4152, %v4226
        %v4257 = vld [vmem:[#allocation2 + $0x1] sm:$0xff]
        %v4258 = vld [vmem:[#allocation2 + $0x9] sm:$0xff]
        %v4259 = vld [vmem:[%s172 + $0x1] sm:$0xff]
        %v4260 = vld [vmem:[%s172 + $0x9] sm:$0xff]
        %v4261 = vld [vmem:[%s179 + $0x1] sm:$0xff]
        %v4262 = vld [vmem:[%s179 + $0x9] sm:$0xff]
        %v4263 = vsub.f32 %v4261, %v192
        %v4264 = vsub.f32 %v4262, %v194
        %v4265 = vmul.f32 %v4263, %v202
        %v4266 = vmul.f32 %v4264, %v204
        %v4267 = vand.u32 2147483647, %v4265
        %v4268 = vand.u32 2147483647, %v4266
        %vm4269 = vcmp.gt.f32.partialorder %v4267, 0.15
        %vm4270 = vcmp.gt.f32.partialorder %v4268, 0.15
        %v4271 = vsel %vm4269, 0.0, %v4257
        %v4272 = vsel %vm4270, 0.0, %v4258
        %v4273 = vsel %vm4269, 0.0, %v4259
        %v4274 = vsel %vm4270, 0.0, %v4260
        %v4275 = vsel %vm4269, 0.0, %v4261
        %v4276 = vsel %vm4270, 0.0, %v4262
        %v4277 = vmul.f32 %v4271, %v4271
        %v4278 = vmul.f32 %v4272, %v4272
        %v4279 = vadd.f32 %v4229, %v4277
        %v4280 = vadd.f32 %v4230, %v4278
        %v4281 = vmul.f32 %v4273, %v4273
        %v4282 = vmul.f32 %v4274, %v4274
        %v4283 = vadd.f32 %v4233, %v4281
        %v4284 = vadd.f32 %v4234, %v4282
        %v4285 = vmul.f32 %v4275, %v4275
        %v4286 = vmul.f32 %v4276, %v4276
        %v4287 = vadd.f32 %v4237, %v4285
        %v4288 = vadd.f32 %v4238, %v4286
        %v4289 = vmul.f32 %v4271, %v4273
        %v4290 = vmul.f32 %v4272, %v4274
        %v4291 = vadd.f32 %v4241, %v4289
        %v4292 = vadd.f32 %v4242, %v4290
        %v4293 = vmul.f32 %v4271, %v4275
        %v4294 = vmul.f32 %v4272, %v4276
        %v4295 = vadd.f32 %v4245, %v4293
        %v4296 = vadd.f32 %v4246, %v4294
        %v4297 = vmul.f32 %v4273, %v4275
        %v4298 = vmul.f32 %v4274, %v4276
        %v4299 = vadd.f32 %v4249, %v4297
        %v4300 = vadd.f32 %v4250, %v4298
        %v4301 = vadd.f32 %v4251, %v4271
        %v4302 = vadd.f32 %v4252, %v4272
        %v4303 = vadd.f32 %v4253, %v4273
        %v4304 = vadd.f32 %v4254, %v4274
        %v4305 = vadd.f32 %v4255, %v4275
        %v4306 = vadd.f32 %v4256, %v4276
        %v4307 = vld [vmem:[#allocation2 + $0x2] sm:$0xff]
        %v4308 = vld [vmem:[#allocation2 + $0xa] sm:$0xff]
        %v4309 = vld [vmem:[%s172 + $0x2] sm:$0xff]
        %v4310 = vld [vmem:[%s172 + $0xa] sm:$0xff]
        %v4311 = vld [vmem:[%s179 + $0x2] sm:$0xff]
        %v4312 = vld [vmem:[%s179 + $0xa] sm:$0xff]
        %v4313 = vsub.f32 %v4311, %v192
        %v4314 = vsub.f32 %v4312, %v194
        %v4315 = vmul.f32 %v4313, %v202
        %v4316 = vmul.f32 %v4314, %v204
        %v4317 = vand.u32 2147483647, %v4315
        %v4318 = vand.u32 2147483647, %v4316
        %vm4319 = vcmp.gt.f32.partialorder %v4317, 0.15
        %vm4320 = vcmp.gt.f32.partialorder %v4318, 0.15
        %v4321 = vsel %vm4319, 0.0, %v4307
        %v4322 = vsel %vm4320, 0.0, %v4308
        %v4323 = vsel %vm4319, 0.0, %v4309
        %v4324 = vsel %vm4320, 0.0, %v4310
        %v4325 = vsel %vm4319, 0.0, %v4311
        %v4326 = vsel %vm4320, 0.0, %v4312
        %v4327 = vmul.f32 %v4321, %v4321
        %v4328 = vmul.f32 %v4322, %v4322
        %v4329 = vadd.f32 %v4279, %v4327
        %v4330 = vadd.f32 %v4280, %v4328
        %v4331 = vmul.f32 %v4323, %v4323
        %v4332 = vmul.f32 %v4324, %v4324
        %v4333 = vadd.f32 %v4283, %v4331
        %v4334 = vadd.f32 %v4284, %v4332
        %v4335 = vmul.f32 %v4325, %v4325
        %v4336 = vmul.f32 %v4326, %v4326
        %v4337 = vadd.f32 %v4287, %v4335
        %v4338 = vadd.f32 %v4288, %v4336
        %v4339 = vmul.f32 %v4321, %v4323
        %v4340 = vmul.f32 %v4322, %v4324
        %v4341 = vadd.f32 %v4291, %v4339
        %v4342 = vadd.f32 %v4292, %v4340
        %v4343 = vmul.f32 %v4321, %v4325
        %v4344 = vmul.f32 %v4322, %v4326
        %v4345 = vadd.f32 %v4295, %v4343
        %v4346 = vadd.f32 %v4296, %v4344
        %v4347 = vmul.f32 %v4323, %v4325
        %v4348 = vmul.f32 %v4324, %v4326
        %v4349 = vadd.f32 %v4299, %v4347
        %v4350 = vadd.f32 %v4300, %v4348
        %v4351 = vadd.f32 %v4301, %v4321
        %v4352 = vadd.f32 %v4302, %v4322
        %v4353 = vadd.f32 %v4303, %v4323
        %v4354 = vadd.f32 %v4304, %v4324
        %v4355 = vadd.f32 %v4305, %v4325
        %v4356 = vadd.f32 %v4306, %v4326
        %v4357 = vld [vmem:[#allocation2 + $0x3] sm:$0xff]
        %v4358 = vld [vmem:[#allocation2 + $0xb] sm:$0xff]
        %v4359 = vld [vmem:[%s172 + $0x3] sm:$0xff]
        %v4360 = vld [vmem:[%s172 + $0xb] sm:$0xff]
        %v4361 = vld [vmem:[%s179 + $0x3] sm:$0xff]
        %v4362 = vld [vmem:[%s179 + $0xb] sm:$0xff]
        %v4363 = vsub.f32 %v4361, %v192
        %v4364 = vsub.f32 %v4362, %v194
        %v4365 = vmul.f32 %v4363, %v202
        %v4366 = vmul.f32 %v4364, %v204
        %v4367 = vand.u32 2147483647, %v4365
        %v4368 = vand.u32 2147483647, %v4366
        %vm4369 = vcmp.gt.f32.partialorder %v4367, 0.15
        %vm4370 = vcmp.gt.f32.partialorder %v4368, 0.15
        %v4371 = vsel %vm4369, 0.0, %v4357
        %v4372 = vsel %vm4370, 0.0, %v4358
        %v4373 = vsel %vm4369, 0.0, %v4359
        %v4374 = vsel %vm4370, 0.0, %v4360
        %v4375 = vsel %vm4369, 0.0, %v4361
        %v4376 = vsel %vm4370, 0.0, %v4362
        %v4377 = vmul.f32 %v4371, %v4371
        %v4378 = vmul.f32 %v4372, %v4372
        %v4379 = vadd.f32 %v4329, %v4377
        %v4380 = vadd.f32 %v4330, %v4378
        %v4381 = vmul.f32 %v4373, %v4373
        %v4382 = vmul.f32 %v4374, %v4374
        %v4383 = vadd.f32 %v4333, %v4381
        %v4384 = vadd.f32 %v4334, %v4382
        %v4385 = vmul.f32 %v4375, %v4375
        %v4386 = vmul.f32 %v4376, %v4376
        %v4387 = vadd.f32 %v4337, %v4385
        %v4388 = vadd.f32 %v4338, %v4386
        %v4389 = vmul.f32 %v4371, %v4373
        %v4390 = vmul.f32 %v4372, %v4374
        %v4391 = vadd.f32 %v4341, %v4389
        %v4392 = vadd.f32 %v4342, %v4390
        %v4393 = vmul.f32 %v4371, %v4375
        %v4394 = vmul.f32 %v4372, %v4376
        %v4395 = vadd.f32 %v4345, %v4393
        %v4396 = vadd.f32 %v4346, %v4394
        %v4397 = vmul.f32 %v4373, %v4375
        %v4398 = vmul.f32 %v4374, %v4376
        %v4399 = vadd.f32 %v4349, %v4397
        %v4400 = vadd.f32 %v4350, %v4398
        %v4401 = vadd.f32 %v4351, %v4371
        %v4402 = vadd.f32 %v4352, %v4372
        %v4403 = vadd.f32 %v4353, %v4373
        %v4404 = vadd.f32 %v4354, %v4374
        %v4405 = vadd.f32 %v4355, %v4375
        %v4406 = vadd.f32 %v4356, %v4376
        %v4407 = vld [vmem:[#allocation2 + $0x4] sm:$0xff]
        %v4408 = vld [vmem:[#allocation2 + $0xc] sm:$0xff]
        %v4409 = vld [vmem:[%s172 + $0x4] sm:$0xff]
        %v4410 = vld [vmem:[%s172 + $0xc] sm:$0xff]
        %v4411 = vld [vmem:[%s179 + $0x4] sm:$0xff]
        %v4412 = vld [vmem:[%s179 + $0xc] sm:$0xff]
        %v4413 = vsub.f32 %v4411, %v192
        %v4414 = vsub.f32 %v4412, %v194
        %v4415 = vmul.f32 %v4413, %v202
        %v4416 = vmul.f32 %v4414, %v204
        %v4417 = vand.u32 2147483647, %v4415
        %v4418 = vand.u32 2147483647, %v4416
        %vm4419 = vcmp.gt.f32.partialorder %v4417, 0.15
        %vm4420 = vcmp.gt.f32.partialorder %v4418, 0.15
        %v4421 = vsel %vm4419, 0.0, %v4407
        %v4422 = vsel %vm4420, 0.0, %v4408
        %v4423 = vsel %vm4419, 0.0, %v4409
        %v4424 = vsel %vm4420, 0.0, %v4410
        %v4425 = vsel %vm4419, 0.0, %v4411
        %v4426 = vsel %vm4420, 0.0, %v4412
        %v4427 = vmul.f32 %v4421, %v4421
        %v4428 = vmul.f32 %v4422, %v4422
        %v4429 = vadd.f32 %v4379, %v4427
        %v4430 = vadd.f32 %v4380, %v4428
        %v4431 = vmul.f32 %v4423, %v4423
        %v4432 = vmul.f32 %v4424, %v4424
        %v4433 = vadd.f32 %v4383, %v4431
        %v4434 = vadd.f32 %v4384, %v4432
        %v4435 = vmul.f32 %v4425, %v4425
        %v4436 = vmul.f32 %v4426, %v4426
        %v4437 = vadd.f32 %v4387, %v4435
        %v4438 = vadd.f32 %v4388, %v4436
        %v4439 = vmul.f32 %v4421, %v4423
        %v4440 = vmul.f32 %v4422, %v4424
        %v4441 = vadd.f32 %v4391, %v4439
        %v4442 = vadd.f32 %v4392, %v4440
        %v4443 = vmul.f32 %v4421, %v4425
        %v4444 = vmul.f32 %v4422, %v4426
        %v4445 = vadd.f32 %v4395, %v4443
        %v4446 = vadd.f32 %v4396, %v4444
        %v4447 = vmul.f32 %v4423, %v4425
        %v4448 = vmul.f32 %v4424, %v4426
        %v4449 = vadd.f32 %v4399, %v4447
        %v4450 = vadd.f32 %v4400, %v4448
        %v4451 = vadd.f32 %v4401, %v4421
        %v4452 = vadd.f32 %v4402, %v4422
        %v4453 = vadd.f32 %v4403, %v4423
        %v4454 = vadd.f32 %v4404, %v4424
        %v4455 = vadd.f32 %v4405, %v4425
        %v4456 = vadd.f32 %v4406, %v4426
        %v4457 = vld [vmem:[#allocation2 + $0x5] sm:$0xff]
        %v4458 = vld [vmem:[#allocation2 + $0xd] sm:$0xff]
        %v4459 = vld [vmem:[%s172 + $0x5] sm:$0xff]
        %v4460 = vld [vmem:[%s172 + $0xd] sm:$0xff]
        %v4461 = vld [vmem:[%s179 + $0x5] sm:$0xff]
        %v4462 = vld [vmem:[%s179 + $0xd] sm:$0xff]
        %v4463 = vsub.f32 %v4461, %v192
        %v4464 = vsub.f32 %v4462, %v194
        %v4465 = vmul.f32 %v4463, %v202
        %v4466 = vmul.f32 %v4464, %v204
        %v4467 = vand.u32 2147483647, %v4465
        %v4468 = vand.u32 2147483647, %v4466
        %vm4469 = vcmp.gt.f32.partialorder %v4467, 0.15
        %vm4470 = vcmp.gt.f32.partialorder %v4468, 0.15
        %v4471 = vsel %vm4469, 0.0, %v4457
        %v4472 = vsel %vm4470, 0.0, %v4458
        %v4473 = vsel %vm4469, 0.0, %v4459
        %v4474 = vsel %vm4470, 0.0, %v4460
        %v4475 = vsel %vm4469, 0.0, %v4461
        %v4476 = vsel %vm4470, 0.0, %v4462
        %v4477 = vmul.f32 %v4471, %v4471
        %v4478 = vmul.f32 %v4472, %v4472
        %v4479 = vadd.f32 %v4429, %v4477
        %v4480 = vadd.f32 %v4430, %v4478
        %v4481 = vmul.f32 %v4473, %v4473
        %v4482 = vmul.f32 %v4474, %v4474
        %v4483 = vadd.f32 %v4433, %v4481
        %v4484 = vadd.f32 %v4434, %v4482
        %v4485 = vmul.f32 %v4475, %v4475
        %v4486 = vmul.f32 %v4476, %v4476
        %v4487 = vadd.f32 %v4437, %v4485
        %v4488 = vadd.f32 %v4438, %v4486
        %v4489 = vmul.f32 %v4471, %v4473
        %v4490 = vmul.f32 %v4472, %v4474
        %v4491 = vadd.f32 %v4441, %v4489
        %v4492 = vadd.f32 %v4442, %v4490
        %v4493 = vmul.f32 %v4471, %v4475
        %v4494 = vmul.f32 %v4472, %v4476
        %v4495 = vadd.f32 %v4445, %v4493
        %v4496 = vadd.f32 %v4446, %v4494
        %v4497 = vmul.f32 %v4473, %v4475
        %v4498 = vmul.f32 %v4474, %v4476
        %v4499 = vadd.f32 %v4449, %v4497
        %v4500 = vadd.f32 %v4450, %v4498
        %v4501 = vadd.f32 %v4451, %v4471
        %v4502 = vadd.f32 %v4452, %v4472
        %v4503 = vadd.f32 %v4453, %v4473
        %v4504 = vadd.f32 %v4454, %v4474
        %v4505 = vadd.f32 %v4455, %v4475
        %v4506 = vadd.f32 %v4456, %v4476
        %v4507 = vld [vmem:[#allocation2 + $0x6] sm:$0xff]
        %v4508 = vld [vmem:[#allocation2 + $0xe] sm:$0xff]
        %v4509 = vld [vmem:[%s172 + $0x6] sm:$0xff]
        %v4510 = vld [vmem:[%s172 + $0xe] sm:$0xff]
        %v4511 = vld [vmem:[%s179 + $0x6] sm:$0xff]
        %v4512 = vld [vmem:[%s179 + $0xe] sm:$0xff]
        %v4513 = vsub.f32 %v4511, %v192
        %v4514 = vsub.f32 %v4512, %v194
        %v4515 = vmul.f32 %v4513, %v202
        %v4516 = vmul.f32 %v4514, %v204
        %v4517 = vand.u32 2147483647, %v4515
        %v4518 = vand.u32 2147483647, %v4516
        %vm4519 = vcmp.gt.f32.partialorder %v4517, 0.15
        %vm4520 = vcmp.gt.f32.partialorder %v4518, 0.15
        %v4521 = vsel %vm4519, 0.0, %v4507
        %v4522 = vsel %vm4520, 0.0, %v4508
        %v4523 = vsel %vm4519, 0.0, %v4509
        %v4524 = vsel %vm4520, 0.0, %v4510
        %v4525 = vsel %vm4519, 0.0, %v4511
        %v4526 = vsel %vm4520, 0.0, %v4512
        %v4527 = vmul.f32 %v4521, %v4521
        %v4528 = vmul.f32 %v4522, %v4522
        %v4529 = vadd.f32 %v4479, %v4527
        %v4530 = vadd.f32 %v4480, %v4528
        %v4531 = vmul.f32 %v4523, %v4523
        %v4532 = vmul.f32 %v4524, %v4524
        %v4533 = vadd.f32 %v4483, %v4531
        %v4534 = vadd.f32 %v4484, %v4532
        %v4535 = vmul.f32 %v4525, %v4525
        %v4536 = vmul.f32 %v4526, %v4526
        %v4537 = vadd.f32 %v4487, %v4535
        %v4538 = vadd.f32 %v4488, %v4536
        %v4539 = vmul.f32 %v4521, %v4523
        %v4540 = vmul.f32 %v4522, %v4524
        %v4541 = vadd.f32 %v4491, %v4539
        %v4542 = vadd.f32 %v4492, %v4540
        %v4543 = vmul.f32 %v4521, %v4525
        %v4544 = vmul.f32 %v4522, %v4526
        %v4545 = vadd.f32 %v4495, %v4543
        %v4546 = vadd.f32 %v4496, %v4544
        %v4547 = vmul.f32 %v4523, %v4525
        %v4548 = vmul.f32 %v4524, %v4526
        %v4549 = vadd.f32 %v4499, %v4547
        %v4550 = vadd.f32 %v4500, %v4548
        %v4551 = vadd.f32 %v4501, %v4521
        %v4552 = vadd.f32 %v4502, %v4522
        %v4553 = vadd.f32 %v4503, %v4523
        %v4554 = vadd.f32 %v4504, %v4524
        %v4555 = vadd.f32 %v4505, %v4525
        %v4556 = vadd.f32 %v4506, %v4526
        %v4557 = vld [vmem:[#allocation2 + $0x7] sm:$0xff]
        %v4558 = vld [vmem:[#allocation2 + $0xf] sm:$0xff]
        %v4559 = vld [vmem:[%s172 + $0x7] sm:$0xff]
        %v4560 = vld [vmem:[%s172 + $0xf] sm:$0xff]
        %v4561 = vld [vmem:[%s179 + $0x7] sm:$0xff]
        %v4562 = vld [vmem:[%s179 + $0xf] sm:$0xff]
        %v4563 = vsub.f32 %v4561, %v192
        %v4564 = vsub.f32 %v4562, %v194
        %v4565 = vmul.f32 %v4563, %v202
        %v4566 = vmul.f32 %v4564, %v204
        %v4567 = vand.u32 2147483647, %v4565
        %v4568 = vand.u32 2147483647, %v4566
        %vm4569 = vcmp.gt.f32.partialorder %v4567, 0.15
        %vm4570 = vcmp.gt.f32.partialorder %v4568, 0.15
        %v4571 = vsel %vm4569, 0.0, %v4557
        %v4572 = vsel %vm4570, 0.0, %v4558
        %v4573 = vsel %vm4569, 0.0, %v4559
        %v4574 = vsel %vm4570, 0.0, %v4560
        %v4575 = vsel %vm4569, 0.0, %v4561
        %v4576 = vsel %vm4570, 0.0, %v4562
        %v4577 = vmul.f32 %v4571, %v4571
        %v4578 = vmul.f32 %v4572, %v4572
        %v4579 = vadd.f32 %v4529, %v4577
        %v4580 = vadd.f32 %v4530, %v4578
        %v4581 = vmul.f32 %v4573, %v4573
        %v4582 = vmul.f32 %v4574, %v4574
        %v4583 = vadd.f32 %v4533, %v4581
        %v4584 = vadd.f32 %v4534, %v4582
        %v4585 = vmul.f32 %v4575, %v4575
        %v4586 = vmul.f32 %v4576, %v4576
        %v4587 = vadd.f32 %v4537, %v4585
        %v4588 = vadd.f32 %v4538, %v4586
        %v4589 = vmul.f32 %v4571, %v4573
        %v4590 = vmul.f32 %v4572, %v4574
        %v4591 = vadd.f32 %v4541, %v4589
        %v4592 = vadd.f32 %v4542, %v4590
        %v4593 = vmul.f32 %v4571, %v4575
        %v4594 = vmul.f32 %v4572, %v4576
        %v4595 = vadd.f32 %v4545, %v4593
        %v4596 = vadd.f32 %v4546, %v4594
        %v4597 = vmul.f32 %v4573, %v4575
        %v4598 = vmul.f32 %v4574, %v4576
        %v4599 = vadd.f32 %v4549, %v4597
        %v4600 = vadd.f32 %v4550, %v4598
        %v4601 = vadd.f32 %v4551, %v4571
        %v4602 = vadd.f32 %v4552, %v4572
        %v4603 = vadd.f32 %v4553, %v4573
        %v4604 = vadd.f32 %v4554, %v4574
        %v4605 = vadd.f32 %v4555, %v4575
        %v4606 = vadd.f32 %v4556, %v4576
        %v4607 = vld [vmem:[#allocation2 + $0x10] sm:$0xff]
        %v4608 = vld [vmem:[%s172 + $0x10] sm:$0xff]
        %v4609 = vld [vmem:[%s179 + $0x10] sm:$0xff]
        %v4610 = vsub.f32 %v4212, %v192
        %v4611 = vsub.f32 %v4609, %v194
        %v4612 = vmul.f32 %v4610, %v202
        %v4613 = vmul.f32 %v4611, %v204
        %v4614 = vand.u32 2147483647, %v4612
        %v4615 = vand.u32 2147483647, %v4613
        %vm4616 = vcmp.gt.f32.partialorder %v4614, 0.15
        %vm4617 = vcmp.gt.f32.partialorder %v4615, 0.15
        %v4618 = vsel %vm4616, 0.0, %v4208
        %v4619 = vsel %vm4617, 0.0, %v4607
        %v4620 = vsel %vm4616, 0.0, %v4210
        %v4621 = vsel %vm4617, 0.0, %v4608
        %v4622 = vsel %vm4616, 0.0, %v4212
        %v4623 = vsel %vm4617, 0.0, %v4609
        %v4624 = vmul.f32 %v4618, %v4618
        %v4625 = vmul.f32 %v4619, %v4619
        %v4626 = vadd.f32 %v4579, %v4624
        %v4627 = vadd.f32 %v4580, %v4625
        %v4628 = vmul.f32 %v4620, %v4620
        %v4629 = vmul.f32 %v4621, %v4621
        %v4630 = vadd.f32 %v4583, %v4628
        %v4631 = vadd.f32 %v4584, %v4629
        %v4632 = vmul.f32 %v4622, %v4622
        %v4633 = vmul.f32 %v4623, %v4623
        %v4634 = vadd.f32 %v4587, %v4632
        %v4635 = vadd.f32 %v4588, %v4633
        %v4636 = vmul.f32 %v4618, %v4620
        %v4637 = vmul.f32 %v4619, %v4621
        %v4638 = vadd.f32 %v4591, %v4636
        %v4639 = vadd.f32 %v4592, %v4637
        %v4640 = vmul.f32 %v4618, %v4622
        %v4641 = vmul.f32 %v4619, %v4623
        %v4642 = vadd.f32 %v4595, %v4640
        %v4643 = vadd.f32 %v4596, %v4641
        %v4644 = vmul.f32 %v4620, %v4622
        %v4645 = vmul.f32 %v4621, %v4623
        %v4646 = vadd.f32 %v4599, %v4644
        %v4647 = vadd.f32 %v4600, %v4645
        %v4648 = vadd.f32 %v4601, %v4618
        %v4649 = vadd.f32 %v4602, %v4619
        %v4650 = vadd.f32 %v4603, %v4620
        %v4651 = vadd.f32 %v4604, %v4621
        %v4652 = vadd.f32 %v4605, %v4622
        %v4653 = vadd.f32 %v4606, %v4623
        %v4654 = vmul.f32 %v4630, %v4634
        %v4655 = vmul.f32 %v4631, %v4635
        %v4656 = vmul.f32 %v4646, %v4646
        %v4657 = vmul.f32 %v4647, %v4647
        %v4658 = vsub.f32 %v4654, %v4656
        %v4659 = vsub.f32 %v4655, %v4657
        %v4660 = vmul.f32 %v4626, %v4658
        %v4661 = vmul.f32 %v4627, %v4659
        %v4662 = vmul.f32 %v4638, %v4634
        %v4663 = vmul.f32 %v4639, %v4635
        %v4664 = vmul.f32 %v4646, %v4642
        %v4665 = vmul.f32 %v4647, %v4643
        %v4666 = vsub.f32 %v4662, %v4664
        %v4667 = vsub.f32 %v4663, %v4665
        %v4668 = vmul.f32 %v4638, %v4666
        %v4669 = vmul.f32 %v4639, %v4667
        %v4670 = vsub.f32 %v4660, %v4668
        %v4671 = vsub.f32 %v4661, %v4669
        %v4672 = vmul.f32 %v4638, %v4646
        %v4673 = vmul.f32 %v4639, %v4647
        %v4674 = vmul.f32 %v4630, %v4642
        %v4675 = vmul.f32 %v4631, %v4643
        %v4676 = vsub.f32 %v4672, %v4674
        %v4677 = vsub.f32 %v4673, %v4675
        %v4678 = vmul.f32 %v4642, %v4676
        %v4679 = vmul.f32 %v4643, %v4677
        %v4680 = vadd.f32 %v4670, %v4678
        %v4681 = vadd.f32 %v4671, %v4679
        %vm4682 = vcmp.lt.f32.partialorder %v4680, 1e-05
        %vm4683 = vcmp.lt.f32.partialorder %v4681, 1e-05
        %v4684 = vsel %vm4682, 1.0, %v4626
        %v4685 = vsel %vm4683, 1.0, %v4627
        %v4686 = vsel %vm4682, 1.0, %v4630
        %v4687 = vsel %vm4683, 1.0, %v4631
        %v4688 = vsel %vm4682, 1.0, %v4634
        %v4689 = vsel %vm4683, 1.0, %v4635
        %v4690 = vsel %vm4682, 0.0, %v4638
        %v4691 = vsel %vm4683, 0.0, %v4639
        %v4692 = vsel %vm4682, 0.0, %v4642
        %v4693 = vsel %vm4683, 0.0, %v4643
        %v4694 = vsel %vm4682, 0.0, %v4646
        %v4695 = vsel %vm4683, 0.0, %v4647
        %v4696 = vsel %vm4682, 1.0, %v4680
        %v4697 = vsel %vm4683, 1.0, %v4681
        %v4698 = vrcp.pop %v4696
        %v4699 = vmul.f32 1.0, %v4698
        %v4700 = vrcp.pop %v4697
        %v4701 = vmul.f32 1.0, %v4700
        %v4702 = vmul.f32 %v4686, %v4688
        %v4703 = vmul.f32 %v4687, %v4689
        %v4704 = vmul.f32 %v4694, %v4694
        %v4705 = vmul.f32 %v4695, %v4695
        %v4706 = vsub.f32 %v4702, %v4704
        %v4707 = vsub.f32 %v4703, %v4705
        %v4708 = vmul.f32 %v4706, %v4699
        %v4709 = vmul.f32 %v4707, %v4701
        %v4710 = vmul.f32 %v4692, %v4694
        %v4711 = vmul.f32 %v4693, %v4695
        %v4712 = vmul.f32 %v4690, %v4688
        %v4713 = vmul.f32 %v4691, %v4689
        %v4714 = vsub.f32 %v4710, %v4712
        %v4715 = vsub.f32 %v4711, %v4713
        %v4716 = vmul.f32 %v4714, %v4699
        %v4717 = vmul.f32 %v4715, %v4701
        %v4718 = vmul.f32 %v4690, %v4694
        %v4719 = vmul.f32 %v4691, %v4695
        %v4720 = vmul.f32 %v4692, %v4686
        %v4721 = vmul.f32 %v4693, %v4687
        %v4722 = vsub.f32 %v4718, %v4720
        %v4723 = vsub.f32 %v4719, %v4721
        %v4724 = vmul.f32 %v4722, %v4699
        %v4725 = vmul.f32 %v4723, %v4701
        %v4726 = vmul.f32 %v4684, %v4688
        %v4727 = vmul.f32 %v4685, %v4689
        %v4728 = vmul.f32 %v4692, %v4692
        %v4729 = vmul.f32 %v4693, %v4693
        %v4730 = vsub.f32 %v4726, %v4728
        %v4731 = vsub.f32 %v4727, %v4729
        %v4732 = vmul.f32 %v4730, %v4699
        %v4733 = vmul.f32 %v4731, %v4701
        %v4734 = vmul.f32 %v4690, %v4692
        %v4735 = vmul.f32 %v4691, %v4693
        %v4736 = vmul.f32 %v4684, %v4694
        %v4737 = vmul.f32 %v4685, %v4695
        %v4738 = vsub.f32 %v4734, %v4736
        %v4739 = vsub.f32 %v4735, %v4737
        %v4740 = vmul.f32 %v4738, %v4699
        %v4741 = vmul.f32 %v4739, %v4701
        %v4742 = vmul.f32 %v4684, %v4686
        %v4743 = vmul.f32 %v4685, %v4687
        %v4744 = vmul.f32 %v4690, %v4690
        %v4745 = vmul.f32 %v4691, %v4691
        %v4746 = vsub.f32 %v4742, %v4744
        %v4747 = vsub.f32 %v4743, %v4745
        %v4748 = vmul.f32 %v4746, %v4699
        %v4749 = vmul.f32 %v4747, %v4701
        %v4750 = vmul.f32 %v4708, %v4648
        %v4751 = vmul.f32 %v4709, %v4649
        %v4752 = vmul.f32 %v4716, %v4650
        %v4753 = vmul.f32 %v4717, %v4651
        %v4754 = vadd.f32 %v4750, %v4752
        %v4755 = vadd.f32 %v4751, %v4753
        %v4756 = vmul.f32 %v4724, %v4652
        %v4757 = vmul.f32 %v4725, %v4653
        %v4758 = vadd.f32 %v4754, %v4756
        %v4759 = vadd.f32 %v4755, %v4757
        %v4760 = vmul.f32 %v4716, %v4648
        %v4761 = vmul.f32 %v4717, %v4649
        %v4762 = vmul.f32 %v4732, %v4650
        %v4763 = vmul.f32 %v4733, %v4651
        %v4764 = vadd.f32 %v4760, %v4762
        %v4765 = vadd.f32 %v4761, %v4763
        %v4766 = vmul.f32 %v4740, %v4652
        %v4767 = vmul.f32 %v4741, %v4653
        %v4768 = vadd.f32 %v4764, %v4766
        %v4769 = vadd.f32 %v4765, %v4767
        %v4770 = vmul.f32 %v4724, %v4648
        %v4771 = vmul.f32 %v4725, %v4649
        %v4772 = vmul.f32 %v4740, %v4650
        %v4773 = vmul.f32 %v4741, %v4651
        %v4774 = vadd.f32 %v4770, %v4772
        %v4775 = vadd.f32 %v4771, %v4773
        %v4776 = vmul.f32 %v4748, %v4652
        %v4777 = vmul.f32 %v4749, %v4653
        %v4778 = vadd.f32 %v4774, %v4776
        %v4779 = vadd.f32 %v4775, %v4777
        %v4780 = vmul.f32 %v4758, %v4758
        %v4781 = vmul.f32 %v4759, %v4759
        %v4782 = vmul.f32 %v4768, %v4768
        %v4783 = vmul.f32 %v4769, %v4769
        %v4784 = vadd.f32 %v4780, %v4782
        %v4785 = vadd.f32 %v4781, %v4783
        %v4786 = vmul.f32 %v4778, %v4778
        %v4787 = vmul.f32 %v4779, %v4779
        %v4788 = vadd.f32 %v4784, %v4786
        %v4789 = vadd.f32 %v4785, %v4787
        %v4790 = vrsqrt.pop %v4788
        %v4791 = vrsqrt.pop %v4789
        %v4792 = vmul.f32 %v4758, %v4790
        %v4793 = vmul.f32 %v4759, %v4791
        %v4794 = vmul.f32 %v4768, %v4790
        %v4795 = vmul.f32 %v4769, %v4791
        %v4796 = vmul.f32 %v4778, %v4790
        %v4797 = vmul.f32 %v4779, %v4791
        %vm4798 = vcmp.ne.f32.partialorder %v4792, %v4792
        %vm4799 = vcmp.ne.f32.partialorder %v4793, %v4793
        %v4800 = vsel %vm4798, 0.0, %v4792
        %v4801 = vsel %vm4799, 0.0, %v4793
        %vm4802 = vcmp.ne.f32.partialorder %v4794, %v4794
        %vm4803 = vcmp.ne.f32.partialorder %v4795, %v4795
        %v4804 = vsel %vm4802, 0.0, %v4794
        %v4805 = vsel %vm4803, 0.0, %v4795
        %vm4806 = vcmp.ne.f32.partialorder %v4796, %v4796
        %vm4807 = vcmp.ne.f32.partialorder %v4797, %v4797
        %v4808 = vsel %vm4806, 0.0, %v4796
        %v4809 = vsel %vm4807, 0.0, %v4797
        %v4810 = vsub.f32 0.0, %v4800
        %v4811 = vsub.f32 0.0, %v4801
        %4812 = vst.msk [vmem:[%s152] sm:$0xff] %vm164, %v4810
        %4813 = vst.msk [vmem:[%s152 + $0x8] sm:$0xff] %vm164, %v4811
        %v4814 = vsub.f32 0.0, %v4804
        %v4815 = vsub.f32 0.0, %v4805
        %s4816 = scalar_lea.vmem %s152, 16 [#allocation6]
        %4817 = vst.msk [vmem:[%s4816] sm:$0xff] %vm164, %v4814
        %4818 = vst.msk [vmem:[%s4816 + $0x8] sm:$0xff] %vm164, %v4815
        %v4819 = vsub.f32 0.0, %v4808
        %v4820 = vsub.f32 0.0, %v4809
        %s4821 = scalar_lea.vmem %s152, 32 [#allocation6]
        %4822 = vst.msk [vmem:[%s4821] sm:$0xff] %vm164, %v4819
        %4823 = vst.msk [vmem:[%s4821 + $0x8] sm:$0xff] %vm164, %v4820
        %s4824 = sand.u32 %s68, 1
        %s4825 = scalar_lea.sflag [#allocation5], %s4824
        %s4826 = sand.u32 %s68, 1
        %s4827 = smul.addr %s4826, 48
        %s4828 = scalar_lea.vmem [#allocation6], %s4827
        // Predicated region
        $region29: #{tpu_custom_call.1} parent=23 // pred_check
          %p4829 = pneg %p78
        $region30: #{tpu_custom_call.1} parent=23 // pred_check_branch
          %4831 = sbr.rel (%p4829) target = $region32
        $region31: #{tpu_custom_call.1} parent=23 // pred_region
          %s4832 = smul.u32 2, %s23
          %s4834 = ssub.s32 768, 768
          %4835 = vsyncadd %s4825, %s4834
          %s4836 = smul.addr %s22, 6
          %s4837 = sadd.s32 %s4832, %s4836
          %s4838 = smul.addr %s4837, 128
          %s4839 = scalar_lea.hbm %s1, %s4838
          %s4840 = sshll.u32 %s4828, 4
          %s4841 = int_to_ptr.vmem [resolvable:$true] %s4840
          %4846 = dma.vmem_to_hbm [thread:$0]  %s4841, 768, %s4839, %s4825, 128, 128, 8
        $region32: #{tpu_custom_call.1} parent=23 // pred_fallthru
          _
      $region24: #{tpu_custom_call.1} parent=5 // pred_fallthru
        _
      %p4847 = scmp.le.s32.totalorder 2, %s13
      // Predicated region
      $region33: #{tpu_custom_call.1} parent=5 // pred_check
        %p4848 = pneg %p4847
      $region34: #{tpu_custom_call.1} parent=5 // pred_check_branch
        %4850 = sbr.rel (%p4848) target = $region36
      $region35: #{tpu_custom_call.1} parent=5 // pred_region
        %s4851 = ssub.s32 %s13, 2
        // Predicated region
        $region37: #{tpu_custom_call.1} parent=35 // pred_check
          %p4852 = pneg %p84
        $region38: #{tpu_custom_call.1} parent=35 // pred_check_branch
          %4854 = sbr.rel (%p4852) target = $region40
        $region39: #{tpu_custom_call.1} parent=35 // pred_region
          %s4855 = sand.u32 %s69, 1
          %s4856 = scalar_lea.sflag [#allocation5], %s4855
          %s4857 = sand.u32 %s69, 1
          %s4858 = smul.addr %s4857, 48
          %s4859 = scalar_lea.vmem [#allocation6], %s4858
          %4860 = dma.done %s4856, 768
        $region40: #{tpu_custom_call.1} parent=35 // pred_fallthru
          _
      $region36: #{tpu_custom_call.1} parent=5 // pred_fallthru
        _
    $region6: #{tpu_custom_call.1} parent=1 // loop_footer
      %s17 = sadd.s32 1, %s13
    $region7: #{tpu_custom_call.1} parent=1 // loop_footer_branch
      %12 = sbr.rel target = $region3
    $region8: #{tpu_custom_call.1} parent=1 // loop_exit
      _
    %4861 = vsyncpa [#allocation4], 1
    %s4862 = scalar_lea.sflag [#allocation4], 1
    %4863 = vsyncpa %s4862, 1
    %4864 = vsyncpa [#allocation5], 1
    %s4865 = scalar_lea.sflag [#allocation5], 1
    %4866 = vsyncpa %s4865, 1

</llo_original>
